<compile_context>
chip_gen: v6e
topology: v6e:2x2x1
jax: 0.10.0
libtpu: 0.0.40
codegen_flags: <defaults>
</compile_context>

<pallas_src>
import functools
import numpy as np
import jax
import jax.numpy as jnp
from jax import lax
from jax.experimental import pallas as pl
from jax.experimental.pallas import tpu as pltpu


def _fused_head_kernel(x_ref, wstack_ref, bias_ref, wout_ref, bout_ref,
                       o_ref, xpad_ref, *, NB, H, W, C, depth, cout_p):
    """Whole classification head for the NB images of one grid step.

    x_ref:      (NB, H, W, C)      input activations (f32)
    wstack_ref: (depth, 9, C, C)   per-layer per-tap combined depthwise*
                                   pointwise weights, BN scale folded into the
                                   output columns (bf16)
    bias_ref:   (depth, 1, C)      folded BN bias (f32)
    wout_ref:   (9, C, cout_p)     output SeparableConv2d combined weights,
                                   lane-padded to a multiple of 128 (bf16)
    bout_ref:   (1, cout_p)        output conv bias, lane-padded (f32)
    o_ref:      (NB*H*W, cout_p)   sigmoid(logits), lane-dense
    xpad_ref:   (NB, H+2, W+2, C)  zero-padded resident activations (bf16)
    """
    M = NB * H * W

    # Zero only the halo ring; the interior is fully overwritten below.  Done
    # every grid step (cost is O(perimeter)) so correctness does not depend on
    # scratch state when the grid axis is split across TensorCores.
    xpad_ref[:, 0:1, :, :] = jnp.zeros((NB, 1, W + 2, C), jnp.bfloat16)
    xpad_ref[:, H + 1:H + 2, :, :] = jnp.zeros((NB, 1, W + 2, C), jnp.bfloat16)
    xpad_ref[:, :, 0:1, :] = jnp.zeros((NB, H + 2, 1, C), jnp.bfloat16)
    xpad_ref[:, :, W + 1:W + 2, :] = jnp.zeros((NB, H + 2, 1, C), jnp.bfloat16)

    # Interior: activations live in bf16 (the matmul operand dtype anyway).
    xpad_ref[:, 1:H + 1, 1:W + 1, :] = x_ref[...].astype(jnp.bfloat16)

    def tap_patches():
        # 9 shifted (M, C) bf16 patch matrices of the padded activations --
        # im2col without any lane-dim concatenate (each tap = one matmul).
        for dy in range(3):
            for dx in range(3):
                yield (dy * 3 + dx,
                       xpad_ref[:, dy:dy + H, dx:dx + W, :].reshape(M, C))

    def conv3x3(weight_for_tap):
        # Sum over the 9 taps of (M, C) @ (C, O), f32 accumulate on the MXU.
        acc = None
        for t, patch in tap_patches():
            d = jnp.dot(patch, weight_for_tap(t),
                        preferred_element_type=jnp.float32)
            acc = d if acc is None else acc + d
        return acc

    for l in range(depth):                                  # statically unrolled
        y = conv3x3(lambda t, l=l: wstack_ref[l, t]) + bias_ref[l]
        # MemoryEfficientSwish: exp -> EUP; approx reciprocal -> EUP.
        y = y * pl.reciprocal(1.0 + jnp.exp(-y), approx=True)
        xpad_ref[:, 1:H + 1, 1:W + 1, :] = (
            y.reshape(NB, H, W, C).astype(jnp.bfloat16))

    logits = conv3x3(lambda t: wout_ref[t]) + bout_ref[...]
    # Exact sigmoid for the final classification scores (approx-reciprocal
    # error would land directly on confidences near detection thresholds).
    o_ref[...] = (1.0 / (1.0 + jnp.exp(-logits))).astype(o_ref.dtype)


def prepare_head_params(params, in_channels, num_anchors, num_classes):
    """One-time weight preparation (hoisted out of the forward pass).

    Folds depthwise(3x3) * pointwise(1x1) * BN-scale into per-tap (C, O)
    matrices (f32 fold, single bf16 cast at the end) and lane-pads the output
    head to a multiple of 128 so the kernel's stores are unmasked.
    """
    C = in_channels
    depth = len(params["layers"])
    cout = num_anchors * num_classes
    cout_p = ((cout + 127) // 128) * 128

    def combine(dww, pww, scale=None):
        # W[(dy,dx), c, o] = dww[dy,dx,c] * pww[c,o] (* scale[o])
        w = dww[:, :, :, None] * pww[None, None, :, :]          # (3,3,C,O) f32
        if scale is not None:
            w = w * scale[None, None, None, :]
        return w.reshape(9, C, -1)

    wstack = jnp.stack([combine(dww, pww, scale)
                        for dww, pww, scale, _ in params["layers"]])
    bias = jnp.stack([b for _, _, _, b in params["layers"]]
                     ).reshape(depth, 1, C)

    out_dww, out_pww, out_bias = params["out"]
    wout = combine(out_dww, out_pww)                            # (9, C, cout)
    wout = jnp.pad(wout, ((0, 0), (0, 0), (0, cout_p - cout)))
    bout = jnp.pad(out_bias, (0, cout_p - cout)).reshape(1, cout_p)

    return dict(wstack=wstack.astype(jnp.bfloat16),
                bias=bias.astype(jnp.float32),
                wout=wout.astype(jnp.bfloat16),
                bout=bout.astype(jnp.float32))


def classification_model_forward(x_nhwc, wstack, bias, wout, bout, *,
                                 num_anchors, num_classes):
    """Fused Pallas forward.  x_nhwc: (N, H, W, C).  Returns (N, H*W*A, K).

    The PyTorch module is NCHW; inputs are built directly in NHWC so the
    module's permute(0, 2, 3, 1) is a no-op here.
    """
    N, H, W, C = x_nhwc.shape
    depth = int(wstack.shape[0])
    cout_p = int(wout.shape[-1])
    cout = num_anchors * num_classes

    # Fold several images into the matmul M dimension per grid step so small
    # feature maps don't underfill the MXU rows / pay per-step overhead.
    NB = 1
    for d in range(1, N + 1):
        if N % d == 0 and d * H * W <= 512:
            NB = d
    M = NB * H * W

    # Explicit VMEM budget: resident activations + double-buffered blocks +
    # weights + live temporaries, with headroom, capped under v7x's 64 MiB.
    est = (NB * (H + 2) * (W + 2) * C * 2            # bf16 resident activation
           + 2 * NB * H * W * C * 4                  # x block (double-buffered)
           + 2 * M * cout_p * 4                      # out block (double-buffered)
           + 2 * (wstack.size + wout.size) * 2       # bf16 weights (dbl-buffered)
           + 2 * (bias.size + bout.size) * 4
           + 4 * M * max(C, cout_p) * 4)             # live f32 temporaries
    vmem_limit = int(min(max(2 * est, 16 * 2 ** 20), 48 * 2 ** 20))

    kernel = functools.partial(_fused_head_kernel, NB=NB, H=H, W=W, C=C,
                               depth=depth, cout_p=cout_p)

    # TODO(synk): for real EfficientDet levels (spatial 64-128, C up to 288,
    # cout~810) add a row-strip grid axis with a 1-row halo per side so the
    # working set fits v7x's 64 MiB VMEM and both TensorCores get work at N=1.
    # TODO(synk): request pl.Buffered(1) on the grid-invariant weight inputs
    # once single-buffered pipeline_mode is verified on the target toolchain.
    out = pl.pallas_call(
        kernel,
        out_shape=jax.ShapeDtypeStruct((N * H * W, cout_p), jnp.float32),
        grid=(N // NB,),
        in_specs=[
            pl.BlockSpec((NB, H, W, C), lambda n: (n, 0, 0, 0)),
            pl.BlockSpec((depth, 9, C, C), lambda n: (0, 0, 0, 0)),
            pl.BlockSpec((depth, 1, C), lambda n: (0, 0, 0)),
            pl.BlockSpec((9, C, cout_p), lambda n: (0, 0, 0)),
            pl.BlockSpec((1, cout_p), lambda n: (0, 0)),
        ],
        out_specs=pl.BlockSpec((M, cout_p), lambda n: (n, 0)),
        scratch_shapes=[pltpu.VMEM((NB, H + 2, W + 2, C), jnp.bfloat16)],
        compiler_params=pltpu.CompilerParams(
            dimension_semantics=("parallel",),
            vmem_limit_bytes=vmem_limit),
    )(x_nhwc, wstack, bias, wout, bout)

    # Drop the lane padding; final view matches the module:
    # (N*H*W, A*K) -> (N, H*W*A, K).
    return out[:, :cout].reshape(N, H * W * num_anchors, num_classes)


def init_params(key, in_channels, depth, num_anchors, num_classes, eps=1e-5):
    """Deterministic synthetic parameters; BN folded to (scale, bias)."""
    dw_std = 0.3
    pw_std = 1.0 / float(np.sqrt(in_channels))
    layers = []
    for _ in range(depth):
        key, k1, k2, k3, k4, k5 = jax.random.split(key, 6)
        dww = jax.random.normal(k1, (3, 3, in_channels), jnp.float32) * dw_std
        pww = jax.random.normal(k2, (in_channels, in_channels), jnp.float32) * pw_std
        gamma = 1.0 + 0.1 * jax.random.normal(k3, (in_channels,), jnp.float32)
        beta = 0.1 * jax.random.normal(k4, (in_channels,), jnp.float32)
        mean = 0.1 * jax.random.normal(k5, (in_channels,), jnp.float32)
        var = jnp.ones((in_channels,), jnp.float32)
        scale = gamma / jnp.sqrt(var + eps)
        bias = beta - mean * scale
        layers.append((dww, pww, scale, bias))

    key, k1, k2, k3 = jax.random.split(key, 4)
    out_c = num_anchors * num_classes
    out_dww = jax.random.normal(k1, (3, 3, in_channels), jnp.float32) * dw_std
    out_pww = jax.random.normal(k2, (in_channels, out_c), jnp.float32) * pw_std
    out_bias = 0.1 * jax.random.normal(k3, (out_c,), jnp.float32)
    return {"layers": layers, "out": (out_dww, out_pww, out_bias)}


def _reference_forward(x_nhwc, params, num_anchors, num_classes):
    """Pure-JAX f32 reference (lax.conv) for correctness checking."""
    dn = ("NHWC", "HWIO", "NHWC")

    def sep(x, dww, pww, scale, bias, swish, sig):
        C = x.shape[-1]
        x = lax.conv_general_dilated(x, dww.reshape(3, 3, 1, C), (1, 1),
                                     "SAME", dimension_numbers=dn,
                                     feature_group_count=C)
        x = lax.conv_general_dilated(x, pww[None, None], (1, 1), "SAME",
                                     dimension_numbers=dn)
        x = x * scale + bias
        if swish:
            x = x * jax.nn.sigmoid(x)
        if sig:
            x = jax.nn.sigmoid(x)
        return x

    x = x_nhwc
    for dww, pww, scale, bias in params["layers"]:
        x = sep(x, dww, pww, scale, bias, True, False)
    out_dww, out_pww, out_bias = params["out"]
    x = sep(x, out_dww, out_pww, jnp.ones((out_pww.shape[1],)), out_bias,
            False, True)
    N, H, W, _ = x.shape
    return x.reshape(N, H * W * num_anchors, num_classes)


if __name__ == "__main__":
    # Small synthetic configuration (logical NCHW input: (2, 32, 8, 8)).
    N, C, H, W = 2, 32, 8, 8
    depth = 2
    num_anchors = 4
    num_classes = 8

    key = jax.random.PRNGKey(0)
    key, kx, kp = jax.random.split(key, 3)
    x_nhwc = jax.random.normal(kx, (N, H, W, C), jnp.float32)
    params = init_params(kp, C, depth, num_anchors, num_classes)

    # One-time weight preparation (hoisted out of the forward pass).
    prep = prepare_head_params(params, C, num_anchors, num_classes)

    fwd = jax.jit(functools.partial(classification_model_forward,
                                    num_anchors=num_anchors,
                                    num_classes=num_classes))
    out = jax.block_until_ready(
        fwd(x_nhwc, prep["wstack"], prep["bias"], prep["wout"], prep["bout"]))

    ref = jax.block_until_ready(
        _reference_forward(x_nhwc, params, num_anchors, num_classes))

    assert out.shape == (N, H * W * num_anchors, num_classes), out.shape
    # bf16 matmul operands + bf16-resident activations + folded weights vs. a
    # fully f32 reference:
    np.testing.assert_allclose(np.asarray(out), np.asarray(ref),
                               rtol=2e-2, atol=2e-2)
    print("KERNEL_OK")
</pallas_src>

<mosaic_0001>
module attributes {stable_mosaic.version = 11 : i64} {
  func.func @_fused_head_kernel(%arg0: i32, %arg1: memref<2x8x8x32xf32, #tpu.memory_space<vmem>>, %arg2: memref<2x9x32x32xbf16, #tpu.memory_space<vmem>>, %arg3: memref<2x1x32xf32, #tpu.memory_space<vmem>>, %arg4: memref<9x32x128xbf16, #tpu.memory_space<vmem>>, %arg5: memref<1x128xf32, #tpu.memory_space<vmem>>, %arg6: memref<128x128xf32, #tpu.memory_space<vmem>>, %arg7: memref<2x10x10x32xbf16, #tpu.memory_space<vmem>>) attributes {dimension_semantics = [#tpu.dimension_semantics<parallel>], iteration_bounds = array<i64: 1>, scalar_prefetch = 0 : i64, scratch_operands = 1 : i64, tpu.core_type = #tpu.core_type<tc>, window_params = [{transform_indices = @transform_0, window_bounds = array<i64: 2, 8, 8, 32>}, {pipeline_mode = #tpu.pipeline_mode<synchronous>, transform_indices = @transform_1, window_bounds = array<i64: 2, 9, 32, 32>}, {pipeline_mode = #tpu.pipeline_mode<synchronous>, transform_indices = @transform_2, window_bounds = array<i64: 2, 1, 32>}, {pipeline_mode = #tpu.pipeline_mode<synchronous>, transform_indices = @transform_3, window_bounds = array<i64: 9, 32, 128>}, {pipeline_mode = #tpu.pipeline_mode<synchronous>, transform_indices = @transform_4, window_bounds = array<i64: 1, 128>}, {transform_indices = @transform_5, window_bounds = array<i64: 128, 128>}]} {
    %cst = arith.constant 0.000000e+00 : bf16
    %0 = vector.broadcast %cst : bf16 to vector<2x1x10x32xbf16>
    %c0 = arith.constant 0 : index
    %c0_0 = arith.constant 0 : index
    %c0_1 = arith.constant 0 : index
    %c0_2 = arith.constant 0 : index
    %1 = vector.load %arg7[%c0, %c0_0, %c0_1, %c0_2] : memref<2x10x10x32xbf16, #tpu.memory_space<vmem>>, vector<2x1x10x32xbf16>
    tpu.vector_store %arg7[%c0, %c0_0, %c0_1, %c0_2], %0 {strides = array<i32>} : memref<2x10x10x32xbf16, #tpu.memory_space<vmem>>, vector<2x1x10x32xbf16>,
    %cst_3 = arith.constant 0.000000e+00 : bf16
    %2 = vector.broadcast %cst_3 : bf16 to vector<2x1x10x32xbf16>
    %c0_4 = arith.constant 0 : index
    %c9 = arith.constant 9 : index
    %c0_5 = arith.constant 0 : index
    %c0_6 = arith.constant 0 : index
    %3 = vector.load %arg7[%c0_4, %c9, %c0_5, %c0_6] : memref<2x10x10x32xbf16, #tpu.memory_space<vmem>>, vector<2x1x10x32xbf16>
    tpu.vector_store %arg7[%c0_4, %c9, %c0_5, %c0_6], %2 {strides = array<i32>} : memref<2x10x10x32xbf16, #tpu.memory_space<vmem>>, vector<2x1x10x32xbf16>,
    %cst_7 = arith.constant 0.000000e+00 : bf16
    %4 = vector.broadcast %cst_7 : bf16 to vector<2x10x1x32xbf16>
    %c0_8 = arith.constant 0 : index
    %c0_9 = arith.constant 0 : index
    %c0_10 = arith.constant 0 : index
    %c0_11 = arith.constant 0 : index
    %5 = vector.load %arg7[%c0_8, %c0_9, %c0_10, %c0_11] : memref<2x10x10x32xbf16, #tpu.memory_space<vmem>>, vector<2x10x1x32xbf16>
    tpu.vector_store %arg7[%c0_8, %c0_9, %c0_10, %c0_11], %4 {strides = array<i32>} : memref<2x10x10x32xbf16, #tpu.memory_space<vmem>>, vector<2x10x1x32xbf16>,
    %cst_12 = arith.constant 0.000000e+00 : bf16
    %6 = vector.broadcast %cst_12 : bf16 to vector<2x10x1x32xbf16>
    %c0_13 = arith.constant 0 : index
    %c0_14 = arith.constant 0 : index
    %c9_15 = arith.constant 9 : index
    %c0_16 = arith.constant 0 : index
    %7 = vector.load %arg7[%c0_13, %c0_14, %c9_15, %c0_16] : memref<2x10x10x32xbf16, #tpu.memory_space<vmem>>, vector<2x10x1x32xbf16>
    tpu.vector_store %arg7[%c0_13, %c0_14, %c9_15, %c0_16], %6 {strides = array<i32>} : memref<2x10x10x32xbf16, #tpu.memory_space<vmem>>, vector<2x10x1x32xbf16>,
    %c0_17 = arith.constant 0 : index
    %c0_18 = arith.constant 0 : index
    %c0_19 = arith.constant 0 : index
    %c0_20 = arith.constant 0 : index
    %8 = vector.load %arg1[%c0_17, %c0_18, %c0_19, %c0_20] : memref<2x8x8x32xf32, #tpu.memory_space<vmem>>, vector<2x8x8x32xf32>
    %9 = arith.truncf %8 : vector<2x8x8x32xf32> to vector<2x8x8x32xbf16>
    %c0_21 = arith.constant 0 : index
    %c1 = arith.constant 1 : index
    %c1_22 = arith.constant 1 : index
    %c0_23 = arith.constant 0 : index
    %10 = vector.load %arg7[%c0_21, %c1, %c1_22, %c0_23] : memref<2x10x10x32xbf16, #tpu.memory_space<vmem>>, vector<2x8x8x32xbf16>
    tpu.vector_store %arg7[%c0_21, %c1, %c1_22, %c0_23], %9 {strides = array<i32>} : memref<2x10x10x32xbf16, #tpu.memory_space<vmem>>, vector<2x8x8x32xbf16>,
    %c0_24 = arith.constant 0 : index
    %c0_25 = arith.constant 0 : index
    %c0_26 = arith.constant 0 : index
    %c0_27 = arith.constant 0 : index
    %11 = vector.load %arg7[%c0_24, %c0_25, %c0_26, %c0_27] : memref<2x10x10x32xbf16, #tpu.memory_space<vmem>>, vector<2x8x8x32xbf16>
    %12 = vector.shape_cast %11 : vector<2x8x8x32xbf16> to vector<128x32xbf16>
    %c0_28 = arith.constant 0 : index
    %c0_29 = arith.constant 0 : index
    %c0_30 = arith.constant 0 : index
    %c0_31 = arith.constant 0 : index
    %13 = vector.load %arg2[%c0_28, %c0_29, %c0_30, %c0_31] : memref<2x9x32x32xbf16, #tpu.memory_space<vmem>>, vector<1x1x32x32xbf16>
    %14 = vector.shape_cast %13 : vector<1x1x32x32xbf16> to vector<32x32xbf16>
    %cst_32 = arith.constant dense<0.000000e+00> : vector<128x32xf32>
    %15 = tpu.matmul %12, %14, %cst_32 {dimension_numbers = #tpu.dot_dimension_numbers<[1], [0], [0], [1], [0, 0, 1, 1], [], []>} : vector<128x32xbf16>, vector<32x32xbf16>, vector<128x32xf32> -> vector<128x32xf32>
    %c0_33 = arith.constant 0 : index
    %c0_34 = arith.constant 0 : index
    %c1_35 = arith.constant 1 : index
    %c0_36 = arith.constant 0 : index
    %16 = vector.load %arg7[%c0_33, %c0_34, %c1_35, %c0_36] : memref<2x10x10x32xbf16, #tpu.memory_space<vmem>>, vector<2x8x8x32xbf16>
    %17 = vector.shape_cast %16 : vector<2x8x8x32xbf16> to vector<128x32xbf16>
    %c0_37 = arith.constant 0 : index
    %c1_38 = arith.constant 1 : index
    %c0_39 = arith.constant 0 : index
    %c0_40 = arith.constant 0 : index
    %18 = vector.load %arg2[%c0_37, %c1_38, %c0_39, %c0_40] : memref<2x9x32x32xbf16, #tpu.memory_space<vmem>>, vector<1x1x32x32xbf16>
    %19 = vector.shape_cast %18 : vector<1x1x32x32xbf16> to vector<32x32xbf16>
    %cst_41 = arith.constant dense<0.000000e+00> : vector<128x32xf32>
    %20 = tpu.matmul %17, %19, %cst_41 {dimension_numbers = #tpu.dot_dimension_numbers<[1], [0], [0], [1], [0, 0, 1, 1], [], []>} : vector<128x32xbf16>, vector<32x32xbf16>, vector<128x32xf32> -> vector<128x32xf32>
    %21 = arith.addf %15, %20 : vector<128x32xf32>
    %c0_42 = arith.constant 0 : index
    %c0_43 = arith.constant 0 : index
    %c2 = arith.constant 2 : index
    %c0_44 = arith.constant 0 : index
    %22 = vector.load %arg7[%c0_42, %c0_43, %c2, %c0_44] : memref<2x10x10x32xbf16, #tpu.memory_space<vmem>>, vector<2x8x8x32xbf16>
    %23 = vector.shape_cast %22 : vector<2x8x8x32xbf16> to vector<128x32xbf16>
    %c0_45 = arith.constant 0 : index
    %c2_46 = arith.constant 2 : index
    %c0_47 = arith.constant 0 : index
    %c0_48 = arith.constant 0 : index
    %24 = vector.load %arg2[%c0_45, %c2_46, %c0_47, %c0_48] : memref<2x9x32x32xbf16, #tpu.memory_space<vmem>>, vector<1x1x32x32xbf16>
    %25 = vector.shape_cast %24 : vector<1x1x32x32xbf16> to vector<32x32xbf16>
    %cst_49 = arith.constant dense<0.000000e+00> : vector<128x32xf32>
    %26 = tpu.matmul %23, %25, %cst_49 {dimension_numbers = #tpu.dot_dimension_numbers<[1], [0], [0], [1], [0, 0, 1, 1], [], []>} : vector<128x32xbf16>, vector<32x32xbf16>, vector<128x32xf32> -> vector<128x32xf32>
    %27 = arith.addf %21, %26 : vector<128x32xf32>
    %c0_50 = arith.constant 0 : index
    %c1_51 = arith.constant 1 : index
    %c0_52 = arith.constant 0 : index
    %c0_53 = arith.constant 0 : index
    %28 = vector.load %arg7[%c0_50, %c1_51, %c0_52, %c0_53] : memref<2x10x10x32xbf16, #tpu.memory_space<vmem>>, vector<2x8x8x32xbf16>
    %29 = vector.shape_cast %28 : vector<2x8x8x32xbf16> to vector<128x32xbf16>
    %c0_54 = arith.constant 0 : index
    %c3 = arith.constant 3 : index
    %c0_55 = arith.constant 0 : index
    %c0_56 = arith.constant 0 : index
    %30 = vector.load %arg2[%c0_54, %c3, %c0_55, %c0_56] : memref<2x9x32x32xbf16, #tpu.memory_space<vmem>>, vector<1x1x32x32xbf16>
    %31 = vector.shape_cast %30 : vector<1x1x32x32xbf16> to vector<32x32xbf16>
    %cst_57 = arith.constant dense<0.000000e+00> : vector<128x32xf32>
    %32 = tpu.matmul %29, %31, %cst_57 {dimension_numbers = #tpu.dot_dimension_numbers<[1], [0], [0], [1], [0, 0, 1, 1], [], []>} : vector<128x32xbf16>, vector<32x32xbf16>, vector<128x32xf32> -> vector<128x32xf32>
    %33 = arith.addf %27, %32 : vector<128x32xf32>
    %c0_58 = arith.constant 0 : index
    %c1_59 = arith.constant 1 : index
    %c1_60 = arith.constant 1 : index
    %c0_61 = arith.constant 0 : index
    %34 = vector.load %arg7[%c0_58, %c1_59, %c1_60, %c0_61] : memref<2x10x10x32xbf16, #tpu.memory_space<vmem>>, vector<2x8x8x32xbf16>
    %35 = vector.shape_cast %34 : vector<2x8x8x32xbf16> to vector<128x32xbf16>
    %c0_62 = arith.constant 0 : index
    %c4 = arith.constant 4 : index
    %c0_63 = arith.constant 0 : index
    %c0_64 = arith.constant 0 : index
    %36 = vector.load %arg2[%c0_62, %c4, %c0_63, %c0_64] : memref<2x9x32x32xbf16, #tpu.memory_space<vmem>>, vector<1x1x32x32xbf16>
    %37 = vector.shape_cast %36 : vector<1x1x32x32xbf16> to vector<32x32xbf16>
    %cst_65 = arith.constant dense<0.000000e+00> : vector<128x32xf32>
    %38 = tpu.matmul %35, %37, %cst_65 {dimension_numbers = #tpu.dot_dimension_numbers<[1], [0], [0], [1], [0, 0, 1, 1], [], []>} : vector<128x32xbf16>, vector<32x32xbf16>, vector<128x32xf32> -> vector<128x32xf32>
    %39 = arith.addf %33, %38 : vector<128x32xf32>
    %c0_66 = arith.constant 0 : index
    %c1_67 = arith.constant 1 : index
    %c2_68 = arith.constant 2 : index
    %c0_69 = arith.constant 0 : index
    %40 = vector.load %arg7[%c0_66, %c1_67, %c2_68, %c0_69] : memref<2x10x10x32xbf16, #tpu.memory_space<vmem>>, vector<2x8x8x32xbf16>
    %41 = vector.shape_cast %40 : vector<2x8x8x32xbf16> to vector<128x32xbf16>
    %c0_70 = arith.constant 0 : index
    %c5 = arith.constant 5 : index
    %c0_71 = arith.constant 0 : index
    %c0_72 = arith.constant 0 : index
    %42 = vector.load %arg2[%c0_70, %c5, %c0_71, %c0_72] : memref<2x9x32x32xbf16, #tpu.memory_space<vmem>>, vector<1x1x32x32xbf16>
    %43 = vector.shape_cast %42 : vector<1x1x32x32xbf16> to vector<32x32xbf16>
    %cst_73 = arith.constant dense<0.000000e+00> : vector<128x32xf32>
    %44 = tpu.matmul %41, %43, %cst_73 {dimension_numbers = #tpu.dot_dimension_numbers<[1], [0], [0], [1], [0, 0, 1, 1], [], []>} : vector<128x32xbf16>, vector<32x32xbf16>, vector<128x32xf32> -> vector<128x32xf32>
    %45 = arith.addf %39, %44 : vector<128x32xf32>
    %c0_74 = arith.constant 0 : index
    %c2_75 = arith.constant 2 : index
    %c0_76 = arith.constant 0 : index
    %c0_77 = arith.constant 0 : index
    %46 = vector.load %arg7[%c0_74, %c2_75, %c0_76, %c0_77] : memref<2x10x10x32xbf16, #tpu.memory_space<vmem>>, vector<2x8x8x32xbf16>
    %47 = vector.shape_cast %46 : vector<2x8x8x32xbf16> to vector<128x32xbf16>
    %c0_78 = arith.constant 0 : index
    %c6 = arith.constant 6 : index
    %c0_79 = arith.constant 0 : index
    %c0_80 = arith.constant 0 : index
    %48 = vector.load %arg2[%c0_78, %c6, %c0_79, %c0_80] : memref<2x9x32x32xbf16, #tpu.memory_space<vmem>>, vector<1x1x32x32xbf16>
    %49 = vector.shape_cast %48 : vector<1x1x32x32xbf16> to vector<32x32xbf16>
    %cst_81 = arith.constant dense<0.000000e+00> : vector<128x32xf32>
    %50 = tpu.matmul %47, %49, %cst_81 {dimension_numbers = #tpu.dot_dimension_numbers<[1], [0], [0], [1], [0, 0, 1, 1], [], []>} : vector<128x32xbf16>, vector<32x32xbf16>, vector<128x32xf32> -> vector<128x32xf32>
    %51 = arith.addf %45, %50 : vector<128x32xf32>
    %c0_82 = arith.constant 0 : index
    %c2_83 = arith.constant 2 : index
    %c1_84 = arith.constant 1 : index
    %c0_85 = arith.constant 0 : index
    %52 = vector.load %arg7[%c0_82, %c2_83, %c1_84, %c0_85] : memref<2x10x10x32xbf16, #tpu.memory_space<vmem>>, vector<2x8x8x32xbf16>
    %53 = vector.shape_cast %52 : vector<2x8x8x32xbf16> to vector<128x32xbf16>
    %c0_86 = arith.constant 0 : index
    %c7 = arith.constant 7 : index
    %c0_87 = arith.constant 0 : index
    %c0_88 = arith.constant 0 : index
    %54 = vector.load %arg2[%c0_86, %c7, %c0_87, %c0_88] : memref<2x9x32x32xbf16, #tpu.memory_space<vmem>>, vector<1x1x32x32xbf16>
    %55 = vector.shape_cast %54 : vector<1x1x32x32xbf16> to vector<32x32xbf16>
    %cst_89 = arith.constant dense<0.000000e+00> : vector<128x32xf32>
    %56 = tpu.matmul %53, %55, %cst_89 {dimension_numbers = #tpu.dot_dimension_numbers<[1], [0], [0], [1], [0, 0, 1, 1], [], []>} : vector<128x32xbf16>, vector<32x32xbf16>, vector<128x32xf32> -> vector<128x32xf32>
    %57 = arith.addf %51, %56 : vector<128x32xf32>
    %c0_90 = arith.constant 0 : index
    %c2_91 = arith.constant 2 : index
    %c2_92 = arith.constant 2 : index
    %c0_93 = arith.constant 0 : index
    %58 = vector.load %arg7[%c0_90, %c2_91, %c2_92, %c0_93] : memref<2x10x10x32xbf16, #tpu.memory_space<vmem>>, vector<2x8x8x32xbf16>
    %59 = vector.shape_cast %58 : vector<2x8x8x32xbf16> to vector<128x32xbf16>
    %c0_94 = arith.constant 0 : index
    %c8 = arith.constant 8 : index
    %c0_95 = arith.constant 0 : index
    %c0_96 = arith.constant 0 : index
    %60 = vector.load %arg2[%c0_94, %c8, %c0_95, %c0_96] : memref<2x9x32x32xbf16, #tpu.memory_space<vmem>>, vector<1x1x32x32xbf16>
    %61 = vector.shape_cast %60 : vector<1x1x32x32xbf16> to vector<32x32xbf16>
    %cst_97 = arith.constant dense<0.000000e+00> : vector<128x32xf32>
    %62 = tpu.matmul %59, %61, %cst_97 {dimension_numbers = #tpu.dot_dimension_numbers<[1], [0], [0], [1], [0, 0, 1, 1], [], []>} : vector<128x32xbf16>, vector<32x32xbf16>, vector<128x32xf32> -> vector<128x32xf32>
    %63 = arith.addf %57, %62 : vector<128x32xf32>
    %c0_98 = arith.constant 0 : index
    %c0_99 = arith.constant 0 : index
    %c0_100 = arith.constant 0 : index
    %64 = vector.load %arg3[%c0_98, %c0_99, %c0_100] : memref<2x1x32xf32, #tpu.memory_space<vmem>>, vector<1x1x32xf32>
    %65 = vector.shape_cast %64 : vector<1x1x32xf32> to vector<1x32xf32>
    %66 = vector.broadcast %65 : vector<1x32xf32> to vector<128x32xf32>
    %67 = arith.addf %63, %66 : vector<128x32xf32>
    %cst_101 = arith.constant 0.000000e+00 : f32
    %68 = vector.broadcast %cst_101 : f32 to vector<128x32xf32>
    %69 = arith.subf %68, %67 : vector<128x32xf32>
    %70 = math.exp %69 : vector<128x32xf32>
    %cst_102 = arith.constant 1.000000e+00 : f32
    %71 = vector.broadcast %cst_102 : f32 to vector<128x32xf32>
    %72 = arith.addf %71, %70 : vector<128x32xf32>
    %73 = tpu.reciprocal %72 {approx = true} : vector<128x32xf32> -> vector<128x32xf32>
    %74 = arith.mulf %67, %73 : vector<128x32xf32>
    %75 = vector.shape_cast %74 : vector<128x32xf32> to vector<2x8x8x32xf32>
    %76 = arith.truncf %75 : vector<2x8x8x32xf32> to vector<2x8x8x32xbf16>
    %c0_103 = arith.constant 0 : index
    %c1_104 = arith.constant 1 : index
    %c1_105 = arith.constant 1 : index
    %c0_106 = arith.constant 0 : index
    %77 = vector.load %arg7[%c0_103, %c1_104, %c1_105, %c0_106] : memref<2x10x10x32xbf16, #tpu.memory_space<vmem>>, vector<2x8x8x32xbf16>
    tpu.vector_store %arg7[%c0_103, %c1_104, %c1_105, %c0_106], %76 {strides = array<i32>} : memref<2x10x10x32xbf16, #tpu.memory_space<vmem>>, vector<2x8x8x32xbf16>,
    %c0_107 = arith.constant 0 : index
    %c0_108 = arith.constant 0 : index
    %c0_109 = arith.constant 0 : index
    %c0_110 = arith.constant 0 : index
    %78 = vector.load %arg7[%c0_107, %c0_108, %c0_109, %c0_110] : memref<2x10x10x32xbf16, #tpu.memory_space<vmem>>, vector<2x8x8x32xbf16>
    %79 = vector.shape_cast %78 : vector<2x8x8x32xbf16> to vector<128x32xbf16>
    %c1_111 = arith.constant 1 : index
    %c0_112 = arith.constant 0 : index
    %c0_113 = arith.constant 0 : index
    %c0_114 = arith.constant 0 : index
    %80 = vector.load %arg2[%c1_111, %c0_112, %c0_113, %c0_114] : memref<2x9x32x32xbf16, #tpu.memory_space<vmem>>, vector<1x1x32x32xbf16>
    %81 = vector.shape_cast %80 : vector<1x1x32x32xbf16> to vector<32x32xbf16>
    %cst_115 = arith.constant dense<0.000000e+00> : vector<128x32xf32>
    %82 = tpu.matmul %79, %81, %cst_115 {dimension_numbers = #tpu.dot_dimension_numbers<[1], [0], [0], [1], [0, 0, 1, 1], [], []>} : vector<128x32xbf16>, vector<32x32xbf16>, vector<128x32xf32> -> vector<128x32xf32>
    %c0_116 = arith.constant 0 : index
    %c0_117 = arith.constant 0 : index
    %c1_118 = arith.constant 1 : index
    %c0_119 = arith.constant 0 : index
    %83 = vector.load %arg7[%c0_116, %c0_117, %c1_118, %c0_119] : memref<2x10x10x32xbf16, #tpu.memory_space<vmem>>, vector<2x8x8x32xbf16>
    %84 = vector.shape_cast %83 : vector<2x8x8x32xbf16> to vector<128x32xbf16>
    %c1_120 = arith.constant 1 : index
    %c1_121 = arith.constant 1 : index
    %c0_122 = arith.constant 0 : index
    %c0_123 = arith.constant 0 : index
    %85 = vector.load %arg2[%c1_120, %c1_121, %c0_122, %c0_123] : memref<2x9x32x32xbf16, #tpu.memory_space<vmem>>, vector<1x1x32x32xbf16>
    %86 = vector.shape_cast %85 : vector<1x1x32x32xbf16> to vector<32x32xbf16>
    %cst_124 = arith.constant dense<0.000000e+00> : vector<128x32xf32>
    %87 = tpu.matmul %84, %86, %cst_124 {dimension_numbers = #tpu.dot_dimension_numbers<[1], [0], [0], [1], [0, 0, 1, 1], [], []>} : vector<128x32xbf16>, vector<32x32xbf16>, vector<128x32xf32> -> vector<128x32xf32>
    %88 = arith.addf %82, %87 : vector<128x32xf32>
    %c0_125 = arith.constant 0 : index
    %c0_126 = arith.constant 0 : index
    %c2_127 = arith.constant 2 : index
    %c0_128 = arith.constant 0 : index
    %89 = vector.load %arg7[%c0_125, %c0_126, %c2_127, %c0_128] : memref<2x10x10x32xbf16, #tpu.memory_space<vmem>>, vector<2x8x8x32xbf16>
    %90 = vector.shape_cast %89 : vector<2x8x8x32xbf16> to vector<128x32xbf16>
    %c1_129 = arith.constant 1 : index
    %c2_130 = arith.constant 2 : index
    %c0_131 = arith.constant 0 : index
    %c0_132 = arith.constant 0 : index
    %91 = vector.load %arg2[%c1_129, %c2_130, %c0_131, %c0_132] : memref<2x9x32x32xbf16, #tpu.memory_space<vmem>>, vector<1x1x32x32xbf16>
    %92 = vector.shape_cast %91 : vector<1x1x32x32xbf16> to vector<32x32xbf16>
    %cst_133 = arith.constant dense<0.000000e+00> : vector<128x32xf32>
    %93 = tpu.matmul %90, %92, %cst_133 {dimension_numbers = #tpu.dot_dimension_numbers<[1], [0], [0], [1], [0, 0, 1, 1], [], []>} : vector<128x32xbf16>, vector<32x32xbf16>, vector<128x32xf32> -> vector<128x32xf32>
    %94 = arith.addf %88, %93 : vector<128x32xf32>
    %c0_134 = arith.constant 0 : index
    %c1_135 = arith.constant 1 : index
    %c0_136 = arith.constant 0 : index
    %c0_137 = arith.constant 0 : index
    %95 = vector.load %arg7[%c0_134, %c1_135, %c0_136, %c0_137] : memref<2x10x10x32xbf16, #tpu.memory_space<vmem>>, vector<2x8x8x32xbf16>
    %96 = vector.shape_cast %95 : vector<2x8x8x32xbf16> to vector<128x32xbf16>
    %c1_138 = arith.constant 1 : index
    %c3_139 = arith.constant 3 : index
    %c0_140 = arith.constant 0 : index
    %c0_141 = arith.constant 0 : index
    %97 = vector.load %arg2[%c1_138, %c3_139, %c0_140, %c0_141] : memref<2x9x32x32xbf16, #tpu.memory_space<vmem>>, vector<1x1x32x32xbf16>
    %98 = vector.shape_cast %97 : vector<1x1x32x32xbf16> to vector<32x32xbf16>
    %cst_142 = arith.constant dense<0.000000e+00> : vector<128x32xf32>
    %99 = tpu.matmul %96, %98, %cst_142 {dimension_numbers = #tpu.dot_dimension_numbers<[1], [0], [0], [1], [0, 0, 1, 1], [], []>} : vector<128x32xbf16>, vector<32x32xbf16>, vector<128x32xf32> -> vector<128x32xf32>
    %100 = arith.addf %94, %99 : vector<128x32xf32>
    %c0_143 = arith.constant 0 : index
    %c1_144 = arith.constant 1 : index
    %c1_145 = arith.constant 1 : index
    %c0_146 = arith.constant 0 : index
    %101 = vector.load %arg7[%c0_143, %c1_144, %c1_145, %c0_146] : memref<2x10x10x32xbf16, #tpu.memory_space<vmem>>, vector<2x8x8x32xbf16>
    %102 = vector.shape_cast %101 : vector<2x8x8x32xbf16> to vector<128x32xbf16>
    %c1_147 = arith.constant 1 : index
    %c4_148 = arith.constant 4 : index
    %c0_149 = arith.constant 0 : index
    %c0_150 = arith.constant 0 : index
    %103 = vector.load %arg2[%c1_147, %c4_148, %c0_149, %c0_150] : memref<2x9x32x32xbf16, #tpu.memory_space<vmem>>, vector<1x1x32x32xbf16>
    %104 = vector.shape_cast %103 : vector<1x1x32x32xbf16> to vector<32x32xbf16>
    %cst_151 = arith.constant dense<0.000000e+00> : vector<128x32xf32>
    %105 = tpu.matmul %102, %104, %cst_151 {dimension_numbers = #tpu.dot_dimension_numbers<[1], [0], [0], [1], [0, 0, 1, 1], [], []>} : vector<128x32xbf16>, vector<32x32xbf16>, vector<128x32xf32> -> vector<128x32xf32>
    %106 = arith.addf %100, %105 : vector<128x32xf32>
    %c0_152 = arith.constant 0 : index
    %c1_153 = arith.constant 1 : index
    %c2_154 = arith.constant 2 : index
    %c0_155 = arith.constant 0 : index
    %107 = vector.load %arg7[%c0_152, %c1_153, %c2_154, %c0_155] : memref<2x10x10x32xbf16, #tpu.memory_space<vmem>>, vector<2x8x8x32xbf16>
    %108 = vector.shape_cast %107 : vector<2x8x8x32xbf16> to vector<128x32xbf16>
    %c1_156 = arith.constant 1 : index
    %c5_157 = arith.constant 5 : index
    %c0_158 = arith.constant 0 : index
    %c0_159 = arith.constant 0 : index
    %109 = vector.load %arg2[%c1_156, %c5_157, %c0_158, %c0_159] : memref<2x9x32x32xbf16, #tpu.memory_space<vmem>>, vector<1x1x32x32xbf16>
    %110 = vector.shape_cast %109 : vector<1x1x32x32xbf16> to vector<32x32xbf16>
    %cst_160 = arith.constant dense<0.000000e+00> : vector<128x32xf32>
    %111 = tpu.matmul %108, %110, %cst_160 {dimension_numbers = #tpu.dot_dimension_numbers<[1], [0], [0], [1], [0, 0, 1, 1], [], []>} : vector<128x32xbf16>, vector<32x32xbf16>, vector<128x32xf32> -> vector<128x32xf32>
    %112 = arith.addf %106, %111 : vector<128x32xf32>
    %c0_161 = arith.constant 0 : index
    %c2_162 = arith.constant 2 : index
    %c0_163 = arith.constant 0 : index
    %c0_164 = arith.constant 0 : index
    %113 = vector.load %arg7[%c0_161, %c2_162, %c0_163, %c0_164] : memref<2x10x10x32xbf16, #tpu.memory_space<vmem>>, vector<2x8x8x32xbf16>
    %114 = vector.shape_cast %113 : vector<2x8x8x32xbf16> to vector<128x32xbf16>
    %c1_165 = arith.constant 1 : index
    %c6_166 = arith.constant 6 : index
    %c0_167 = arith.constant 0 : index
    %c0_168 = arith.constant 0 : index
    %115 = vector.load %arg2[%c1_165, %c6_166, %c0_167, %c0_168] : memref<2x9x32x32xbf16, #tpu.memory_space<vmem>>, vector<1x1x32x32xbf16>
    %116 = vector.shape_cast %115 : vector<1x1x32x32xbf16> to vector<32x32xbf16>
    %cst_169 = arith.constant dense<0.000000e+00> : vector<128x32xf32>
    %117 = tpu.matmul %114, %116, %cst_169 {dimension_numbers = #tpu.dot_dimension_numbers<[1], [0], [0], [1], [0, 0, 1, 1], [], []>} : vector<128x32xbf16>, vector<32x32xbf16>, vector<128x32xf32> -> vector<128x32xf32>
    %118 = arith.addf %112, %117 : vector<128x32xf32>
    %c0_170 = arith.constant 0 : index
    %c2_171 = arith.constant 2 : index
    %c1_172 = arith.constant 1 : index
    %c0_173 = arith.constant 0 : index
    %119 = vector.load %arg7[%c0_170, %c2_171, %c1_172, %c0_173] : memref<2x10x10x32xbf16, #tpu.memory_space<vmem>>, vector<2x8x8x32xbf16>
    %120 = vector.shape_cast %119 : vector<2x8x8x32xbf16> to vector<128x32xbf16>
    %c1_174 = arith.constant 1 : index
    %c7_175 = arith.constant 7 : index
    %c0_176 = arith.constant 0 : index
    %c0_177 = arith.constant 0 : index
    %121 = vector.load %arg2[%c1_174, %c7_175, %c0_176, %c0_177] : memref<2x9x32x32xbf16, #tpu.memory_space<vmem>>, vector<1x1x32x32xbf16>
    %122 = vector.shape_cast %121 : vector<1x1x32x32xbf16> to vector<32x32xbf16>
    %cst_178 = arith.constant dense<0.000000e+00> : vector<128x32xf32>
    %123 = tpu.matmul %120, %122, %cst_178 {dimension_numbers = #tpu.dot_dimension_numbers<[1], [0], [0], [1], [0, 0, 1, 1], [], []>} : vector<128x32xbf16>, vector<32x32xbf16>, vector<128x32xf32> -> vector<128x32xf32>
    %124 = arith.addf %118, %123 : vector<128x32xf32>
    %c0_179 = arith.constant 0 : index
    %c2_180 = arith.constant 2 : index
    %c2_181 = arith.constant 2 : index
    %c0_182 = arith.constant 0 : index
    %125 = vector.load %arg7[%c0_179, %c2_180, %c2_181, %c0_182] : memref<2x10x10x32xbf16, #tpu.memory_space<vmem>>, vector<2x8x8x32xbf16>
    %126 = vector.shape_cast %125 : vector<2x8x8x32xbf16> to vector<128x32xbf16>
    %c1_183 = arith.constant 1 : index
    %c8_184 = arith.constant 8 : index
    %c0_185 = arith.constant 0 : index
    %c0_186 = arith.constant 0 : index
    %127 = vector.load %arg2[%c1_183, %c8_184, %c0_185, %c0_186] : memref<2x9x32x32xbf16, #tpu.memory_space<vmem>>, vector<1x1x32x32xbf16>
    %128 = vector.shape_cast %127 : vector<1x1x32x32xbf16> to vector<32x32xbf16>
    %cst_187 = arith.constant dense<0.000000e+00> : vector<128x32xf32>
    %129 = tpu.matmul %126, %128, %cst_187 {dimension_numbers = #tpu.dot_dimension_numbers<[1], [0], [0], [1], [0, 0, 1, 1], [], []>} : vector<128x32xbf16>, vector<32x32xbf16>, vector<128x32xf32> -> vector<128x32xf32>
    %130 = arith.addf %124, %129 : vector<128x32xf32>
    %c1_188 = arith.constant 1 : index
    %c0_189 = arith.constant 0 : index
    %c0_190 = arith.constant 0 : index
    %131 = vector.load %arg3[%c1_188, %c0_189, %c0_190] : memref<2x1x32xf32, #tpu.memory_space<vmem>>, vector<1x1x32xf32>
    %132 = vector.shape_cast %131 : vector<1x1x32xf32> to vector<1x32xf32>
    %133 = vector.broadcast %132 : vector<1x32xf32> to vector<128x32xf32>
    %134 = arith.addf %130, %133 : vector<128x32xf32>
    %cst_191 = arith.constant 0.000000e+00 : f32
    %135 = vector.broadcast %cst_191 : f32 to vector<128x32xf32>
    %136 = arith.subf %135, %134 : vector<128x32xf32>
    %137 = math.exp %136 : vector<128x32xf32>
    %cst_192 = arith.constant 1.000000e+00 : f32
    %138 = vector.broadcast %cst_192 : f32 to vector<128x32xf32>
    %139 = arith.addf %138, %137 : vector<128x32xf32>
    %140 = tpu.reciprocal %139 {approx = true} : vector<128x32xf32> -> vector<128x32xf32>
    %141 = arith.mulf %134, %140 : vector<128x32xf32>
    %142 = vector.shape_cast %141 : vector<128x32xf32> to vector<2x8x8x32xf32>
    %143 = arith.truncf %142 : vector<2x8x8x32xf32> to vector<2x8x8x32xbf16>
    %c0_193 = arith.constant 0 : index
    %c1_194 = arith.constant 1 : index
    %c1_195 = arith.constant 1 : index
    %c0_196 = arith.constant 0 : index
    %144 = vector.load %arg7[%c0_193, %c1_194, %c1_195, %c0_196] : memref<2x10x10x32xbf16, #tpu.memory_space<vmem>>, vector<2x8x8x32xbf16>
    tpu.vector_store %arg7[%c0_193, %c1_194, %c1_195, %c0_196], %143 {strides = array<i32>} : memref<2x10x10x32xbf16, #tpu.memory_space<vmem>>, vector<2x8x8x32xbf16>,
    %c0_197 = arith.constant 0 : index
    %c0_198 = arith.constant 0 : index
    %c0_199 = arith.constant 0 : index
    %c0_200 = arith.constant 0 : index
    %145 = vector.load %arg7[%c0_197, %c0_198, %c0_199, %c0_200] : memref<2x10x10x32xbf16, #tpu.memory_space<vmem>>, vector<2x8x8x32xbf16>
    %146 = vector.shape_cast %145 : vector<2x8x8x32xbf16> to vector<128x32xbf16>
    %c0_201 = arith.constant 0 : index
    %c0_202 = arith.constant 0 : index
    %c0_203 = arith.constant 0 : index
    %147 = vector.load %arg4[%c0_201, %c0_202, %c0_203] : memref<9x32x128xbf16, #tpu.memory_space<vmem>>, vector<1x32x128xbf16>
    %148 = vector.shape_cast %147 : vector<1x32x128xbf16> to vector<32x128xbf16>
    %cst_204 = arith.constant dense<0.000000e+00> : vector<128x128xf32>
    %149 = tpu.matmul %146, %148, %cst_204 {dimension_numbers = #tpu.dot_dimension_numbers<[1], [0], [0], [1], [0, 0, 1, 1], [], []>} : vector<128x32xbf16>, vector<32x128xbf16>, vector<128x128xf32> -> vector<128x128xf32>
    %c0_205 = arith.constant 0 : index
    %c0_206 = arith.constant 0 : index
    %c1_207 = arith.constant 1 : index
    %c0_208 = arith.constant 0 : index
    %150 = vector.load %arg7[%c0_205, %c0_206, %c1_207, %c0_208] : memref<2x10x10x32xbf16, #tpu.memory_space<vmem>>, vector<2x8x8x32xbf16>
    %151 = vector.shape_cast %150 : vector<2x8x8x32xbf16> to vector<128x32xbf16>
    %c1_209 = arith.constant 1 : index
    %c0_210 = arith.constant 0 : index
    %c0_211 = arith.constant 0 : index
    %152 = vector.load %arg4[%c1_209, %c0_210, %c0_211] : memref<9x32x128xbf16, #tpu.memory_space<vmem>>, vector<1x32x128xbf16>
    %153 = vector.shape_cast %152 : vector<1x32x128xbf16> to vector<32x128xbf16>
    %cst_212 = arith.constant dense<0.000000e+00> : vector<128x128xf32>
    %154 = tpu.matmul %151, %153, %cst_212 {dimension_numbers = #tpu.dot_dimension_numbers<[1], [0], [0], [1], [0, 0, 1, 1], [], []>} : vector<128x32xbf16>, vector<32x128xbf16>, vector<128x128xf32> -> vector<128x128xf32>
    %155 = arith.addf %149, %154 : vector<128x128xf32>
    %c0_213 = arith.constant 0 : index
    %c0_214 = arith.constant 0 : index
    %c2_215 = arith.constant 2 : index
    %c0_216 = arith.constant 0 : index
    %156 = vector.load %arg7[%c0_213, %c0_214, %c2_215, %c0_216] : memref<2x10x10x32xbf16, #tpu.memory_space<vmem>>, vector<2x8x8x32xbf16>
    %157 = vector.shape_cast %156 : vector<2x8x8x32xbf16> to vector<128x32xbf16>
    %c2_217 = arith.constant 2 : index
    %c0_218 = arith.constant 0 : index
    %c0_219 = arith.constant 0 : index
    %158 = vector.load %arg4[%c2_217, %c0_218, %c0_219] : memref<9x32x128xbf16, #tpu.memory_space<vmem>>, vector<1x32x128xbf16>
    %159 = vector.shape_cast %158 : vector<1x32x128xbf16> to vector<32x128xbf16>
    %cst_220 = arith.constant dense<0.000000e+00> : vector<128x128xf32>
    %160 = tpu.matmul %157, %159, %cst_220 {dimension_numbers = #tpu.dot_dimension_numbers<[1], [0], [0], [1], [0, 0, 1, 1], [], []>} : vector<128x32xbf16>, vector<32x128xbf16>, vector<128x128xf32> -> vector<128x128xf32>
    %161 = arith.addf %155, %160 : vector<128x128xf32>
    %c0_221 = arith.constant 0 : index
    %c1_222 = arith.constant 1 : index
    %c0_223 = arith.constant 0 : index
    %c0_224 = arith.constant 0 : index
    %162 = vector.load %arg7[%c0_221, %c1_222, %c0_223, %c0_224] : memref<2x10x10x32xbf16, #tpu.memory_space<vmem>>, vector<2x8x8x32xbf16>
    %163 = vector.shape_cast %162 : vector<2x8x8x32xbf16> to vector<128x32xbf16>
    %c3_225 = arith.constant 3 : index
    %c0_226 = arith.constant 0 : index
    %c0_227 = arith.constant 0 : index
    %164 = vector.load %arg4[%c3_225, %c0_226, %c0_227] : memref<9x32x128xbf16, #tpu.memory_space<vmem>>, vector<1x32x128xbf16>
    %165 = vector.shape_cast %164 : vector<1x32x128xbf16> to vector<32x128xbf16>
    %cst_228 = arith.constant dense<0.000000e+00> : vector<128x128xf32>
    %166 = tpu.matmul %163, %165, %cst_228 {dimension_numbers = #tpu.dot_dimension_numbers<[1], [0], [0], [1], [0, 0, 1, 1], [], []>} : vector<128x32xbf16>, vector<32x128xbf16>, vector<128x128xf32> -> vector<128x128xf32>
    %167 = arith.addf %161, %166 : vector<128x128xf32>
    %c0_229 = arith.constant 0 : index
    %c1_230 = arith.constant 1 : index
    %c1_231 = arith.constant 1 : index
    %c0_232 = arith.constant 0 : index
    %168 = vector.load %arg7[%c0_229, %c1_230, %c1_231, %c0_232] : memref<2x10x10x32xbf16, #tpu.memory_space<vmem>>, vector<2x8x8x32xbf16>
    %169 = vector.shape_cast %168 : vector<2x8x8x32xbf16> to vector<128x32xbf16>
    %c4_233 = arith.constant 4 : index
    %c0_234 = arith.constant 0 : index
    %c0_235 = arith.constant 0 : index
    %170 = vector.load %arg4[%c4_233, %c0_234, %c0_235] : memref<9x32x128xbf16, #tpu.memory_space<vmem>>, vector<1x32x128xbf16>
    %171 = vector.shape_cast %170 : vector<1x32x128xbf16> to vector<32x128xbf16>
    %cst_236 = arith.constant dense<0.000000e+00> : vector<128x128xf32>
    %172 = tpu.matmul %169, %171, %cst_236 {dimension_numbers = #tpu.dot_dimension_numbers<[1], [0], [0], [1], [0, 0, 1, 1], [], []>} : vector<128x32xbf16>, vector<32x128xbf16>, vector<128x128xf32> -> vector<128x128xf32>
    %173 = arith.addf %167, %172 : vector<128x128xf32>
    %c0_237 = arith.constant 0 : index
    %c1_238 = arith.constant 1 : index
    %c2_239 = arith.constant 2 : index
    %c0_240 = arith.constant 0 : index
    %174 = vector.load %arg7[%c0_237, %c1_238, %c2_239, %c0_240] : memref<2x10x10x32xbf16, #tpu.memory_space<vmem>>, vector<2x8x8x32xbf16>
    %175 = vector.shape_cast %174 : vector<2x8x8x32xbf16> to vector<128x32xbf16>
    %c5_241 = arith.constant 5 : index
    %c0_242 = arith.constant 0 : index
    %c0_243 = arith.constant 0 : index
    %176 = vector.load %arg4[%c5_241, %c0_242, %c0_243] : memref<9x32x128xbf16, #tpu.memory_space<vmem>>, vector<1x32x128xbf16>
    %177 = vector.shape_cast %176 : vector<1x32x128xbf16> to vector<32x128xbf16>
    %cst_244 = arith.constant dense<0.000000e+00> : vector<128x128xf32>
    %178 = tpu.matmul %175, %177, %cst_244 {dimension_numbers = #tpu.dot_dimension_numbers<[1], [0], [0], [1], [0, 0, 1, 1], [], []>} : vector<128x32xbf16>, vector<32x128xbf16>, vector<128x128xf32> -> vector<128x128xf32>
    %179 = arith.addf %173, %178 : vector<128x128xf32>
    %c0_245 = arith.constant 0 : index
    %c2_246 = arith.constant 2 : index
    %c0_247 = arith.constant 0 : index
    %c0_248 = arith.constant 0 : index
    %180 = vector.load %arg7[%c0_245, %c2_246, %c0_247, %c0_248] : memref<2x10x10x32xbf16, #tpu.memory_space<vmem>>, vector<2x8x8x32xbf16>
    %181 = vector.shape_cast %180 : vector<2x8x8x32xbf16> to vector<128x32xbf16>
    %c6_249 = arith.constant 6 : index
    %c0_250 = arith.constant 0 : index
    %c0_251 = arith.constant 0 : index
    %182 = vector.load %arg4[%c6_249, %c0_250, %c0_251] : memref<9x32x128xbf16, #tpu.memory_space<vmem>>, vector<1x32x128xbf16>
    %183 = vector.shape_cast %182 : vector<1x32x128xbf16> to vector<32x128xbf16>
    %cst_252 = arith.constant dense<0.000000e+00> : vector<128x128xf32>
    %184 = tpu.matmul %181, %183, %cst_252 {dimension_numbers = #tpu.dot_dimension_numbers<[1], [0], [0], [1], [0, 0, 1, 1], [], []>} : vector<128x32xbf16>, vector<32x128xbf16>, vector<128x128xf32> -> vector<128x128xf32>
    %185 = arith.addf %179, %184 : vector<128x128xf32>
    %c0_253 = arith.constant 0 : index
    %c2_254 = arith.constant 2 : index
    %c1_255 = arith.constant 1 : index
    %c0_256 = arith.constant 0 : index
    %186 = vector.load %arg7[%c0_253, %c2_254, %c1_255, %c0_256] : memref<2x10x10x32xbf16, #tpu.memory_space<vmem>>, vector<2x8x8x32xbf16>
    %187 = vector.shape_cast %186 : vector<2x8x8x32xbf16> to vector<128x32xbf16>
    %c7_257 = arith.constant 7 : index
    %c0_258 = arith.constant 0 : index
    %c0_259 = arith.constant 0 : index
    %188 = vector.load %arg4[%c7_257, %c0_258, %c0_259] : memref<9x32x128xbf16, #tpu.memory_space<vmem>>, vector<1x32x128xbf16>
    %189 = vector.shape_cast %188 : vector<1x32x128xbf16> to vector<32x128xbf16>
    %cst_260 = arith.constant dense<0.000000e+00> : vector<128x128xf32>
    %190 = tpu.matmul %187, %189, %cst_260 {dimension_numbers = #tpu.dot_dimension_numbers<[1], [0], [0], [1], [0, 0, 1, 1], [], []>} : vector<128x32xbf16>, vector<32x128xbf16>, vector<128x128xf32> -> vector<128x128xf32>
    %191 = arith.addf %185, %190 : vector<128x128xf32>
    %c0_261 = arith.constant 0 : index
    %c2_262 = arith.constant 2 : index
    %c2_263 = arith.constant 2 : index
    %c0_264 = arith.constant 0 : index
    %192 = vector.load %arg7[%c0_261, %c2_262, %c2_263, %c0_264] : memref<2x10x10x32xbf16, #tpu.memory_space<vmem>>, vector<2x8x8x32xbf16>
    %193 = vector.shape_cast %192 : vector<2x8x8x32xbf16> to vector<128x32xbf16>
    %c8_265 = arith.constant 8 : index
    %c0_266 = arith.constant 0 : index
    %c0_267 = arith.constant 0 : index
    %194 = vector.load %arg4[%c8_265, %c0_266, %c0_267] : memref<9x32x128xbf16, #tpu.memory_space<vmem>>, vector<1x32x128xbf16>
    %195 = vector.shape_cast %194 : vector<1x32x128xbf16> to vector<32x128xbf16>
    %cst_268 = arith.constant dense<0.000000e+00> : vector<128x128xf32>
    %196 = tpu.matmul %193, %195, %cst_268 {dimension_numbers = #tpu.dot_dimension_numbers<[1], [0], [0], [1], [0, 0, 1, 1], [], []>} : vector<128x32xbf16>, vector<32x128xbf16>, vector<128x128xf32> -> vector<128x128xf32>
    %197 = arith.addf %191, %196 : vector<128x128xf32>
    %c0_269 = arith.constant 0 : index
    %c0_270 = arith.constant 0 : index
    %198 = vector.load %arg5[%c0_269, %c0_270] : memref<1x128xf32, #tpu.memory_space<vmem>>, vector<1x128xf32>
    %199 = vector.broadcast %198 : vector<1x128xf32> to vector<128x128xf32>
    %200 = arith.addf %197, %199 : vector<128x128xf32>
    %cst_271 = arith.constant 0.000000e+00 : f32
    %201 = vector.broadcast %cst_271 : f32 to vector<128x128xf32>
    %202 = arith.subf %201, %200 : vector<128x128xf32>
    %203 = math.exp %202 : vector<128x128xf32>
    %cst_272 = arith.constant 1.000000e+00 : f32
    %204 = vector.broadcast %cst_272 : f32 to vector<128x128xf32>
    %205 = arith.addf %204, %203 : vector<128x128xf32>
    %cst_273 = arith.constant 1.000000e+00 : f32
    %206 = vector.broadcast %cst_273 : f32 to vector<128x128xf32>
    %207 = arith.divf %206, %205 : vector<128x128xf32>
    %c0_274 = arith.constant 0 : index
    %c0_275 = arith.constant 0 : index
    %208 = vector.load %arg6[%c0_274, %c0_275] : memref<128x128xf32, #tpu.memory_space<vmem>>, vector<128x128xf32>
    tpu.vector_store %arg6[%c0_274, %c0_275], %207 {strides = array<i32>} : memref<128x128xf32, #tpu.memory_space<vmem>>, vector<128x128xf32>,
    return
  }
  func.func @transform_0(%arg0: i32) -> (i32, i32, i32, i32) {
    %c0_i32 = arith.constant 0 : i32
    %c0_i32_0 = arith.constant 0 : i32
    %c0_i32_1 = arith.constant 0 : i32
    %c0_i32_2 = arith.constant 0 : i32
    return %arg0, %c0_i32, %c0_i32_0, %c0_i32_1 : i32, i32, i32, i32
  }
  func.func @transform_1(%arg0: i32) -> (i32, i32, i32, i32) {
    %c0_i32 = arith.constant 0 : i32
    %c0_i32_0 = arith.constant 0 : i32
    %c0_i32_1 = arith.constant 0 : i32
    %c0_i32_2 = arith.constant 0 : i32
    %c0_i32_3 = arith.constant 0 : i32
    return %c0_i32, %c0_i32_0, %c0_i32_1, %c0_i32_2 : i32, i32, i32, i32
  }
  func.func @transform_2(%arg0: i32) -> (i32, i32, i32) {
    %c0_i32 = arith.constant 0 : i32
    %c0_i32_0 = arith.constant 0 : i32
    %c0_i32_1 = arith.constant 0 : i32
    %c0_i32_2 = arith.constant 0 : i32
    return %c0_i32, %c0_i32_0, %c0_i32_1 : i32, i32, i32
  }
  func.func @transform_3(%arg0: i32) -> (i32, i32, i32) {
    %c0_i32 = arith.constant 0 : i32
    %c0_i32_0 = arith.constant 0 : i32
    %c0_i32_1 = arith.constant 0 : i32
    %c0_i32_2 = arith.constant 0 : i32
    return %c0_i32, %c0_i32_0, %c0_i32_1 : i32, i32, i32
  }
  func.func @transform_4(%arg0: i32) -> (i32, i32) {
    %c0_i32 = arith.constant 0 : i32
    %c0_i32_0 = arith.constant 0 : i32
    %c0_i32_1 = arith.constant 0 : i32
    return %c0_i32, %c0_i32_0 : i32, i32
  }
  func.func @transform_5(%arg0: i32) -> (i32, i32) {
    %c0_i32 = arith.constant 0 : i32
    %c0_i32_0 = arith.constant 0 : i32
    return %arg0, %c0_i32 : i32, i32
  }
}

</mosaic_0001>

<llo_original>
// kernel: classification_model_forward.1
$region0: #{classification_model_forward.1}
  #allocation0 [shape = 'u32[]', space=smem, size = 0x4, offset = 0x4, fixed_abs, tag = 'smem constant byte address 0x4 - core index']
  #allocation1 [shape = 'u32[144,128]{1,0:T(1,128)}', space=vmem, size = 0x12000, scoped, tag = 'internal scratch']
  #allocation2 [shape = 'bf16[2,10,10,32]{3,2,1,0:T(8,128)(2,1)}', space=vmem, size = 0x14000, scoped, tag = 'scratch operand']
  %s0 = inlined_call_operand.hbm [shape: f32[2,8,8,32], index: 0, kind: input, shape index: {}]
  %s1 = inlined_call_operand.hbm [shape: bf16[2,9,32,32], index: 1, kind: input, shape index: {}]
  %s2 = inlined_call_operand.vmem [shape: f32[2,1,32], index: 2, kind: input, shape index: {}]
  %s3 = inlined_call_operand.hbm [shape: bf16[9,32,128], index: 3, kind: input, shape index: {}]
  %s4 = inlined_call_operand.vmem [shape: f32[1,128], index: 4, kind: input, shape index: {}]
  %s5 = inlined_call_operand.vmem [shape: f32[128,128], index: 5, kind: output, shape index: {}]
  %s6 = sld [smem:[#allocation0]]
  $region42: #{classification_model_forward.1} parent=0
    _
  %s8 = ssub.s32 1, %s6
  %s9 = scalar_select 0, %s8, %s6
  $region1: #{classification_model_forward.1} parent=0
    #allocation3 [shape = 'u8[65536]{0}', space=vmem, size = 0x10000, scoped, tag = 'input window, operand 0, single buffered']
    #allocation4 [shape = 's32[1]{0}', space=sflag, size = 0x4, scoped, tag = 'scoped memory for classification_model_forward.1']
    #allocation5 [shape = 'u8[147456]{0}', space=vmem, size = 0x24000, scoped, tag = 'input window, operand 1, single buffered']
    #allocation6 [shape = 's32[1]{0}', space=sflag, size = 0x4, scoped, tag = 'scoped memory for classification_model_forward.1']
    #allocation7 [shape = 'u8[73728]{0}', space=vmem, size = 0x12000, scoped, tag = 'input window, operand 3, single buffered']
    %10 = vsyncpa [#allocation4], 0
    %11 = vsyncpa [#allocation6], 0
    // Predicated region
    $region2: #{classification_model_forward.1} parent=1 // pred_check
      _
    $region3: #{classification_model_forward.1} parent=1 // pred_check_branch
      %13 = sbr.rel (0) target = $region5
    $region4: #{classification_model_forward.1} parent=1 // pred_region
      %s15 = ssub.s32 2048, 2048
      %16 = vsyncadd [#allocation4], %s15
      %s17 = sshll.u32 [#allocation3], 4
      %s18 = int_to_ptr.vmem [resolvable:$true] %s17
      %23 = dma.hbm_to_vmem [thread:$0]  %s0, 2048, %s18, [#allocation4], 128, 128, 8
    $region5: #{classification_model_forward.1} parent=1 // pred_fallthru
      _
    // Predicated region
    $region6: #{classification_model_forward.1} parent=1 // pred_check
      _
    $region7: #{classification_model_forward.1} parent=1 // pred_check_branch
      %25 = sbr.rel (0) target = $region9
    $region8: #{classification_model_forward.1} parent=1 // pred_region
      %s27 = ssub.s32 4608, 4608
      %28 = vsyncadd [#allocation6], %s27
      %s29 = sshll.u32 [#allocation5], 4
      %s30 = int_to_ptr.vmem [resolvable:$true] %s29
      %35 = dma.hbm_to_vmem [thread:$0]  %s1, 4608, %s30, [#allocation6], 64, 64, 4
    $region9: #{classification_model_forward.1} parent=1 // pred_fallthru
      _
    // Predicated region
    $region10: #{classification_model_forward.1} parent=1 // pred_check
      _
    $region11: #{classification_model_forward.1} parent=1 // pred_check_branch
      %37 = sbr.rel (0) target = $region13
    $region12: #{classification_model_forward.1} parent=1 // pred_region
      _
    $region13: #{classification_model_forward.1} parent=1 // pred_fallthru
      _
    // Predicated region
    $region14: #{classification_model_forward.1} parent=1 // pred_check
      _
    $region15: #{classification_model_forward.1} parent=1 // pred_check_branch
      %39 = sbr.rel (0) target = $region17
    $region16: #{classification_model_forward.1} parent=1 // pred_region
      %s41 = ssub.s32 2304, 2304
      %42 = vsyncadd [#allocation6], %s41
      %s43 = sshll.u32 [#allocation7], 4
      %s44 = int_to_ptr.vmem [resolvable:$true] %s43
      %49 = dma.hbm_to_vmem [thread:$0]  %s3, 2304, %s44, [#allocation6], 64, 64, 4
    $region17: #{classification_model_forward.1} parent=1 // pred_fallthru
      _
    // Predicated region
    $region18: #{classification_model_forward.1} parent=1 // pred_check
      _
    $region19: #{classification_model_forward.1} parent=1 // pred_check_branch
      %51 = sbr.rel (0) target = $region21
    $region20: #{classification_model_forward.1} parent=1 // pred_region
      _
    $region21: #{classification_model_forward.1} parent=1 // pred_fallthru
      _
    // Predicated region
    $region22: #{classification_model_forward.1} parent=1 // pred_check
      _
    $region23: #{classification_model_forward.1} parent=1 // pred_check_branch
      %53 = sbr.rel (0) target = $region25
    $region24: #{classification_model_forward.1} parent=1 // pred_region
      %54 = dma.done [#allocation4], 2048
    $region25: #{classification_model_forward.1} parent=1 // pred_fallthru
      _
    // Predicated region
    $region26: #{classification_model_forward.1} parent=1 // pred_check
      _
    $region27: #{classification_model_forward.1} parent=1 // pred_check_branch
      %56 = sbr.rel (0) target = $region29
    $region28: #{classification_model_forward.1} parent=1 // pred_region
      %57 = dma.done [#allocation6], 4608
    $region29: #{classification_model_forward.1} parent=1 // pred_fallthru
      _
    // Predicated region
    $region30: #{classification_model_forward.1} parent=1 // pred_check
      _
    $region31: #{classification_model_forward.1} parent=1 // pred_check_branch
      %59 = sbr.rel (0) target = $region33
    $region32: #{classification_model_forward.1} parent=1 // pred_region
      %60 = dma.done [#allocation6], 2304
    $region33: #{classification_model_forward.1} parent=1 // pred_fallthru
      _
    %vm62 = vcmask 257024
    %63 = vst.msk [vmem:[#allocation2] sm:$0xf] %vm62, 0
    %vm64 = vcmask 253952
    %65 = vst.msk [vmem:[#allocation2 + $0x4] sm:$0x1] %vm64, 0
    %66 = vst.msk [vmem:[#allocation2 + $0x50] sm:$0xf] %vm62, 0
    %67 = vst.msk [vmem:[#allocation2 + $0x54] sm:$0x1] %vm64, 0
    %s68 = scalar_lea.vmem [#allocation2], 72
    %69 = vst.msk [vmem:[%s68] sm:$0xf] %vm62, 0
    %70 = vst.msk [vmem:[%s68 + $0x4] sm:$0x1] %vm64, 0
    %71 = vst.msk [vmem:[%s68 + $0x50] sm:$0xf] %vm62, 0
    %72 = vst.msk [vmem:[%s68 + $0x54] sm:$0x1] %vm64, 0
    %vm73 = vcmask 253952
    %vm74 = vsmask.f32 256
    %vm75 = vmand %vm73, %vm74
    %v76 = vld [vmem:[#allocation2] sm:$0x1]
    %v77 = vsel %vm75, 0, %v76
    %78 = vst [vmem:[#allocation2] sm:$0x1] %v77
    %v79 = vld [vmem:[#allocation2 + $0x8] sm:$0x1]
    %v80 = vsel %vm75, 0, %v79
    %81 = vst [vmem:[#allocation2 + $0x8] sm:$0x1] %v80
    %v82 = vld [vmem:[#allocation2 + $0x10] sm:$0x1]
    %v83 = vsel %vm75, 0, %v82
    %84 = vst [vmem:[#allocation2 + $0x10] sm:$0x1] %v83
    %v85 = vld [vmem:[#allocation2 + $0x18] sm:$0x1]
    %v86 = vsel %vm75, 0, %v85
    %87 = vst [vmem:[#allocation2 + $0x18] sm:$0x1] %v86
    %v88 = vld [vmem:[#allocation2 + $0x20] sm:$0x1]
    %v89 = vsel %vm75, 0, %v88
    %90 = vst [vmem:[#allocation2 + $0x20] sm:$0x1] %v89
    %v91 = vld [vmem:[#allocation2 + $0x28] sm:$0x1]
    %v92 = vsel %vm75, 0, %v91
    %93 = vst [vmem:[#allocation2 + $0x28] sm:$0x1] %v92
    %v94 = vld [vmem:[#allocation2 + $0x30] sm:$0x1]
    %v95 = vsel %vm75, 0, %v94
    %96 = vst [vmem:[#allocation2 + $0x30] sm:$0x1] %v95
    %v97 = vld [vmem:[#allocation2 + $0x38] sm:$0x1]
    %v98 = vsel %vm75, 0, %v97
    %99 = vst [vmem:[#allocation2 + $0x38] sm:$0x1] %v98
    %v100 = vld [vmem:[#allocation2 + $0x40] sm:$0x1]
    %v101 = vsel %vm75, 0, %v100
    %102 = vst [vmem:[#allocation2 + $0x40] sm:$0x1] %v101
    %v103 = vld [vmem:[#allocation2 + $0x48] sm:$0x1]
    %v104 = vsel %vm75, 0, %v103
    %105 = vst [vmem:[#allocation2 + $0x48] sm:$0x1] %v104
    %v106 = vld [vmem:[#allocation2 + $0x50] sm:$0x1]
    %v107 = vsel %vm75, 0, %v106
    %108 = vst [vmem:[#allocation2 + $0x50] sm:$0x1] %v107
    %v109 = vld [vmem:[#allocation2 + $0x58] sm:$0x1]
    %v110 = vsel %vm75, 0, %v109
    %111 = vst [vmem:[#allocation2 + $0x58] sm:$0x1] %v110
    %v112 = vld [vmem:[#allocation2 + $0x60] sm:$0x1]
    %v113 = vsel %vm75, 0, %v112
    %114 = vst [vmem:[#allocation2 + $0x60] sm:$0x1] %v113
    %v115 = vld [vmem:[#allocation2 + $0x68] sm:$0x1]
    %v116 = vsel %vm75, 0, %v115
    %117 = vst [vmem:[#allocation2 + $0x68] sm:$0x1] %v116
    %v118 = vld [vmem:[#allocation2 + $0x70] sm:$0x1]
    %v119 = vsel %vm75, 0, %v118
    %120 = vst [vmem:[#allocation2 + $0x70] sm:$0x1] %v119
    %v121 = vld [vmem:[#allocation2 + $0x78] sm:$0x1]
    %v122 = vsel %vm75, 0, %v121
    %123 = vst [vmem:[#allocation2 + $0x78] sm:$0x1] %v122
    %v124 = vld [vmem:[#allocation2 + $0x80] sm:$0x1]
    %v125 = vsel %vm75, 0, %v124
    %126 = vst [vmem:[#allocation2 + $0x80] sm:$0x1] %v125
    %v127 = vld [vmem:[#allocation2 + $0x88] sm:$0x1]
    %v128 = vsel %vm75, 0, %v127
    %129 = vst [vmem:[#allocation2 + $0x88] sm:$0x1] %v128
    %v130 = vld [vmem:[#allocation2 + $0x90] sm:$0x1]
    %v131 = vsel %vm75, 0, %v130
    %132 = vst [vmem:[#allocation2 + $0x90] sm:$0x1] %v131
    %v133 = vld [vmem:[#allocation2 + $0x98] sm:$0x1]
    %v134 = vsel %vm75, 0, %v133
    %135 = vst [vmem:[#allocation2 + $0x98] sm:$0x1] %v134
    %vm136 = vsmask.f32 7938
    %vm137 = vmand %vm73, %vm136
    %v138 = vld [vmem:[#allocation2 + $0x4] sm:$0x1]
    %v139 = vsel %vm137, 0, %v138
    %140 = vst [vmem:[#allocation2 + $0x4] sm:$0x1] %v139
    %v141 = vld [vmem:[#allocation2 + $0xc] sm:$0x1]
    %v142 = vsel %vm137, 0, %v141
    %143 = vst [vmem:[#allocation2 + $0xc] sm:$0x1] %v142
    %v144 = vld [vmem:[#allocation2 + $0x14] sm:$0x1]
    %v145 = vsel %vm137, 0, %v144
    %146 = vst [vmem:[#allocation2 + $0x14] sm:$0x1] %v145
    %v147 = vld [vmem:[#allocation2 + $0x1c] sm:$0x1]
    %v148 = vsel %vm137, 0, %v147
    %149 = vst [vmem:[#allocation2 + $0x1c] sm:$0x1] %v148
    %v150 = vld [vmem:[#allocation2 + $0x24] sm:$0x1]
    %v151 = vsel %vm137, 0, %v150
    %152 = vst [vmem:[#allocation2 + $0x24] sm:$0x1] %v151
    %v153 = vld [vmem:[#allocation2 + $0x2c] sm:$0x1]
    %v154 = vsel %vm137, 0, %v153
    %155 = vst [vmem:[#allocation2 + $0x2c] sm:$0x1] %v154
    %v156 = vld [vmem:[#allocation2 + $0x34] sm:$0x1]
    %v157 = vsel %vm137, 0, %v156
    %158 = vst [vmem:[#allocation2 + $0x34] sm:$0x1] %v157
    %v159 = vld [vmem:[#allocation2 + $0x3c] sm:$0x1]
    %v160 = vsel %vm137, 0, %v159
    %161 = vst [vmem:[#allocation2 + $0x3c] sm:$0x1] %v160
    %v162 = vld [vmem:[#allocation2 + $0x44] sm:$0x1]
    %v163 = vsel %vm137, 0, %v162
    %164 = vst [vmem:[#allocation2 + $0x44] sm:$0x1] %v163
    %v165 = vld [vmem:[#allocation2 + $0x4c] sm:$0x1]
    %v166 = vsel %vm137, 0, %v165
    %167 = vst [vmem:[#allocation2 + $0x4c] sm:$0x1] %v166
    %v168 = vld [vmem:[#allocation2 + $0x54] sm:$0x1]
    %v169 = vsel %vm137, 0, %v168
    %170 = vst [vmem:[#allocation2 + $0x54] sm:$0x1] %v169
    %v171 = vld [vmem:[#allocation2 + $0x5c] sm:$0x1]
    %v172 = vsel %vm137, 0, %v171
    %173 = vst [vmem:[#allocation2 + $0x5c] sm:$0x1] %v172
    %v174 = vld [vmem:[#allocation2 + $0x64] sm:$0x1]
    %v175 = vsel %vm137, 0, %v174
    %176 = vst [vmem:[#allocation2 + $0x64] sm:$0x1] %v175
    %v177 = vld [vmem:[#allocation2 + $0x6c] sm:$0x1]
    %v178 = vsel %vm137, 0, %v177
    %179 = vst [vmem:[#allocation2 + $0x6c] sm:$0x1] %v178
    %v180 = vld [vmem:[#allocation2 + $0x74] sm:$0x1]
    %v181 = vsel %vm137, 0, %v180
    %182 = vst [vmem:[#allocation2 + $0x74] sm:$0x1] %v181
    %v183 = vld [vmem:[#allocation2 + $0x7c] sm:$0x1]
    %v184 = vsel %vm137, 0, %v183
    %185 = vst [vmem:[#allocation2 + $0x7c] sm:$0x1] %v184
    %v186 = vld [vmem:[#allocation2 + $0x84] sm:$0x1]
    %v187 = vsel %vm137, 0, %v186
    %188 = vst [vmem:[#allocation2 + $0x84] sm:$0x1] %v187
    %v189 = vld [vmem:[#allocation2 + $0x8c] sm:$0x1]
    %v190 = vsel %vm137, 0, %v189
    %191 = vst [vmem:[#allocation2 + $0x8c] sm:$0x1] %v190
    %v192 = vld [vmem:[#allocation2 + $0x94] sm:$0x1]
    %v193 = vsel %vm137, 0, %v192
    %194 = vst [vmem:[#allocation2 + $0x94] sm:$0x1] %v193
    %v195 = vld [vmem:[#allocation2 + $0x9c] sm:$0x1]
    %v196 = vsel %vm137, 0, %v195
    %197 = vst [vmem:[#allocation2 + $0x9c] sm:$0x1] %v196
    %v198 = vld [vmem:[#allocation3] sm:$0xff]
    %v199 = vld [vmem:[#allocation3 + $0x8] sm:$0xff]
    %v200 = vld [vmem:[#allocation3 + $0x10] sm:$0xff]
    %v201 = vld [vmem:[#allocation3 + $0x18] sm:$0xff]
    %v202 = vld [vmem:[#allocation3 + $0x20] sm:$0xff]
    %v203 = vld [vmem:[#allocation3 + $0x28] sm:$0xff]
    %v204 = vld [vmem:[#allocation3 + $0x30] sm:$0xff]
    %v205 = vld [vmem:[#allocation3 + $0x38] sm:$0xff]
    %v206 = vld [vmem:[#allocation3 + $0x40] sm:$0xff]
    %v207 = vld [vmem:[#allocation3 + $0x48] sm:$0xff]
    %v208 = vld [vmem:[#allocation3 + $0x50] sm:$0xff]
    %v209 = vld [vmem:[#allocation3 + $0x58] sm:$0xff]
    %v210 = vld [vmem:[#allocation3 + $0x60] sm:$0xff]
    %v211 = vld [vmem:[#allocation3 + $0x68] sm:$0xff]
    %v212 = vld [vmem:[#allocation3 + $0x70] sm:$0xff]
    %v213 = vld [vmem:[#allocation3 + $0x78] sm:$0xff]
    %v214 = vpack.c.bf16 %v198, %v198
    %v215 = vpack.c.bf16 %v199, %v199
    %v216 = vpack.c.bf16 %v200, %v200
    %v217 = vpack.c.bf16 %v201, %v201
    %v218 = vpack.c.bf16 %v202, %v202
    %v219 = vpack.c.bf16 %v203, %v203
    %v220 = vpack.c.bf16 %v204, %v204
    %v221 = vpack.c.bf16 %v205, %v205
    %v222 = vpack.c.bf16 %v206, %v206
    %v223 = vpack.c.bf16 %v207, %v207
    %v224 = vpack.c.bf16 %v208, %v208
    %v225 = vpack.c.bf16 %v209, %v209
    %v226 = vpack.c.bf16 %v210, %v210
    %v227 = vpack.c.bf16 %v211, %v211
    %v228 = vpack.c.bf16 %v212, %v212
    %v229 = vpack.c.bf16 %v213, %v213
    %v246 = vunpack.c.l.b16 %v214
    %v247 = vunpack.c.l.b16 %v215
    %v248 = vunpack.c.l.b16 %v216
    %v249 = vunpack.c.l.b16 %v217
    %v250 = vunpack.c.l.b16 %v218
    %v251 = vunpack.c.l.b16 %v219
    %v252 = vunpack.c.l.b16 %v220
    %v253 = vunpack.c.l.b16 %v221
    %v254 = vunpack.c.l.b16 %v222
    %v255 = vunpack.c.l.b16 %v223
    %v256 = vunpack.c.l.b16 %v224
    %v257 = vunpack.c.l.b16 %v225
    %v258 = vunpack.c.l.b16 %v226
    %v259 = vunpack.c.l.b16 %v227
    %v260 = vunpack.c.l.b16 %v228
    %v261 = vunpack.c.l.b16 %v229
    %v262 = vpack.c.b16 %v246, %v246
    %v263 = vpack.c.b16 %v247, %v247
    %v264 = vpack.c.b16 %v248, %v248
    %v265 = vpack.c.b16 %v249, %v249
    %v266 = vpack.c.b16 %v250, %v250
    %v267 = vpack.c.b16 %v251, %v251
    %v268 = vpack.c.b16 %v252, %v252
    %v269 = vpack.c.b16 %v253, %v253
    %v270 = vpack.c.b16 %v254, %v254
    %v271 = vpack.c.b16 %v255, %v255
    %v272 = vpack.c.b16 %v256, %v256
    %v273 = vpack.c.b16 %v257, %v257
    %v274 = vpack.c.b16 %v258, %v258
    %v275 = vpack.c.b16 %v259, %v259
    %v276 = vpack.c.b16 %v260, %v260
    %v277 = vpack.c.b16 %v261, %v261
    %v279 = vshrl.u32 %v262, 16
    %v281 = vrot.slane %v279, 7
    %v282 = vshll.u32 %v262, 16
    %v284 = vor.u32 %v281, %v282
    %v285 = vrot.slane %v281, 4
    %v287 = vshrl.u32 %v263, 16
    %v289 = vrot.slane %v287, 7
    %v290 = vshll.u32 %v263, 16
    %v292 = vor.u32 %v289, %v290
    %v293 = vrot.slane %v289, 4
    %v295 = vshrl.u32 %v264, 16
    %v297 = vrot.slane %v295, 7
    %v298 = vshll.u32 %v264, 16
    %v300 = vor.u32 %v297, %v298
    %v301 = vrot.slane %v297, 4
    %v303 = vshrl.u32 %v265, 16
    %v305 = vrot.slane %v303, 7
    %v306 = vshll.u32 %v265, 16
    %v308 = vor.u32 %v305, %v306
    %v309 = vrot.slane %v305, 4
    %v311 = vshrl.u32 %v266, 16
    %v313 = vrot.slane %v311, 7
    %v314 = vshll.u32 %v266, 16
    %v316 = vor.u32 %v313, %v314
    %v317 = vrot.slane %v313, 4
    %v319 = vshrl.u32 %v267, 16
    %v321 = vrot.slane %v319, 7
    %v322 = vshll.u32 %v267, 16
    %v324 = vor.u32 %v321, %v322
    %v325 = vrot.slane %v321, 4
    %v327 = vshrl.u32 %v268, 16
    %v329 = vrot.slane %v327, 7
    %v330 = vshll.u32 %v268, 16
    %v332 = vor.u32 %v329, %v330
    %v333 = vrot.slane %v329, 4
    %v335 = vshrl.u32 %v269, 16
    %v337 = vrot.slane %v335, 7
    %v338 = vshll.u32 %v269, 16
    %v340 = vor.u32 %v337, %v338
    %v341 = vrot.slane %v337, 4
    %v343 = vshrl.u32 %v270, 16
    %v345 = vrot.slane %v343, 7
    %v346 = vshll.u32 %v270, 16
    %v348 = vor.u32 %v345, %v346
    %v349 = vrot.slane %v345, 4
    %v351 = vshrl.u32 %v271, 16
    %v353 = vrot.slane %v351, 7
    %v354 = vshll.u32 %v271, 16
    %v356 = vor.u32 %v353, %v354
    %v357 = vrot.slane %v353, 4
    %v359 = vshrl.u32 %v272, 16
    %v361 = vrot.slane %v359, 7
    %v362 = vshll.u32 %v272, 16
    %v364 = vor.u32 %v361, %v362
    %v365 = vrot.slane %v361, 4
    %v367 = vshrl.u32 %v273, 16
    %v369 = vrot.slane %v367, 7
    %v370 = vshll.u32 %v273, 16
    %v372 = vor.u32 %v369, %v370
    %v373 = vrot.slane %v369, 4
    %v375 = vshrl.u32 %v274, 16
    %v377 = vrot.slane %v375, 7
    %v378 = vshll.u32 %v274, 16
    %v380 = vor.u32 %v377, %v378
    %v381 = vrot.slane %v377, 4
    %v383 = vshrl.u32 %v275, 16
    %v385 = vrot.slane %v383, 7
    %v386 = vshll.u32 %v275, 16
    %v388 = vor.u32 %v385, %v386
    %v389 = vrot.slane %v385, 4
    %v391 = vshrl.u32 %v276, 16
    %v393 = vrot.slane %v391, 7
    %v394 = vshll.u32 %v276, 16
    %v396 = vor.u32 %v393, %v394
    %v397 = vrot.slane %v393, 4
    %v399 = vshrl.u32 %v277, 16
    %v401 = vrot.slane %v399, 7
    %v402 = vshll.u32 %v277, 16
    %v404 = vor.u32 %v401, %v402
    %v405 = vrot.slane %v401, 4
    %s438 = scalar_lea.vmem [#allocation2], 8
    %vm439 = vcmask 257024
    %vm440 = vmand %vm439, %vm136
    %v441 = vld [vmem:[%s438] sm:$0xf]
    %v442 = vsel %vm440, %v284, %v441
    %443 = vst [vmem:[%s438] sm:$0xf] %v442
    %v444 = vld [vmem:[%s438 + $0x4] sm:$0x1]
    %v445 = vsel %vm75, %v285, %v444
    %446 = vst [vmem:[%s438 + $0x4] sm:$0x1] %v445
    %v447 = vld [vmem:[%s438 + $0x8] sm:$0xf]
    %v448 = vsel %vm440, %v292, %v447
    %449 = vst [vmem:[%s438 + $0x8] sm:$0xf] %v448
    %v450 = vld [vmem:[%s438 + $0xc] sm:$0x1]
    %v451 = vsel %vm75, %v293, %v450
    %452 = vst [vmem:[%s438 + $0xc] sm:$0x1] %v451
    %v453 = vld [vmem:[%s438 + $0x10] sm:$0xf]
    %v454 = vsel %vm440, %v300, %v453
    %455 = vst [vmem:[%s438 + $0x10] sm:$0xf] %v454
    %v456 = vld [vmem:[%s438 + $0x14] sm:$0x1]
    %v457 = vsel %vm75, %v301, %v456
    %458 = vst [vmem:[%s438 + $0x14] sm:$0x1] %v457
    %v459 = vld [vmem:[%s438 + $0x18] sm:$0xf]
    %v460 = vsel %vm440, %v308, %v459
    %461 = vst [vmem:[%s438 + $0x18] sm:$0xf] %v460
    %v462 = vld [vmem:[%s438 + $0x1c] sm:$0x1]
    %v463 = vsel %vm75, %v309, %v462
    %464 = vst [vmem:[%s438 + $0x1c] sm:$0x1] %v463
    %v465 = vld [vmem:[%s438 + $0x20] sm:$0xf]
    %v466 = vsel %vm440, %v316, %v465
    %467 = vst [vmem:[%s438 + $0x20] sm:$0xf] %v466
    %v468 = vld [vmem:[%s438 + $0x24] sm:$0x1]
    %v469 = vsel %vm75, %v317, %v468
    %470 = vst [vmem:[%s438 + $0x24] sm:$0x1] %v469
    %v471 = vld [vmem:[%s438 + $0x28] sm:$0xf]
    %v472 = vsel %vm440, %v324, %v471
    %473 = vst [vmem:[%s438 + $0x28] sm:$0xf] %v472
    %v474 = vld [vmem:[%s438 + $0x2c] sm:$0x1]
    %v475 = vsel %vm75, %v325, %v474
    %476 = vst [vmem:[%s438 + $0x2c] sm:$0x1] %v475
    %v477 = vld [vmem:[%s438 + $0x30] sm:$0xf]
    %v478 = vsel %vm440, %v332, %v477
    %479 = vst [vmem:[%s438 + $0x30] sm:$0xf] %v478
    %v480 = vld [vmem:[%s438 + $0x34] sm:$0x1]
    %v481 = vsel %vm75, %v333, %v480
    %482 = vst [vmem:[%s438 + $0x34] sm:$0x1] %v481
    %v483 = vld [vmem:[%s438 + $0x38] sm:$0xf]
    %v484 = vsel %vm440, %v340, %v483
    %485 = vst [vmem:[%s438 + $0x38] sm:$0xf] %v484
    %v486 = vld [vmem:[%s438 + $0x3c] sm:$0x1]
    %v487 = vsel %vm75, %v341, %v486
    %488 = vst [vmem:[%s438 + $0x3c] sm:$0x1] %v487
    %v489 = vld [vmem:[%s438 + $0x50] sm:$0xf]
    %v490 = vsel %vm440, %v348, %v489
    %491 = vst [vmem:[%s438 + $0x50] sm:$0xf] %v490
    %v492 = vld [vmem:[%s438 + $0x54] sm:$0x1]
    %v493 = vsel %vm75, %v349, %v492
    %494 = vst [vmem:[%s438 + $0x54] sm:$0x1] %v493
    %v495 = vld [vmem:[%s438 + $0x58] sm:$0xf]
    %v496 = vsel %vm440, %v356, %v495
    %497 = vst [vmem:[%s438 + $0x58] sm:$0xf] %v496
    %v498 = vld [vmem:[%s438 + $0x5c] sm:$0x1]
    %v499 = vsel %vm75, %v357, %v498
    %500 = vst [vmem:[%s438 + $0x5c] sm:$0x1] %v499
    %v501 = vld [vmem:[%s438 + $0x60] sm:$0xf]
    %v502 = vsel %vm440, %v364, %v501
    %503 = vst [vmem:[%s438 + $0x60] sm:$0xf] %v502
    %v504 = vld [vmem:[%s438 + $0x64] sm:$0x1]
    %v505 = vsel %vm75, %v365, %v504
    %506 = vst [vmem:[%s438 + $0x64] sm:$0x1] %v505
    %v507 = vld [vmem:[%s438 + $0x68] sm:$0xf]
    %v508 = vsel %vm440, %v372, %v507
    %509 = vst [vmem:[%s438 + $0x68] sm:$0xf] %v508
    %v510 = vld [vmem:[%s438 + $0x6c] sm:$0x1]
    %v511 = vsel %vm75, %v373, %v510
    %512 = vst [vmem:[%s438 + $0x6c] sm:$0x1] %v511
    %v513 = vld [vmem:[%s438 + $0x70] sm:$0xf]
    %v514 = vsel %vm440, %v380, %v513
    %515 = vst [vmem:[%s438 + $0x70] sm:$0xf] %v514
    %v516 = vld [vmem:[%s438 + $0x74] sm:$0x1]
    %v517 = vsel %vm75, %v381, %v516
    %518 = vst [vmem:[%s438 + $0x74] sm:$0x1] %v517
    %v519 = vld [vmem:[%s438 + $0x78] sm:$0xf]
    %v520 = vsel %vm440, %v388, %v519
    %521 = vst [vmem:[%s438 + $0x78] sm:$0xf] %v520
    %v522 = vld [vmem:[%s438 + $0x7c] sm:$0x1]
    %v523 = vsel %vm75, %v389, %v522
    %524 = vst [vmem:[%s438 + $0x7c] sm:$0x1] %v523
    %v525 = vld [vmem:[%s438 + $0x80] sm:$0xf]
    %v526 = vsel %vm440, %v396, %v525
    %527 = vst [vmem:[%s438 + $0x80] sm:$0xf] %v526
    %v528 = vld [vmem:[%s438 + $0x84] sm:$0x1]
    %v529 = vsel %vm75, %v397, %v528
    %530 = vst [vmem:[%s438 + $0x84] sm:$0x1] %v529
    %v531 = vld [vmem:[%s438 + $0x88] sm:$0xf]
    %v532 = vsel %vm440, %v404, %v531
    %533 = vst [vmem:[%s438 + $0x88] sm:$0xf] %v532
    %v534 = vld [vmem:[%s438 + $0x8c] sm:$0x1]
    %v535 = vsel %vm75, %v405, %v534
    %536 = vst [vmem:[%s438 + $0x8c] sm:$0x1] %v535
    %v537 = vld [vmem:[#allocation2] sm:$0xf]
    %v538 = vld [vmem:[#allocation2 + $0x8] sm:$0xf]
    %v539 = vld [vmem:[#allocation2 + $0x10] sm:$0xf]
    %v540 = vld [vmem:[#allocation2 + $0x18] sm:$0xf]
    %v541 = vld [vmem:[#allocation2 + $0x20] sm:$0xf]
    %v542 = vld [vmem:[#allocation2 + $0x28] sm:$0xf]
    %v543 = vld [vmem:[#allocation2 + $0x30] sm:$0xf]
    %v544 = vld [vmem:[#allocation2 + $0x38] sm:$0xf]
    %v545 = vld [vmem:[#allocation2 + $0x50] sm:$0xf]
    %v546 = vld [vmem:[#allocation2 + $0x58] sm:$0xf]
    %v547 = vld [vmem:[#allocation2 + $0x60] sm:$0xf]
    %v548 = vld [vmem:[#allocation2 + $0x68] sm:$0xf]
    %v549 = vld [vmem:[#allocation2 + $0x70] sm:$0xf]
    %v550 = vld [vmem:[#allocation2 + $0x78] sm:$0xf]
    %v551 = vld [vmem:[#allocation2 + $0x80] sm:$0xf]
    %v552 = vld [vmem:[#allocation2 + $0x88] sm:$0xf]
    %v553 = vld [vmem:[#allocation5] sm:$0xf]
    %v554 = vld [vmem:[#allocation5 + $0x4] sm:$0xf]
    %v555 = vld [vmem:[#allocation5 + $0x8] sm:$0xf]
    %v556 = vld [vmem:[#allocation5 + $0xc] sm:$0xf]
    %v557 = vld [vmem:[#allocation2 + $0x4] sm:$0x1]
    %v558 = vld [vmem:[#allocation2 + $0xc] sm:$0x1]
    %v559 = vld [vmem:[#allocation2 + $0x14] sm:$0x1]
    %v560 = vld [vmem:[#allocation2 + $0x1c] sm:$0x1]
    %v561 = vld [vmem:[#allocation2 + $0x24] sm:$0x1]
    %v562 = vld [vmem:[#allocation2 + $0x2c] sm:$0x1]
    %v563 = vld [vmem:[#allocation2 + $0x34] sm:$0x1]
    %v564 = vld [vmem:[#allocation2 + $0x3c] sm:$0x1]
    %v565 = vld [vmem:[#allocation2 + $0x54] sm:$0x1]
    %v566 = vld [vmem:[#allocation2 + $0x5c] sm:$0x1]
    %v567 = vld [vmem:[#allocation2 + $0x64] sm:$0x1]
    %v568 = vld [vmem:[#allocation2 + $0x6c] sm:$0x1]
    %v569 = vld [vmem:[#allocation2 + $0x74] sm:$0x1]
    %v570 = vld [vmem:[#allocation2 + $0x7c] sm:$0x1]
    %v571 = vld [vmem:[#allocation2 + $0x84] sm:$0x1]
    %v572 = vld [vmem:[#allocation2 + $0x8c] sm:$0x1]
    %vm573 = vsmask.f32 3328
    %vm574 = vsmask.f32 7440
    %vm575 = vmor %vm573, %vm574
    %v577 = vshrl.u32 %v537, 16
    %v579 = vrot.slane %v577, 4
    %v580 = vshll.u32 %v537, 16
    %v582 = vrot.slane %v580, 5
    %v583 = vor.u32 %v579, %v582
    %v584 = vrot.slane %v583, 4
    %v586 = vshll.u32 %v557, 16
    %v588 = vrot.slane %v586, 5
    %v589 = vsel %vm575, %v584, %v588
    %v591 = vshrl.u32 %v538, 16
    %v593 = vrot.slane %v591, 4
    %v594 = vshll.u32 %v538, 16
    %v596 = vrot.slane %v594, 5
    %v597 = vor.u32 %v593, %v596
    %v598 = vrot.slane %v597, 4
    %v600 = vshll.u32 %v558, 16
    %v602 = vrot.slane %v600, 5
    %v603 = vsel %vm575, %v598, %v602
    %v605 = vshrl.u32 %v539, 16
    %v607 = vrot.slane %v605, 4
    %v608 = vshll.u32 %v539, 16
    %v610 = vrot.slane %v608, 5
    %v611 = vor.u32 %v607, %v610
    %v612 = vrot.slane %v611, 4
    %v614 = vshll.u32 %v559, 16
    %v616 = vrot.slane %v614, 5
    %v617 = vsel %vm575, %v612, %v616
    %v619 = vshrl.u32 %v540, 16
    %v621 = vrot.slane %v619, 4
    %v622 = vshll.u32 %v540, 16
    %v624 = vrot.slane %v622, 5
    %v625 = vor.u32 %v621, %v624
    %v626 = vrot.slane %v625, 4
    %v628 = vshll.u32 %v560, 16
    %v630 = vrot.slane %v628, 5
    %v631 = vsel %vm575, %v626, %v630
    %v633 = vshrl.u32 %v541, 16
    %v635 = vrot.slane %v633, 4
    %v636 = vshll.u32 %v541, 16
    %v638 = vrot.slane %v636, 5
    %v639 = vor.u32 %v635, %v638
    %v640 = vrot.slane %v639, 4
    %v642 = vshll.u32 %v561, 16
    %v644 = vrot.slane %v642, 5
    %v645 = vsel %vm575, %v640, %v644
    %v647 = vshrl.u32 %v542, 16
    %v649 = vrot.slane %v647, 4
    %v650 = vshll.u32 %v542, 16
    %v652 = vrot.slane %v650, 5
    %v653 = vor.u32 %v649, %v652
    %v654 = vrot.slane %v653, 4
    %v656 = vshll.u32 %v562, 16
    %v658 = vrot.slane %v656, 5
    %v659 = vsel %vm575, %v654, %v658
    %v661 = vshrl.u32 %v543, 16
    %v663 = vrot.slane %v661, 4
    %v664 = vshll.u32 %v543, 16
    %v666 = vrot.slane %v664, 5
    %v667 = vor.u32 %v663, %v666
    %v668 = vrot.slane %v667, 4
    %v670 = vshll.u32 %v563, 16
    %v672 = vrot.slane %v670, 5
    %v673 = vsel %vm575, %v668, %v672
    %v675 = vshrl.u32 %v544, 16
    %v677 = vrot.slane %v675, 4
    %v678 = vshll.u32 %v544, 16
    %v680 = vrot.slane %v678, 5
    %v681 = vor.u32 %v677, %v680
    %v682 = vrot.slane %v681, 4
    %v684 = vshll.u32 %v564, 16
    %v686 = vrot.slane %v684, 5
    %v687 = vsel %vm575, %v682, %v686
    %v689 = vshrl.u32 %v545, 16
    %v691 = vrot.slane %v689, 4
    %v692 = vshll.u32 %v545, 16
    %v694 = vrot.slane %v692, 5
    %v695 = vor.u32 %v691, %v694
    %v696 = vrot.slane %v695, 4
    %v698 = vshll.u32 %v565, 16
    %v700 = vrot.slane %v698, 5
    %v701 = vsel %vm575, %v696, %v700
    %v703 = vshrl.u32 %v546, 16
    %v705 = vrot.slane %v703, 4
    %v706 = vshll.u32 %v546, 16
    %v708 = vrot.slane %v706, 5
    %v709 = vor.u32 %v705, %v708
    %v710 = vrot.slane %v709, 4
    %v712 = vshll.u32 %v566, 16
    %v714 = vrot.slane %v712, 5
    %v715 = vsel %vm575, %v710, %v714
    %v717 = vshrl.u32 %v547, 16
    %v719 = vrot.slane %v717, 4
    %v720 = vshll.u32 %v547, 16
    %v722 = vrot.slane %v720, 5
    %v723 = vor.u32 %v719, %v722
    %v724 = vrot.slane %v723, 4
    %v726 = vshll.u32 %v567, 16
    %v728 = vrot.slane %v726, 5
    %v729 = vsel %vm575, %v724, %v728
    %v731 = vshrl.u32 %v548, 16
    %v733 = vrot.slane %v731, 4
    %v734 = vshll.u32 %v548, 16
    %v736 = vrot.slane %v734, 5
    %v737 = vor.u32 %v733, %v736
    %v738 = vrot.slane %v737, 4
    %v740 = vshll.u32 %v568, 16
    %v742 = vrot.slane %v740, 5
    %v743 = vsel %vm575, %v738, %v742
    %v745 = vshrl.u32 %v549, 16
    %v747 = vrot.slane %v745, 4
    %v748 = vshll.u32 %v549, 16
    %v750 = vrot.slane %v748, 5
    %v751 = vor.u32 %v747, %v750
    %v752 = vrot.slane %v751, 4
    %v754 = vshll.u32 %v569, 16
    %v756 = vrot.slane %v754, 5
    %v757 = vsel %vm575, %v752, %v756
    %v759 = vshrl.u32 %v550, 16
    %v761 = vrot.slane %v759, 4
    %v762 = vshll.u32 %v550, 16
    %v764 = vrot.slane %v762, 5
    %v765 = vor.u32 %v761, %v764
    %v766 = vrot.slane %v765, 4
    %v768 = vshll.u32 %v570, 16
    %v770 = vrot.slane %v768, 5
    %v771 = vsel %vm575, %v766, %v770
    %v773 = vshrl.u32 %v551, 16
    %v775 = vrot.slane %v773, 4
    %v776 = vshll.u32 %v551, 16
    %v778 = vrot.slane %v776, 5
    %v779 = vor.u32 %v775, %v778
    %v780 = vrot.slane %v779, 4
    %v782 = vshll.u32 %v571, 16
    %v784 = vrot.slane %v782, 5
    %v785 = vsel %vm575, %v780, %v784
    %v787 = vshrl.u32 %v552, 16
    %v789 = vrot.slane %v787, 4
    %v790 = vshll.u32 %v552, 16
    %v792 = vrot.slane %v790, 5
    %v793 = vor.u32 %v789, %v792
    %v794 = vrot.slane %v793, 4
    %v796 = vshll.u32 %v572, 16
    %v798 = vrot.slane %v796, 5
    %v799 = vsel %vm575, %v794, %v798
    %s800 = scalar_lea.vmem [#allocation5], 16
    %v801 = vld [vmem:[%s800] sm:$0xf]
    %v802 = vld [vmem:[%s800 + $0x4] sm:$0xf]
    %v803 = vld [vmem:[%s800 + $0x8] sm:$0xf]
    %v804 = vld [vmem:[%s800 + $0xc] sm:$0xf]
    %v805 = vunpack.c.l.b16 %v589
    %v806 = vunpack.c.l.b16 %v603
    %v807 = vunpack.c.l.b16 %v617
    %v808 = vunpack.c.l.b16 %v631
    %v809 = vunpack.c.l.b16 %v645
    %v810 = vunpack.c.l.b16 %v659
    %v811 = vunpack.c.l.b16 %v673
    %v812 = vunpack.c.l.b16 %v687
    %v813 = vunpack.c.l.b16 %v701
    %v814 = vunpack.c.l.b16 %v715
    %v815 = vunpack.c.l.b16 %v729
    %v816 = vunpack.c.l.b16 %v743
    %v817 = vunpack.c.l.b16 %v757
    %v818 = vunpack.c.l.b16 %v771
    %v819 = vunpack.c.l.b16 %v785
    %v820 = vunpack.c.l.b16 %v799
    %v821 = vpack.c.b16 %v806, %v805
    %v822 = vpack.c.b16 %v808, %v807
    %v823 = vpack.c.b16 %v810, %v809
    %v824 = vpack.c.b16 %v812, %v811
    %v825 = vpack.c.b16 %v814, %v813
    %v826 = vpack.c.b16 %v816, %v815
    %v827 = vpack.c.b16 %v818, %v817
    %v828 = vpack.c.b16 %v820, %v819
    %v833 = vunpack.c.l.b16 %v801
    %v834 = vunpack.c.l.b16 %v802
    %v835 = vunpack.c.l.b16 %v803
    %v836 = vunpack.c.l.b16 %v804
    %v837 = vpack.c.b16 %v834, %v833
    %v838 = vpack.c.b16 %v836, %v835
    %vm841 = vcmask 261120
    %v843 = vsel %vm841, %v821, 0
    %v846 = vsel %vm841, %v822, 0
    %v849 = vsel %vm841, %v823, 0
    %v852 = vsel %vm841, %v824, 0
    %v855 = vsel %vm841, %v825, 0
    %v858 = vsel %vm841, %v826, 0
    %v861 = vsel %vm841, %v827, 0
    %v864 = vsel %vm841, %v828, 0
    %866 = vmatprep.subr.bf16.mxu0 0
    %867 = vmatpush1.bf16.msra.mxu0 0
    %868 = vmatprep.subr.bf16.mxu0 0
    %869 = vmatpush1.bf16.msra.mxu0 0
    %870 = vmatprep.subr.bf16.mxu0 0
    %871 = vmatpush1.bf16.msra.mxu0 0
    %872 = vmatprep.subr.bf16.mxu0 0
    %873 = vmatpush1.bf16.msra.mxu0 0
    %874 = vmatprep.subr.bf16.mxu0 0
    %875 = vmatpush1.bf16.msra.mxu0 0
    %876 = vmatprep.subr.bf16.mxu0 0
    %877 = vmatpush1.bf16.msra.mxu0 0
    %878 = vmatprep.subr.bf16.mxu0 0
    %879 = vmatpush1.bf16.msra.mxu0 %v838
    %880 = vmatprep.subr.bf16.mxu0 0
    %881 = vmatpush1.bf16.msra.mxu0 %v837
    %882 = vmatprep.subr.bf16.mxu0 0
    %883 = vmatpush2.bf16.msra.mxu0 0
    %884 = vmatprep.subr.bf16.mxu0 0
    %885 = vmatpush2.bf16.msra.mxu0 0
    %886 = vmatprep.subr.bf16.mxu0 0
    %887 = vmatpush2.bf16.msra.mxu0 0
    %888 = vmatprep.subr.bf16.mxu0 0
    %889 = vmatpush2.bf16.msra.mxu0 0
    %890 = vmatprep.subr.bf16.mxu0 0
    %891 = vmatpush2.bf16.msra.mxu0 0
    %892 = vmatprep.subr.bf16.mxu0 0
    %893 = vmatpush2.bf16.msra.mxu0 0
    %894 = vmatprep.subr.bf16.mxu0 0
    %895 = vmatpush2.bf16.msra.mxu0 0
    %896 = vmatprep.subr.bf16.mxu0 0
    %897 = vmatpush2.bf16.msra.mxu0 0
    %898 = vmatprep.mubr.bf16.mxu0 0
    %899 = vmatmul.mubr.bf16.gmra.mxu0 %v843
    %v900 = vpop.f32.mrf.mxu0
    %v901 = vadd.f32 0.0, %v900
    %v902 = vpop.f32.mrf.mxu0
    %v903 = vpop.f32.mrf.mxu0
    %v904 = vadd.f32 0.0, %v903
    %v905 = vpop.f32.mrf.mxu0
    %906 = vmatprep.mubr.bf16.mxu0 0
    %907 = vmatmul.mubr.bf16.gmra.mxu0 %v846
    %v908 = vpop.f32.mrf.mxu0
    %v909 = vadd.f32 0.0, %v908
    %v910 = vpop.f32.mrf.mxu0
    %v911 = vpop.f32.mrf.mxu0
    %v912 = vadd.f32 0.0, %v911
    %v913 = vpop.f32.mrf.mxu0
    %914 = vmatprep.mubr.bf16.mxu0 0
    %915 = vmatmul.mubr.bf16.gmra.mxu0 %v849
    %v916 = vpop.f32.mrf.mxu0
    %v917 = vadd.f32 0.0, %v916
    %v918 = vpop.f32.mrf.mxu0
    %v919 = vpop.f32.mrf.mxu0
    %v920 = vadd.f32 0.0, %v919
    %v921 = vpop.f32.mrf.mxu0
    %922 = vmatprep.mubr.bf16.mxu0 0
    %923 = vmatmul.mubr.bf16.gmra.mxu0 %v852
    %v924 = vpop.f32.mrf.mxu0
    %v925 = vadd.f32 0.0, %v924
    %v926 = vpop.f32.mrf.mxu0
    %v927 = vpop.f32.mrf.mxu0
    %v928 = vadd.f32 0.0, %v927
    %v929 = vpop.f32.mrf.mxu0
    %930 = vmatprep.mubr.bf16.mxu0 0
    %931 = vmatmul.mubr.bf16.gmra.mxu0 %v855
    %v932 = vpop.f32.mrf.mxu0
    %v933 = vadd.f32 0.0, %v932
    %v934 = vpop.f32.mrf.mxu0
    %v935 = vpop.f32.mrf.mxu0
    %v936 = vadd.f32 0.0, %v935
    %v937 = vpop.f32.mrf.mxu0
    %938 = vmatprep.mubr.bf16.mxu0 0
    %939 = vmatmul.mubr.bf16.gmra.mxu0 %v858
    %v940 = vpop.f32.mrf.mxu0
    %v941 = vadd.f32 0.0, %v940
    %v942 = vpop.f32.mrf.mxu0
    %v943 = vpop.f32.mrf.mxu0
    %v944 = vadd.f32 0.0, %v943
    %v945 = vpop.f32.mrf.mxu0
    %946 = vmatprep.mubr.bf16.mxu0 0
    %947 = vmatmul.mubr.bf16.gmra.mxu0 %v861
    %v948 = vpop.f32.mrf.mxu0
    %v949 = vadd.f32 0.0, %v948
    %v950 = vpop.f32.mrf.mxu0
    %v951 = vpop.f32.mrf.mxu0
    %v952 = vadd.f32 0.0, %v951
    %v953 = vpop.f32.mrf.mxu0
    %954 = vmatprep.mubr.bf16.mxu0 0
    %955 = vmatmul.mubr.bf16.gmra.mxu0 %v864
    %v956 = vpop.f32.mrf.mxu0
    %v957 = vadd.f32 0.0, %v956
    %v958 = vpop.f32.mrf.mxu0
    %v959 = vpop.f32.mrf.mxu0
    %v960 = vadd.f32 0.0, %v959
    %v961 = vpop.f32.mrf.mxu0
    %962 = vdwg.mxu0
    %v979 = vunpack.c.l.b16 %v537
    %v980 = vunpack.c.l.b16 %v538
    %v981 = vunpack.c.l.b16 %v539
    %v982 = vunpack.c.l.b16 %v540
    %v983 = vunpack.c.l.b16 %v541
    %v984 = vunpack.c.l.b16 %v542
    %v985 = vunpack.c.l.b16 %v543
    %v986 = vunpack.c.l.b16 %v544
    %v987 = vunpack.c.l.b16 %v545
    %v988 = vunpack.c.l.b16 %v546
    %v989 = vunpack.c.l.b16 %v547
    %v990 = vunpack.c.l.b16 %v548
    %v991 = vunpack.c.l.b16 %v549
    %v992 = vunpack.c.l.b16 %v550
    %v993 = vunpack.c.l.b16 %v551
    %v994 = vunpack.c.l.b16 %v552
    %v995 = vpack.c.b16 %v980, %v979
    %v996 = vpack.c.b16 %v982, %v981
    %v997 = vpack.c.b16 %v984, %v983
    %v998 = vpack.c.b16 %v986, %v985
    %v999 = vpack.c.b16 %v988, %v987
    %v1000 = vpack.c.b16 %v990, %v989
    %v1001 = vpack.c.b16 %v992, %v991
    %v1002 = vpack.c.b16 %v994, %v993
    %v1007 = vunpack.c.l.b16 %v553
    %v1008 = vunpack.c.l.b16 %v554
    %v1009 = vunpack.c.l.b16 %v555
    %v1010 = vunpack.c.l.b16 %v556
    %v1011 = vpack.c.b16 %v1008, %v1007
    %v1012 = vpack.c.b16 %v1010, %v1009
    %v1016 = vsel %vm841, %v995, 0
    %v1019 = vsel %vm841, %v996, 0
    %v1022 = vsel %vm841, %v997, 0
    %v1025 = vsel %vm841, %v998, 0
    %v1028 = vsel %vm841, %v999, 0
    %v1031 = vsel %vm841, %v1000, 0
    %v1034 = vsel %vm841, %v1001, 0
    %v1037 = vsel %vm841, %v1002, 0
    %1039 = vmatprep.subr.bf16.mxu0 0
    %1040 = vmatpush1.bf16.msra.mxu0 0
    %1041 = vmatprep.subr.bf16.mxu0 0
    %1042 = vmatpush1.bf16.msra.mxu0 0
    %1043 = vmatprep.subr.bf16.mxu0 0
    %1044 = vmatpush1.bf16.msra.mxu0 0
    %1045 = vmatprep.subr.bf16.mxu0 0
    %1046 = vmatpush1.bf16.msra.mxu0 0
    %1047 = vmatprep.subr.bf16.mxu0 0
    %1048 = vmatpush1.bf16.msra.mxu0 0
    %1049 = vmatprep.subr.bf16.mxu0 0
    %1050 = vmatpush1.bf16.msra.mxu0 0
    %1051 = vmatprep.subr.bf16.mxu0 0
    %1052 = vmatpush1.bf16.msra.mxu0 %v1012
    %1053 = vmatprep.subr.bf16.mxu0 0
    %1054 = vmatpush1.bf16.msra.mxu0 %v1011
    %1055 = vmatprep.subr.bf16.mxu0 0
    %1056 = vmatpush2.bf16.msra.mxu0 0
    %1057 = vmatprep.subr.bf16.mxu0 0
    %1058 = vmatpush2.bf16.msra.mxu0 0
    %1059 = vmatprep.subr.bf16.mxu0 0
    %1060 = vmatpush2.bf16.msra.mxu0 0
    %1061 = vmatprep.subr.bf16.mxu0 0
    %1062 = vmatpush2.bf16.msra.mxu0 0
    %1063 = vmatprep.subr.bf16.mxu0 0
    %1064 = vmatpush2.bf16.msra.mxu0 0
    %1065 = vmatprep.subr.bf16.mxu0 0
    %1066 = vmatpush2.bf16.msra.mxu0 0
    %1067 = vmatprep.subr.bf16.mxu0 0
    %1068 = vmatpush2.bf16.msra.mxu0 0
    %1069 = vmatprep.subr.bf16.mxu0 0
    %1070 = vmatpush2.bf16.msra.mxu0 0
    %1071 = vmatprep.mubr.bf16.mxu0 0
    %1072 = vmatmul.mubr.bf16.gmra.mxu0 %v1016
    %v1073 = vpop.f32.mrf.mxu0
    %v1074 = vadd.f32 %v901, %v1073
    %v1075 = vpop.f32.mrf.mxu0
    %v1076 = vpop.f32.mrf.mxu0
    %v1077 = vadd.f32 %v904, %v1076
    %v1078 = vpop.f32.mrf.mxu0
    %1079 = vmatprep.mubr.bf16.mxu0 0
    %1080 = vmatmul.mubr.bf16.gmra.mxu0 %v1019
    %v1081 = vpop.f32.mrf.mxu0
    %v1082 = vadd.f32 %v909, %v1081
    %v1083 = vpop.f32.mrf.mxu0
    %v1084 = vpop.f32.mrf.mxu0
    %v1085 = vadd.f32 %v912, %v1084
    %v1086 = vpop.f32.mrf.mxu0
    %1087 = vmatprep.mubr.bf16.mxu0 0
    %1088 = vmatmul.mubr.bf16.gmra.mxu0 %v1022
    %v1089 = vpop.f32.mrf.mxu0
    %v1090 = vadd.f32 %v917, %v1089
    %v1091 = vpop.f32.mrf.mxu0
    %v1092 = vpop.f32.mrf.mxu0
    %v1093 = vadd.f32 %v920, %v1092
    %v1094 = vpop.f32.mrf.mxu0
    %1095 = vmatprep.mubr.bf16.mxu0 0
    %1096 = vmatmul.mubr.bf16.gmra.mxu0 %v1025
    %v1097 = vpop.f32.mrf.mxu0
    %v1098 = vadd.f32 %v925, %v1097
    %v1099 = vpop.f32.mrf.mxu0
    %v1100 = vpop.f32.mrf.mxu0
    %v1101 = vadd.f32 %v928, %v1100
    %v1102 = vpop.f32.mrf.mxu0
    %1103 = vmatprep.mubr.bf16.mxu0 0
    %1104 = vmatmul.mubr.bf16.gmra.mxu0 %v1028
    %v1105 = vpop.f32.mrf.mxu0
    %v1106 = vadd.f32 %v933, %v1105
    %v1107 = vpop.f32.mrf.mxu0
    %v1108 = vpop.f32.mrf.mxu0
    %v1109 = vadd.f32 %v936, %v1108
    %v1110 = vpop.f32.mrf.mxu0
    %1111 = vmatprep.mubr.bf16.mxu0 0
    %1112 = vmatmul.mubr.bf16.gmra.mxu0 %v1031
    %v1113 = vpop.f32.mrf.mxu0
    %v1114 = vadd.f32 %v941, %v1113
    %v1115 = vpop.f32.mrf.mxu0
    %v1116 = vpop.f32.mrf.mxu0
    %v1117 = vadd.f32 %v944, %v1116
    %v1118 = vpop.f32.mrf.mxu0
    %1119 = vmatprep.mubr.bf16.mxu0 0
    %1120 = vmatmul.mubr.bf16.gmra.mxu0 %v1034
    %v1121 = vpop.f32.mrf.mxu0
    %v1122 = vadd.f32 %v949, %v1121
    %v1123 = vpop.f32.mrf.mxu0
    %v1124 = vpop.f32.mrf.mxu0
    %v1125 = vadd.f32 %v952, %v1124
    %v1126 = vpop.f32.mrf.mxu0
    %1127 = vmatprep.mubr.bf16.mxu0 0
    %1128 = vmatmul.mubr.bf16.gmra.mxu0 %v1037
    %v1129 = vpop.f32.mrf.mxu0
    %v1130 = vadd.f32 %v957, %v1129
    %v1131 = vpop.f32.mrf.mxu0
    %v1132 = vpop.f32.mrf.mxu0
    %v1133 = vadd.f32 %v960, %v1132
    %v1134 = vpop.f32.mrf.mxu0
    %1135 = vdwg.mxu0
    %v1136 = vld [vmem:[#allocation2] sm:$0xe]
    %v1137 = vld [vmem:[#allocation2 + $0x8] sm:$0xe]
    %v1138 = vld [vmem:[#allocation2 + $0x10] sm:$0xe]
    %v1139 = vld [vmem:[#allocation2 + $0x18] sm:$0xe]
    %v1140 = vld [vmem:[#allocation2 + $0x20] sm:$0xe]
    %v1141 = vld [vmem:[#allocation2 + $0x28] sm:$0xe]
    %v1142 = vld [vmem:[#allocation2 + $0x30] sm:$0xe]
    %v1143 = vld [vmem:[#allocation2 + $0x38] sm:$0xe]
    %v1144 = vld [vmem:[#allocation2 + $0x50] sm:$0xe]
    %v1145 = vld [vmem:[#allocation2 + $0x58] sm:$0xe]
    %v1146 = vld [vmem:[#allocation2 + $0x60] sm:$0xe]
    %v1147 = vld [vmem:[#allocation2 + $0x68] sm:$0xe]
    %v1148 = vld [vmem:[#allocation2 + $0x70] sm:$0xe]
    %v1149 = vld [vmem:[#allocation2 + $0x78] sm:$0xe]
    %v1150 = vld [vmem:[#allocation2 + $0x80] sm:$0xe]
    %v1151 = vld [vmem:[#allocation2 + $0x88] sm:$0xe]
    %vm1184 = vcmask 1042432
    %vm1185 = vcmask 1046532
    %vm1186 = vmor %vm1184, %vm1185
    %v1187 = vrot.slane %v1136, 5
    %v1188 = vrot.slane %v1187, 4
    %v1189 = vrot.slane %v557, 5
    %v1190 = vsel %vm1186, %v1188, %v1189
    %v1191 = vrot.slane %v1137, 5
    %v1192 = vrot.slane %v1191, 4
    %v1193 = vrot.slane %v558, 5
    %v1194 = vsel %vm1186, %v1192, %v1193
    %v1195 = vrot.slane %v1138, 5
    %v1196 = vrot.slane %v1195, 4
    %v1197 = vrot.slane %v559, 5
    %v1198 = vsel %vm1186, %v1196, %v1197
    %v1199 = vrot.slane %v1139, 5
    %v1200 = vrot.slane %v1199, 4
    %v1201 = vrot.slane %v560, 5
    %v1202 = vsel %vm1186, %v1200, %v1201
    %v1203 = vrot.slane %v1140, 5
    %v1204 = vrot.slane %v1203, 4
    %v1205 = vrot.slane %v561, 5
    %v1206 = vsel %vm1186, %v1204, %v1205
    %v1207 = vrot.slane %v1141, 5
    %v1208 = vrot.slane %v1207, 4
    %v1209 = vrot.slane %v562, 5
    %v1210 = vsel %vm1186, %v1208, %v1209
    %v1211 = vrot.slane %v1142, 5
    %v1212 = vrot.slane %v1211, 4
    %v1213 = vrot.slane %v563, 5
    %v1214 = vsel %vm1186, %v1212, %v1213
    %v1215 = vrot.slane %v1143, 5
    %v1216 = vrot.slane %v1215, 4
    %v1217 = vrot.slane %v564, 5
    %v1218 = vsel %vm1186, %v1216, %v1217
    %v1219 = vrot.slane %v1144, 5
    %v1220 = vrot.slane %v1219, 4
    %v1221 = vrot.slane %v565, 5
    %v1222 = vsel %vm1186, %v1220, %v1221
    %v1223 = vrot.slane %v1145, 5
    %v1224 = vrot.slane %v1223, 4
    %v1225 = vrot.slane %v566, 5
    %v1226 = vsel %vm1186, %v1224, %v1225
    %v1227 = vrot.slane %v1146, 5
    %v1228 = vrot.slane %v1227, 4
    %v1229 = vrot.slane %v567, 5
    %v1230 = vsel %vm1186, %v1228, %v1229
    %v1231 = vrot.slane %v1147, 5
    %v1232 = vrot.slane %v1231, 4
    %v1233 = vrot.slane %v568, 5
    %v1234 = vsel %vm1186, %v1232, %v1233
    %v1235 = vrot.slane %v1148, 5
    %v1236 = vrot.slane %v1235, 4
    %v1237 = vrot.slane %v569, 5
    %v1238 = vsel %vm1186, %v1236, %v1237
    %v1239 = vrot.slane %v1149, 5
    %v1240 = vrot.slane %v1239, 4
    %v1241 = vrot.slane %v570, 5
    %v1242 = vsel %vm1186, %v1240, %v1241
    %v1243 = vrot.slane %v1150, 5
    %v1244 = vrot.slane %v1243, 4
    %v1245 = vrot.slane %v571, 5
    %v1246 = vsel %vm1186, %v1244, %v1245
    %v1247 = vrot.slane %v1151, 5
    %v1248 = vrot.slane %v1247, 4
    %v1249 = vrot.slane %v572, 5
    %v1250 = vsel %vm1186, %v1248, %v1249
    %s1251 = scalar_lea.vmem [#allocation5], 32
    %v1252 = vld [vmem:[%s1251] sm:$0xf]
    %v1253 = vld [vmem:[%s1251 + $0x4] sm:$0xf]
    %v1254 = vld [vmem:[%s1251 + $0x8] sm:$0xf]
    %v1255 = vld [vmem:[%s1251 + $0xc] sm:$0xf]
    %v1256 = vunpack.c.l.b16 %v1190
    %v1257 = vunpack.c.l.b16 %v1194
    %v1258 = vunpack.c.l.b16 %v1198
    %v1259 = vunpack.c.l.b16 %v1202
    %v1260 = vunpack.c.l.b16 %v1206
    %v1261 = vunpack.c.l.b16 %v1210
    %v1262 = vunpack.c.l.b16 %v1214
    %v1263 = vunpack.c.l.b16 %v1218
    %v1264 = vunpack.c.l.b16 %v1222
    %v1265 = vunpack.c.l.b16 %v1226
    %v1266 = vunpack.c.l.b16 %v1230
    %v1267 = vunpack.c.l.b16 %v1234
    %v1268 = vunpack.c.l.b16 %v1238
    %v1269 = vunpack.c.l.b16 %v1242
    %v1270 = vunpack.c.l.b16 %v1246
    %v1271 = vunpack.c.l.b16 %v1250
    %v1272 = vpack.c.b16 %v1257, %v1256
    %v1273 = vpack.c.b16 %v1259, %v1258
    %v1274 = vpack.c.b16 %v1261, %v1260
    %v1275 = vpack.c.b16 %v1263, %v1262
    %v1276 = vpack.c.b16 %v1265, %v1264
    %v1277 = vpack.c.b16 %v1267, %v1266
    %v1278 = vpack.c.b16 %v1269, %v1268
    %v1279 = vpack.c.b16 %v1271, %v1270
    %v1284 = vunpack.c.l.b16 %v1252
    %v1285 = vunpack.c.l.b16 %v1253
    %v1286 = vunpack.c.l.b16 %v1254
    %v1287 = vunpack.c.l.b16 %v1255
    %v1288 = vpack.c.b16 %v1285, %v1284
    %v1289 = vpack.c.b16 %v1287, %v1286
    %v1293 = vsel %vm841, %v1272, 0
    %v1296 = vsel %vm841, %v1273, 0
    %v1299 = vsel %vm841, %v1274, 0
    %v1302 = vsel %vm841, %v1275, 0
    %v1305 = vsel %vm841, %v1276, 0
    %v1308 = vsel %vm841, %v1277, 0
    %v1311 = vsel %vm841, %v1278, 0
    %v1314 = vsel %vm841, %v1279, 0
    %1316 = vmatprep.subr.bf16.mxu0 0
    %1317 = vmatpush1.bf16.msra.mxu0 0
    %1318 = vmatprep.subr.bf16.mxu0 0
    %1319 = vmatpush1.bf16.msra.mxu0 0
    %1320 = vmatprep.subr.bf16.mxu0 0
    %1321 = vmatpush1.bf16.msra.mxu0 0
    %1322 = vmatprep.subr.bf16.mxu0 0
    %1323 = vmatpush1.bf16.msra.mxu0 0
    %1324 = vmatprep.subr.bf16.mxu0 0
    %1325 = vmatpush1.bf16.msra.mxu0 0
    %1326 = vmatprep.subr.bf16.mxu0 0
    %1327 = vmatpush1.bf16.msra.mxu0 0
    %1328 = vmatprep.subr.bf16.mxu0 0
    %1329 = vmatpush1.bf16.msra.mxu0 %v1289
    %1330 = vmatprep.subr.bf16.mxu0 0
    %1331 = vmatpush1.bf16.msra.mxu0 %v1288
    %1332 = vmatprep.subr.bf16.mxu0 0
    %1333 = vmatpush2.bf16.msra.mxu0 0
    %1334 = vmatprep.subr.bf16.mxu0 0
    %1335 = vmatpush2.bf16.msra.mxu0 0
    %1336 = vmatprep.subr.bf16.mxu0 0
    %1337 = vmatpush2.bf16.msra.mxu0 0
    %1338 = vmatprep.subr.bf16.mxu0 0
    %1339 = vmatpush2.bf16.msra.mxu0 0
    %1340 = vmatprep.subr.bf16.mxu0 0
    %1341 = vmatpush2.bf16.msra.mxu0 0
    %1342 = vmatprep.subr.bf16.mxu0 0
    %1343 = vmatpush2.bf16.msra.mxu0 0
    %1344 = vmatprep.subr.bf16.mxu0 0
    %1345 = vmatpush2.bf16.msra.mxu0 0
    %1346 = vmatprep.subr.bf16.mxu0 0
    %1347 = vmatpush2.bf16.msra.mxu0 0
    %1348 = vmatprep.mubr.bf16.mxu0 0
    %1349 = vmatmul.mubr.bf16.gmra.mxu0 %v1293
    %v1350 = vpop.f32.mrf.mxu0
    %v1351 = vadd.f32 0.0, %v1350
    %v1352 = vpop.f32.mrf.mxu0
    %v1353 = vpop.f32.mrf.mxu0
    %v1354 = vadd.f32 0.0, %v1353
    %v1355 = vpop.f32.mrf.mxu0
    %1356 = vmatprep.mubr.bf16.mxu0 0
    %1357 = vmatmul.mubr.bf16.gmra.mxu0 %v1296
    %v1358 = vpop.f32.mrf.mxu0
    %v1359 = vadd.f32 0.0, %v1358
    %v1360 = vpop.f32.mrf.mxu0
    %v1361 = vpop.f32.mrf.mxu0
    %v1362 = vadd.f32 0.0, %v1361
    %v1363 = vpop.f32.mrf.mxu0
    %1364 = vmatprep.mubr.bf16.mxu0 0
    %1365 = vmatmul.mubr.bf16.gmra.mxu0 %v1299
    %v1366 = vpop.f32.mrf.mxu0
    %v1367 = vadd.f32 0.0, %v1366
    %v1368 = vpop.f32.mrf.mxu0
    %v1369 = vpop.f32.mrf.mxu0
    %v1370 = vadd.f32 0.0, %v1369
    %v1371 = vpop.f32.mrf.mxu0
    %1372 = vmatprep.mubr.bf16.mxu0 0
    %1373 = vmatmul.mubr.bf16.gmra.mxu0 %v1302
    %v1374 = vpop.f32.mrf.mxu0
    %v1375 = vadd.f32 0.0, %v1374
    %v1376 = vpop.f32.mrf.mxu0
    %v1377 = vpop.f32.mrf.mxu0
    %v1378 = vadd.f32 0.0, %v1377
    %v1379 = vpop.f32.mrf.mxu0
    %1380 = vmatprep.mubr.bf16.mxu0 0
    %1381 = vmatmul.mubr.bf16.gmra.mxu0 %v1305
    %v1382 = vpop.f32.mrf.mxu0
    %v1383 = vadd.f32 0.0, %v1382
    %v1384 = vpop.f32.mrf.mxu0
    %v1385 = vpop.f32.mrf.mxu0
    %v1386 = vadd.f32 0.0, %v1385
    %v1387 = vpop.f32.mrf.mxu0
    %1388 = vmatprep.mubr.bf16.mxu0 0
    %1389 = vmatmul.mubr.bf16.gmra.mxu0 %v1308
    %v1390 = vpop.f32.mrf.mxu0
    %v1391 = vadd.f32 0.0, %v1390
    %v1392 = vpop.f32.mrf.mxu0
    %v1393 = vpop.f32.mrf.mxu0
    %v1394 = vadd.f32 0.0, %v1393
    %v1395 = vpop.f32.mrf.mxu0
    %1396 = vmatprep.mubr.bf16.mxu0 0
    %1397 = vmatmul.mubr.bf16.gmra.mxu0 %v1311
    %v1398 = vpop.f32.mrf.mxu0
    %v1399 = vadd.f32 0.0, %v1398
    %v1400 = vpop.f32.mrf.mxu0
    %v1401 = vpop.f32.mrf.mxu0
    %v1402 = vadd.f32 0.0, %v1401
    %v1403 = vpop.f32.mrf.mxu0
    %1404 = vmatprep.mubr.bf16.mxu0 0
    %1405 = vmatmul.mubr.bf16.gmra.mxu0 %v1314
    %v1406 = vpop.f32.mrf.mxu0
    %v1407 = vadd.f32 0.0, %v1406
    %v1408 = vpop.f32.mrf.mxu0
    %v1409 = vpop.f32.mrf.mxu0
    %v1410 = vadd.f32 0.0, %v1409
    %v1411 = vpop.f32.mrf.mxu0
    %1412 = vdwg.mxu0
    %v1413 = vadd.f32 %v1074, %v1351
    %v1414 = vadd.f32 %v1077, %v1354
    %v1415 = vadd.f32 %v1082, %v1359
    %v1416 = vadd.f32 %v1085, %v1362
    %v1417 = vadd.f32 %v1090, %v1367
    %v1418 = vadd.f32 %v1093, %v1370
    %v1419 = vadd.f32 %v1098, %v1375
    %v1420 = vadd.f32 %v1101, %v1378
    %v1421 = vadd.f32 %v1106, %v1383
    %v1422 = vadd.f32 %v1109, %v1386
    %v1423 = vadd.f32 %v1114, %v1391
    %v1424 = vadd.f32 %v1117, %v1394
    %v1425 = vadd.f32 %v1122, %v1399
    %v1426 = vadd.f32 %v1125, %v1402
    %v1427 = vadd.f32 %v1130, %v1407
    %v1428 = vadd.f32 %v1133, %v1410
    %v1429 = vld [vmem:[%s438] sm:$0xf]
    %v1430 = vld [vmem:[%s438 + $0x8] sm:$0xf]
    %v1431 = vld [vmem:[%s438 + $0x10] sm:$0xf]
    %v1432 = vld [vmem:[%s438 + $0x18] sm:$0xf]
    %v1433 = vld [vmem:[%s438 + $0x20] sm:$0xf]
    %v1434 = vld [vmem:[%s438 + $0x28] sm:$0xf]
    %v1435 = vld [vmem:[%s438 + $0x30] sm:$0xf]
    %v1436 = vld [vmem:[%s438 + $0x38] sm:$0xf]
    %v1437 = vld [vmem:[%s438 + $0x50] sm:$0xf]
    %v1438 = vld [vmem:[%s438 + $0x58] sm:$0xf]
    %v1439 = vld [vmem:[%s438 + $0x60] sm:$0xf]
    %v1440 = vld [vmem:[%s438 + $0x68] sm:$0xf]
    %v1441 = vld [vmem:[%s438 + $0x70] sm:$0xf]
    %v1442 = vld [vmem:[%s438 + $0x78] sm:$0xf]
    %v1443 = vld [vmem:[%s438 + $0x80] sm:$0xf]
    %v1444 = vld [vmem:[%s438 + $0x88] sm:$0xf]
    %s1445 = scalar_lea.vmem [#allocation5], 48
    %v1446 = vld [vmem:[%s1445] sm:$0xf]
    %v1447 = vld [vmem:[%s1445 + $0x4] sm:$0xf]
    %v1448 = vld [vmem:[%s1445 + $0x8] sm:$0xf]
    %v1449 = vld [vmem:[%s1445 + $0xc] sm:$0xf]
    %v1466 = vunpack.c.l.b16 %v1429
    %v1467 = vunpack.c.l.b16 %v1430
    %v1468 = vunpack.c.l.b16 %v1431
    %v1469 = vunpack.c.l.b16 %v1432
    %v1470 = vunpack.c.l.b16 %v1433
    %v1471 = vunpack.c.l.b16 %v1434
    %v1472 = vunpack.c.l.b16 %v1435
    %v1473 = vunpack.c.l.b16 %v1436
    %v1474 = vunpack.c.l.b16 %v1437
    %v1475 = vunpack.c.l.b16 %v1438
    %v1476 = vunpack.c.l.b16 %v1439
    %v1477 = vunpack.c.l.b16 %v1440
    %v1478 = vunpack.c.l.b16 %v1441
    %v1479 = vunpack.c.l.b16 %v1442
    %v1480 = vunpack.c.l.b16 %v1443
    %v1481 = vunpack.c.l.b16 %v1444
    %v1482 = vpack.c.b16 %v1467, %v1466
    %v1483 = vpack.c.b16 %v1469, %v1468
    %v1484 = vpack.c.b16 %v1471, %v1470
    %v1485 = vpack.c.b16 %v1473, %v1472
    %v1486 = vpack.c.b16 %v1475, %v1474
    %v1487 = vpack.c.b16 %v1477, %v1476
    %v1488 = vpack.c.b16 %v1479, %v1478
    %v1489 = vpack.c.b16 %v1481, %v1480
    %v1494 = vunpack.c.l.b16 %v1446
    %v1495 = vunpack.c.l.b16 %v1447
    %v1496 = vunpack.c.l.b16 %v1448
    %v1497 = vunpack.c.l.b16 %v1449
    %v1498 = vpack.c.b16 %v1495, %v1494
    %v1499 = vpack.c.b16 %v1497, %v1496
    %v1503 = vsel %vm841, %v1482, 0
    %v1506 = vsel %vm841, %v1483, 0
    %v1509 = vsel %vm841, %v1484, 0
    %v1512 = vsel %vm841, %v1485, 0
    %v1515 = vsel %vm841, %v1486, 0
    %v1518 = vsel %vm841, %v1487, 0
    %v1521 = vsel %vm841, %v1488, 0
    %v1524 = vsel %vm841, %v1489, 0
    %1526 = vmatprep.subr.bf16.mxu0 0
    %1527 = vmatpush1.bf16.msra.mxu0 0
    %1528 = vmatprep.subr.bf16.mxu0 0
    %1529 = vmatpush1.bf16.msra.mxu0 0
    %1530 = vmatprep.subr.bf16.mxu0 0
    %1531 = vmatpush1.bf16.msra.mxu0 0
    %1532 = vmatprep.subr.bf16.mxu0 0
    %1533 = vmatpush1.bf16.msra.mxu0 0
    %1534 = vmatprep.subr.bf16.mxu0 0
    %1535 = vmatpush1.bf16.msra.mxu0 0
    %1536 = vmatprep.subr.bf16.mxu0 0
    %1537 = vmatpush1.bf16.msra.mxu0 0
    %1538 = vmatprep.subr.bf16.mxu0 0
    %1539 = vmatpush1.bf16.msra.mxu0 %v1499
    %1540 = vmatprep.subr.bf16.mxu0 0
    %1541 = vmatpush1.bf16.msra.mxu0 %v1498
    %1542 = vmatprep.subr.bf16.mxu0 0
    %1543 = vmatpush2.bf16.msra.mxu0 0
    %1544 = vmatprep.subr.bf16.mxu0 0
    %1545 = vmatpush2.bf16.msra.mxu0 0
    %1546 = vmatprep.subr.bf16.mxu0 0
    %1547 = vmatpush2.bf16.msra.mxu0 0
    %1548 = vmatprep.subr.bf16.mxu0 0
    %1549 = vmatpush2.bf16.msra.mxu0 0
    %1550 = vmatprep.subr.bf16.mxu0 0
    %1551 = vmatpush2.bf16.msra.mxu0 0
    %1552 = vmatprep.subr.bf16.mxu0 0
    %1553 = vmatpush2.bf16.msra.mxu0 0
    %1554 = vmatprep.subr.bf16.mxu0 0
    %1555 = vmatpush2.bf16.msra.mxu0 0
    %1556 = vmatprep.subr.bf16.mxu0 0
    %1557 = vmatpush2.bf16.msra.mxu0 0
    %1558 = vmatprep.mubr.bf16.mxu0 0
    %1559 = vmatmul.mubr.bf16.gmra.mxu0 %v1503
    %v1560 = vpop.f32.mrf.mxu0
    %v1561 = vadd.f32 0.0, %v1560
    %v1562 = vpop.f32.mrf.mxu0
    %v1563 = vpop.f32.mrf.mxu0
    %v1564 = vadd.f32 0.0, %v1563
    %v1565 = vpop.f32.mrf.mxu0
    %1566 = vmatprep.mubr.bf16.mxu0 0
    %1567 = vmatmul.mubr.bf16.gmra.mxu0 %v1506
    %v1568 = vpop.f32.mrf.mxu0
    %v1569 = vadd.f32 0.0, %v1568
    %v1570 = vpop.f32.mrf.mxu0
    %v1571 = vpop.f32.mrf.mxu0
    %v1572 = vadd.f32 0.0, %v1571
    %v1573 = vpop.f32.mrf.mxu0
    %1574 = vmatprep.mubr.bf16.mxu0 0
    %1575 = vmatmul.mubr.bf16.gmra.mxu0 %v1509
    %v1576 = vpop.f32.mrf.mxu0
    %v1577 = vadd.f32 0.0, %v1576
    %v1578 = vpop.f32.mrf.mxu0
    %v1579 = vpop.f32.mrf.mxu0
    %v1580 = vadd.f32 0.0, %v1579
    %v1581 = vpop.f32.mrf.mxu0
    %1582 = vmatprep.mubr.bf16.mxu0 0
    %1583 = vmatmul.mubr.bf16.gmra.mxu0 %v1512
    %v1584 = vpop.f32.mrf.mxu0
    %v1585 = vadd.f32 0.0, %v1584
    %v1586 = vpop.f32.mrf.mxu0
    %v1587 = vpop.f32.mrf.mxu0
    %v1588 = vadd.f32 0.0, %v1587
    %v1589 = vpop.f32.mrf.mxu0
    %1590 = vmatprep.mubr.bf16.mxu0 0
    %1591 = vmatmul.mubr.bf16.gmra.mxu0 %v1515
    %v1592 = vpop.f32.mrf.mxu0
    %v1593 = vadd.f32 0.0, %v1592
    %v1594 = vpop.f32.mrf.mxu0
    %v1595 = vpop.f32.mrf.mxu0
    %v1596 = vadd.f32 0.0, %v1595
    %v1597 = vpop.f32.mrf.mxu0
    %1598 = vmatprep.mubr.bf16.mxu0 0
    %1599 = vmatmul.mubr.bf16.gmra.mxu0 %v1518
    %v1600 = vpop.f32.mrf.mxu0
    %v1601 = vadd.f32 0.0, %v1600
    %v1602 = vpop.f32.mrf.mxu0
    %v1603 = vpop.f32.mrf.mxu0
    %v1604 = vadd.f32 0.0, %v1603
    %v1605 = vpop.f32.mrf.mxu0
    %1606 = vmatprep.mubr.bf16.mxu0 0
    %1607 = vmatmul.mubr.bf16.gmra.mxu0 %v1521
    %v1608 = vpop.f32.mrf.mxu0
    %v1609 = vadd.f32 0.0, %v1608
    %v1610 = vpop.f32.mrf.mxu0
    %v1611 = vpop.f32.mrf.mxu0
    %v1612 = vadd.f32 0.0, %v1611
    %v1613 = vpop.f32.mrf.mxu0
    %1614 = vmatprep.mubr.bf16.mxu0 0
    %1615 = vmatmul.mubr.bf16.gmra.mxu0 %v1524
    %v1616 = vpop.f32.mrf.mxu0
    %v1617 = vadd.f32 0.0, %v1616
    %v1618 = vpop.f32.mrf.mxu0
    %v1619 = vpop.f32.mrf.mxu0
    %v1620 = vadd.f32 0.0, %v1619
    %v1621 = vpop.f32.mrf.mxu0
    %1622 = vdwg.mxu0
    %v1623 = vadd.f32 %v1413, %v1561
    %v1624 = vadd.f32 %v1414, %v1564
    %v1625 = vadd.f32 %v1415, %v1569
    %v1626 = vadd.f32 %v1416, %v1572
    %v1627 = vadd.f32 %v1417, %v1577
    %v1628 = vadd.f32 %v1418, %v1580
    %v1629 = vadd.f32 %v1419, %v1585
    %v1630 = vadd.f32 %v1420, %v1588
    %v1631 = vadd.f32 %v1421, %v1593
    %v1632 = vadd.f32 %v1422, %v1596
    %v1633 = vadd.f32 %v1423, %v1601
    %v1634 = vadd.f32 %v1424, %v1604
    %v1635 = vadd.f32 %v1425, %v1609
    %v1636 = vadd.f32 %v1426, %v1612
    %v1637 = vadd.f32 %v1427, %v1617
    %v1638 = vadd.f32 %v1428, %v1620
    %v1639 = vld [vmem:[%s438] sm:$0xf]
    %v1640 = vld [vmem:[%s438 + $0x4] sm:$0x1]
    %v1641 = vld [vmem:[%s438 + $0x8] sm:$0xf]
    %v1642 = vld [vmem:[%s438 + $0xc] sm:$0x1]
    %v1643 = vld [vmem:[%s438 + $0x10] sm:$0xf]
    %v1644 = vld [vmem:[%s438 + $0x14] sm:$0x1]
    %v1645 = vld [vmem:[%s438 + $0x18] sm:$0xf]
    %v1646 = vld [vmem:[%s438 + $0x1c] sm:$0x1]
    %v1647 = vld [vmem:[%s438 + $0x20] sm:$0xf]
    %v1648 = vld [vmem:[%s438 + $0x24] sm:$0x1]
    %v1649 = vld [vmem:[%s438 + $0x28] sm:$0xf]
    %v1650 = vld [vmem:[%s438 + $0x2c] sm:$0x1]
    %v1651 = vld [vmem:[%s438 + $0x30] sm:$0xf]
    %v1652 = vld [vmem:[%s438 + $0x34] sm:$0x1]
    %v1653 = vld [vmem:[%s438 + $0x38] sm:$0xf]
    %v1654 = vld [vmem:[%s438 + $0x3c] sm:$0x1]
    %v1655 = vld [vmem:[%s438 + $0x50] sm:$0xf]
    %v1656 = vld [vmem:[%s438 + $0x54] sm:$0x1]
    %v1657 = vld [vmem:[%s438 + $0x58] sm:$0xf]
    %v1658 = vld [vmem:[%s438 + $0x5c] sm:$0x1]
    %v1659 = vld [vmem:[%s438 + $0x60] sm:$0xf]
    %v1660 = vld [vmem:[%s438 + $0x64] sm:$0x1]
    %v1661 = vld [vmem:[%s438 + $0x68] sm:$0xf]
    %v1662 = vld [vmem:[%s438 + $0x6c] sm:$0x1]
    %v1663 = vld [vmem:[%s438 + $0x70] sm:$0xf]
    %v1664 = vld [vmem:[%s438 + $0x74] sm:$0x1]
    %v1665 = vld [vmem:[%s438 + $0x78] sm:$0xf]
    %v1666 = vld [vmem:[%s438 + $0x7c] sm:$0x1]
    %v1667 = vld [vmem:[%s438 + $0x80] sm:$0xf]
    %v1668 = vld [vmem:[%s438 + $0x84] sm:$0x1]
    %v1669 = vld [vmem:[%s438 + $0x88] sm:$0xf]
    %v1670 = vld [vmem:[%s438 + $0x8c] sm:$0x1]
    %v1672 = vshrl.u32 %v1639, 16
    %v1674 = vrot.slane %v1672, 4
    %v1675 = vshll.u32 %v1639, 16
    %v1677 = vrot.slane %v1675, 5
    %v1678 = vor.u32 %v1674, %v1677
    %v1679 = vrot.slane %v1678, 4
    %v1681 = vshll.u32 %v1640, 16
    %v1683 = vrot.slane %v1681, 5
    %v1684 = vsel %vm575, %v1679, %v1683
    %v1686 = vshrl.u32 %v1641, 16
    %v1688 = vrot.slane %v1686, 4
    %v1689 = vshll.u32 %v1641, 16
    %v1691 = vrot.slane %v1689, 5
    %v1692 = vor.u32 %v1688, %v1691
    %v1693 = vrot.slane %v1692, 4
    %v1695 = vshll.u32 %v1642, 16
    %v1697 = vrot.slane %v1695, 5
    %v1698 = vsel %vm575, %v1693, %v1697
    %v1700 = vshrl.u32 %v1643, 16
    %v1702 = vrot.slane %v1700, 4
    %v1703 = vshll.u32 %v1643, 16
    %v1705 = vrot.slane %v1703, 5
    %v1706 = vor.u32 %v1702, %v1705
    %v1707 = vrot.slane %v1706, 4
    %v1709 = vshll.u32 %v1644, 16
    %v1711 = vrot.slane %v1709, 5
    %v1712 = vsel %vm575, %v1707, %v1711
    %v1714 = vshrl.u32 %v1645, 16
    %v1716 = vrot.slane %v1714, 4
    %v1717 = vshll.u32 %v1645, 16
    %v1719 = vrot.slane %v1717, 5
    %v1720 = vor.u32 %v1716, %v1719
    %v1721 = vrot.slane %v1720, 4
    %v1723 = vshll.u32 %v1646, 16
    %v1725 = vrot.slane %v1723, 5
    %v1726 = vsel %vm575, %v1721, %v1725
    %v1728 = vshrl.u32 %v1647, 16
    %v1730 = vrot.slane %v1728, 4
    %v1731 = vshll.u32 %v1647, 16
    %v1733 = vrot.slane %v1731, 5
    %v1734 = vor.u32 %v1730, %v1733
    %v1735 = vrot.slane %v1734, 4
    %v1737 = vshll.u32 %v1648, 16
    %v1739 = vrot.slane %v1737, 5
    %v1740 = vsel %vm575, %v1735, %v1739
    %v1742 = vshrl.u32 %v1649, 16
    %v1744 = vrot.slane %v1742, 4
    %v1745 = vshll.u32 %v1649, 16
    %v1747 = vrot.slane %v1745, 5
    %v1748 = vor.u32 %v1744, %v1747
    %v1749 = vrot.slane %v1748, 4
    %v1751 = vshll.u32 %v1650, 16
    %v1753 = vrot.slane %v1751, 5
    %v1754 = vsel %vm575, %v1749, %v1753
    %v1756 = vshrl.u32 %v1651, 16
    %v1758 = vrot.slane %v1756, 4
    %v1759 = vshll.u32 %v1651, 16
    %v1761 = vrot.slane %v1759, 5
    %v1762 = vor.u32 %v1758, %v1761
    %v1763 = vrot.slane %v1762, 4
    %v1765 = vshll.u32 %v1652, 16
    %v1767 = vrot.slane %v1765, 5
    %v1768 = vsel %vm575, %v1763, %v1767
    %v1770 = vshrl.u32 %v1653, 16
    %v1772 = vrot.slane %v1770, 4
    %v1773 = vshll.u32 %v1653, 16
    %v1775 = vrot.slane %v1773, 5
    %v1776 = vor.u32 %v1772, %v1775
    %v1777 = vrot.slane %v1776, 4
    %v1779 = vshll.u32 %v1654, 16
    %v1781 = vrot.slane %v1779, 5
    %v1782 = vsel %vm575, %v1777, %v1781
    %v1784 = vshrl.u32 %v1655, 16
    %v1786 = vrot.slane %v1784, 4
    %v1787 = vshll.u32 %v1655, 16
    %v1789 = vrot.slane %v1787, 5
    %v1790 = vor.u32 %v1786, %v1789
    %v1791 = vrot.slane %v1790, 4
    %v1793 = vshll.u32 %v1656, 16
    %v1795 = vrot.slane %v1793, 5
    %v1796 = vsel %vm575, %v1791, %v1795
    %v1798 = vshrl.u32 %v1657, 16
    %v1800 = vrot.slane %v1798, 4
    %v1801 = vshll.u32 %v1657, 16
    %v1803 = vrot.slane %v1801, 5
    %v1804 = vor.u32 %v1800, %v1803
    %v1805 = vrot.slane %v1804, 4
    %v1807 = vshll.u32 %v1658, 16
    %v1809 = vrot.slane %v1807, 5
    %v1810 = vsel %vm575, %v1805, %v1809
    %v1812 = vshrl.u32 %v1659, 16
    %v1814 = vrot.slane %v1812, 4
    %v1815 = vshll.u32 %v1659, 16
    %v1817 = vrot.slane %v1815, 5
    %v1818 = vor.u32 %v1814, %v1817
    %v1819 = vrot.slane %v1818, 4
    %v1821 = vshll.u32 %v1660, 16
    %v1823 = vrot.slane %v1821, 5
    %v1824 = vsel %vm575, %v1819, %v1823
    %v1826 = vshrl.u32 %v1661, 16
    %v1828 = vrot.slane %v1826, 4
    %v1829 = vshll.u32 %v1661, 16
    %v1831 = vrot.slane %v1829, 5
    %v1832 = vor.u32 %v1828, %v1831
    %v1833 = vrot.slane %v1832, 4
    %v1835 = vshll.u32 %v1662, 16
    %v1837 = vrot.slane %v1835, 5
    %v1838 = vsel %vm575, %v1833, %v1837
    %v1840 = vshrl.u32 %v1663, 16
    %v1842 = vrot.slane %v1840, 4
    %v1843 = vshll.u32 %v1663, 16
    %v1845 = vrot.slane %v1843, 5
    %v1846 = vor.u32 %v1842, %v1845
    %v1847 = vrot.slane %v1846, 4
    %v1849 = vshll.u32 %v1664, 16
    %v1851 = vrot.slane %v1849, 5
    %v1852 = vsel %vm575, %v1847, %v1851
    %v1854 = vshrl.u32 %v1665, 16
    %v1856 = vrot.slane %v1854, 4
    %v1857 = vshll.u32 %v1665, 16
    %v1859 = vrot.slane %v1857, 5
    %v1860 = vor.u32 %v1856, %v1859
    %v1861 = vrot.slane %v1860, 4
    %v1863 = vshll.u32 %v1666, 16
    %v1865 = vrot.slane %v1863, 5
    %v1866 = vsel %vm575, %v1861, %v1865
    %v1868 = vshrl.u32 %v1667, 16
    %v1870 = vrot.slane %v1868, 4
    %v1871 = vshll.u32 %v1667, 16
    %v1873 = vrot.slane %v1871, 5
    %v1874 = vor.u32 %v1870, %v1873
    %v1875 = vrot.slane %v1874, 4
    %v1877 = vshll.u32 %v1668, 16
    %v1879 = vrot.slane %v1877, 5
    %v1880 = vsel %vm575, %v1875, %v1879
    %v1882 = vshrl.u32 %v1669, 16
    %v1884 = vrot.slane %v1882, 4
    %v1885 = vshll.u32 %v1669, 16
    %v1887 = vrot.slane %v1885, 5
    %v1888 = vor.u32 %v1884, %v1887
    %v1889 = vrot.slane %v1888, 4
    %v1891 = vshll.u32 %v1670, 16
    %v1893 = vrot.slane %v1891, 5
    %v1894 = vsel %vm575, %v1889, %v1893
    %s1895 = scalar_lea.vmem [#allocation5], 64
    %v1896 = vld [vmem:[%s1895] sm:$0xf]
    %v1897 = vld [vmem:[%s1895 + $0x4] sm:$0xf]
    %v1898 = vld [vmem:[%s1895 + $0x8] sm:$0xf]
    %v1899 = vld [vmem:[%s1895 + $0xc] sm:$0xf]
    %v1900 = vunpack.c.l.b16 %v1684
    %v1901 = vunpack.c.l.b16 %v1698
    %v1902 = vunpack.c.l.b16 %v1712
    %v1903 = vunpack.c.l.b16 %v1726
    %v1904 = vunpack.c.l.b16 %v1740
    %v1905 = vunpack.c.l.b16 %v1754
    %v1906 = vunpack.c.l.b16 %v1768
    %v1907 = vunpack.c.l.b16 %v1782
    %v1908 = vunpack.c.l.b16 %v1796
    %v1909 = vunpack.c.l.b16 %v1810
    %v1910 = vunpack.c.l.b16 %v1824
    %v1911 = vunpack.c.l.b16 %v1838
    %v1912 = vunpack.c.l.b16 %v1852
    %v1913 = vunpack.c.l.b16 %v1866
    %v1914 = vunpack.c.l.b16 %v1880
    %v1915 = vunpack.c.l.b16 %v1894
    %v1916 = vpack.c.b16 %v1901, %v1900
    %v1917 = vpack.c.b16 %v1903, %v1902
    %v1918 = vpack.c.b16 %v1905, %v1904
    %v1919 = vpack.c.b16 %v1907, %v1906
    %v1920 = vpack.c.b16 %v1909, %v1908
    %v1921 = vpack.c.b16 %v1911, %v1910
    %v1922 = vpack.c.b16 %v1913, %v1912
    %v1923 = vpack.c.b16 %v1915, %v1914
    %v1928 = vunpack.c.l.b16 %v1896
    %v1929 = vunpack.c.l.b16 %v1897
    %v1930 = vunpack.c.l.b16 %v1898
    %v1931 = vunpack.c.l.b16 %v1899
    %v1932 = vpack.c.b16 %v1929, %v1928
    %v1933 = vpack.c.b16 %v1931, %v1930
    %v1937 = vsel %vm841, %v1916, 0
    %v1940 = vsel %vm841, %v1917, 0
    %v1943 = vsel %vm841, %v1918, 0
    %v1946 = vsel %vm841, %v1919, 0
    %v1949 = vsel %vm841, %v1920, 0
    %v1952 = vsel %vm841, %v1921, 0
    %v1955 = vsel %vm841, %v1922, 0
    %v1958 = vsel %vm841, %v1923, 0
    %1960 = vmatprep.subr.bf16.mxu0 0
    %1961 = vmatpush1.bf16.msra.mxu0 0
    %1962 = vmatprep.subr.bf16.mxu0 0
    %1963 = vmatpush1.bf16.msra.mxu0 0
    %1964 = vmatprep.subr.bf16.mxu0 0
    %1965 = vmatpush1.bf16.msra.mxu0 0
    %1966 = vmatprep.subr.bf16.mxu0 0
    %1967 = vmatpush1.bf16.msra.mxu0 0
    %1968 = vmatprep.subr.bf16.mxu0 0
    %1969 = vmatpush1.bf16.msra.mxu0 0
    %1970 = vmatprep.subr.bf16.mxu0 0
    %1971 = vmatpush1.bf16.msra.mxu0 0
    %1972 = vmatprep.subr.bf16.mxu0 0
    %1973 = vmatpush1.bf16.msra.mxu0 %v1933
    %1974 = vmatprep.subr.bf16.mxu0 0
    %1975 = vmatpush1.bf16.msra.mxu0 %v1932
    %1976 = vmatprep.subr.bf16.mxu0 0
    %1977 = vmatpush2.bf16.msra.mxu0 0
    %1978 = vmatprep.subr.bf16.mxu0 0
    %1979 = vmatpush2.bf16.msra.mxu0 0
    %1980 = vmatprep.subr.bf16.mxu0 0
    %1981 = vmatpush2.bf16.msra.mxu0 0
    %1982 = vmatprep.subr.bf16.mxu0 0
    %1983 = vmatpush2.bf16.msra.mxu0 0
    %1984 = vmatprep.subr.bf16.mxu0 0
    %1985 = vmatpush2.bf16.msra.mxu0 0
    %1986 = vmatprep.subr.bf16.mxu0 0
    %1987 = vmatpush2.bf16.msra.mxu0 0
    %1988 = vmatprep.subr.bf16.mxu0 0
    %1989 = vmatpush2.bf16.msra.mxu0 0
    %1990 = vmatprep.subr.bf16.mxu0 0
    %1991 = vmatpush2.bf16.msra.mxu0 0
    %1992 = vmatprep.mubr.bf16.mxu0 0
    %1993 = vmatmul.mubr.bf16.gmra.mxu0 %v1937
    %v1994 = vpop.f32.mrf.mxu0
    %v1995 = vadd.f32 0.0, %v1994
    %v1996 = vpop.f32.mrf.mxu0
    %v1997 = vpop.f32.mrf.mxu0
    %v1998 = vadd.f32 0.0, %v1997
    %v1999 = vpop.f32.mrf.mxu0
    %2000 = vmatprep.mubr.bf16.mxu0 0
    %2001 = vmatmul.mubr.bf16.gmra.mxu0 %v1940
    %v2002 = vpop.f32.mrf.mxu0
    %v2003 = vadd.f32 0.0, %v2002
    %v2004 = vpop.f32.mrf.mxu0
    %v2005 = vpop.f32.mrf.mxu0
    %v2006 = vadd.f32 0.0, %v2005
    %v2007 = vpop.f32.mrf.mxu0
    %2008 = vmatprep.mubr.bf16.mxu0 0
    %2009 = vmatmul.mubr.bf16.gmra.mxu0 %v1943
    %v2010 = vpop.f32.mrf.mxu0
    %v2011 = vadd.f32 0.0, %v2010
    %v2012 = vpop.f32.mrf.mxu0
    %v2013 = vpop.f32.mrf.mxu0
    %v2014 = vadd.f32 0.0, %v2013
    %v2015 = vpop.f32.mrf.mxu0
    %2016 = vmatprep.mubr.bf16.mxu0 0
    %2017 = vmatmul.mubr.bf16.gmra.mxu0 %v1946
    %v2018 = vpop.f32.mrf.mxu0
    %v2019 = vadd.f32 0.0, %v2018
    %v2020 = vpop.f32.mrf.mxu0
    %v2021 = vpop.f32.mrf.mxu0
    %v2022 = vadd.f32 0.0, %v2021
    %v2023 = vpop.f32.mrf.mxu0
    %2024 = vmatprep.mubr.bf16.mxu0 0
    %2025 = vmatmul.mubr.bf16.gmra.mxu0 %v1949
    %v2026 = vpop.f32.mrf.mxu0
    %v2027 = vadd.f32 0.0, %v2026
    %v2028 = vpop.f32.mrf.mxu0
    %v2029 = vpop.f32.mrf.mxu0
    %v2030 = vadd.f32 0.0, %v2029
    %v2031 = vpop.f32.mrf.mxu0
    %2032 = vmatprep.mubr.bf16.mxu0 0
    %2033 = vmatmul.mubr.bf16.gmra.mxu0 %v1952
    %v2034 = vpop.f32.mrf.mxu0
    %v2035 = vadd.f32 0.0, %v2034
    %v2036 = vpop.f32.mrf.mxu0
    %v2037 = vpop.f32.mrf.mxu0
    %v2038 = vadd.f32 0.0, %v2037
    %v2039 = vpop.f32.mrf.mxu0
    %2040 = vmatprep.mubr.bf16.mxu0 0
    %2041 = vmatmul.mubr.bf16.gmra.mxu0 %v1955
    %v2042 = vpop.f32.mrf.mxu0
    %v2043 = vadd.f32 0.0, %v2042
    %v2044 = vpop.f32.mrf.mxu0
    %v2045 = vpop.f32.mrf.mxu0
    %v2046 = vadd.f32 0.0, %v2045
    %v2047 = vpop.f32.mrf.mxu0
    %2048 = vmatprep.mubr.bf16.mxu0 0
    %2049 = vmatmul.mubr.bf16.gmra.mxu0 %v1958
    %v2050 = vpop.f32.mrf.mxu0
    %v2051 = vadd.f32 0.0, %v2050
    %v2052 = vpop.f32.mrf.mxu0
    %v2053 = vpop.f32.mrf.mxu0
    %v2054 = vadd.f32 0.0, %v2053
    %v2055 = vpop.f32.mrf.mxu0
    %2056 = vdwg.mxu0
    %v2057 = vadd.f32 %v1623, %v1995
    %v2058 = vadd.f32 %v1624, %v1998
    %v2059 = vadd.f32 %v1625, %v2003
    %v2060 = vadd.f32 %v1626, %v2006
    %v2061 = vadd.f32 %v1627, %v2011
    %v2062 = vadd.f32 %v1628, %v2014
    %v2063 = vadd.f32 %v1629, %v2019
    %v2064 = vadd.f32 %v1630, %v2022
    %v2065 = vadd.f32 %v1631, %v2027
    %v2066 = vadd.f32 %v1632, %v2030
    %v2067 = vadd.f32 %v1633, %v2035
    %v2068 = vadd.f32 %v1634, %v2038
    %v2069 = vadd.f32 %v1635, %v2043
    %v2070 = vadd.f32 %v1636, %v2046
    %v2071 = vadd.f32 %v1637, %v2051
    %v2072 = vadd.f32 %v1638, %v2054
    %v2073 = vld [vmem:[%s438] sm:$0xe]
    %v2074 = vld [vmem:[%s438 + $0x8] sm:$0xe]
    %v2075 = vld [vmem:[%s438 + $0x10] sm:$0xe]
    %v2076 = vld [vmem:[%s438 + $0x18] sm:$0xe]
    %v2077 = vld [vmem:[%s438 + $0x20] sm:$0xe]
    %v2078 = vld [vmem:[%s438 + $0x28] sm:$0xe]
    %v2079 = vld [vmem:[%s438 + $0x30] sm:$0xe]
    %v2080 = vld [vmem:[%s438 + $0x38] sm:$0xe]
    %v2081 = vld [vmem:[%s438 + $0x50] sm:$0xe]
    %v2082 = vld [vmem:[%s438 + $0x58] sm:$0xe]
    %v2083 = vld [vmem:[%s438 + $0x60] sm:$0xe]
    %v2084 = vld [vmem:[%s438 + $0x68] sm:$0xe]
    %v2085 = vld [vmem:[%s438 + $0x70] sm:$0xe]
    %v2086 = vld [vmem:[%s438 + $0x78] sm:$0xe]
    %v2087 = vld [vmem:[%s438 + $0x80] sm:$0xe]
    %v2088 = vld [vmem:[%s438 + $0x88] sm:$0xe]
    %v2121 = vrot.slane %v2073, 5
    %v2122 = vrot.slane %v2121, 4
    %v2123 = vrot.slane %v1640, 5
    %v2124 = vsel %vm1186, %v2122, %v2123
    %v2125 = vrot.slane %v2074, 5
    %v2126 = vrot.slane %v2125, 4
    %v2127 = vrot.slane %v1642, 5
    %v2128 = vsel %vm1186, %v2126, %v2127
    %v2129 = vrot.slane %v2075, 5
    %v2130 = vrot.slane %v2129, 4
    %v2131 = vrot.slane %v1644, 5
    %v2132 = vsel %vm1186, %v2130, %v2131
    %v2133 = vrot.slane %v2076, 5
    %v2134 = vrot.slane %v2133, 4
    %v2135 = vrot.slane %v1646, 5
    %v2136 = vsel %vm1186, %v2134, %v2135
    %v2137 = vrot.slane %v2077, 5
    %v2138 = vrot.slane %v2137, 4
    %v2139 = vrot.slane %v1648, 5
    %v2140 = vsel %vm1186, %v2138, %v2139
    %v2141 = vrot.slane %v2078, 5
    %v2142 = vrot.slane %v2141, 4
    %v2143 = vrot.slane %v1650, 5
    %v2144 = vsel %vm1186, %v2142, %v2143
    %v2145 = vrot.slane %v2079, 5
    %v2146 = vrot.slane %v2145, 4
    %v2147 = vrot.slane %v1652, 5
    %v2148 = vsel %vm1186, %v2146, %v2147
    %v2149 = vrot.slane %v2080, 5
    %v2150 = vrot.slane %v2149, 4
    %v2151 = vrot.slane %v1654, 5
    %v2152 = vsel %vm1186, %v2150, %v2151
    %v2153 = vrot.slane %v2081, 5
    %v2154 = vrot.slane %v2153, 4
    %v2155 = vrot.slane %v1656, 5
    %v2156 = vsel %vm1186, %v2154, %v2155
    %v2157 = vrot.slane %v2082, 5
    %v2158 = vrot.slane %v2157, 4
    %v2159 = vrot.slane %v1658, 5
    %v2160 = vsel %vm1186, %v2158, %v2159
    %v2161 = vrot.slane %v2083, 5
    %v2162 = vrot.slane %v2161, 4
    %v2163 = vrot.slane %v1660, 5
    %v2164 = vsel %vm1186, %v2162, %v2163
    %v2165 = vrot.slane %v2084, 5
    %v2166 = vrot.slane %v2165, 4
    %v2167 = vrot.slane %v1662, 5
    %v2168 = vsel %vm1186, %v2166, %v2167
    %v2169 = vrot.slane %v2085, 5
    %v2170 = vrot.slane %v2169, 4
    %v2171 = vrot.slane %v1664, 5
    %v2172 = vsel %vm1186, %v2170, %v2171
    %v2173 = vrot.slane %v2086, 5
    %v2174 = vrot.slane %v2173, 4
    %v2175 = vrot.slane %v1666, 5
    %v2176 = vsel %vm1186, %v2174, %v2175
    %v2177 = vrot.slane %v2087, 5
    %v2178 = vrot.slane %v2177, 4
    %v2179 = vrot.slane %v1668, 5
    %v2180 = vsel %vm1186, %v2178, %v2179
    %v2181 = vrot.slane %v2088, 5
    %v2182 = vrot.slane %v2181, 4
    %v2183 = vrot.slane %v1670, 5
    %v2184 = vsel %vm1186, %v2182, %v2183
    %s2185 = scalar_lea.vmem [#allocation5], 80
    %v2186 = vld [vmem:[%s2185] sm:$0xf]
    %v2187 = vld [vmem:[%s2185 + $0x4] sm:$0xf]
    %v2188 = vld [vmem:[%s2185 + $0x8] sm:$0xf]
    %v2189 = vld [vmem:[%s2185 + $0xc] sm:$0xf]
    %v2190 = vunpack.c.l.b16 %v2124
    %v2191 = vunpack.c.l.b16 %v2128
    %v2192 = vunpack.c.l.b16 %v2132
    %v2193 = vunpack.c.l.b16 %v2136
    %v2194 = vunpack.c.l.b16 %v2140
    %v2195 = vunpack.c.l.b16 %v2144
    %v2196 = vunpack.c.l.b16 %v2148
    %v2197 = vunpack.c.l.b16 %v2152
    %v2198 = vunpack.c.l.b16 %v2156
    %v2199 = vunpack.c.l.b16 %v2160
    %v2200 = vunpack.c.l.b16 %v2164
    %v2201 = vunpack.c.l.b16 %v2168
    %v2202 = vunpack.c.l.b16 %v2172
    %v2203 = vunpack.c.l.b16 %v2176
    %v2204 = vunpack.c.l.b16 %v2180
    %v2205 = vunpack.c.l.b16 %v2184
    %v2206 = vpack.c.b16 %v2191, %v2190
    %v2207 = vpack.c.b16 %v2193, %v2192
    %v2208 = vpack.c.b16 %v2195, %v2194
    %v2209 = vpack.c.b16 %v2197, %v2196
    %v2210 = vpack.c.b16 %v2199, %v2198
    %v2211 = vpack.c.b16 %v2201, %v2200
    %v2212 = vpack.c.b16 %v2203, %v2202
    %v2213 = vpack.c.b16 %v2205, %v2204
    %v2218 = vunpack.c.l.b16 %v2186
    %v2219 = vunpack.c.l.b16 %v2187
    %v2220 = vunpack.c.l.b16 %v2188
    %v2221 = vunpack.c.l.b16 %v2189
    %v2222 = vpack.c.b16 %v2219, %v2218
    %v2223 = vpack.c.b16 %v2221, %v2220
    %v2227 = vsel %vm841, %v2206, 0
    %v2230 = vsel %vm841, %v2207, 0
    %v2233 = vsel %vm841, %v2208, 0
    %v2236 = vsel %vm841, %v2209, 0
    %v2239 = vsel %vm841, %v2210, 0
    %v2242 = vsel %vm841, %v2211, 0
    %v2245 = vsel %vm841, %v2212, 0
    %v2248 = vsel %vm841, %v2213, 0
    %2250 = vmatprep.subr.bf16.mxu0 0
    %2251 = vmatpush1.bf16.msra.mxu0 0
    %2252 = vmatprep.subr.bf16.mxu0 0
    %2253 = vmatpush1.bf16.msra.mxu0 0
    %2254 = vmatprep.subr.bf16.mxu0 0
    %2255 = vmatpush1.bf16.msra.mxu0 0
    %2256 = vmatprep.subr.bf16.mxu0 0
    %2257 = vmatpush1.bf16.msra.mxu0 0
    %2258 = vmatprep.subr.bf16.mxu0 0
    %2259 = vmatpush1.bf16.msra.mxu0 0
    %2260 = vmatprep.subr.bf16.mxu0 0
    %2261 = vmatpush1.bf16.msra.mxu0 0
    %2262 = vmatprep.subr.bf16.mxu0 0
    %2263 = vmatpush1.bf16.msra.mxu0 %v2223
    %2264 = vmatprep.subr.bf16.mxu0 0
    %2265 = vmatpush1.bf16.msra.mxu0 %v2222
    %2266 = vmatprep.subr.bf16.mxu0 0
    %2267 = vmatpush2.bf16.msra.mxu0 0
    %2268 = vmatprep.subr.bf16.mxu0 0
    %2269 = vmatpush2.bf16.msra.mxu0 0
    %2270 = vmatprep.subr.bf16.mxu0 0
    %2271 = vmatpush2.bf16.msra.mxu0 0
    %2272 = vmatprep.subr.bf16.mxu0 0
    %2273 = vmatpush2.bf16.msra.mxu0 0
    %2274 = vmatprep.subr.bf16.mxu0 0
    %2275 = vmatpush2.bf16.msra.mxu0 0
    %2276 = vmatprep.subr.bf16.mxu0 0
    %2277 = vmatpush2.bf16.msra.mxu0 0
    %2278 = vmatprep.subr.bf16.mxu0 0
    %2279 = vmatpush2.bf16.msra.mxu0 0
    %2280 = vmatprep.subr.bf16.mxu0 0
    %2281 = vmatpush2.bf16.msra.mxu0 0
    %2282 = vmatprep.mubr.bf16.mxu0 0
    %2283 = vmatmul.mubr.bf16.gmra.mxu0 %v2227
    %v2284 = vpop.f32.mrf.mxu0
    %v2285 = vadd.f32 0.0, %v2284
    %v2286 = vpop.f32.mrf.mxu0
    %v2287 = vpop.f32.mrf.mxu0
    %v2288 = vadd.f32 0.0, %v2287
    %v2289 = vpop.f32.mrf.mxu0
    %2290 = vmatprep.mubr.bf16.mxu0 0
    %2291 = vmatmul.mubr.bf16.gmra.mxu0 %v2230
    %v2292 = vpop.f32.mrf.mxu0
    %v2293 = vadd.f32 0.0, %v2292
    %v2294 = vpop.f32.mrf.mxu0
    %v2295 = vpop.f32.mrf.mxu0
    %v2296 = vadd.f32 0.0, %v2295
    %v2297 = vpop.f32.mrf.mxu0
    %2298 = vmatprep.mubr.bf16.mxu0 0
    %2299 = vmatmul.mubr.bf16.gmra.mxu0 %v2233
    %v2300 = vpop.f32.mrf.mxu0
    %v2301 = vadd.f32 0.0, %v2300
    %v2302 = vpop.f32.mrf.mxu0
    %v2303 = vpop.f32.mrf.mxu0
    %v2304 = vadd.f32 0.0, %v2303
    %v2305 = vpop.f32.mrf.mxu0
    %2306 = vmatprep.mubr.bf16.mxu0 0
    %2307 = vmatmul.mubr.bf16.gmra.mxu0 %v2236
    %v2308 = vpop.f32.mrf.mxu0
    %v2309 = vadd.f32 0.0, %v2308
    %v2310 = vpop.f32.mrf.mxu0
    %v2311 = vpop.f32.mrf.mxu0
    %v2312 = vadd.f32 0.0, %v2311
    %v2313 = vpop.f32.mrf.mxu0
    %2314 = vmatprep.mubr.bf16.mxu0 0
    %2315 = vmatmul.mubr.bf16.gmra.mxu0 %v2239
    %v2316 = vpop.f32.mrf.mxu0
    %v2317 = vadd.f32 0.0, %v2316
    %v2318 = vpop.f32.mrf.mxu0
    %v2319 = vpop.f32.mrf.mxu0
    %v2320 = vadd.f32 0.0, %v2319
    %v2321 = vpop.f32.mrf.mxu0
    %2322 = vmatprep.mubr.bf16.mxu0 0
    %2323 = vmatmul.mubr.bf16.gmra.mxu0 %v2242
    %v2324 = vpop.f32.mrf.mxu0
    %v2325 = vadd.f32 0.0, %v2324
    %v2326 = vpop.f32.mrf.mxu0
    %v2327 = vpop.f32.mrf.mxu0
    %v2328 = vadd.f32 0.0, %v2327
    %v2329 = vpop.f32.mrf.mxu0
    %2330 = vmatprep.mubr.bf16.mxu0 0
    %2331 = vmatmul.mubr.bf16.gmra.mxu0 %v2245
    %v2332 = vpop.f32.mrf.mxu0
    %v2333 = vadd.f32 0.0, %v2332
    %v2334 = vpop.f32.mrf.mxu0
    %v2335 = vpop.f32.mrf.mxu0
    %v2336 = vadd.f32 0.0, %v2335
    %v2337 = vpop.f32.mrf.mxu0
    %2338 = vmatprep.mubr.bf16.mxu0 0
    %2339 = vmatmul.mubr.bf16.gmra.mxu0 %v2248
    %v2340 = vpop.f32.mrf.mxu0
    %v2341 = vadd.f32 0.0, %v2340
    %v2342 = vpop.f32.mrf.mxu0
    %v2343 = vpop.f32.mrf.mxu0
    %v2344 = vadd.f32 0.0, %v2343
    %v2345 = vpop.f32.mrf.mxu0
    %2346 = vdwg.mxu0
    %v2347 = vadd.f32 %v2057, %v2285
    %v2348 = vadd.f32 %v2058, %v2288
    %v2349 = vadd.f32 %v2059, %v2293
    %v2350 = vadd.f32 %v2060, %v2296
    %v2351 = vadd.f32 %v2061, %v2301
    %v2352 = vadd.f32 %v2062, %v2304
    %v2353 = vadd.f32 %v2063, %v2309
    %v2354 = vadd.f32 %v2064, %v2312
    %v2355 = vadd.f32 %v2065, %v2317
    %v2356 = vadd.f32 %v2066, %v2320
    %v2357 = vadd.f32 %v2067, %v2325
    %v2358 = vadd.f32 %v2068, %v2328
    %v2359 = vadd.f32 %v2069, %v2333
    %v2360 = vadd.f32 %v2070, %v2336
    %v2361 = vadd.f32 %v2071, %v2341
    %v2362 = vadd.f32 %v2072, %v2344
    %s2363 = scalar_lea.vmem [#allocation2], 16
    %v2364 = vld [vmem:[%s2363] sm:$0xf]
    %v2365 = vld [vmem:[%s2363 + $0x8] sm:$0xf]
    %v2366 = vld [vmem:[%s2363 + $0x10] sm:$0xf]
    %v2367 = vld [vmem:[%s2363 + $0x18] sm:$0xf]
    %v2368 = vld [vmem:[%s2363 + $0x20] sm:$0xf]
    %v2369 = vld [vmem:[%s2363 + $0x28] sm:$0xf]
    %v2370 = vld [vmem:[%s2363 + $0x30] sm:$0xf]
    %v2371 = vld [vmem:[%s2363 + $0x38] sm:$0xf]
    %v2372 = vld [vmem:[%s2363 + $0x50] sm:$0xf]
    %v2373 = vld [vmem:[%s2363 + $0x58] sm:$0xf]
    %v2374 = vld [vmem:[%s2363 + $0x60] sm:$0xf]
    %v2375 = vld [vmem:[%s2363 + $0x68] sm:$0xf]
    %v2376 = vld [vmem:[%s2363 + $0x70] sm:$0xf]
    %v2377 = vld [vmem:[%s2363 + $0x78] sm:$0xf]
    %v2378 = vld [vmem:[%s2363 + $0x80] sm:$0xf]
    %v2379 = vld [vmem:[%s2363 + $0x88] sm:$0xf]
    %s2380 = scalar_lea.vmem [#allocation5], 96
    %v2381 = vld [vmem:[%s2380] sm:$0xf]
    %v2382 = vld [vmem:[%s2380 + $0x4] sm:$0xf]
    %v2383 = vld [vmem:[%s2380 + $0x8] sm:$0xf]
    %v2384 = vld [vmem:[%s2380 + $0xc] sm:$0xf]
    %v2401 = vunpack.c.l.b16 %v2364
    %v2402 = vunpack.c.l.b16 %v2365
    %v2403 = vunpack.c.l.b16 %v2366
    %v2404 = vunpack.c.l.b16 %v2367
    %v2405 = vunpack.c.l.b16 %v2368
    %v2406 = vunpack.c.l.b16 %v2369
    %v2407 = vunpack.c.l.b16 %v2370
    %v2408 = vunpack.c.l.b16 %v2371
    %v2409 = vunpack.c.l.b16 %v2372
    %v2410 = vunpack.c.l.b16 %v2373
    %v2411 = vunpack.c.l.b16 %v2374
    %v2412 = vunpack.c.l.b16 %v2375
    %v2413 = vunpack.c.l.b16 %v2376
    %v2414 = vunpack.c.l.b16 %v2377
    %v2415 = vunpack.c.l.b16 %v2378
    %v2416 = vunpack.c.l.b16 %v2379
    %v2417 = vpack.c.b16 %v2402, %v2401
    %v2418 = vpack.c.b16 %v2404, %v2403
    %v2419 = vpack.c.b16 %v2406, %v2405
    %v2420 = vpack.c.b16 %v2408, %v2407
    %v2421 = vpack.c.b16 %v2410, %v2409
    %v2422 = vpack.c.b16 %v2412, %v2411
    %v2423 = vpack.c.b16 %v2414, %v2413
    %v2424 = vpack.c.b16 %v2416, %v2415
    %v2429 = vunpack.c.l.b16 %v2381
    %v2430 = vunpack.c.l.b16 %v2382
    %v2431 = vunpack.c.l.b16 %v2383
    %v2432 = vunpack.c.l.b16 %v2384
    %v2433 = vpack.c.b16 %v2430, %v2429
    %v2434 = vpack.c.b16 %v2432, %v2431
    %v2438 = vsel %vm841, %v2417, 0
    %v2441 = vsel %vm841, %v2418, 0
    %v2444 = vsel %vm841, %v2419, 0
    %v2447 = vsel %vm841, %v2420, 0
    %v2450 = vsel %vm841, %v2421, 0
    %v2453 = vsel %vm841, %v2422, 0
    %v2456 = vsel %vm841, %v2423, 0
    %v2459 = vsel %vm841, %v2424, 0
    %2461 = vmatprep.subr.bf16.mxu0 0
    %2462 = vmatpush1.bf16.msra.mxu0 0
    %2463 = vmatprep.subr.bf16.mxu0 0
    %2464 = vmatpush1.bf16.msra.mxu0 0
    %2465 = vmatprep.subr.bf16.mxu0 0
    %2466 = vmatpush1.bf16.msra.mxu0 0
    %2467 = vmatprep.subr.bf16.mxu0 0
    %2468 = vmatpush1.bf16.msra.mxu0 0
    %2469 = vmatprep.subr.bf16.mxu0 0
    %2470 = vmatpush1.bf16.msra.mxu0 0
    %2471 = vmatprep.subr.bf16.mxu0 0
    %2472 = vmatpush1.bf16.msra.mxu0 0
    %2473 = vmatprep.subr.bf16.mxu0 0
    %2474 = vmatpush1.bf16.msra.mxu0 %v2434
    %2475 = vmatprep.subr.bf16.mxu0 0
    %2476 = vmatpush1.bf16.msra.mxu0 %v2433
    %2477 = vmatprep.subr.bf16.mxu0 0
    %2478 = vmatpush2.bf16.msra.mxu0 0
    %2479 = vmatprep.subr.bf16.mxu0 0
    %2480 = vmatpush2.bf16.msra.mxu0 0
    %2481 = vmatprep.subr.bf16.mxu0 0
    %2482 = vmatpush2.bf16.msra.mxu0 0
    %2483 = vmatprep.subr.bf16.mxu0 0
    %2484 = vmatpush2.bf16.msra.mxu0 0
    %2485 = vmatprep.subr.bf16.mxu0 0
    %2486 = vmatpush2.bf16.msra.mxu0 0
    %2487 = vmatprep.subr.bf16.mxu0 0
    %2488 = vmatpush2.bf16.msra.mxu0 0
    %2489 = vmatprep.subr.bf16.mxu0 0
    %2490 = vmatpush2.bf16.msra.mxu0 0
    %2491 = vmatprep.subr.bf16.mxu0 0
    %2492 = vmatpush2.bf16.msra.mxu0 0
    %2493 = vmatprep.mubr.bf16.mxu0 0
    %2494 = vmatmul.mubr.bf16.gmra.mxu0 %v2438
    %v2495 = vpop.f32.mrf.mxu0
    %v2496 = vadd.f32 0.0, %v2495
    %v2497 = vpop.f32.mrf.mxu0
    %v2498 = vpop.f32.mrf.mxu0
    %v2499 = vadd.f32 0.0, %v2498
    %v2500 = vpop.f32.mrf.mxu0
    %2501 = vmatprep.mubr.bf16.mxu0 0
    %2502 = vmatmul.mubr.bf16.gmra.mxu0 %v2441
    %v2503 = vpop.f32.mrf.mxu0
    %v2504 = vadd.f32 0.0, %v2503
    %v2505 = vpop.f32.mrf.mxu0
    %v2506 = vpop.f32.mrf.mxu0
    %v2507 = vadd.f32 0.0, %v2506
    %v2508 = vpop.f32.mrf.mxu0
    %2509 = vmatprep.mubr.bf16.mxu0 0
    %2510 = vmatmul.mubr.bf16.gmra.mxu0 %v2444
    %v2511 = vpop.f32.mrf.mxu0
    %v2512 = vadd.f32 0.0, %v2511
    %v2513 = vpop.f32.mrf.mxu0
    %v2514 = vpop.f32.mrf.mxu0
    %v2515 = vadd.f32 0.0, %v2514
    %v2516 = vpop.f32.mrf.mxu0
    %2517 = vmatprep.mubr.bf16.mxu0 0
    %2518 = vmatmul.mubr.bf16.gmra.mxu0 %v2447
    %v2519 = vpop.f32.mrf.mxu0
    %v2520 = vadd.f32 0.0, %v2519
    %v2521 = vpop.f32.mrf.mxu0
    %v2522 = vpop.f32.mrf.mxu0
    %v2523 = vadd.f32 0.0, %v2522
    %v2524 = vpop.f32.mrf.mxu0
    %2525 = vmatprep.mubr.bf16.mxu0 0
    %2526 = vmatmul.mubr.bf16.gmra.mxu0 %v2450
    %v2527 = vpop.f32.mrf.mxu0
    %v2528 = vadd.f32 0.0, %v2527
    %v2529 = vpop.f32.mrf.mxu0
    %v2530 = vpop.f32.mrf.mxu0
    %v2531 = vadd.f32 0.0, %v2530
    %v2532 = vpop.f32.mrf.mxu0
    %2533 = vmatprep.mubr.bf16.mxu0 0
    %2534 = vmatmul.mubr.bf16.gmra.mxu0 %v2453
    %v2535 = vpop.f32.mrf.mxu0
    %v2536 = vadd.f32 0.0, %v2535
    %v2537 = vpop.f32.mrf.mxu0
    %v2538 = vpop.f32.mrf.mxu0
    %v2539 = vadd.f32 0.0, %v2538
    %v2540 = vpop.f32.mrf.mxu0
    %2541 = vmatprep.mubr.bf16.mxu0 0
    %2542 = vmatmul.mubr.bf16.gmra.mxu0 %v2456
    %v2543 = vpop.f32.mrf.mxu0
    %v2544 = vadd.f32 0.0, %v2543
    %v2545 = vpop.f32.mrf.mxu0
    %v2546 = vpop.f32.mrf.mxu0
    %v2547 = vadd.f32 0.0, %v2546
    %v2548 = vpop.f32.mrf.mxu0
    %2549 = vmatprep.mubr.bf16.mxu0 0
    %2550 = vmatmul.mubr.bf16.gmra.mxu0 %v2459
    %v2551 = vpop.f32.mrf.mxu0
    %v2552 = vadd.f32 0.0, %v2551
    %v2553 = vpop.f32.mrf.mxu0
    %v2554 = vpop.f32.mrf.mxu0
    %v2555 = vadd.f32 0.0, %v2554
    %v2556 = vpop.f32.mrf.mxu0
    %2557 = vdwg.mxu0
    %v2558 = vadd.f32 %v2347, %v2496
    %v2559 = vadd.f32 %v2348, %v2499
    %v2560 = vadd.f32 %v2349, %v2504
    %v2561 = vadd.f32 %v2350, %v2507
    %v2562 = vadd.f32 %v2351, %v2512
    %v2563 = vadd.f32 %v2352, %v2515
    %v2564 = vadd.f32 %v2353, %v2520
    %v2565 = vadd.f32 %v2354, %v2523
    %v2566 = vadd.f32 %v2355, %v2528
    %v2567 = vadd.f32 %v2356, %v2531
    %v2568 = vadd.f32 %v2357, %v2536
    %v2569 = vadd.f32 %v2358, %v2539
    %v2570 = vadd.f32 %v2359, %v2544
    %v2571 = vadd.f32 %v2360, %v2547
    %v2572 = vadd.f32 %v2361, %v2552
    %v2573 = vadd.f32 %v2362, %v2555
    %v2574 = vld [vmem:[%s2363] sm:$0xf]
    %v2575 = vld [vmem:[%s2363 + $0x4] sm:$0x1]
    %v2576 = vld [vmem:[%s2363 + $0x8] sm:$0xf]
    %v2577 = vld [vmem:[%s2363 + $0xc] sm:$0x1]
    %v2578 = vld [vmem:[%s2363 + $0x10] sm:$0xf]
    %v2579 = vld [vmem:[%s2363 + $0x14] sm:$0x1]
    %v2580 = vld [vmem:[%s2363 + $0x18] sm:$0xf]
    %v2581 = vld [vmem:[%s2363 + $0x1c] sm:$0x1]
    %v2582 = vld [vmem:[%s2363 + $0x20] sm:$0xf]
    %v2583 = vld [vmem:[%s2363 + $0x24] sm:$0x1]
    %v2584 = vld [vmem:[%s2363 + $0x28] sm:$0xf]
    %v2585 = vld [vmem:[%s2363 + $0x2c] sm:$0x1]
    %v2586 = vld [vmem:[%s2363 + $0x30] sm:$0xf]
    %v2587 = vld [vmem:[%s2363 + $0x34] sm:$0x1]
    %v2588 = vld [vmem:[%s2363 + $0x38] sm:$0xf]
    %v2589 = vld [vmem:[%s2363 + $0x3c] sm:$0x1]
    %v2590 = vld [vmem:[%s2363 + $0x50] sm:$0xf]
    %v2591 = vld [vmem:[%s2363 + $0x54] sm:$0x1]
    %v2592 = vld [vmem:[%s2363 + $0x58] sm:$0xf]
    %v2593 = vld [vmem:[%s2363 + $0x5c] sm:$0x1]
    %v2594 = vld [vmem:[%s2363 + $0x60] sm:$0xf]
    %v2595 = vld [vmem:[%s2363 + $0x64] sm:$0x1]
    %v2596 = vld [vmem:[%s2363 + $0x68] sm:$0xf]
    %v2597 = vld [vmem:[%s2363 + $0x6c] sm:$0x1]
    %v2598 = vld [vmem:[%s2363 + $0x70] sm:$0xf]
    %v2599 = vld [vmem:[%s2363 + $0x74] sm:$0x1]
    %v2600 = vld [vmem:[%s2363 + $0x78] sm:$0xf]
    %v2601 = vld [vmem:[%s2363 + $0x7c] sm:$0x1]
    %v2602 = vld [vmem:[%s2363 + $0x80] sm:$0xf]
    %v2603 = vld [vmem:[%s2363 + $0x84] sm:$0x1]
    %v2604 = vld [vmem:[%s2363 + $0x88] sm:$0xf]
    %v2605 = vld [vmem:[%s2363 + $0x8c] sm:$0x1]
    %v2607 = vshrl.u32 %v2574, 16
    %v2609 = vrot.slane %v2607, 4
    %v2610 = vshll.u32 %v2574, 16
    %v2612 = vrot.slane %v2610, 5
    %v2613 = vor.u32 %v2609, %v2612
    %v2614 = vrot.slane %v2613, 4
    %v2616 = vshll.u32 %v2575, 16
    %v2618 = vrot.slane %v2616, 5
    %v2619 = vsel %vm575, %v2614, %v2618
    %v2621 = vshrl.u32 %v2576, 16
    %v2623 = vrot.slane %v2621, 4
    %v2624 = vshll.u32 %v2576, 16
    %v2626 = vrot.slane %v2624, 5
    %v2627 = vor.u32 %v2623, %v2626
    %v2628 = vrot.slane %v2627, 4
    %v2630 = vshll.u32 %v2577, 16
    %v2632 = vrot.slane %v2630, 5
    %v2633 = vsel %vm575, %v2628, %v2632
    %v2635 = vshrl.u32 %v2578, 16
    %v2637 = vrot.slane %v2635, 4
    %v2638 = vshll.u32 %v2578, 16
    %v2640 = vrot.slane %v2638, 5
    %v2641 = vor.u32 %v2637, %v2640
    %v2642 = vrot.slane %v2641, 4
    %v2644 = vshll.u32 %v2579, 16
    %v2646 = vrot.slane %v2644, 5
    %v2647 = vsel %vm575, %v2642, %v2646
    %v2649 = vshrl.u32 %v2580, 16
    %v2651 = vrot.slane %v2649, 4
    %v2652 = vshll.u32 %v2580, 16
    %v2654 = vrot.slane %v2652, 5
    %v2655 = vor.u32 %v2651, %v2654
    %v2656 = vrot.slane %v2655, 4
    %v2658 = vshll.u32 %v2581, 16
    %v2660 = vrot.slane %v2658, 5
    %v2661 = vsel %vm575, %v2656, %v2660
    %v2663 = vshrl.u32 %v2582, 16
    %v2665 = vrot.slane %v2663, 4
    %v2666 = vshll.u32 %v2582, 16
    %v2668 = vrot.slane %v2666, 5
    %v2669 = vor.u32 %v2665, %v2668
    %v2670 = vrot.slane %v2669, 4
    %v2672 = vshll.u32 %v2583, 16
    %v2674 = vrot.slane %v2672, 5
    %v2675 = vsel %vm575, %v2670, %v2674
    %v2677 = vshrl.u32 %v2584, 16
    %v2679 = vrot.slane %v2677, 4
    %v2680 = vshll.u32 %v2584, 16
    %v2682 = vrot.slane %v2680, 5
    %v2683 = vor.u32 %v2679, %v2682
    %v2684 = vrot.slane %v2683, 4
    %v2686 = vshll.u32 %v2585, 16
    %v2688 = vrot.slane %v2686, 5
    %v2689 = vsel %vm575, %v2684, %v2688
    %v2691 = vshrl.u32 %v2586, 16
    %v2693 = vrot.slane %v2691, 4
    %v2694 = vshll.u32 %v2586, 16
    %v2696 = vrot.slane %v2694, 5
    %v2697 = vor.u32 %v2693, %v2696
    %v2698 = vrot.slane %v2697, 4
    %v2700 = vshll.u32 %v2587, 16
    %v2702 = vrot.slane %v2700, 5
    %v2703 = vsel %vm575, %v2698, %v2702
    %v2705 = vshrl.u32 %v2588, 16
    %v2707 = vrot.slane %v2705, 4
    %v2708 = vshll.u32 %v2588, 16
    %v2710 = vrot.slane %v2708, 5
    %v2711 = vor.u32 %v2707, %v2710
    %v2712 = vrot.slane %v2711, 4
    %v2714 = vshll.u32 %v2589, 16
    %v2716 = vrot.slane %v2714, 5
    %v2717 = vsel %vm575, %v2712, %v2716
    %v2719 = vshrl.u32 %v2590, 16
    %v2721 = vrot.slane %v2719, 4
    %v2722 = vshll.u32 %v2590, 16
    %v2724 = vrot.slane %v2722, 5
    %v2725 = vor.u32 %v2721, %v2724
    %v2726 = vrot.slane %v2725, 4
    %v2728 = vshll.u32 %v2591, 16
    %v2730 = vrot.slane %v2728, 5
    %v2731 = vsel %vm575, %v2726, %v2730
    %v2733 = vshrl.u32 %v2592, 16
    %v2735 = vrot.slane %v2733, 4
    %v2736 = vshll.u32 %v2592, 16
    %v2738 = vrot.slane %v2736, 5
    %v2739 = vor.u32 %v2735, %v2738
    %v2740 = vrot.slane %v2739, 4
    %v2742 = vshll.u32 %v2593, 16
    %v2744 = vrot.slane %v2742, 5
    %v2745 = vsel %vm575, %v2740, %v2744
    %v2747 = vshrl.u32 %v2594, 16
    %v2749 = vrot.slane %v2747, 4
    %v2750 = vshll.u32 %v2594, 16
    %v2752 = vrot.slane %v2750, 5
    %v2753 = vor.u32 %v2749, %v2752
    %v2754 = vrot.slane %v2753, 4
    %v2756 = vshll.u32 %v2595, 16
    %v2758 = vrot.slane %v2756, 5
    %v2759 = vsel %vm575, %v2754, %v2758
    %v2761 = vshrl.u32 %v2596, 16
    %v2763 = vrot.slane %v2761, 4
    %v2764 = vshll.u32 %v2596, 16
    %v2766 = vrot.slane %v2764, 5
    %v2767 = vor.u32 %v2763, %v2766
    %v2768 = vrot.slane %v2767, 4
    %v2770 = vshll.u32 %v2597, 16
    %v2772 = vrot.slane %v2770, 5
    %v2773 = vsel %vm575, %v2768, %v2772
    %v2775 = vshrl.u32 %v2598, 16
    %v2777 = vrot.slane %v2775, 4
    %v2778 = vshll.u32 %v2598, 16
    %v2780 = vrot.slane %v2778, 5
    %v2781 = vor.u32 %v2777, %v2780
    %v2782 = vrot.slane %v2781, 4
    %v2784 = vshll.u32 %v2599, 16
    %v2786 = vrot.slane %v2784, 5
    %v2787 = vsel %vm575, %v2782, %v2786
    %v2789 = vshrl.u32 %v2600, 16
    %v2791 = vrot.slane %v2789, 4
    %v2792 = vshll.u32 %v2600, 16
    %v2794 = vrot.slane %v2792, 5
    %v2795 = vor.u32 %v2791, %v2794
    %v2796 = vrot.slane %v2795, 4
    %v2798 = vshll.u32 %v2601, 16
    %v2800 = vrot.slane %v2798, 5
    %v2801 = vsel %vm575, %v2796, %v2800
    %v2803 = vshrl.u32 %v2602, 16
    %v2805 = vrot.slane %v2803, 4
    %v2806 = vshll.u32 %v2602, 16
    %v2808 = vrot.slane %v2806, 5
    %v2809 = vor.u32 %v2805, %v2808
    %v2810 = vrot.slane %v2809, 4
    %v2812 = vshll.u32 %v2603, 16
    %v2814 = vrot.slane %v2812, 5
    %v2815 = vsel %vm575, %v2810, %v2814
    %v2817 = vshrl.u32 %v2604, 16
    %v2819 = vrot.slane %v2817, 4
    %v2820 = vshll.u32 %v2604, 16
    %v2822 = vrot.slane %v2820, 5
    %v2823 = vor.u32 %v2819, %v2822
    %v2824 = vrot.slane %v2823, 4
    %v2826 = vshll.u32 %v2605, 16
    %v2828 = vrot.slane %v2826, 5
    %v2829 = vsel %vm575, %v2824, %v2828
    %s2830 = scalar_lea.vmem [#allocation5], 112
    %v2831 = vld [vmem:[%s2830] sm:$0xf]
    %v2832 = vld [vmem:[%s2830 + $0x4] sm:$0xf]
    %v2833 = vld [vmem:[%s2830 + $0x8] sm:$0xf]
    %v2834 = vld [vmem:[%s2830 + $0xc] sm:$0xf]
    %v2835 = vunpack.c.l.b16 %v2619
    %v2836 = vunpack.c.l.b16 %v2633
    %v2837 = vunpack.c.l.b16 %v2647
    %v2838 = vunpack.c.l.b16 %v2661
    %v2839 = vunpack.c.l.b16 %v2675
    %v2840 = vunpack.c.l.b16 %v2689
    %v2841 = vunpack.c.l.b16 %v2703
    %v2842 = vunpack.c.l.b16 %v2717
    %v2843 = vunpack.c.l.b16 %v2731
    %v2844 = vunpack.c.l.b16 %v2745
    %v2845 = vunpack.c.l.b16 %v2759
    %v2846 = vunpack.c.l.b16 %v2773
    %v2847 = vunpack.c.l.b16 %v2787
    %v2848 = vunpack.c.l.b16 %v2801
    %v2849 = vunpack.c.l.b16 %v2815
    %v2850 = vunpack.c.l.b16 %v2829
    %v2851 = vpack.c.b16 %v2836, %v2835
    %v2852 = vpack.c.b16 %v2838, %v2837
    %v2853 = vpack.c.b16 %v2840, %v2839
    %v2854 = vpack.c.b16 %v2842, %v2841
    %v2855 = vpack.c.b16 %v2844, %v2843
    %v2856 = vpack.c.b16 %v2846, %v2845
    %v2857 = vpack.c.b16 %v2848, %v2847
    %v2858 = vpack.c.b16 %v2850, %v2849
    %v2863 = vunpack.c.l.b16 %v2831
    %v2864 = vunpack.c.l.b16 %v2832
    %v2865 = vunpack.c.l.b16 %v2833
    %v2866 = vunpack.c.l.b16 %v2834
    %v2867 = vpack.c.b16 %v2864, %v2863
    %v2868 = vpack.c.b16 %v2866, %v2865
    %v2872 = vsel %vm841, %v2851, 0
    %v2875 = vsel %vm841, %v2852, 0
    %v2878 = vsel %vm841, %v2853, 0
    %v2881 = vsel %vm841, %v2854, 0
    %v2884 = vsel %vm841, %v2855, 0
    %v2887 = vsel %vm841, %v2856, 0
    %v2890 = vsel %vm841, %v2857, 0
    %v2893 = vsel %vm841, %v2858, 0
    %2895 = vmatprep.subr.bf16.mxu0 0
    %2896 = vmatpush1.bf16.msra.mxu0 0
    %2897 = vmatprep.subr.bf16.mxu0 0
    %2898 = vmatpush1.bf16.msra.mxu0 0
    %2899 = vmatprep.subr.bf16.mxu0 0
    %2900 = vmatpush1.bf16.msra.mxu0 0
    %2901 = vmatprep.subr.bf16.mxu0 0
    %2902 = vmatpush1.bf16.msra.mxu0 0
    %2903 = vmatprep.subr.bf16.mxu0 0
    %2904 = vmatpush1.bf16.msra.mxu0 0
    %2905 = vmatprep.subr.bf16.mxu0 0
    %2906 = vmatpush1.bf16.msra.mxu0 0
    %2907 = vmatprep.subr.bf16.mxu0 0
    %2908 = vmatpush1.bf16.msra.mxu0 %v2868
    %2909 = vmatprep.subr.bf16.mxu0 0
    %2910 = vmatpush1.bf16.msra.mxu0 %v2867
    %2911 = vmatprep.subr.bf16.mxu0 0
    %2912 = vmatpush2.bf16.msra.mxu0 0
    %2913 = vmatprep.subr.bf16.mxu0 0
    %2914 = vmatpush2.bf16.msra.mxu0 0
    %2915 = vmatprep.subr.bf16.mxu0 0
    %2916 = vmatpush2.bf16.msra.mxu0 0
    %2917 = vmatprep.subr.bf16.mxu0 0
    %2918 = vmatpush2.bf16.msra.mxu0 0
    %2919 = vmatprep.subr.bf16.mxu0 0
    %2920 = vmatpush2.bf16.msra.mxu0 0
    %2921 = vmatprep.subr.bf16.mxu0 0
    %2922 = vmatpush2.bf16.msra.mxu0 0
    %2923 = vmatprep.subr.bf16.mxu0 0
    %2924 = vmatpush2.bf16.msra.mxu0 0
    %2925 = vmatprep.subr.bf16.mxu0 0
    %2926 = vmatpush2.bf16.msra.mxu0 0
    %2927 = vmatprep.mubr.bf16.mxu0 0
    %2928 = vmatmul.mubr.bf16.gmra.mxu0 %v2872
    %v2929 = vpop.f32.mrf.mxu0
    %v2930 = vadd.f32 0.0, %v2929
    %v2931 = vpop.f32.mrf.mxu0
    %v2932 = vpop.f32.mrf.mxu0
    %v2933 = vadd.f32 0.0, %v2932
    %v2934 = vpop.f32.mrf.mxu0
    %2935 = vmatprep.mubr.bf16.mxu0 0
    %2936 = vmatmul.mubr.bf16.gmra.mxu0 %v2875
    %v2937 = vpop.f32.mrf.mxu0
    %v2938 = vadd.f32 0.0, %v2937
    %v2939 = vpop.f32.mrf.mxu0
    %v2940 = vpop.f32.mrf.mxu0
    %v2941 = vadd.f32 0.0, %v2940
    %v2942 = vpop.f32.mrf.mxu0
    %2943 = vmatprep.mubr.bf16.mxu0 0
    %2944 = vmatmul.mubr.bf16.gmra.mxu0 %v2878
    %v2945 = vpop.f32.mrf.mxu0
    %v2946 = vadd.f32 0.0, %v2945
    %v2947 = vpop.f32.mrf.mxu0
    %v2948 = vpop.f32.mrf.mxu0
    %v2949 = vadd.f32 0.0, %v2948
    %v2950 = vpop.f32.mrf.mxu0
    %2951 = vmatprep.mubr.bf16.mxu0 0
    %2952 = vmatmul.mubr.bf16.gmra.mxu0 %v2881
    %v2953 = vpop.f32.mrf.mxu0
    %v2954 = vadd.f32 0.0, %v2953
    %v2955 = vpop.f32.mrf.mxu0
    %v2956 = vpop.f32.mrf.mxu0
    %v2957 = vadd.f32 0.0, %v2956
    %v2958 = vpop.f32.mrf.mxu0
    %2959 = vmatprep.mubr.bf16.mxu0 0
    %2960 = vmatmul.mubr.bf16.gmra.mxu0 %v2884
    %v2961 = vpop.f32.mrf.mxu0
    %v2962 = vadd.f32 0.0, %v2961
    %v2963 = vpop.f32.mrf.mxu0
    %v2964 = vpop.f32.mrf.mxu0
    %v2965 = vadd.f32 0.0, %v2964
    %v2966 = vpop.f32.mrf.mxu0
    %2967 = vmatprep.mubr.bf16.mxu0 0
    %2968 = vmatmul.mubr.bf16.gmra.mxu0 %v2887
    %v2969 = vpop.f32.mrf.mxu0
    %v2970 = vadd.f32 0.0, %v2969
    %v2971 = vpop.f32.mrf.mxu0
    %v2972 = vpop.f32.mrf.mxu0
    %v2973 = vadd.f32 0.0, %v2972
    %v2974 = vpop.f32.mrf.mxu0
    %2975 = vmatprep.mubr.bf16.mxu0 0
    %2976 = vmatmul.mubr.bf16.gmra.mxu0 %v2890
    %v2977 = vpop.f32.mrf.mxu0
    %v2978 = vadd.f32 0.0, %v2977
    %v2979 = vpop.f32.mrf.mxu0
    %v2980 = vpop.f32.mrf.mxu0
    %v2981 = vadd.f32 0.0, %v2980
    %v2982 = vpop.f32.mrf.mxu0
    %2983 = vmatprep.mubr.bf16.mxu0 0
    %2984 = vmatmul.mubr.bf16.gmra.mxu0 %v2893
    %v2985 = vpop.f32.mrf.mxu0
    %v2986 = vadd.f32 0.0, %v2985
    %v2987 = vpop.f32.mrf.mxu0
    %v2988 = vpop.f32.mrf.mxu0
    %v2989 = vadd.f32 0.0, %v2988
    %v2990 = vpop.f32.mrf.mxu0
    %2991 = vdwg.mxu0
    %v2992 = vadd.f32 %v2558, %v2930
    %v2993 = vadd.f32 %v2559, %v2933
    %v2994 = vadd.f32 %v2560, %v2938
    %v2995 = vadd.f32 %v2561, %v2941
    %v2996 = vadd.f32 %v2562, %v2946
    %v2997 = vadd.f32 %v2563, %v2949
    %v2998 = vadd.f32 %v2564, %v2954
    %v2999 = vadd.f32 %v2565, %v2957
    %v3000 = vadd.f32 %v2566, %v2962
    %v3001 = vadd.f32 %v2567, %v2965
    %v3002 = vadd.f32 %v2568, %v2970
    %v3003 = vadd.f32 %v2569, %v2973
    %v3004 = vadd.f32 %v2570, %v2978
    %v3005 = vadd.f32 %v2571, %v2981
    %v3006 = vadd.f32 %v2572, %v2986
    %v3007 = vadd.f32 %v2573, %v2989
    %v3008 = vld [vmem:[%s2363] sm:$0xe]
    %v3009 = vld [vmem:[%s2363 + $0x8] sm:$0xe]
    %v3010 = vld [vmem:[%s2363 + $0x10] sm:$0xe]
    %v3011 = vld [vmem:[%s2363 + $0x18] sm:$0xe]
    %v3012 = vld [vmem:[%s2363 + $0x20] sm:$0xe]
    %v3013 = vld [vmem:[%s2363 + $0x28] sm:$0xe]
    %v3014 = vld [vmem:[%s2363 + $0x30] sm:$0xe]
    %v3015 = vld [vmem:[%s2363 + $0x38] sm:$0xe]
    %v3016 = vld [vmem:[%s2363 + $0x50] sm:$0xe]
    %v3017 = vld [vmem:[%s2363 + $0x58] sm:$0xe]
    %v3018 = vld [vmem:[%s2363 + $0x60] sm:$0xe]
    %v3019 = vld [vmem:[%s2363 + $0x68] sm:$0xe]
    %v3020 = vld [vmem:[%s2363 + $0x70] sm:$0xe]
    %v3021 = vld [vmem:[%s2363 + $0x78] sm:$0xe]
    %v3022 = vld [vmem:[%s2363 + $0x80] sm:$0xe]
    %v3023 = vld [vmem:[%s2363 + $0x88] sm:$0xe]
    %v3056 = vrot.slane %v3008, 5
    %v3057 = vrot.slane %v3056, 4
    %v3058 = vrot.slane %v2575, 5
    %v3059 = vsel %vm1186, %v3057, %v3058
    %v3060 = vrot.slane %v3009, 5
    %v3061 = vrot.slane %v3060, 4
    %v3062 = vrot.slane %v2577, 5
    %v3063 = vsel %vm1186, %v3061, %v3062
    %v3064 = vrot.slane %v3010, 5
    %v3065 = vrot.slane %v3064, 4
    %v3066 = vrot.slane %v2579, 5
    %v3067 = vsel %vm1186, %v3065, %v3066
    %v3068 = vrot.slane %v3011, 5
    %v3069 = vrot.slane %v3068, 4
    %v3070 = vrot.slane %v2581, 5
    %v3071 = vsel %vm1186, %v3069, %v3070
    %v3072 = vrot.slane %v3012, 5
    %v3073 = vrot.slane %v3072, 4
    %v3074 = vrot.slane %v2583, 5
    %v3075 = vsel %vm1186, %v3073, %v3074
    %v3076 = vrot.slane %v3013, 5
    %v3077 = vrot.slane %v3076, 4
    %v3078 = vrot.slane %v2585, 5
    %v3079 = vsel %vm1186, %v3077, %v3078
    %v3080 = vrot.slane %v3014, 5
    %v3081 = vrot.slane %v3080, 4
    %v3082 = vrot.slane %v2587, 5
    %v3083 = vsel %vm1186, %v3081, %v3082
    %v3084 = vrot.slane %v3015, 5
    %v3085 = vrot.slane %v3084, 4
    %v3086 = vrot.slane %v2589, 5
    %v3087 = vsel %vm1186, %v3085, %v3086
    %v3088 = vrot.slane %v3016, 5
    %v3089 = vrot.slane %v3088, 4
    %v3090 = vrot.slane %v2591, 5
    %v3091 = vsel %vm1186, %v3089, %v3090
    %v3092 = vrot.slane %v3017, 5
    %v3093 = vrot.slane %v3092, 4
    %v3094 = vrot.slane %v2593, 5
    %v3095 = vsel %vm1186, %v3093, %v3094
    %v3096 = vrot.slane %v3018, 5
    %v3097 = vrot.slane %v3096, 4
    %v3098 = vrot.slane %v2595, 5
    %v3099 = vsel %vm1186, %v3097, %v3098
    %v3100 = vrot.slane %v3019, 5
    %v3101 = vrot.slane %v3100, 4
    %v3102 = vrot.slane %v2597, 5
    %v3103 = vsel %vm1186, %v3101, %v3102
    %v3104 = vrot.slane %v3020, 5
    %v3105 = vrot.slane %v3104, 4
    %v3106 = vrot.slane %v2599, 5
    %v3107 = vsel %vm1186, %v3105, %v3106
    %v3108 = vrot.slane %v3021, 5
    %v3109 = vrot.slane %v3108, 4
    %v3110 = vrot.slane %v2601, 5
    %v3111 = vsel %vm1186, %v3109, %v3110
    %v3112 = vrot.slane %v3022, 5
    %v3113 = vrot.slane %v3112, 4
    %v3114 = vrot.slane %v2603, 5
    %v3115 = vsel %vm1186, %v3113, %v3114
    %v3116 = vrot.slane %v3023, 5
    %v3117 = vrot.slane %v3116, 4
    %v3118 = vrot.slane %v2605, 5
    %v3119 = vsel %vm1186, %v3117, %v3118
    %s3120 = scalar_lea.vmem [#allocation5], 128
    %v3121 = vld [vmem:[%s3120] sm:$0xf]
    %v3122 = vld [vmem:[%s3120 + $0x4] sm:$0xf]
    %v3123 = vld [vmem:[%s3120 + $0x8] sm:$0xf]
    %v3124 = vld [vmem:[%s3120 + $0xc] sm:$0xf]
    %v3125 = vunpack.c.l.b16 %v3059
    %v3126 = vunpack.c.l.b16 %v3063
    %v3127 = vunpack.c.l.b16 %v3067
    %v3128 = vunpack.c.l.b16 %v3071
    %v3129 = vunpack.c.l.b16 %v3075
    %v3130 = vunpack.c.l.b16 %v3079
    %v3131 = vunpack.c.l.b16 %v3083
    %v3132 = vunpack.c.l.b16 %v3087
    %v3133 = vunpack.c.l.b16 %v3091
    %v3134 = vunpack.c.l.b16 %v3095
    %v3135 = vunpack.c.l.b16 %v3099
    %v3136 = vunpack.c.l.b16 %v3103
    %v3137 = vunpack.c.l.b16 %v3107
    %v3138 = vunpack.c.l.b16 %v3111
    %v3139 = vunpack.c.l.b16 %v3115
    %v3140 = vunpack.c.l.b16 %v3119
    %v3141 = vpack.c.b16 %v3126, %v3125
    %v3142 = vpack.c.b16 %v3128, %v3127
    %v3143 = vpack.c.b16 %v3130, %v3129
    %v3144 = vpack.c.b16 %v3132, %v3131
    %v3145 = vpack.c.b16 %v3134, %v3133
    %v3146 = vpack.c.b16 %v3136, %v3135
    %v3147 = vpack.c.b16 %v3138, %v3137
    %v3148 = vpack.c.b16 %v3140, %v3139
    %v3153 = vunpack.c.l.b16 %v3121
    %v3154 = vunpack.c.l.b16 %v3122
    %v3155 = vunpack.c.l.b16 %v3123
    %v3156 = vunpack.c.l.b16 %v3124
    %v3157 = vpack.c.b16 %v3154, %v3153
    %v3158 = vpack.c.b16 %v3156, %v3155
    %v3162 = vsel %vm841, %v3141, 0
    %v3165 = vsel %vm841, %v3142, 0
    %v3168 = vsel %vm841, %v3143, 0
    %v3171 = vsel %vm841, %v3144, 0
    %v3174 = vsel %vm841, %v3145, 0
    %v3177 = vsel %vm841, %v3146, 0
    %v3180 = vsel %vm841, %v3147, 0
    %v3183 = vsel %vm841, %v3148, 0
    %3185 = vmatprep.subr.bf16.mxu0 0
    %3186 = vmatpush1.bf16.msra.mxu0 0
    %3187 = vmatprep.subr.bf16.mxu0 0
    %3188 = vmatpush1.bf16.msra.mxu0 0
    %3189 = vmatprep.subr.bf16.mxu0 0
    %3190 = vmatpush1.bf16.msra.mxu0 0
    %3191 = vmatprep.subr.bf16.mxu0 0
    %3192 = vmatpush1.bf16.msra.mxu0 0
    %3193 = vmatprep.subr.bf16.mxu0 0
    %3194 = vmatpush1.bf16.msra.mxu0 0
    %3195 = vmatprep.subr.bf16.mxu0 0
    %3196 = vmatpush1.bf16.msra.mxu0 0
    %3197 = vmatprep.subr.bf16.mxu0 0
    %3198 = vmatpush1.bf16.msra.mxu0 %v3158
    %3199 = vmatprep.subr.bf16.mxu0 0
    %3200 = vmatpush1.bf16.msra.mxu0 %v3157
    %3201 = vmatprep.subr.bf16.mxu0 0
    %3202 = vmatpush2.bf16.msra.mxu0 0
    %3203 = vmatprep.subr.bf16.mxu0 0
    %3204 = vmatpush2.bf16.msra.mxu0 0
    %3205 = vmatprep.subr.bf16.mxu0 0
    %3206 = vmatpush2.bf16.msra.mxu0 0
    %3207 = vmatprep.subr.bf16.mxu0 0
    %3208 = vmatpush2.bf16.msra.mxu0 0
    %3209 = vmatprep.subr.bf16.mxu0 0
    %3210 = vmatpush2.bf16.msra.mxu0 0
    %3211 = vmatprep.subr.bf16.mxu0 0
    %3212 = vmatpush2.bf16.msra.mxu0 0
    %3213 = vmatprep.subr.bf16.mxu0 0
    %3214 = vmatpush2.bf16.msra.mxu0 0
    %3215 = vmatprep.subr.bf16.mxu0 0
    %3216 = vmatpush2.bf16.msra.mxu0 0
    %3217 = vmatprep.mubr.bf16.mxu0 0
    %3218 = vmatmul.mubr.bf16.gmra.mxu0 %v3162
    %v3219 = vpop.f32.mrf.mxu0
    %v3220 = vadd.f32 0.0, %v3219
    %v3221 = vpop.f32.mrf.mxu0
    %v3222 = vpop.f32.mrf.mxu0
    %v3223 = vadd.f32 0.0, %v3222
    %v3224 = vpop.f32.mrf.mxu0
    %3225 = vmatprep.mubr.bf16.mxu0 0
    %3226 = vmatmul.mubr.bf16.gmra.mxu0 %v3165
    %v3227 = vpop.f32.mrf.mxu0
    %v3228 = vadd.f32 0.0, %v3227
    %v3229 = vpop.f32.mrf.mxu0
    %v3230 = vpop.f32.mrf.mxu0
    %v3231 = vadd.f32 0.0, %v3230
    %v3232 = vpop.f32.mrf.mxu0
    %3233 = vmatprep.mubr.bf16.mxu0 0
    %3234 = vmatmul.mubr.bf16.gmra.mxu0 %v3168
    %v3235 = vpop.f32.mrf.mxu0
    %v3236 = vadd.f32 0.0, %v3235
    %v3237 = vpop.f32.mrf.mxu0
    %v3238 = vpop.f32.mrf.mxu0
    %v3239 = vadd.f32 0.0, %v3238
    %v3240 = vpop.f32.mrf.mxu0
    %3241 = vmatprep.mubr.bf16.mxu0 0
    %3242 = vmatmul.mubr.bf16.gmra.mxu0 %v3171
    %v3243 = vpop.f32.mrf.mxu0
    %v3244 = vadd.f32 0.0, %v3243
    %v3245 = vpop.f32.mrf.mxu0
    %v3246 = vpop.f32.mrf.mxu0
    %v3247 = vadd.f32 0.0, %v3246
    %v3248 = vpop.f32.mrf.mxu0
    %3249 = vmatprep.mubr.bf16.mxu0 0
    %3250 = vmatmul.mubr.bf16.gmra.mxu0 %v3174
    %v3251 = vpop.f32.mrf.mxu0
    %v3252 = vadd.f32 0.0, %v3251
    %v3253 = vpop.f32.mrf.mxu0
    %v3254 = vpop.f32.mrf.mxu0
    %v3255 = vadd.f32 0.0, %v3254
    %v3256 = vpop.f32.mrf.mxu0
    %3257 = vmatprep.mubr.bf16.mxu0 0
    %3258 = vmatmul.mubr.bf16.gmra.mxu0 %v3177
    %v3259 = vpop.f32.mrf.mxu0
    %v3260 = vadd.f32 0.0, %v3259
    %v3261 = vpop.f32.mrf.mxu0
    %v3262 = vpop.f32.mrf.mxu0
    %v3263 = vadd.f32 0.0, %v3262
    %v3264 = vpop.f32.mrf.mxu0
    %3265 = vmatprep.mubr.bf16.mxu0 0
    %3266 = vmatmul.mubr.bf16.gmra.mxu0 %v3180
    %v3267 = vpop.f32.mrf.mxu0
    %v3268 = vadd.f32 0.0, %v3267
    %v3269 = vpop.f32.mrf.mxu0
    %v3270 = vpop.f32.mrf.mxu0
    %v3271 = vadd.f32 0.0, %v3270
    %v3272 = vpop.f32.mrf.mxu0
    %3273 = vmatprep.mubr.bf16.mxu0 0
    %3274 = vmatmul.mubr.bf16.gmra.mxu0 %v3183
    %v3275 = vpop.f32.mrf.mxu0
    %v3276 = vadd.f32 0.0, %v3275
    %v3277 = vpop.f32.mrf.mxu0
    %v3278 = vpop.f32.mrf.mxu0
    %v3279 = vadd.f32 0.0, %v3278
    %v3280 = vpop.f32.mrf.mxu0
    %3281 = vdwg.mxu0
    %v3282 = vadd.f32 %v2992, %v3220
    %v3283 = vadd.f32 %v2993, %v3223
    %v3284 = vadd.f32 %v2994, %v3228
    %v3285 = vadd.f32 %v2995, %v3231
    %v3286 = vadd.f32 %v2996, %v3236
    %v3287 = vadd.f32 %v2997, %v3239
    %v3288 = vadd.f32 %v2998, %v3244
    %v3289 = vadd.f32 %v2999, %v3247
    %v3290 = vadd.f32 %v3000, %v3252
    %v3291 = vadd.f32 %v3001, %v3255
    %v3292 = vadd.f32 %v3002, %v3260
    %v3293 = vadd.f32 %v3003, %v3263
    %v3294 = vadd.f32 %v3004, %v3268
    %v3295 = vadd.f32 %v3005, %v3271
    %v3296 = vadd.f32 %v3006, %v3276
    %v3297 = vadd.f32 %v3007, %v3279
    %v3298 = vld [vmem:[%s2] sm:$0x1]
    %v3300 = vlaneseq
    %v3301 = vshrl.u32 %v3300, 7
    %v3302 = vsub.s32 0, %v3301
    %v3303 = vrot.slane %v3298, %v3302
    %v3305 = vadd.f32 %v3282, %v3303
    %v3306 = vadd.f32 %v3283, %v3303
    %v3307 = vadd.f32 %v3284, %v3303
    %v3308 = vadd.f32 %v3285, %v3303
    %v3309 = vadd.f32 %v3286, %v3303
    %v3310 = vadd.f32 %v3287, %v3303
    %v3311 = vadd.f32 %v3288, %v3303
    %v3312 = vadd.f32 %v3289, %v3303
    %v3313 = vadd.f32 %v3290, %v3303
    %v3314 = vadd.f32 %v3291, %v3303
    %v3315 = vadd.f32 %v3292, %v3303
    %v3316 = vadd.f32 %v3293, %v3303
    %v3317 = vadd.f32 %v3294, %v3303
    %v3318 = vadd.f32 %v3295, %v3303
    %v3319 = vadd.f32 %v3296, %v3303
    %v3320 = vadd.f32 %v3297, %v3303
    %v3321 = vsub.f32 0.0, %v3305
    %v3322 = vsub.f32 0.0, %v3306
    %v3323 = vsub.f32 0.0, %v3307
    %v3324 = vsub.f32 0.0, %v3308
    %v3325 = vsub.f32 0.0, %v3309
    %v3326 = vsub.f32 0.0, %v3310
    %v3327 = vsub.f32 0.0, %v3311
    %v3328 = vsub.f32 0.0, %v3312
    %v3329 = vsub.f32 0.0, %v3313
    %v3330 = vsub.f32 0.0, %v3314
    %v3331 = vsub.f32 0.0, %v3315
    %v3332 = vsub.f32 0.0, %v3316
    %v3333 = vsub.f32 0.0, %v3317
    %v3334 = vsub.f32 0.0, %v3318
    %v3335 = vsub.f32 0.0, %v3319
    %v3336 = vsub.f32 0.0, %v3320
    %v3337 = vmul.f32 %v3321, 1.442695
    %v3338 = vpow.pop %v3337
    %v3339 = vmul.f32 %v3322, 1.442695
    %v3340 = vpow.pop %v3339
    %v3341 = vmul.f32 %v3323, 1.442695
    %v3342 = vpow.pop %v3341
    %v3343 = vmul.f32 %v3324, 1.442695
    %v3344 = vpow.pop %v3343
    %v3345 = vmul.f32 %v3325, 1.442695
    %v3346 = vpow.pop %v3345
    %v3347 = vmul.f32 %v3326, 1.442695
    %v3348 = vpow.pop %v3347
    %v3349 = vmul.f32 %v3327, 1.442695
    %v3350 = vpow.pop %v3349
    %v3351 = vmul.f32 %v3328, 1.442695
    %v3352 = vpow.pop %v3351
    %v3353 = vmul.f32 %v3329, 1.442695
    %v3354 = vpow.pop %v3353
    %v3355 = vmul.f32 %v3330, 1.442695
    %v3356 = vpow.pop %v3355
    %v3357 = vmul.f32 %v3331, 1.442695
    %v3358 = vpow.pop %v3357
    %v3359 = vmul.f32 %v3332, 1.442695
    %v3360 = vpow.pop %v3359
    %v3361 = vmul.f32 %v3333, 1.442695
    %v3362 = vpow.pop %v3361
    %v3363 = vmul.f32 %v3334, 1.442695
    %v3364 = vpow.pop %v3363
    %v3365 = vmul.f32 %v3335, 1.442695
    %v3366 = vpow.pop %v3365
    %v3367 = vmul.f32 %v3336, 1.442695
    %v3368 = vpow.pop %v3367
    %v3369 = vadd.f32 %v3338, 1.0
    %v3370 = vadd.f32 %v3340, 1.0
    %v3371 = vadd.f32 %v3342, 1.0
    %v3372 = vadd.f32 %v3344, 1.0
    %v3373 = vadd.f32 %v3346, 1.0
    %v3374 = vadd.f32 %v3348, 1.0
    %v3375 = vadd.f32 %v3350, 1.0
    %v3376 = vadd.f32 %v3352, 1.0
    %v3377 = vadd.f32 %v3354, 1.0
    %v3378 = vadd.f32 %v3356, 1.0
    %v3379 = vadd.f32 %v3358, 1.0
    %v3380 = vadd.f32 %v3360, 1.0
    %v3381 = vadd.f32 %v3362, 1.0
    %v3382 = vadd.f32 %v3364, 1.0
    %v3383 = vadd.f32 %v3366, 1.0
    %v3384 = vadd.f32 %v3368, 1.0
    %v3385 = vrcp.pop %v3369
    %v3386 = vrcp.pop %v3370
    %v3387 = vrcp.pop %v3371
    %v3388 = vrcp.pop %v3372
    %v3389 = vrcp.pop %v3373
    %v3390 = vrcp.pop %v3374
    %v3391 = vrcp.pop %v3375
    %v3392 = vrcp.pop %v3376
    %v3393 = vrcp.pop %v3377
    %v3394 = vrcp.pop %v3378
    %v3395 = vrcp.pop %v3379
    %v3396 = vrcp.pop %v3380
    %v3397 = vrcp.pop %v3381
    %v3398 = vrcp.pop %v3382
    %v3399 = vrcp.pop %v3383
    %v3400 = vrcp.pop %v3384
    %v3401 = vmul.f32 %v3305, %v3385
    %v3402 = vmul.f32 %v3306, %v3386
    %v3403 = vmul.f32 %v3307, %v3387
    %v3404 = vmul.f32 %v3308, %v3388
    %v3405 = vmul.f32 %v3309, %v3389
    %v3406 = vmul.f32 %v3310, %v3390
    %v3407 = vmul.f32 %v3311, %v3391
    %v3408 = vmul.f32 %v3312, %v3392
    %v3409 = vmul.f32 %v3313, %v3393
    %v3410 = vmul.f32 %v3314, %v3394
    %v3411 = vmul.f32 %v3315, %v3395
    %v3412 = vmul.f32 %v3316, %v3396
    %v3413 = vmul.f32 %v3317, %v3397
    %v3414 = vmul.f32 %v3318, %v3398
    %v3415 = vmul.f32 %v3319, %v3399
    %v3416 = vmul.f32 %v3320, %v3400
    %v3417 = vpack.c.bf16 %v3401, %v3401
    %v3418 = vpack.c.bf16 %v3402, %v3402
    %v3419 = vpack.c.bf16 %v3403, %v3403
    %v3420 = vpack.c.bf16 %v3404, %v3404
    %v3421 = vpack.c.bf16 %v3405, %v3405
    %v3422 = vpack.c.bf16 %v3406, %v3406
    %v3423 = vpack.c.bf16 %v3407, %v3407
    %v3424 = vpack.c.bf16 %v3408, %v3408
    %v3425 = vpack.c.bf16 %v3409, %v3409
    %v3426 = vpack.c.bf16 %v3410, %v3410
    %v3427 = vpack.c.bf16 %v3411, %v3411
    %v3428 = vpack.c.bf16 %v3412, %v3412
    %v3429 = vpack.c.bf16 %v3413, %v3413
    %v3430 = vpack.c.bf16 %v3414, %v3414
    %v3431 = vpack.c.bf16 %v3415, %v3415
    %v3432 = vpack.c.bf16 %v3416, %v3416
    %v3449 = vunpack.c.l.b16 %v3417
    %v3450 = vunpack.c.l.b16 %v3418
    %v3451 = vunpack.c.l.b16 %v3419
    %v3452 = vunpack.c.l.b16 %v3420
    %v3453 = vunpack.c.l.b16 %v3421
    %v3454 = vunpack.c.l.b16 %v3422
    %v3455 = vunpack.c.l.b16 %v3423
    %v3456 = vunpack.c.l.b16 %v3424
    %v3457 = vunpack.c.l.b16 %v3425
    %v3458 = vunpack.c.l.b16 %v3426
    %v3459 = vunpack.c.l.b16 %v3427
    %v3460 = vunpack.c.l.b16 %v3428
    %v3461 = vunpack.c.l.b16 %v3429
    %v3462 = vunpack.c.l.b16 %v3430
    %v3463 = vunpack.c.l.b16 %v3431
    %v3464 = vunpack.c.l.b16 %v3432
    %v3465 = vpack.c.b16 %v3449, %v3449
    %v3466 = vpack.c.b16 %v3450, %v3450
    %v3467 = vpack.c.b16 %v3451, %v3451
    %v3468 = vpack.c.b16 %v3452, %v3452
    %v3469 = vpack.c.b16 %v3453, %v3453
    %v3470 = vpack.c.b16 %v3454, %v3454
    %v3471 = vpack.c.b16 %v3455, %v3455
    %v3472 = vpack.c.b16 %v3456, %v3456
    %v3473 = vpack.c.b16 %v3457, %v3457
    %v3474 = vpack.c.b16 %v3458, %v3458
    %v3475 = vpack.c.b16 %v3459, %v3459
    %v3476 = vpack.c.b16 %v3460, %v3460
    %v3477 = vpack.c.b16 %v3461, %v3461
    %v3478 = vpack.c.b16 %v3462, %v3462
    %v3479 = vpack.c.b16 %v3463, %v3463
    %v3480 = vpack.c.b16 %v3464, %v3464
    %v3482 = vshrl.u32 %v3465, 16
    %v3484 = vrot.slane %v3482, 7
    %v3485 = vshll.u32 %v3465, 16
    %v3487 = vor.u32 %v3484, %v3485
    %v3488 = vrot.slane %v3484, 4
    %v3490 = vshrl.u32 %v3466, 16
    %v3492 = vrot.slane %v3490, 7
    %v3493 = vshll.u32 %v3466, 16
    %v3495 = vor.u32 %v3492, %v3493
    %v3496 = vrot.slane %v3492, 4
    %v3498 = vshrl.u32 %v3467, 16
    %v3500 = vrot.slane %v3498, 7
    %v3501 = vshll.u32 %v3467, 16
    %v3503 = vor.u32 %v3500, %v3501
    %v3504 = vrot.slane %v3500, 4
    %v3506 = vshrl.u32 %v3468, 16
    %v3508 = vrot.slane %v3506, 7
    %v3509 = vshll.u32 %v3468, 16
    %v3511 = vor.u32 %v3508, %v3509
    %v3512 = vrot.slane %v3508, 4
    %v3514 = vshrl.u32 %v3469, 16
    %v3516 = vrot.slane %v3514, 7
    %v3517 = vshll.u32 %v3469, 16
    %v3519 = vor.u32 %v3516, %v3517
    %v3520 = vrot.slane %v3516, 4
    %v3522 = vshrl.u32 %v3470, 16
    %v3524 = vrot.slane %v3522, 7
    %v3525 = vshll.u32 %v3470, 16
    %v3527 = vor.u32 %v3524, %v3525
    %v3528 = vrot.slane %v3524, 4
    %v3530 = vshrl.u32 %v3471, 16
    %v3532 = vrot.slane %v3530, 7
    %v3533 = vshll.u32 %v3471, 16
    %v3535 = vor.u32 %v3532, %v3533
    %v3536 = vrot.slane %v3532, 4
    %v3538 = vshrl.u32 %v3472, 16
    %v3540 = vrot.slane %v3538, 7
    %v3541 = vshll.u32 %v3472, 16
    %v3543 = vor.u32 %v3540, %v3541
    %v3544 = vrot.slane %v3540, 4
    %v3546 = vshrl.u32 %v3473, 16
    %v3548 = vrot.slane %v3546, 7
    %v3549 = vshll.u32 %v3473, 16
    %v3551 = vor.u32 %v3548, %v3549
    %v3552 = vrot.slane %v3548, 4
    %v3554 = vshrl.u32 %v3474, 16
    %v3556 = vrot.slane %v3554, 7
    %v3557 = vshll.u32 %v3474, 16
    %v3559 = vor.u32 %v3556, %v3557
    %v3560 = vrot.slane %v3556, 4
    %v3562 = vshrl.u32 %v3475, 16
    %v3564 = vrot.slane %v3562, 7
    %v3565 = vshll.u32 %v3475, 16
    %v3567 = vor.u32 %v3564, %v3565
    %v3568 = vrot.slane %v3564, 4
    %v3570 = vshrl.u32 %v3476, 16
    %v3572 = vrot.slane %v3570, 7
    %v3573 = vshll.u32 %v3476, 16
    %v3575 = vor.u32 %v3572, %v3573
    %v3576 = vrot.slane %v3572, 4
    %v3578 = vshrl.u32 %v3477, 16
    %v3580 = vrot.slane %v3578, 7
    %v3581 = vshll.u32 %v3477, 16
    %v3583 = vor.u32 %v3580, %v3581
    %v3584 = vrot.slane %v3580, 4
    %v3586 = vshrl.u32 %v3478, 16
    %v3588 = vrot.slane %v3586, 7
    %v3589 = vshll.u32 %v3478, 16
    %v3591 = vor.u32 %v3588, %v3589
    %v3592 = vrot.slane %v3588, 4
    %v3594 = vshrl.u32 %v3479, 16
    %v3596 = vrot.slane %v3594, 7
    %v3597 = vshll.u32 %v3479, 16
    %v3599 = vor.u32 %v3596, %v3597
    %v3600 = vrot.slane %v3596, 4
    %v3602 = vshrl.u32 %v3480, 16
    %v3604 = vrot.slane %v3602, 7
    %v3605 = vshll.u32 %v3480, 16
    %v3607 = vor.u32 %v3604, %v3605
    %v3608 = vrot.slane %v3604, 4
    %v3641 = vsel %vm440, %v3487, %v1639
    %3642 = vst [vmem:[%s438] sm:$0xf] %v3641
    %v3643 = vld [vmem:[%s438 + $0x4] sm:$0x1]
    %v3644 = vsel %vm75, %v3488, %v3643
    %3645 = vst [vmem:[%s438 + $0x4] sm:$0x1] %v3644
    %v3646 = vld [vmem:[%s438 + $0x8] sm:$0xf]
    %v3647 = vsel %vm440, %v3495, %v3646
    %3648 = vst [vmem:[%s438 + $0x8] sm:$0xf] %v3647
    %v3649 = vld [vmem:[%s438 + $0xc] sm:$0x1]
    %v3650 = vsel %vm75, %v3496, %v3649
    %3651 = vst [vmem:[%s438 + $0xc] sm:$0x1] %v3650
    %v3652 = vld [vmem:[%s438 + $0x10] sm:$0xf]
    %v3653 = vsel %vm440, %v3503, %v3652
    %3654 = vst [vmem:[%s438 + $0x10] sm:$0xf] %v3653
    %v3655 = vld [vmem:[%s438 + $0x14] sm:$0x1]
    %v3656 = vsel %vm75, %v3504, %v3655
    %3657 = vst [vmem:[%s438 + $0x14] sm:$0x1] %v3656
    %v3658 = vld [vmem:[%s438 + $0x18] sm:$0xf]
    %v3659 = vsel %vm440, %v3511, %v3658
    %3660 = vst [vmem:[%s438 + $0x18] sm:$0xf] %v3659
    %v3661 = vld [vmem:[%s438 + $0x1c] sm:$0x1]
    %v3662 = vsel %vm75, %v3512, %v3661
    %3663 = vst [vmem:[%s438 + $0x1c] sm:$0x1] %v3662
    %v3664 = vld [vmem:[%s438 + $0x20] sm:$0xf]
    %v3665 = vsel %vm440, %v3519, %v3664
    %3666 = vst [vmem:[%s438 + $0x20] sm:$0xf] %v3665
    %v3667 = vld [vmem:[%s438 + $0x24] sm:$0x1]
    %v3668 = vsel %vm75, %v3520, %v3667
    %3669 = vst [vmem:[%s438 + $0x24] sm:$0x1] %v3668
    %v3670 = vld [vmem:[%s438 + $0x28] sm:$0xf]
    %v3671 = vsel %vm440, %v3527, %v3670
    %3672 = vst [vmem:[%s438 + $0x28] sm:$0xf] %v3671
    %v3673 = vld [vmem:[%s438 + $0x2c] sm:$0x1]
    %v3674 = vsel %vm75, %v3528, %v3673
    %3675 = vst [vmem:[%s438 + $0x2c] sm:$0x1] %v3674
    %v3676 = vld [vmem:[%s438 + $0x30] sm:$0xf]
    %v3677 = vsel %vm440, %v3535, %v3676
    %3678 = vst [vmem:[%s438 + $0x30] sm:$0xf] %v3677
    %v3679 = vld [vmem:[%s438 + $0x34] sm:$0x1]
    %v3680 = vsel %vm75, %v3536, %v3679
    %3681 = vst [vmem:[%s438 + $0x34] sm:$0x1] %v3680
    %v3682 = vld [vmem:[%s438 + $0x38] sm:$0xf]
    %v3683 = vsel %vm440, %v3543, %v3682
    %3684 = vst [vmem:[%s438 + $0x38] sm:$0xf] %v3683
    %v3685 = vld [vmem:[%s438 + $0x3c] sm:$0x1]
    %v3686 = vsel %vm75, %v3544, %v3685
    %3687 = vst [vmem:[%s438 + $0x3c] sm:$0x1] %v3686
    %v3688 = vld [vmem:[%s438 + $0x50] sm:$0xf]
    %v3689 = vsel %vm440, %v3551, %v3688
    %3690 = vst [vmem:[%s438 + $0x50] sm:$0xf] %v3689
    %v3691 = vld [vmem:[%s438 + $0x54] sm:$0x1]
    %v3692 = vsel %vm75, %v3552, %v3691
    %3693 = vst [vmem:[%s438 + $0x54] sm:$0x1] %v3692
    %v3694 = vld [vmem:[%s438 + $0x58] sm:$0xf]
    %v3695 = vsel %vm440, %v3559, %v3694
    %3696 = vst [vmem:[%s438 + $0x58] sm:$0xf] %v3695
    %v3697 = vld [vmem:[%s438 + $0x5c] sm:$0x1]
    %v3698 = vsel %vm75, %v3560, %v3697
    %3699 = vst [vmem:[%s438 + $0x5c] sm:$0x1] %v3698
    %v3700 = vld [vmem:[%s438 + $0x60] sm:$0xf]
    %v3701 = vsel %vm440, %v3567, %v3700
    %3702 = vst [vmem:[%s438 + $0x60] sm:$0xf] %v3701
    %v3703 = vld [vmem:[%s438 + $0x64] sm:$0x1]
    %v3704 = vsel %vm75, %v3568, %v3703
    %3705 = vst [vmem:[%s438 + $0x64] sm:$0x1] %v3704
    %v3706 = vld [vmem:[%s438 + $0x68] sm:$0xf]
    %v3707 = vsel %vm440, %v3575, %v3706
    %3708 = vst [vmem:[%s438 + $0x68] sm:$0xf] %v3707
    %v3709 = vld [vmem:[%s438 + $0x6c] sm:$0x1]
    %v3710 = vsel %vm75, %v3576, %v3709
    %3711 = vst [vmem:[%s438 + $0x6c] sm:$0x1] %v3710
    %v3712 = vld [vmem:[%s438 + $0x70] sm:$0xf]
    %v3713 = vsel %vm440, %v3583, %v3712
    %3714 = vst [vmem:[%s438 + $0x70] sm:$0xf] %v3713
    %v3715 = vld [vmem:[%s438 + $0x74] sm:$0x1]
    %v3716 = vsel %vm75, %v3584, %v3715
    %3717 = vst [vmem:[%s438 + $0x74] sm:$0x1] %v3716
    %v3718 = vld [vmem:[%s438 + $0x78] sm:$0xf]
    %v3719 = vsel %vm440, %v3591, %v3718
    %3720 = vst [vmem:[%s438 + $0x78] sm:$0xf] %v3719
    %v3721 = vld [vmem:[%s438 + $0x7c] sm:$0x1]
    %v3722 = vsel %vm75, %v3592, %v3721
    %3723 = vst [vmem:[%s438 + $0x7c] sm:$0x1] %v3722
    %v3724 = vld [vmem:[%s438 + $0x80] sm:$0xf]
    %v3725 = vsel %vm440, %v3599, %v3724
    %3726 = vst [vmem:[%s438 + $0x80] sm:$0xf] %v3725
    %v3727 = vld [vmem:[%s438 + $0x84] sm:$0x1]
    %v3728 = vsel %vm75, %v3600, %v3727
    %3729 = vst [vmem:[%s438 + $0x84] sm:$0x1] %v3728
    %v3730 = vld [vmem:[%s438 + $0x88] sm:$0xf]
    %v3731 = vsel %vm440, %v3607, %v3730
    %3732 = vst [vmem:[%s438 + $0x88] sm:$0xf] %v3731
    %v3733 = vld [vmem:[%s438 + $0x8c] sm:$0x1]
    %v3734 = vsel %vm75, %v3608, %v3733
    %3735 = vst [vmem:[%s438 + $0x8c] sm:$0x1] %v3734
    %v3736 = vld [vmem:[#allocation2] sm:$0xf]
    %v3737 = vld [vmem:[#allocation2 + $0x8] sm:$0xf]
    %v3738 = vld [vmem:[#allocation2 + $0x10] sm:$0xf]
    %v3739 = vld [vmem:[#allocation2 + $0x18] sm:$0xf]
    %v3740 = vld [vmem:[#allocation2 + $0x20] sm:$0xf]
    %v3741 = vld [vmem:[#allocation2 + $0x28] sm:$0xf]
    %v3742 = vld [vmem:[#allocation2 + $0x30] sm:$0xf]
    %v3743 = vld [vmem:[#allocation2 + $0x38] sm:$0xf]
    %v3744 = vld [vmem:[#allocation2 + $0x50] sm:$0xf]
    %v3745 = vld [vmem:[#allocation2 + $0x58] sm:$0xf]
    %v3746 = vld [vmem:[#allocation2 + $0x60] sm:$0xf]
    %v3747 = vld [vmem:[#allocation2 + $0x68] sm:$0xf]
    %v3748 = vld [vmem:[#allocation2 + $0x70] sm:$0xf]
    %v3749 = vld [vmem:[#allocation2 + $0x78] sm:$0xf]
    %v3750 = vld [vmem:[#allocation2 + $0x80] sm:$0xf]
    %v3751 = vld [vmem:[#allocation2 + $0x88] sm:$0xf]
    %s3752 = scalar_lea.vmem [#allocation5], 144
    %v3753 = vld [vmem:[%s3752] sm:$0xf]
    %v3754 = vld [vmem:[%s3752 + $0x4] sm:$0xf]
    %v3755 = vld [vmem:[%s3752 + $0x8] sm:$0xf]
    %v3756 = vld [vmem:[%s3752 + $0xc] sm:$0xf]
    %v3757 = vld [vmem:[#allocation2 + $0x4] sm:$0x1]
    %v3758 = vld [vmem:[#allocation2 + $0xc] sm:$0x1]
    %v3759 = vld [vmem:[#allocation2 + $0x14] sm:$0x1]
    %v3760 = vld [vmem:[#allocation2 + $0x1c] sm:$0x1]
    %v3761 = vld [vmem:[#allocation2 + $0x24] sm:$0x1]
    %v3762 = vld [vmem:[#allocation2 + $0x2c] sm:$0x1]
    %v3763 = vld [vmem:[#allocation2 + $0x34] sm:$0x1]
    %v3764 = vld [vmem:[#allocation2 + $0x3c] sm:$0x1]
    %v3765 = vld [vmem:[#allocation2 + $0x54] sm:$0x1]
    %v3766 = vld [vmem:[#allocation2 + $0x5c] sm:$0x1]
    %v3767 = vld [vmem:[#allocation2 + $0x64] sm:$0x1]
    %v3768 = vld [vmem:[#allocation2 + $0x6c] sm:$0x1]
    %v3769 = vld [vmem:[#allocation2 + $0x74] sm:$0x1]
    %v3770 = vld [vmem:[#allocation2 + $0x7c] sm:$0x1]
    %v3771 = vld [vmem:[#allocation2 + $0x84] sm:$0x1]
    %v3772 = vld [vmem:[#allocation2 + $0x8c] sm:$0x1]
    %v3774 = vshrl.u32 %v3736, 16
    %v3776 = vrot.slane %v3774, 4
    %v3777 = vshll.u32 %v3736, 16
    %v3779 = vrot.slane %v3777, 5
    %v3780 = vor.u32 %v3776, %v3779
    %v3781 = vrot.slane %v3780, 4
    %v3783 = vshll.u32 %v3757, 16
    %v3785 = vrot.slane %v3783, 5
    %v3786 = vsel %vm575, %v3781, %v3785
    %v3788 = vshrl.u32 %v3737, 16
    %v3790 = vrot.slane %v3788, 4
    %v3791 = vshll.u32 %v3737, 16
    %v3793 = vrot.slane %v3791, 5
    %v3794 = vor.u32 %v3790, %v3793
    %v3795 = vrot.slane %v3794, 4
    %v3797 = vshll.u32 %v3758, 16
    %v3799 = vrot.slane %v3797, 5
    %v3800 = vsel %vm575, %v3795, %v3799
    %v3802 = vshrl.u32 %v3738, 16
    %v3804 = vrot.slane %v3802, 4
    %v3805 = vshll.u32 %v3738, 16
    %v3807 = vrot.slane %v3805, 5
    %v3808 = vor.u32 %v3804, %v3807
    %v3809 = vrot.slane %v3808, 4
    %v3811 = vshll.u32 %v3759, 16
    %v3813 = vrot.slane %v3811, 5
    %v3814 = vsel %vm575, %v3809, %v3813
    %v3816 = vshrl.u32 %v3739, 16
    %v3818 = vrot.slane %v3816, 4
    %v3819 = vshll.u32 %v3739, 16
    %v3821 = vrot.slane %v3819, 5
    %v3822 = vor.u32 %v3818, %v3821
    %v3823 = vrot.slane %v3822, 4
    %v3825 = vshll.u32 %v3760, 16
    %v3827 = vrot.slane %v3825, 5
    %v3828 = vsel %vm575, %v3823, %v3827
    %v3830 = vshrl.u32 %v3740, 16
    %v3832 = vrot.slane %v3830, 4
    %v3833 = vshll.u32 %v3740, 16
    %v3835 = vrot.slane %v3833, 5
    %v3836 = vor.u32 %v3832, %v3835
    %v3837 = vrot.slane %v3836, 4
    %v3839 = vshll.u32 %v3761, 16
    %v3841 = vrot.slane %v3839, 5
    %v3842 = vsel %vm575, %v3837, %v3841
    %v3844 = vshrl.u32 %v3741, 16
    %v3846 = vrot.slane %v3844, 4
    %v3847 = vshll.u32 %v3741, 16
    %v3849 = vrot.slane %v3847, 5
    %v3850 = vor.u32 %v3846, %v3849
    %v3851 = vrot.slane %v3850, 4
    %v3853 = vshll.u32 %v3762, 16
    %v3855 = vrot.slane %v3853, 5
    %v3856 = vsel %vm575, %v3851, %v3855
    %v3858 = vshrl.u32 %v3742, 16
    %v3860 = vrot.slane %v3858, 4
    %v3861 = vshll.u32 %v3742, 16
    %v3863 = vrot.slane %v3861, 5
    %v3864 = vor.u32 %v3860, %v3863
    %v3865 = vrot.slane %v3864, 4
    %v3867 = vshll.u32 %v3763, 16
    %v3869 = vrot.slane %v3867, 5
    %v3870 = vsel %vm575, %v3865, %v3869
    %v3872 = vshrl.u32 %v3743, 16
    %v3874 = vrot.slane %v3872, 4
    %v3875 = vshll.u32 %v3743, 16
    %v3877 = vrot.slane %v3875, 5
    %v3878 = vor.u32 %v3874, %v3877
    %v3879 = vrot.slane %v3878, 4
    %v3881 = vshll.u32 %v3764, 16
    %v3883 = vrot.slane %v3881, 5
    %v3884 = vsel %vm575, %v3879, %v3883
    %v3886 = vshrl.u32 %v3744, 16
    %v3888 = vrot.slane %v3886, 4
    %v3889 = vshll.u32 %v3744, 16
    %v3891 = vrot.slane %v3889, 5
    %v3892 = vor.u32 %v3888, %v3891
    %v3893 = vrot.slane %v3892, 4
    %v3895 = vshll.u32 %v3765, 16
    %v3897 = vrot.slane %v3895, 5
    %v3898 = vsel %vm575, %v3893, %v3897
    %v3900 = vshrl.u32 %v3745, 16
    %v3902 = vrot.slane %v3900, 4
    %v3903 = vshll.u32 %v3745, 16
    %v3905 = vrot.slane %v3903, 5
    %v3906 = vor.u32 %v3902, %v3905
    %v3907 = vrot.slane %v3906, 4
    %v3909 = vshll.u32 %v3766, 16
    %v3911 = vrot.slane %v3909, 5
    %v3912 = vsel %vm575, %v3907, %v3911
    %v3914 = vshrl.u32 %v3746, 16
    %v3916 = vrot.slane %v3914, 4
    %v3917 = vshll.u32 %v3746, 16
    %v3919 = vrot.slane %v3917, 5
    %v3920 = vor.u32 %v3916, %v3919
    %v3921 = vrot.slane %v3920, 4
    %v3923 = vshll.u32 %v3767, 16
    %v3925 = vrot.slane %v3923, 5
    %v3926 = vsel %vm575, %v3921, %v3925
    %v3928 = vshrl.u32 %v3747, 16
    %v3930 = vrot.slane %v3928, 4
    %v3931 = vshll.u32 %v3747, 16
    %v3933 = vrot.slane %v3931, 5
    %v3934 = vor.u32 %v3930, %v3933
    %v3935 = vrot.slane %v3934, 4
    %v3937 = vshll.u32 %v3768, 16
    %v3939 = vrot.slane %v3937, 5
    %v3940 = vsel %vm575, %v3935, %v3939
    %v3942 = vshrl.u32 %v3748, 16
    %v3944 = vrot.slane %v3942, 4
    %v3945 = vshll.u32 %v3748, 16
    %v3947 = vrot.slane %v3945, 5
    %v3948 = vor.u32 %v3944, %v3947
    %v3949 = vrot.slane %v3948, 4
    %v3951 = vshll.u32 %v3769, 16
    %v3953 = vrot.slane %v3951, 5
    %v3954 = vsel %vm575, %v3949, %v3953
    %v3956 = vshrl.u32 %v3749, 16
    %v3958 = vrot.slane %v3956, 4
    %v3959 = vshll.u32 %v3749, 16
    %v3961 = vrot.slane %v3959, 5
    %v3962 = vor.u32 %v3958, %v3961
    %v3963 = vrot.slane %v3962, 4
    %v3965 = vshll.u32 %v3770, 16
    %v3967 = vrot.slane %v3965, 5
    %v3968 = vsel %vm575, %v3963, %v3967
    %v3970 = vshrl.u32 %v3750, 16
    %v3972 = vrot.slane %v3970, 4
    %v3973 = vshll.u32 %v3750, 16
    %v3975 = vrot.slane %v3973, 5
    %v3976 = vor.u32 %v3972, %v3975
    %v3977 = vrot.slane %v3976, 4
    %v3979 = vshll.u32 %v3771, 16
    %v3981 = vrot.slane %v3979, 5
    %v3982 = vsel %vm575, %v3977, %v3981
    %v3984 = vshrl.u32 %v3751, 16
    %v3986 = vrot.slane %v3984, 4
    %v3987 = vshll.u32 %v3751, 16
    %v3989 = vrot.slane %v3987, 5
    %v3990 = vor.u32 %v3986, %v3989
    %v3991 = vrot.slane %v3990, 4
    %v3993 = vshll.u32 %v3772, 16
    %v3995 = vrot.slane %v3993, 5
    %v3996 = vsel %vm575, %v3991, %v3995
    %s3997 = scalar_lea.vmem [#allocation5], 160
    %v3998 = vld [vmem:[%s3997] sm:$0xf]
    %v3999 = vld [vmem:[%s3997 + $0x4] sm:$0xf]
    %v4000 = vld [vmem:[%s3997 + $0x8] sm:$0xf]
    %v4001 = vld [vmem:[%s3997 + $0xc] sm:$0xf]
    %v4002 = vunpack.c.l.b16 %v3786
    %v4003 = vunpack.c.l.b16 %v3800
    %v4004 = vunpack.c.l.b16 %v3814
    %v4005 = vunpack.c.l.b16 %v3828
    %v4006 = vunpack.c.l.b16 %v3842
    %v4007 = vunpack.c.l.b16 %v3856
    %v4008 = vunpack.c.l.b16 %v3870
    %v4009 = vunpack.c.l.b16 %v3884
    %v4010 = vunpack.c.l.b16 %v3898
    %v4011 = vunpack.c.l.b16 %v3912
    %v4012 = vunpack.c.l.b16 %v3926
    %v4013 = vunpack.c.l.b16 %v3940
    %v4014 = vunpack.c.l.b16 %v3954
    %v4015 = vunpack.c.l.b16 %v3968
    %v4016 = vunpack.c.l.b16 %v3982
    %v4017 = vunpack.c.l.b16 %v3996
    %v4018 = vpack.c.b16 %v4003, %v4002
    %v4019 = vpack.c.b16 %v4005, %v4004
    %v4020 = vpack.c.b16 %v4007, %v4006
    %v4021 = vpack.c.b16 %v4009, %v4008
    %v4022 = vpack.c.b16 %v4011, %v4010
    %v4023 = vpack.c.b16 %v4013, %v4012
    %v4024 = vpack.c.b16 %v4015, %v4014
    %v4025 = vpack.c.b16 %v4017, %v4016
    %v4030 = vunpack.c.l.b16 %v3998
    %v4031 = vunpack.c.l.b16 %v3999
    %v4032 = vunpack.c.l.b16 %v4000
    %v4033 = vunpack.c.l.b16 %v4001
    %v4034 = vpack.c.b16 %v4031, %v4030
    %v4035 = vpack.c.b16 %v4033, %v4032
    %v4039 = vsel %vm841, %v4018, 0
    %v4042 = vsel %vm841, %v4019, 0
    %v4045 = vsel %vm841, %v4020, 0
    %v4048 = vsel %vm841, %v4021, 0
    %v4051 = vsel %vm841, %v4022, 0
    %v4054 = vsel %vm841, %v4023, 0
    %v4057 = vsel %vm841, %v4024, 0
    %v4060 = vsel %vm841, %v4025, 0
    %4062 = vmatprep.subr.bf16.mxu0 0
    %4063 = vmatpush1.bf16.msra.mxu0 0
    %4064 = vmatprep.subr.bf16.mxu0 0
    %4065 = vmatpush1.bf16.msra.mxu0 0
    %4066 = vmatprep.subr.bf16.mxu0 0
    %4067 = vmatpush1.bf16.msra.mxu0 0
    %4068 = vmatprep.subr.bf16.mxu0 0
    %4069 = vmatpush1.bf16.msra.mxu0 0
    %4070 = vmatprep.subr.bf16.mxu0 0
    %4071 = vmatpush1.bf16.msra.mxu0 0
    %4072 = vmatprep.subr.bf16.mxu0 0
    %4073 = vmatpush1.bf16.msra.mxu0 0
    %4074 = vmatprep.subr.bf16.mxu0 0
    %4075 = vmatpush1.bf16.msra.mxu0 %v4035
    %4076 = vmatprep.subr.bf16.mxu0 0
    %4077 = vmatpush1.bf16.msra.mxu0 %v4034
    %4078 = vmatprep.subr.bf16.mxu0 0
    %4079 = vmatpush2.bf16.msra.mxu0 0
    %4080 = vmatprep.subr.bf16.mxu0 0
    %4081 = vmatpush2.bf16.msra.mxu0 0
    %4082 = vmatprep.subr.bf16.mxu0 0
    %4083 = vmatpush2.bf16.msra.mxu0 0
    %4084 = vmatprep.subr.bf16.mxu0 0
    %4085 = vmatpush2.bf16.msra.mxu0 0
    %4086 = vmatprep.subr.bf16.mxu0 0
    %4087 = vmatpush2.bf16.msra.mxu0 0
    %4088 = vmatprep.subr.bf16.mxu0 0
    %4089 = vmatpush2.bf16.msra.mxu0 0
    %4090 = vmatprep.subr.bf16.mxu0 0
    %4091 = vmatpush2.bf16.msra.mxu0 0
    %4092 = vmatprep.subr.bf16.mxu0 0
    %4093 = vmatpush2.bf16.msra.mxu0 0
    %4094 = vmatprep.mubr.bf16.mxu0 0
    %4095 = vmatmul.mubr.bf16.gmra.mxu0 %v4039
    %v4096 = vpop.f32.mrf.mxu0
    %v4097 = vadd.f32 0.0, %v4096
    %v4098 = vpop.f32.mrf.mxu0
    %v4099 = vpop.f32.mrf.mxu0
    %v4100 = vadd.f32 0.0, %v4099
    %v4101 = vpop.f32.mrf.mxu0
    %4102 = vmatprep.mubr.bf16.mxu0 0
    %4103 = vmatmul.mubr.bf16.gmra.mxu0 %v4042
    %v4104 = vpop.f32.mrf.mxu0
    %v4105 = vadd.f32 0.0, %v4104
    %v4106 = vpop.f32.mrf.mxu0
    %v4107 = vpop.f32.mrf.mxu0
    %v4108 = vadd.f32 0.0, %v4107
    %v4109 = vpop.f32.mrf.mxu0
    %4110 = vmatprep.mubr.bf16.mxu0 0
    %4111 = vmatmul.mubr.bf16.gmra.mxu0 %v4045
    %v4112 = vpop.f32.mrf.mxu0
    %v4113 = vadd.f32 0.0, %v4112
    %v4114 = vpop.f32.mrf.mxu0
    %v4115 = vpop.f32.mrf.mxu0
    %v4116 = vadd.f32 0.0, %v4115
    %v4117 = vpop.f32.mrf.mxu0
    %4118 = vmatprep.mubr.bf16.mxu0 0
    %4119 = vmatmul.mubr.bf16.gmra.mxu0 %v4048
    %v4120 = vpop.f32.mrf.mxu0
    %v4121 = vadd.f32 0.0, %v4120
    %v4122 = vpop.f32.mrf.mxu0
    %v4123 = vpop.f32.mrf.mxu0
    %v4124 = vadd.f32 0.0, %v4123
    %v4125 = vpop.f32.mrf.mxu0
    %4126 = vmatprep.mubr.bf16.mxu0 0
    %4127 = vmatmul.mubr.bf16.gmra.mxu0 %v4051
    %v4128 = vpop.f32.mrf.mxu0
    %v4129 = vadd.f32 0.0, %v4128
    %v4130 = vpop.f32.mrf.mxu0
    %v4131 = vpop.f32.mrf.mxu0
    %v4132 = vadd.f32 0.0, %v4131
    %v4133 = vpop.f32.mrf.mxu0
    %4134 = vmatprep.mubr.bf16.mxu0 0
    %4135 = vmatmul.mubr.bf16.gmra.mxu0 %v4054
    %v4136 = vpop.f32.mrf.mxu0
    %v4137 = vadd.f32 0.0, %v4136
    %v4138 = vpop.f32.mrf.mxu0
    %v4139 = vpop.f32.mrf.mxu0
    %v4140 = vadd.f32 0.0, %v4139
    %v4141 = vpop.f32.mrf.mxu0
    %4142 = vmatprep.mubr.bf16.mxu0 0
    %4143 = vmatmul.mubr.bf16.gmra.mxu0 %v4057
    %v4144 = vpop.f32.mrf.mxu0
    %v4145 = vadd.f32 0.0, %v4144
    %v4146 = vpop.f32.mrf.mxu0
    %v4147 = vpop.f32.mrf.mxu0
    %v4148 = vadd.f32 0.0, %v4147
    %v4149 = vpop.f32.mrf.mxu0
    %4150 = vmatprep.mubr.bf16.mxu0 0
    %4151 = vmatmul.mubr.bf16.gmra.mxu0 %v4060
    %v4152 = vpop.f32.mrf.mxu0
    %v4153 = vadd.f32 0.0, %v4152
    %v4154 = vpop.f32.mrf.mxu0
    %v4155 = vpop.f32.mrf.mxu0
    %v4156 = vadd.f32 0.0, %v4155
    %v4157 = vpop.f32.mrf.mxu0
    %4158 = vdwg.mxu0
    %v4175 = vunpack.c.l.b16 %v3736
    %v4176 = vunpack.c.l.b16 %v3737
    %v4177 = vunpack.c.l.b16 %v3738
    %v4178 = vunpack.c.l.b16 %v3739
    %v4179 = vunpack.c.l.b16 %v3740
    %v4180 = vunpack.c.l.b16 %v3741
    %v4181 = vunpack.c.l.b16 %v3742
    %v4182 = vunpack.c.l.b16 %v3743
    %v4183 = vunpack.c.l.b16 %v3744
    %v4184 = vunpack.c.l.b16 %v3745
    %v4185 = vunpack.c.l.b16 %v3746
    %v4186 = vunpack.c.l.b16 %v3747
    %v4187 = vunpack.c.l.b16 %v3748
    %v4188 = vunpack.c.l.b16 %v3749
    %v4189 = vunpack.c.l.b16 %v3750
    %v4190 = vunpack.c.l.b16 %v3751
    %v4191 = vpack.c.b16 %v4176, %v4175
    %v4192 = vpack.c.b16 %v4178, %v4177
    %v4193 = vpack.c.b16 %v4180, %v4179
    %v4194 = vpack.c.b16 %v4182, %v4181
    %v4195 = vpack.c.b16 %v4184, %v4183
    %v4196 = vpack.c.b16 %v4186, %v4185
    %v4197 = vpack.c.b16 %v4188, %v4187
    %v4198 = vpack.c.b16 %v4190, %v4189
    %v4203 = vunpack.c.l.b16 %v3753
    %v4204 = vunpack.c.l.b16 %v3754
    %v4205 = vunpack.c.l.b16 %v3755
    %v4206 = vunpack.c.l.b16 %v3756
    %v4207 = vpack.c.b16 %v4204, %v4203
    %v4208 = vpack.c.b16 %v4206, %v4205
    %v4212 = vsel %vm841, %v4191, 0
    %v4215 = vsel %vm841, %v4192, 0
    %v4218 = vsel %vm841, %v4193, 0
    %v4221 = vsel %vm841, %v4194, 0
    %v4224 = vsel %vm841, %v4195, 0
    %v4227 = vsel %vm841, %v4196, 0
    %v4230 = vsel %vm841, %v4197, 0
    %v4233 = vsel %vm841, %v4198, 0
    %4235 = vmatprep.subr.bf16.mxu0 0
    %4236 = vmatpush1.bf16.msra.mxu0 0
    %4237 = vmatprep.subr.bf16.mxu0 0
    %4238 = vmatpush1.bf16.msra.mxu0 0
    %4239 = vmatprep.subr.bf16.mxu0 0
    %4240 = vmatpush1.bf16.msra.mxu0 0
    %4241 = vmatprep.subr.bf16.mxu0 0
    %4242 = vmatpush1.bf16.msra.mxu0 0
    %4243 = vmatprep.subr.bf16.mxu0 0
    %4244 = vmatpush1.bf16.msra.mxu0 0
    %4245 = vmatprep.subr.bf16.mxu0 0
    %4246 = vmatpush1.bf16.msra.mxu0 0
    %4247 = vmatprep.subr.bf16.mxu0 0
    %4248 = vmatpush1.bf16.msra.mxu0 %v4208
    %4249 = vmatprep.subr.bf16.mxu0 0
    %4250 = vmatpush1.bf16.msra.mxu0 %v4207
    %4251 = vmatprep.subr.bf16.mxu0 0
    %4252 = vmatpush2.bf16.msra.mxu0 0
    %4253 = vmatprep.subr.bf16.mxu0 0
    %4254 = vmatpush2.bf16.msra.mxu0 0
    %4255 = vmatprep.subr.bf16.mxu0 0
    %4256 = vmatpush2.bf16.msra.mxu0 0
    %4257 = vmatprep.subr.bf16.mxu0 0
    %4258 = vmatpush2.bf16.msra.mxu0 0
    %4259 = vmatprep.subr.bf16.mxu0 0
    %4260 = vmatpush2.bf16.msra.mxu0 0
    %4261 = vmatprep.subr.bf16.mxu0 0
    %4262 = vmatpush2.bf16.msra.mxu0 0
    %4263 = vmatprep.subr.bf16.mxu0 0
    %4264 = vmatpush2.bf16.msra.mxu0 0
    %4265 = vmatprep.subr.bf16.mxu0 0
    %4266 = vmatpush2.bf16.msra.mxu0 0
    %4267 = vmatprep.mubr.bf16.mxu0 0
    %4268 = vmatmul.mubr.bf16.gmra.mxu0 %v4212
    %v4269 = vpop.f32.mrf.mxu0
    %v4270 = vadd.f32 %v4097, %v4269
    %v4271 = vpop.f32.mrf.mxu0
    %v4272 = vpop.f32.mrf.mxu0
    %v4273 = vadd.f32 %v4100, %v4272
    %v4274 = vpop.f32.mrf.mxu0
    %4275 = vmatprep.mubr.bf16.mxu0 0
    %4276 = vmatmul.mubr.bf16.gmra.mxu0 %v4215
    %v4277 = vpop.f32.mrf.mxu0
    %v4278 = vadd.f32 %v4105, %v4277
    %v4279 = vpop.f32.mrf.mxu0
    %v4280 = vpop.f32.mrf.mxu0
    %v4281 = vadd.f32 %v4108, %v4280
    %v4282 = vpop.f32.mrf.mxu0
    %4283 = vmatprep.mubr.bf16.mxu0 0
    %4284 = vmatmul.mubr.bf16.gmra.mxu0 %v4218
    %v4285 = vpop.f32.mrf.mxu0
    %v4286 = vadd.f32 %v4113, %v4285
    %v4287 = vpop.f32.mrf.mxu0
    %v4288 = vpop.f32.mrf.mxu0
    %v4289 = vadd.f32 %v4116, %v4288
    %v4290 = vpop.f32.mrf.mxu0
    %4291 = vmatprep.mubr.bf16.mxu0 0
    %4292 = vmatmul.mubr.bf16.gmra.mxu0 %v4221
    %v4293 = vpop.f32.mrf.mxu0
    %v4294 = vadd.f32 %v4121, %v4293
    %v4295 = vpop.f32.mrf.mxu0
    %v4296 = vpop.f32.mrf.mxu0
    %v4297 = vadd.f32 %v4124, %v4296
    %v4298 = vpop.f32.mrf.mxu0
    %4299 = vmatprep.mubr.bf16.mxu0 0
    %4300 = vmatmul.mubr.bf16.gmra.mxu0 %v4224
    %v4301 = vpop.f32.mrf.mxu0
    %v4302 = vadd.f32 %v4129, %v4301
    %v4303 = vpop.f32.mrf.mxu0
    %v4304 = vpop.f32.mrf.mxu0
    %v4305 = vadd.f32 %v4132, %v4304
    %v4306 = vpop.f32.mrf.mxu0
    %4307 = vmatprep.mubr.bf16.mxu0 0
    %4308 = vmatmul.mubr.bf16.gmra.mxu0 %v4227
    %v4309 = vpop.f32.mrf.mxu0
    %v4310 = vadd.f32 %v4137, %v4309
    %v4311 = vpop.f32.mrf.mxu0
    %v4312 = vpop.f32.mrf.mxu0
    %v4313 = vadd.f32 %v4140, %v4312
    %v4314 = vpop.f32.mrf.mxu0
    %4315 = vmatprep.mubr.bf16.mxu0 0
    %4316 = vmatmul.mubr.bf16.gmra.mxu0 %v4230
    %v4317 = vpop.f32.mrf.mxu0
    %v4318 = vadd.f32 %v4145, %v4317
    %v4319 = vpop.f32.mrf.mxu0
    %v4320 = vpop.f32.mrf.mxu0
    %v4321 = vadd.f32 %v4148, %v4320
    %v4322 = vpop.f32.mrf.mxu0
    %4323 = vmatprep.mubr.bf16.mxu0 0
    %4324 = vmatmul.mubr.bf16.gmra.mxu0 %v4233
    %v4325 = vpop.f32.mrf.mxu0
    %v4326 = vadd.f32 %v4153, %v4325
    %v4327 = vpop.f32.mrf.mxu0
    %v4328 = vpop.f32.mrf.mxu0
    %v4329 = vadd.f32 %v4156, %v4328
    %v4330 = vpop.f32.mrf.mxu0
    %4331 = vdwg.mxu0
    %v4332 = vld [vmem:[#allocation2] sm:$0xe]
    %v4333 = vld [vmem:[#allocation2 + $0x8] sm:$0xe]
    %v4334 = vld [vmem:[#allocation2 + $0x10] sm:$0xe]
    %v4335 = vld [vmem:[#allocation2 + $0x18] sm:$0xe]
    %v4336 = vld [vmem:[#allocation2 + $0x20] sm:$0xe]
    %v4337 = vld [vmem:[#allocation2 + $0x28] sm:$0xe]
    %v4338 = vld [vmem:[#allocation2 + $0x30] sm:$0xe]
    %v4339 = vld [vmem:[#allocation2 + $0x38] sm:$0xe]
    %v4340 = vld [vmem:[#allocation2 + $0x50] sm:$0xe]
    %v4341 = vld [vmem:[#allocation2 + $0x58] sm:$0xe]
    %v4342 = vld [vmem:[#allocation2 + $0x60] sm:$0xe]
    %v4343 = vld [vmem:[#allocation2 + $0x68] sm:$0xe]
    %v4344 = vld [vmem:[#allocation2 + $0x70] sm:$0xe]
    %v4345 = vld [vmem:[#allocation2 + $0x78] sm:$0xe]
    %v4346 = vld [vmem:[#allocation2 + $0x80] sm:$0xe]
    %v4347 = vld [vmem:[#allocation2 + $0x88] sm:$0xe]
    %v4380 = vrot.slane %v4332, 5
    %v4381 = vrot.slane %v4380, 4
    %v4382 = vrot.slane %v3757, 5
    %v4383 = vsel %vm1186, %v4381, %v4382
    %v4384 = vrot.slane %v4333, 5
    %v4385 = vrot.slane %v4384, 4
    %v4386 = vrot.slane %v3758, 5
    %v4387 = vsel %vm1186, %v4385, %v4386
    %v4388 = vrot.slane %v4334, 5
    %v4389 = vrot.slane %v4388, 4
    %v4390 = vrot.slane %v3759, 5
    %v4391 = vsel %vm1186, %v4389, %v4390
    %v4392 = vrot.slane %v4335, 5
    %v4393 = vrot.slane %v4392, 4
    %v4394 = vrot.slane %v3760, 5
    %v4395 = vsel %vm1186, %v4393, %v4394
    %v4396 = vrot.slane %v4336, 5
    %v4397 = vrot.slane %v4396, 4
    %v4398 = vrot.slane %v3761, 5
    %v4399 = vsel %vm1186, %v4397, %v4398
    %v4400 = vrot.slane %v4337, 5
    %v4401 = vrot.slane %v4400, 4
    %v4402 = vrot.slane %v3762, 5
    %v4403 = vsel %vm1186, %v4401, %v4402
    %v4404 = vrot.slane %v4338, 5
    %v4405 = vrot.slane %v4404, 4
    %v4406 = vrot.slane %v3763, 5
    %v4407 = vsel %vm1186, %v4405, %v4406
    %v4408 = vrot.slane %v4339, 5
    %v4409 = vrot.slane %v4408, 4
    %v4410 = vrot.slane %v3764, 5
    %v4411 = vsel %vm1186, %v4409, %v4410
    %v4412 = vrot.slane %v4340, 5
    %v4413 = vrot.slane %v4412, 4
    %v4414 = vrot.slane %v3765, 5
    %v4415 = vsel %vm1186, %v4413, %v4414
    %v4416 = vrot.slane %v4341, 5
    %v4417 = vrot.slane %v4416, 4
    %v4418 = vrot.slane %v3766, 5
    %v4419 = vsel %vm1186, %v4417, %v4418
    %v4420 = vrot.slane %v4342, 5
    %v4421 = vrot.slane %v4420, 4
    %v4422 = vrot.slane %v3767, 5
    %v4423 = vsel %vm1186, %v4421, %v4422
    %v4424 = vrot.slane %v4343, 5
    %v4425 = vrot.slane %v4424, 4
    %v4426 = vrot.slane %v3768, 5
    %v4427 = vsel %vm1186, %v4425, %v4426
    %v4428 = vrot.slane %v4344, 5
    %v4429 = vrot.slane %v4428, 4
    %v4430 = vrot.slane %v3769, 5
    %v4431 = vsel %vm1186, %v4429, %v4430
    %v4432 = vrot.slane %v4345, 5
    %v4433 = vrot.slane %v4432, 4
    %v4434 = vrot.slane %v3770, 5
    %v4435 = vsel %vm1186, %v4433, %v4434
    %v4436 = vrot.slane %v4346, 5
    %v4437 = vrot.slane %v4436, 4
    %v4438 = vrot.slane %v3771, 5
    %v4439 = vsel %vm1186, %v4437, %v4438
    %v4440 = vrot.slane %v4347, 5
    %v4441 = vrot.slane %v4440, 4
    %v4442 = vrot.slane %v3772, 5
    %v4443 = vsel %vm1186, %v4441, %v4442
    %s4444 = scalar_lea.vmem [#allocation5], 176
    %v4445 = vld [vmem:[%s4444] sm:$0xf]
    %v4446 = vld [vmem:[%s4444 + $0x4] sm:$0xf]
    %v4447 = vld [vmem:[%s4444 + $0x8] sm:$0xf]
    %v4448 = vld [vmem:[%s4444 + $0xc] sm:$0xf]
    %v4449 = vunpack.c.l.b16 %v4383
    %v4450 = vunpack.c.l.b16 %v4387
    %v4451 = vunpack.c.l.b16 %v4391
    %v4452 = vunpack.c.l.b16 %v4395
    %v4453 = vunpack.c.l.b16 %v4399
    %v4454 = vunpack.c.l.b16 %v4403
    %v4455 = vunpack.c.l.b16 %v4407
    %v4456 = vunpack.c.l.b16 %v4411
    %v4457 = vunpack.c.l.b16 %v4415
    %v4458 = vunpack.c.l.b16 %v4419
    %v4459 = vunpack.c.l.b16 %v4423
    %v4460 = vunpack.c.l.b16 %v4427
    %v4461 = vunpack.c.l.b16 %v4431
    %v4462 = vunpack.c.l.b16 %v4435
    %v4463 = vunpack.c.l.b16 %v4439
    %v4464 = vunpack.c.l.b16 %v4443
    %v4465 = vpack.c.b16 %v4450, %v4449
    %v4466 = vpack.c.b16 %v4452, %v4451
    %v4467 = vpack.c.b16 %v4454, %v4453
    %v4468 = vpack.c.b16 %v4456, %v4455
    %v4469 = vpack.c.b16 %v4458, %v4457
    %v4470 = vpack.c.b16 %v4460, %v4459
    %v4471 = vpack.c.b16 %v4462, %v4461
    %v4472 = vpack.c.b16 %v4464, %v4463
    %v4477 = vunpack.c.l.b16 %v4445
    %v4478 = vunpack.c.l.b16 %v4446
    %v4479 = vunpack.c.l.b16 %v4447
    %v4480 = vunpack.c.l.b16 %v4448
    %v4481 = vpack.c.b16 %v4478, %v4477
    %v4482 = vpack.c.b16 %v4480, %v4479
    %v4486 = vsel %vm841, %v4465, 0
    %v4489 = vsel %vm841, %v4466, 0
    %v4492 = vsel %vm841, %v4467, 0
    %v4495 = vsel %vm841, %v4468, 0
    %v4498 = vsel %vm841, %v4469, 0
    %v4501 = vsel %vm841, %v4470, 0
    %v4504 = vsel %vm841, %v4471, 0
    %v4507 = vsel %vm841, %v4472, 0
    %4509 = vmatprep.subr.bf16.mxu0 0
    %4510 = vmatpush1.bf16.msra.mxu0 0
    %4511 = vmatprep.subr.bf16.mxu0 0
    %4512 = vmatpush1.bf16.msra.mxu0 0
    %4513 = vmatprep.subr.bf16.mxu0 0
    %4514 = vmatpush1.bf16.msra.mxu0 0
    %4515 = vmatprep.subr.bf16.mxu0 0
    %4516 = vmatpush1.bf16.msra.mxu0 0
    %4517 = vmatprep.subr.bf16.mxu0 0
    %4518 = vmatpush1.bf16.msra.mxu0 0
    %4519 = vmatprep.subr.bf16.mxu0 0
    %4520 = vmatpush1.bf16.msra.mxu0 0
    %4521 = vmatprep.subr.bf16.mxu0 0
    %4522 = vmatpush1.bf16.msra.mxu0 %v4482
    %4523 = vmatprep.subr.bf16.mxu0 0
    %4524 = vmatpush1.bf16.msra.mxu0 %v4481
    %4525 = vmatprep.subr.bf16.mxu0 0
    %4526 = vmatpush2.bf16.msra.mxu0 0
    %4527 = vmatprep.subr.bf16.mxu0 0
    %4528 = vmatpush2.bf16.msra.mxu0 0
    %4529 = vmatprep.subr.bf16.mxu0 0
    %4530 = vmatpush2.bf16.msra.mxu0 0
    %4531 = vmatprep.subr.bf16.mxu0 0
    %4532 = vmatpush2.bf16.msra.mxu0 0
    %4533 = vmatprep.subr.bf16.mxu0 0
    %4534 = vmatpush2.bf16.msra.mxu0 0
    %4535 = vmatprep.subr.bf16.mxu0 0
    %4536 = vmatpush2.bf16.msra.mxu0 0
    %4537 = vmatprep.subr.bf16.mxu0 0
    %4538 = vmatpush2.bf16.msra.mxu0 0
    %4539 = vmatprep.subr.bf16.mxu0 0
    %4540 = vmatpush2.bf16.msra.mxu0 0
    %4541 = vmatprep.mubr.bf16.mxu0 0
    %4542 = vmatmul.mubr.bf16.gmra.mxu0 %v4486
    %v4543 = vpop.f32.mrf.mxu0
    %v4544 = vadd.f32 0.0, %v4543
    %v4545 = vpop.f32.mrf.mxu0
    %v4546 = vpop.f32.mrf.mxu0
    %v4547 = vadd.f32 0.0, %v4546
    %v4548 = vpop.f32.mrf.mxu0
    %4549 = vmatprep.mubr.bf16.mxu0 0
    %4550 = vmatmul.mubr.bf16.gmra.mxu0 %v4489
    %v4551 = vpop.f32.mrf.mxu0
    %v4552 = vadd.f32 0.0, %v4551
    %v4553 = vpop.f32.mrf.mxu0
    %v4554 = vpop.f32.mrf.mxu0
    %v4555 = vadd.f32 0.0, %v4554
    %v4556 = vpop.f32.mrf.mxu0
    %4557 = vmatprep.mubr.bf16.mxu0 0
    %4558 = vmatmul.mubr.bf16.gmra.mxu0 %v4492
    %v4559 = vpop.f32.mrf.mxu0
    %v4560 = vadd.f32 0.0, %v4559
    %v4561 = vpop.f32.mrf.mxu0
    %v4562 = vpop.f32.mrf.mxu0
    %v4563 = vadd.f32 0.0, %v4562
    %v4564 = vpop.f32.mrf.mxu0
    %4565 = vmatprep.mubr.bf16.mxu0 0
    %4566 = vmatmul.mubr.bf16.gmra.mxu0 %v4495
    %v4567 = vpop.f32.mrf.mxu0
    %v4568 = vadd.f32 0.0, %v4567
    %v4569 = vpop.f32.mrf.mxu0
    %v4570 = vpop.f32.mrf.mxu0
    %v4571 = vadd.f32 0.0, %v4570
    %v4572 = vpop.f32.mrf.mxu0
    %4573 = vmatprep.mubr.bf16.mxu0 0
    %4574 = vmatmul.mubr.bf16.gmra.mxu0 %v4498
    %v4575 = vpop.f32.mrf.mxu0
    %v4576 = vadd.f32 0.0, %v4575
    %v4577 = vpop.f32.mrf.mxu0
    %v4578 = vpop.f32.mrf.mxu0
    %v4579 = vadd.f32 0.0, %v4578
    %v4580 = vpop.f32.mrf.mxu0
    %4581 = vmatprep.mubr.bf16.mxu0 0
    %4582 = vmatmul.mubr.bf16.gmra.mxu0 %v4501
    %v4583 = vpop.f32.mrf.mxu0
    %v4584 = vadd.f32 0.0, %v4583
    %v4585 = vpop.f32.mrf.mxu0
    %v4586 = vpop.f32.mrf.mxu0
    %v4587 = vadd.f32 0.0, %v4586
    %v4588 = vpop.f32.mrf.mxu0
    %4589 = vmatprep.mubr.bf16.mxu0 0
    %4590 = vmatmul.mubr.bf16.gmra.mxu0 %v4504
    %v4591 = vpop.f32.mrf.mxu0
    %v4592 = vadd.f32 0.0, %v4591
    %v4593 = vpop.f32.mrf.mxu0
    %v4594 = vpop.f32.mrf.mxu0
    %v4595 = vadd.f32 0.0, %v4594
    %v4596 = vpop.f32.mrf.mxu0
    %4597 = vmatprep.mubr.bf16.mxu0 0
    %4598 = vmatmul.mubr.bf16.gmra.mxu0 %v4507
    %v4599 = vpop.f32.mrf.mxu0
    %v4600 = vadd.f32 0.0, %v4599
    %v4601 = vpop.f32.mrf.mxu0
    %v4602 = vpop.f32.mrf.mxu0
    %v4603 = vadd.f32 0.0, %v4602
    %v4604 = vpop.f32.mrf.mxu0
    %4605 = vdwg.mxu0
    %v4606 = vadd.f32 %v4270, %v4544
    %v4607 = vadd.f32 %v4273, %v4547
    %v4608 = vadd.f32 %v4278, %v4552
    %v4609 = vadd.f32 %v4281, %v4555
    %v4610 = vadd.f32 %v4286, %v4560
    %v4611 = vadd.f32 %v4289, %v4563
    %v4612 = vadd.f32 %v4294, %v4568
    %v4613 = vadd.f32 %v4297, %v4571
    %v4614 = vadd.f32 %v4302, %v4576
    %v4615 = vadd.f32 %v4305, %v4579
    %v4616 = vadd.f32 %v4310, %v4584
    %v4617 = vadd.f32 %v4313, %v4587
    %v4618 = vadd.f32 %v4318, %v4592
    %v4619 = vadd.f32 %v4321, %v4595
    %v4620 = vadd.f32 %v4326, %v4600
    %v4621 = vadd.f32 %v4329, %v4603
    %v4622 = vld [vmem:[%s438] sm:$0xf]
    %v4623 = vld [vmem:[%s438 + $0x8] sm:$0xf]
    %v4624 = vld [vmem:[%s438 + $0x10] sm:$0xf]
    %v4625 = vld [vmem:[%s438 + $0x18] sm:$0xf]
    %v4626 = vld [vmem:[%s438 + $0x20] sm:$0xf]
    %v4627 = vld [vmem:[%s438 + $0x28] sm:$0xf]
    %v4628 = vld [vmem:[%s438 + $0x30] sm:$0xf]
    %v4629 = vld [vmem:[%s438 + $0x38] sm:$0xf]
    %v4630 = vld [vmem:[%s438 + $0x50] sm:$0xf]
    %v4631 = vld [vmem:[%s438 + $0x58] sm:$0xf]
    %v4632 = vld [vmem:[%s438 + $0x60] sm:$0xf]
    %v4633 = vld [vmem:[%s438 + $0x68] sm:$0xf]
    %v4634 = vld [vmem:[%s438 + $0x70] sm:$0xf]
    %v4635 = vld [vmem:[%s438 + $0x78] sm:$0xf]
    %v4636 = vld [vmem:[%s438 + $0x80] sm:$0xf]
    %v4637 = vld [vmem:[%s438 + $0x88] sm:$0xf]
    %s4638 = scalar_lea.vmem [#allocation5], 192
    %v4639 = vld [vmem:[%s4638] sm:$0xf]
    %v4640 = vld [vmem:[%s4638 + $0x4] sm:$0xf]
    %v4641 = vld [vmem:[%s4638 + $0x8] sm:$0xf]
    %v4642 = vld [vmem:[%s4638 + $0xc] sm:$0xf]
    %v4659 = vunpack.c.l.b16 %v4622
    %v4660 = vunpack.c.l.b16 %v4623
    %v4661 = vunpack.c.l.b16 %v4624
    %v4662 = vunpack.c.l.b16 %v4625
    %v4663 = vunpack.c.l.b16 %v4626
    %v4664 = vunpack.c.l.b16 %v4627
    %v4665 = vunpack.c.l.b16 %v4628
    %v4666 = vunpack.c.l.b16 %v4629
    %v4667 = vunpack.c.l.b16 %v4630
    %v4668 = vunpack.c.l.b16 %v4631
    %v4669 = vunpack.c.l.b16 %v4632
    %v4670 = vunpack.c.l.b16 %v4633
    %v4671 = vunpack.c.l.b16 %v4634
    %v4672 = vunpack.c.l.b16 %v4635
    %v4673 = vunpack.c.l.b16 %v4636
    %v4674 = vunpack.c.l.b16 %v4637
    %v4675 = vpack.c.b16 %v4660, %v4659
    %v4676 = vpack.c.b16 %v4662, %v4661
    %v4677 = vpack.c.b16 %v4664, %v4663
    %v4678 = vpack.c.b16 %v4666, %v4665
    %v4679 = vpack.c.b16 %v4668, %v4667
    %v4680 = vpack.c.b16 %v4670, %v4669
    %v4681 = vpack.c.b16 %v4672, %v4671
    %v4682 = vpack.c.b16 %v4674, %v4673
    %v4687 = vunpack.c.l.b16 %v4639
    %v4688 = vunpack.c.l.b16 %v4640
    %v4689 = vunpack.c.l.b16 %v4641
    %v4690 = vunpack.c.l.b16 %v4642
    %v4691 = vpack.c.b16 %v4688, %v4687
    %v4692 = vpack.c.b16 %v4690, %v4689
    %v4696 = vsel %vm841, %v4675, 0
    %v4699 = vsel %vm841, %v4676, 0
    %v4702 = vsel %vm841, %v4677, 0
    %v4705 = vsel %vm841, %v4678, 0
    %v4708 = vsel %vm841, %v4679, 0
    %v4711 = vsel %vm841, %v4680, 0
    %v4714 = vsel %vm841, %v4681, 0
    %v4717 = vsel %vm841, %v4682, 0
    %4719 = vmatprep.subr.bf16.mxu0 0
    %4720 = vmatpush1.bf16.msra.mxu0 0
    %4721 = vmatprep.subr.bf16.mxu0 0
    %4722 = vmatpush1.bf16.msra.mxu0 0
    %4723 = vmatprep.subr.bf16.mxu0 0
    %4724 = vmatpush1.bf16.msra.mxu0 0
    %4725 = vmatprep.subr.bf16.mxu0 0
    %4726 = vmatpush1.bf16.msra.mxu0 0
    %4727 = vmatprep.subr.bf16.mxu0 0
    %4728 = vmatpush1.bf16.msra.mxu0 0
    %4729 = vmatprep.subr.bf16.mxu0 0
    %4730 = vmatpush1.bf16.msra.mxu0 0
    %4731 = vmatprep.subr.bf16.mxu0 0
    %4732 = vmatpush1.bf16.msra.mxu0 %v4692
    %4733 = vmatprep.subr.bf16.mxu0 0
    %4734 = vmatpush1.bf16.msra.mxu0 %v4691
    %4735 = vmatprep.subr.bf16.mxu0 0
    %4736 = vmatpush2.bf16.msra.mxu0 0
    %4737 = vmatprep.subr.bf16.mxu0 0
    %4738 = vmatpush2.bf16.msra.mxu0 0
    %4739 = vmatprep.subr.bf16.mxu0 0
    %4740 = vmatpush2.bf16.msra.mxu0 0
    %4741 = vmatprep.subr.bf16.mxu0 0
    %4742 = vmatpush2.bf16.msra.mxu0 0
    %4743 = vmatprep.subr.bf16.mxu0 0
    %4744 = vmatpush2.bf16.msra.mxu0 0
    %4745 = vmatprep.subr.bf16.mxu0 0
    %4746 = vmatpush2.bf16.msra.mxu0 0
    %4747 = vmatprep.subr.bf16.mxu0 0
    %4748 = vmatpush2.bf16.msra.mxu0 0
    %4749 = vmatprep.subr.bf16.mxu0 0
    %4750 = vmatpush2.bf16.msra.mxu0 0
    %4751 = vmatprep.mubr.bf16.mxu0 0
    %4752 = vmatmul.mubr.bf16.gmra.mxu0 %v4696
    %v4753 = vpop.f32.mrf.mxu0
    %v4754 = vadd.f32 0.0, %v4753
    %v4755 = vpop.f32.mrf.mxu0
    %v4756 = vpop.f32.mrf.mxu0
    %v4757 = vadd.f32 0.0, %v4756
    %v4758 = vpop.f32.mrf.mxu0
    %4759 = vmatprep.mubr.bf16.mxu0 0
    %4760 = vmatmul.mubr.bf16.gmra.mxu0 %v4699
    %v4761 = vpop.f32.mrf.mxu0
    %v4762 = vadd.f32 0.0, %v4761
    %v4763 = vpop.f32.mrf.mxu0
    %v4764 = vpop.f32.mrf.mxu0
    %v4765 = vadd.f32 0.0, %v4764
    %v4766 = vpop.f32.mrf.mxu0
    %4767 = vmatprep.mubr.bf16.mxu0 0
    %4768 = vmatmul.mubr.bf16.gmra.mxu0 %v4702
    %v4769 = vpop.f32.mrf.mxu0
    %v4770 = vadd.f32 0.0, %v4769
    %v4771 = vpop.f32.mrf.mxu0
    %v4772 = vpop.f32.mrf.mxu0
    %v4773 = vadd.f32 0.0, %v4772
    %v4774 = vpop.f32.mrf.mxu0
    %4775 = vmatprep.mubr.bf16.mxu0 0
    %4776 = vmatmul.mubr.bf16.gmra.mxu0 %v4705
    %v4777 = vpop.f32.mrf.mxu0
    %v4778 = vadd.f32 0.0, %v4777
    %v4779 = vpop.f32.mrf.mxu0
    %v4780 = vpop.f32.mrf.mxu0
    %v4781 = vadd.f32 0.0, %v4780
    %v4782 = vpop.f32.mrf.mxu0
    %4783 = vmatprep.mubr.bf16.mxu0 0
    %4784 = vmatmul.mubr.bf16.gmra.mxu0 %v4708
    %v4785 = vpop.f32.mrf.mxu0
    %v4786 = vadd.f32 0.0, %v4785
    %v4787 = vpop.f32.mrf.mxu0
    %v4788 = vpop.f32.mrf.mxu0
    %v4789 = vadd.f32 0.0, %v4788
    %v4790 = vpop.f32.mrf.mxu0
    %4791 = vmatprep.mubr.bf16.mxu0 0
    %4792 = vmatmul.mubr.bf16.gmra.mxu0 %v4711
    %v4793 = vpop.f32.mrf.mxu0
    %v4794 = vadd.f32 0.0, %v4793
    %v4795 = vpop.f32.mrf.mxu0
    %v4796 = vpop.f32.mrf.mxu0
    %v4797 = vadd.f32 0.0, %v4796
    %v4798 = vpop.f32.mrf.mxu0
    %4799 = vmatprep.mubr.bf16.mxu0 0
    %4800 = vmatmul.mubr.bf16.gmra.mxu0 %v4714
    %v4801 = vpop.f32.mrf.mxu0
    %v4802 = vadd.f32 0.0, %v4801
    %v4803 = vpop.f32.mrf.mxu0
    %v4804 = vpop.f32.mrf.mxu0
    %v4805 = vadd.f32 0.0, %v4804
    %v4806 = vpop.f32.mrf.mxu0
    %4807 = vmatprep.mubr.bf16.mxu0 0
    %4808 = vmatmul.mubr.bf16.gmra.mxu0 %v4717
    %v4809 = vpop.f32.mrf.mxu0
    %v4810 = vadd.f32 0.0, %v4809
    %v4811 = vpop.f32.mrf.mxu0
    %v4812 = vpop.f32.mrf.mxu0
    %v4813 = vadd.f32 0.0, %v4812
    %v4814 = vpop.f32.mrf.mxu0
    %4815 = vdwg.mxu0
    %v4816 = vadd.f32 %v4606, %v4754
    %v4817 = vadd.f32 %v4607, %v4757
    %v4818 = vadd.f32 %v4608, %v4762
    %v4819 = vadd.f32 %v4609, %v4765
    %v4820 = vadd.f32 %v4610, %v4770
    %v4821 = vadd.f32 %v4611, %v4773
    %v4822 = vadd.f32 %v4612, %v4778
    %v4823 = vadd.f32 %v4613, %v4781
    %v4824 = vadd.f32 %v4614, %v4786
    %v4825 = vadd.f32 %v4615, %v4789
    %v4826 = vadd.f32 %v4616, %v4794
    %v4827 = vadd.f32 %v4617, %v4797
    %v4828 = vadd.f32 %v4618, %v4802
    %v4829 = vadd.f32 %v4619, %v4805
    %v4830 = vadd.f32 %v4620, %v4810
    %v4831 = vadd.f32 %v4621, %v4813
    %v4832 = vld [vmem:[%s438] sm:$0xf]
    %v4833 = vld [vmem:[%s438 + $0x4] sm:$0x1]
    %v4834 = vld [vmem:[%s438 + $0x8] sm:$0xf]
    %v4835 = vld [vmem:[%s438 + $0xc] sm:$0x1]
    %v4836 = vld [vmem:[%s438 + $0x10] sm:$0xf]
    %v4837 = vld [vmem:[%s438 + $0x14] sm:$0x1]
    %v4838 = vld [vmem:[%s438 + $0x18] sm:$0xf]
    %v4839 = vld [vmem:[%s438 + $0x1c] sm:$0x1]
    %v4840 = vld [vmem:[%s438 + $0x20] sm:$0xf]
    %v4841 = vld [vmem:[%s438 + $0x24] sm:$0x1]
    %v4842 = vld [vmem:[%s438 + $0x28] sm:$0xf]
    %v4843 = vld [vmem:[%s438 + $0x2c] sm:$0x1]
    %v4844 = vld [vmem:[%s438 + $0x30] sm:$0xf]
    %v4845 = vld [vmem:[%s438 + $0x34] sm:$0x1]
    %v4846 = vld [vmem:[%s438 + $0x38] sm:$0xf]
    %v4847 = vld [vmem:[%s438 + $0x3c] sm:$0x1]
    %v4848 = vld [vmem:[%s438 + $0x50] sm:$0xf]
    %v4849 = vld [vmem:[%s438 + $0x54] sm:$0x1]
    %v4850 = vld [vmem:[%s438 + $0x58] sm:$0xf]
    %v4851 = vld [vmem:[%s438 + $0x5c] sm:$0x1]
    %v4852 = vld [vmem:[%s438 + $0x60] sm:$0xf]
    %v4853 = vld [vmem:[%s438 + $0x64] sm:$0x1]
    %v4854 = vld [vmem:[%s438 + $0x68] sm:$0xf]
    %v4855 = vld [vmem:[%s438 + $0x6c] sm:$0x1]
    %v4856 = vld [vmem:[%s438 + $0x70] sm:$0xf]
    %v4857 = vld [vmem:[%s438 + $0x74] sm:$0x1]
    %v4858 = vld [vmem:[%s438 + $0x78] sm:$0xf]
    %v4859 = vld [vmem:[%s438 + $0x7c] sm:$0x1]
    %v4860 = vld [vmem:[%s438 + $0x80] sm:$0xf]
    %v4861 = vld [vmem:[%s438 + $0x84] sm:$0x1]
    %v4862 = vld [vmem:[%s438 + $0x88] sm:$0xf]
    %v4863 = vld [vmem:[%s438 + $0x8c] sm:$0x1]
    %v4865 = vshrl.u32 %v4832, 16
    %v4867 = vrot.slane %v4865, 4
    %v4868 = vshll.u32 %v4832, 16
    %v4870 = vrot.slane %v4868, 5
    %v4871 = vor.u32 %v4867, %v4870
    %v4872 = vrot.slane %v4871, 4
    %v4874 = vshll.u32 %v4833, 16
    %v4876 = vrot.slane %v4874, 5
    %v4877 = vsel %vm575, %v4872, %v4876
    %v4879 = vshrl.u32 %v4834, 16
    %v4881 = vrot.slane %v4879, 4
    %v4882 = vshll.u32 %v4834, 16
    %v4884 = vrot.slane %v4882, 5
    %v4885 = vor.u32 %v4881, %v4884
    %v4886 = vrot.slane %v4885, 4
    %v4888 = vshll.u32 %v4835, 16
    %v4890 = vrot.slane %v4888, 5
    %v4891 = vsel %vm575, %v4886, %v4890
    %v4893 = vshrl.u32 %v4836, 16
    %v4895 = vrot.slane %v4893, 4
    %v4896 = vshll.u32 %v4836, 16
    %v4898 = vrot.slane %v4896, 5
    %v4899 = vor.u32 %v4895, %v4898
    %v4900 = vrot.slane %v4899, 4
    %v4902 = vshll.u32 %v4837, 16
    %v4904 = vrot.slane %v4902, 5
    %v4905 = vsel %vm575, %v4900, %v4904
    %v4907 = vshrl.u32 %v4838, 16
    %v4909 = vrot.slane %v4907, 4
    %v4910 = vshll.u32 %v4838, 16
    %v4912 = vrot.slane %v4910, 5
    %v4913 = vor.u32 %v4909, %v4912
    %v4914 = vrot.slane %v4913, 4
    %v4916 = vshll.u32 %v4839, 16
    %v4918 = vrot.slane %v4916, 5
    %v4919 = vsel %vm575, %v4914, %v4918
    %v4921 = vshrl.u32 %v4840, 16
    %v4923 = vrot.slane %v4921, 4
    %v4924 = vshll.u32 %v4840, 16
    %v4926 = vrot.slane %v4924, 5
    %v4927 = vor.u32 %v4923, %v4926
    %v4928 = vrot.slane %v4927, 4
    %v4930 = vshll.u32 %v4841, 16
    %v4932 = vrot.slane %v4930, 5
    %v4933 = vsel %vm575, %v4928, %v4932
    %v4935 = vshrl.u32 %v4842, 16
    %v4937 = vrot.slane %v4935, 4
    %v4938 = vshll.u32 %v4842, 16
    %v4940 = vrot.slane %v4938, 5
    %v4941 = vor.u32 %v4937, %v4940
    %v4942 = vrot.slane %v4941, 4
    %v4944 = vshll.u32 %v4843, 16
    %v4946 = vrot.slane %v4944, 5
    %v4947 = vsel %vm575, %v4942, %v4946
    %v4949 = vshrl.u32 %v4844, 16
    %v4951 = vrot.slane %v4949, 4
    %v4952 = vshll.u32 %v4844, 16
    %v4954 = vrot.slane %v4952, 5
    %v4955 = vor.u32 %v4951, %v4954
    %v4956 = vrot.slane %v4955, 4
    %v4958 = vshll.u32 %v4845, 16
    %v4960 = vrot.slane %v4958, 5
    %v4961 = vsel %vm575, %v4956, %v4960
    %v4963 = vshrl.u32 %v4846, 16
    %v4965 = vrot.slane %v4963, 4
    %v4966 = vshll.u32 %v4846, 16
    %v4968 = vrot.slane %v4966, 5
    %v4969 = vor.u32 %v4965, %v4968
    %v4970 = vrot.slane %v4969, 4
    %v4972 = vshll.u32 %v4847, 16
    %v4974 = vrot.slane %v4972, 5
    %v4975 = vsel %vm575, %v4970, %v4974
    %v4977 = vshrl.u32 %v4848, 16
    %v4979 = vrot.slane %v4977, 4
    %v4980 = vshll.u32 %v4848, 16
    %v4982 = vrot.slane %v4980, 5
    %v4983 = vor.u32 %v4979, %v4982
    %v4984 = vrot.slane %v4983, 4
    %v4986 = vshll.u32 %v4849, 16
    %v4988 = vrot.slane %v4986, 5
    %v4989 = vsel %vm575, %v4984, %v4988
    %v4991 = vshrl.u32 %v4850, 16
    %v4993 = vrot.slane %v4991, 4
    %v4994 = vshll.u32 %v4850, 16
    %v4996 = vrot.slane %v4994, 5
    %v4997 = vor.u32 %v4993, %v4996
    %v4998 = vrot.slane %v4997, 4
    %v5000 = vshll.u32 %v4851, 16
    %v5002 = vrot.slane %v5000, 5
    %v5003 = vsel %vm575, %v4998, %v5002
    %v5005 = vshrl.u32 %v4852, 16
    %v5007 = vrot.slane %v5005, 4
    %v5008 = vshll.u32 %v4852, 16
    %v5010 = vrot.slane %v5008, 5
    %v5011 = vor.u32 %v5007, %v5010
    %v5012 = vrot.slane %v5011, 4
    %v5014 = vshll.u32 %v4853, 16
    %v5016 = vrot.slane %v5014, 5
    %v5017 = vsel %vm575, %v5012, %v5016
    %v5019 = vshrl.u32 %v4854, 16
    %v5021 = vrot.slane %v5019, 4
    %v5022 = vshll.u32 %v4854, 16
    %v5024 = vrot.slane %v5022, 5
    %v5025 = vor.u32 %v5021, %v5024
    %v5026 = vrot.slane %v5025, 4
    %v5028 = vshll.u32 %v4855, 16
    %v5030 = vrot.slane %v5028, 5
    %v5031 = vsel %vm575, %v5026, %v5030
    %v5033 = vshrl.u32 %v4856, 16
    %v5035 = vrot.slane %v5033, 4
    %v5036 = vshll.u32 %v4856, 16
    %v5038 = vrot.slane %v5036, 5
    %v5039 = vor.u32 %v5035, %v5038
    %v5040 = vrot.slane %v5039, 4
    %v5042 = vshll.u32 %v4857, 16
    %v5044 = vrot.slane %v5042, 5
    %v5045 = vsel %vm575, %v5040, %v5044
    %v5047 = vshrl.u32 %v4858, 16
    %v5049 = vrot.slane %v5047, 4
    %v5050 = vshll.u32 %v4858, 16
    %v5052 = vrot.slane %v5050, 5
    %v5053 = vor.u32 %v5049, %v5052
    %v5054 = vrot.slane %v5053, 4
    %v5056 = vshll.u32 %v4859, 16
    %v5058 = vrot.slane %v5056, 5
    %v5059 = vsel %vm575, %v5054, %v5058
    %v5061 = vshrl.u32 %v4860, 16
    %v5063 = vrot.slane %v5061, 4
    %v5064 = vshll.u32 %v4860, 16
    %v5066 = vrot.slane %v5064, 5
    %v5067 = vor.u32 %v5063, %v5066
    %v5068 = vrot.slane %v5067, 4
    %v5070 = vshll.u32 %v4861, 16
    %v5072 = vrot.slane %v5070, 5
    %v5073 = vsel %vm575, %v5068, %v5072
    %v5075 = vshrl.u32 %v4862, 16
    %v5077 = vrot.slane %v5075, 4
    %v5078 = vshll.u32 %v4862, 16
    %v5080 = vrot.slane %v5078, 5
    %v5081 = vor.u32 %v5077, %v5080
    %v5082 = vrot.slane %v5081, 4
    %v5084 = vshll.u32 %v4863, 16
    %v5086 = vrot.slane %v5084, 5
    %v5087 = vsel %vm575, %v5082, %v5086
    %s5088 = scalar_lea.vmem [#allocation5], 208
    %v5089 = vld [vmem:[%s5088] sm:$0xf]
    %v5090 = vld [vmem:[%s5088 + $0x4] sm:$0xf]
    %v5091 = vld [vmem:[%s5088 + $0x8] sm:$0xf]
    %v5092 = vld [vmem:[%s5088 + $0xc] sm:$0xf]
    %v5093 = vunpack.c.l.b16 %v4877
    %v5094 = vunpack.c.l.b16 %v4891
    %v5095 = vunpack.c.l.b16 %v4905
    %v5096 = vunpack.c.l.b16 %v4919
    %v5097 = vunpack.c.l.b16 %v4933
    %v5098 = vunpack.c.l.b16 %v4947
    %v5099 = vunpack.c.l.b16 %v4961
    %v5100 = vunpack.c.l.b16 %v4975
    %v5101 = vunpack.c.l.b16 %v4989
    %v5102 = vunpack.c.l.b16 %v5003
    %v5103 = vunpack.c.l.b16 %v5017
    %v5104 = vunpack.c.l.b16 %v5031
    %v5105 = vunpack.c.l.b16 %v5045
    %v5106 = vunpack.c.l.b16 %v5059
    %v5107 = vunpack.c.l.b16 %v5073
    %v5108 = vunpack.c.l.b16 %v5087
    %v5109 = vpack.c.b16 %v5094, %v5093
    %v5110 = vpack.c.b16 %v5096, %v5095
    %v5111 = vpack.c.b16 %v5098, %v5097
    %v5112 = vpack.c.b16 %v5100, %v5099
    %v5113 = vpack.c.b16 %v5102, %v5101
    %v5114 = vpack.c.b16 %v5104, %v5103
    %v5115 = vpack.c.b16 %v5106, %v5105
    %v5116 = vpack.c.b16 %v5108, %v5107
    %v5121 = vunpack.c.l.b16 %v5089
    %v5122 = vunpack.c.l.b16 %v5090
    %v5123 = vunpack.c.l.b16 %v5091
    %v5124 = vunpack.c.l.b16 %v5092
    %v5125 = vpack.c.b16 %v5122, %v5121
    %v5126 = vpack.c.b16 %v5124, %v5123
    %v5130 = vsel %vm841, %v5109, 0
    %v5133 = vsel %vm841, %v5110, 0
    %v5136 = vsel %vm841, %v5111, 0
    %v5139 = vsel %vm841, %v5112, 0
    %v5142 = vsel %vm841, %v5113, 0
    %v5145 = vsel %vm841, %v5114, 0
    %v5148 = vsel %vm841, %v5115, 0
    %v5151 = vsel %vm841, %v5116, 0
    %5153 = vmatprep.subr.bf16.mxu0 0
    %5154 = vmatpush1.bf16.msra.mxu0 0
    %5155 = vmatprep.subr.bf16.mxu0 0
    %5156 = vmatpush1.bf16.msra.mxu0 0
    %5157 = vmatprep.subr.bf16.mxu0 0
    %5158 = vmatpush1.bf16.msra.mxu0 0
    %5159 = vmatprep.subr.bf16.mxu0 0
    %5160 = vmatpush1.bf16.msra.mxu0 0
    %5161 = vmatprep.subr.bf16.mxu0 0
    %5162 = vmatpush1.bf16.msra.mxu0 0
    %5163 = vmatprep.subr.bf16.mxu0 0
    %5164 = vmatpush1.bf16.msra.mxu0 0
    %5165 = vmatprep.subr.bf16.mxu0 0
    %5166 = vmatpush1.bf16.msra.mxu0 %v5126
    %5167 = vmatprep.subr.bf16.mxu0 0
    %5168 = vmatpush1.bf16.msra.mxu0 %v5125
    %5169 = vmatprep.subr.bf16.mxu0 0
    %5170 = vmatpush2.bf16.msra.mxu0 0
    %5171 = vmatprep.subr.bf16.mxu0 0
    %5172 = vmatpush2.bf16.msra.mxu0 0
    %5173 = vmatprep.subr.bf16.mxu0 0
    %5174 = vmatpush2.bf16.msra.mxu0 0
    %5175 = vmatprep.subr.bf16.mxu0 0
    %5176 = vmatpush2.bf16.msra.mxu0 0
    %5177 = vmatprep.subr.bf16.mxu0 0
    %5178 = vmatpush2.bf16.msra.mxu0 0
    %5179 = vmatprep.subr.bf16.mxu0 0
    %5180 = vmatpush2.bf16.msra.mxu0 0
    %5181 = vmatprep.subr.bf16.mxu0 0
    %5182 = vmatpush2.bf16.msra.mxu0 0
    %5183 = vmatprep.subr.bf16.mxu0 0
    %5184 = vmatpush2.bf16.msra.mxu0 0
    %5185 = vmatprep.mubr.bf16.mxu0 0
    %5186 = vmatmul.mubr.bf16.gmra.mxu0 %v5130
    %v5187 = vpop.f32.mrf.mxu0
    %v5188 = vadd.f32 0.0, %v5187
    %v5189 = vpop.f32.mrf.mxu0
    %v5190 = vpop.f32.mrf.mxu0
    %v5191 = vadd.f32 0.0, %v5190
    %v5192 = vpop.f32.mrf.mxu0
    %5193 = vmatprep.mubr.bf16.mxu0 0
    %5194 = vmatmul.mubr.bf16.gmra.mxu0 %v5133
    %v5195 = vpop.f32.mrf.mxu0
    %v5196 = vadd.f32 0.0, %v5195
    %v5197 = vpop.f32.mrf.mxu0
    %v5198 = vpop.f32.mrf.mxu0
    %v5199 = vadd.f32 0.0, %v5198
    %v5200 = vpop.f32.mrf.mxu0
    %5201 = vmatprep.mubr.bf16.mxu0 0
    %5202 = vmatmul.mubr.bf16.gmra.mxu0 %v5136
    %v5203 = vpop.f32.mrf.mxu0
    %v5204 = vadd.f32 0.0, %v5203
    %v5205 = vpop.f32.mrf.mxu0
    %v5206 = vpop.f32.mrf.mxu0
    %v5207 = vadd.f32 0.0, %v5206
    %v5208 = vpop.f32.mrf.mxu0
    %5209 = vmatprep.mubr.bf16.mxu0 0
    %5210 = vmatmul.mubr.bf16.gmra.mxu0 %v5139
    %v5211 = vpop.f32.mrf.mxu0
    %v5212 = vadd.f32 0.0, %v5211
    %v5213 = vpop.f32.mrf.mxu0
    %v5214 = vpop.f32.mrf.mxu0
    %v5215 = vadd.f32 0.0, %v5214
    %v5216 = vpop.f32.mrf.mxu0
    %5217 = vmatprep.mubr.bf16.mxu0 0
    %5218 = vmatmul.mubr.bf16.gmra.mxu0 %v5142
    %v5219 = vpop.f32.mrf.mxu0
    %v5220 = vadd.f32 0.0, %v5219
    %v5221 = vpop.f32.mrf.mxu0
    %v5222 = vpop.f32.mrf.mxu0
    %v5223 = vadd.f32 0.0, %v5222
    %v5224 = vpop.f32.mrf.mxu0
    %5225 = vmatprep.mubr.bf16.mxu0 0
    %5226 = vmatmul.mubr.bf16.gmra.mxu0 %v5145
    %v5227 = vpop.f32.mrf.mxu0
    %v5228 = vadd.f32 0.0, %v5227
    %v5229 = vpop.f32.mrf.mxu0
    %v5230 = vpop.f32.mrf.mxu0
    %v5231 = vadd.f32 0.0, %v5230
    %v5232 = vpop.f32.mrf.mxu0
    %5233 = vmatprep.mubr.bf16.mxu0 0
    %5234 = vmatmul.mubr.bf16.gmra.mxu0 %v5148
    %v5235 = vpop.f32.mrf.mxu0
    %v5236 = vadd.f32 0.0, %v5235
    %v5237 = vpop.f32.mrf.mxu0
    %v5238 = vpop.f32.mrf.mxu0
    %v5239 = vadd.f32 0.0, %v5238
    %v5240 = vpop.f32.mrf.mxu0
    %5241 = vmatprep.mubr.bf16.mxu0 0
    %5242 = vmatmul.mubr.bf16.gmra.mxu0 %v5151
    %v5243 = vpop.f32.mrf.mxu0
    %v5244 = vadd.f32 0.0, %v5243
    %v5245 = vpop.f32.mrf.mxu0
    %v5246 = vpop.f32.mrf.mxu0
    %v5247 = vadd.f32 0.0, %v5246
    %v5248 = vpop.f32.mrf.mxu0
    %5249 = vdwg.mxu0
    %v5250 = vadd.f32 %v4816, %v5188
    %v5251 = vadd.f32 %v4817, %v5191
    %v5252 = vadd.f32 %v4818, %v5196
    %v5253 = vadd.f32 %v4819, %v5199
    %v5254 = vadd.f32 %v4820, %v5204
    %v5255 = vadd.f32 %v4821, %v5207
    %v5256 = vadd.f32 %v4822, %v5212
    %v5257 = vadd.f32 %v4823, %v5215
    %v5258 = vadd.f32 %v4824, %v5220
    %v5259 = vadd.f32 %v4825, %v5223
    %v5260 = vadd.f32 %v4826, %v5228
    %v5261 = vadd.f32 %v4827, %v5231
    %v5262 = vadd.f32 %v4828, %v5236
    %v5263 = vadd.f32 %v4829, %v5239
    %v5264 = vadd.f32 %v4830, %v5244
    %v5265 = vadd.f32 %v4831, %v5247
    %v5266 = vld [vmem:[%s438] sm:$0xe]
    %v5267 = vld [vmem:[%s438 + $0x8] sm:$0xe]
    %v5268 = vld [vmem:[%s438 + $0x10] sm:$0xe]
    %v5269 = vld [vmem:[%s438 + $0x18] sm:$0xe]
    %v5270 = vld [vmem:[%s438 + $0x20] sm:$0xe]
    %v5271 = vld [vmem:[%s438 + $0x28] sm:$0xe]
    %v5272 = vld [vmem:[%s438 + $0x30] sm:$0xe]
    %v5273 = vld [vmem:[%s438 + $0x38] sm:$0xe]
    %v5274 = vld [vmem:[%s438 + $0x50] sm:$0xe]
    %v5275 = vld [vmem:[%s438 + $0x58] sm:$0xe]
    %v5276 = vld [vmem:[%s438 + $0x60] sm:$0xe]
    %v5277 = vld [vmem:[%s438 + $0x68] sm:$0xe]
    %v5278 = vld [vmem:[%s438 + $0x70] sm:$0xe]
    %v5279 = vld [vmem:[%s438 + $0x78] sm:$0xe]
    %v5280 = vld [vmem:[%s438 + $0x80] sm:$0xe]
    %v5281 = vld [vmem:[%s438 + $0x88] sm:$0xe]
    %v5314 = vrot.slane %v5266, 5
    %v5315 = vrot.slane %v5314, 4
    %v5316 = vrot.slane %v4833, 5
    %v5317 = vsel %vm1186, %v5315, %v5316
    %v5318 = vrot.slane %v5267, 5
    %v5319 = vrot.slane %v5318, 4
    %v5320 = vrot.slane %v4835, 5
    %v5321 = vsel %vm1186, %v5319, %v5320
    %v5322 = vrot.slane %v5268, 5
    %v5323 = vrot.slane %v5322, 4
    %v5324 = vrot.slane %v4837, 5
    %v5325 = vsel %vm1186, %v5323, %v5324
    %v5326 = vrot.slane %v5269, 5
    %v5327 = vrot.slane %v5326, 4
    %v5328 = vrot.slane %v4839, 5
    %v5329 = vsel %vm1186, %v5327, %v5328
    %v5330 = vrot.slane %v5270, 5
    %v5331 = vrot.slane %v5330, 4
    %v5332 = vrot.slane %v4841, 5
    %v5333 = vsel %vm1186, %v5331, %v5332
    %v5334 = vrot.slane %v5271, 5
    %v5335 = vrot.slane %v5334, 4
    %v5336 = vrot.slane %v4843, 5
    %v5337 = vsel %vm1186, %v5335, %v5336
    %v5338 = vrot.slane %v5272, 5
    %v5339 = vrot.slane %v5338, 4
    %v5340 = vrot.slane %v4845, 5
    %v5341 = vsel %vm1186, %v5339, %v5340
    %v5342 = vrot.slane %v5273, 5
    %v5343 = vrot.slane %v5342, 4
    %v5344 = vrot.slane %v4847, 5
    %v5345 = vsel %vm1186, %v5343, %v5344
    %v5346 = vrot.slane %v5274, 5
    %v5347 = vrot.slane %v5346, 4
    %v5348 = vrot.slane %v4849, 5
    %v5349 = vsel %vm1186, %v5347, %v5348
    %v5350 = vrot.slane %v5275, 5
    %v5351 = vrot.slane %v5350, 4
    %v5352 = vrot.slane %v4851, 5
    %v5353 = vsel %vm1186, %v5351, %v5352
    %v5354 = vrot.slane %v5276, 5
    %v5355 = vrot.slane %v5354, 4
    %v5356 = vrot.slane %v4853, 5
    %v5357 = vsel %vm1186, %v5355, %v5356
    %v5358 = vrot.slane %v5277, 5
    %v5359 = vrot.slane %v5358, 4
    %v5360 = vrot.slane %v4855, 5
    %v5361 = vsel %vm1186, %v5359, %v5360
    %v5362 = vrot.slane %v5278, 5
    %v5363 = vrot.slane %v5362, 4
    %v5364 = vrot.slane %v4857, 5
    %v5365 = vsel %vm1186, %v5363, %v5364
    %v5366 = vrot.slane %v5279, 5
    %v5367 = vrot.slane %v5366, 4
    %v5368 = vrot.slane %v4859, 5
    %v5369 = vsel %vm1186, %v5367, %v5368
    %v5370 = vrot.slane %v5280, 5
    %v5371 = vrot.slane %v5370, 4
    %v5372 = vrot.slane %v4861, 5
    %v5373 = vsel %vm1186, %v5371, %v5372
    %v5374 = vrot.slane %v5281, 5
    %v5375 = vrot.slane %v5374, 4
    %v5376 = vrot.slane %v4863, 5
    %v5377 = vsel %vm1186, %v5375, %v5376
    %s5378 = scalar_lea.vmem [#allocation5], 224
    %v5379 = vld [vmem:[%s5378] sm:$0xf]
    %v5380 = vld [vmem:[%s5378 + $0x4] sm:$0xf]
    %v5381 = vld [vmem:[%s5378 + $0x8] sm:$0xf]
    %v5382 = vld [vmem:[%s5378 + $0xc] sm:$0xf]
    %v5383 = vunpack.c.l.b16 %v5317
    %v5384 = vunpack.c.l.b16 %v5321
    %v5385 = vunpack.c.l.b16 %v5325
    %v5386 = vunpack.c.l.b16 %v5329
    %v5387 = vunpack.c.l.b16 %v5333
    %v5388 = vunpack.c.l.b16 %v5337
    %v5389 = vunpack.c.l.b16 %v5341
    %v5390 = vunpack.c.l.b16 %v5345
    %v5391 = vunpack.c.l.b16 %v5349
    %v5392 = vunpack.c.l.b16 %v5353
    %v5393 = vunpack.c.l.b16 %v5357
    %v5394 = vunpack.c.l.b16 %v5361
    %v5395 = vunpack.c.l.b16 %v5365
    %v5396 = vunpack.c.l.b16 %v5369
    %v5397 = vunpack.c.l.b16 %v5373
    %v5398 = vunpack.c.l.b16 %v5377
    %v5399 = vpack.c.b16 %v5384, %v5383
    %v5400 = vpack.c.b16 %v5386, %v5385
    %v5401 = vpack.c.b16 %v5388, %v5387
    %v5402 = vpack.c.b16 %v5390, %v5389
    %v5403 = vpack.c.b16 %v5392, %v5391
    %v5404 = vpack.c.b16 %v5394, %v5393
    %v5405 = vpack.c.b16 %v5396, %v5395
    %v5406 = vpack.c.b16 %v5398, %v5397
    %v5411 = vunpack.c.l.b16 %v5379
    %v5412 = vunpack.c.l.b16 %v5380
    %v5413 = vunpack.c.l.b16 %v5381
    %v5414 = vunpack.c.l.b16 %v5382
    %v5415 = vpack.c.b16 %v5412, %v5411
    %v5416 = vpack.c.b16 %v5414, %v5413
    %v5420 = vsel %vm841, %v5399, 0
    %v5423 = vsel %vm841, %v5400, 0
    %v5426 = vsel %vm841, %v5401, 0
    %v5429 = vsel %vm841, %v5402, 0
    %v5432 = vsel %vm841, %v5403, 0
    %v5435 = vsel %vm841, %v5404, 0
    %v5438 = vsel %vm841, %v5405, 0
    %v5441 = vsel %vm841, %v5406, 0
    %5443 = vmatprep.subr.bf16.mxu0 0
    %5444 = vmatpush1.bf16.msra.mxu0 0
    %5445 = vmatprep.subr.bf16.mxu0 0
    %5446 = vmatpush1.bf16.msra.mxu0 0
    %5447 = vmatprep.subr.bf16.mxu0 0
    %5448 = vmatpush1.bf16.msra.mxu0 0
    %5449 = vmatprep.subr.bf16.mxu0 0
    %5450 = vmatpush1.bf16.msra.mxu0 0
    %5451 = vmatprep.subr.bf16.mxu0 0
    %5452 = vmatpush1.bf16.msra.mxu0 0
    %5453 = vmatprep.subr.bf16.mxu0 0
    %5454 = vmatpush1.bf16.msra.mxu0 0
    %5455 = vmatprep.subr.bf16.mxu0 0
    %5456 = vmatpush1.bf16.msra.mxu0 %v5416
    %5457 = vmatprep.subr.bf16.mxu0 0
    %5458 = vmatpush1.bf16.msra.mxu0 %v5415
    %5459 = vmatprep.subr.bf16.mxu0 0
    %5460 = vmatpush2.bf16.msra.mxu0 0
    %5461 = vmatprep.subr.bf16.mxu0 0
    %5462 = vmatpush2.bf16.msra.mxu0 0
    %5463 = vmatprep.subr.bf16.mxu0 0
    %5464 = vmatpush2.bf16.msra.mxu0 0
    %5465 = vmatprep.subr.bf16.mxu0 0
    %5466 = vmatpush2.bf16.msra.mxu0 0
    %5467 = vmatprep.subr.bf16.mxu0 0
    %5468 = vmatpush2.bf16.msra.mxu0 0
    %5469 = vmatprep.subr.bf16.mxu0 0
    %5470 = vmatpush2.bf16.msra.mxu0 0
    %5471 = vmatprep.subr.bf16.mxu0 0
    %5472 = vmatpush2.bf16.msra.mxu0 0
    %5473 = vmatprep.subr.bf16.mxu0 0
    %5474 = vmatpush2.bf16.msra.mxu0 0
    %5475 = vmatprep.mubr.bf16.mxu0 0
    %5476 = vmatmul.mubr.bf16.gmra.mxu0 %v5420
    %v5477 = vpop.f32.mrf.mxu0
    %v5478 = vadd.f32 0.0, %v5477
    %v5479 = vpop.f32.mrf.mxu0
    %v5480 = vpop.f32.mrf.mxu0
    %v5481 = vadd.f32 0.0, %v5480
    %v5482 = vpop.f32.mrf.mxu0
    %5483 = vmatprep.mubr.bf16.mxu0 0
    %5484 = vmatmul.mubr.bf16.gmra.mxu0 %v5423
    %v5485 = vpop.f32.mrf.mxu0
    %v5486 = vadd.f32 0.0, %v5485
    %v5487 = vpop.f32.mrf.mxu0
    %v5488 = vpop.f32.mrf.mxu0
    %v5489 = vadd.f32 0.0, %v5488
    %v5490 = vpop.f32.mrf.mxu0
    %5491 = vmatprep.mubr.bf16.mxu0 0
    %5492 = vmatmul.mubr.bf16.gmra.mxu0 %v5426
    %v5493 = vpop.f32.mrf.mxu0
    %v5494 = vadd.f32 0.0, %v5493
    %v5495 = vpop.f32.mrf.mxu0
    %v5496 = vpop.f32.mrf.mxu0
    %v5497 = vadd.f32 0.0, %v5496
    %v5498 = vpop.f32.mrf.mxu0
    %5499 = vmatprep.mubr.bf16.mxu0 0
    %5500 = vmatmul.mubr.bf16.gmra.mxu0 %v5429
    %v5501 = vpop.f32.mrf.mxu0
    %v5502 = vadd.f32 0.0, %v5501
    %v5503 = vpop.f32.mrf.mxu0
    %v5504 = vpop.f32.mrf.mxu0
    %v5505 = vadd.f32 0.0, %v5504
    %v5506 = vpop.f32.mrf.mxu0
    %5507 = vmatprep.mubr.bf16.mxu0 0
    %5508 = vmatmul.mubr.bf16.gmra.mxu0 %v5432
    %v5509 = vpop.f32.mrf.mxu0
    %v5510 = vadd.f32 0.0, %v5509
    %v5511 = vpop.f32.mrf.mxu0
    %v5512 = vpop.f32.mrf.mxu0
    %v5513 = vadd.f32 0.0, %v5512
    %v5514 = vpop.f32.mrf.mxu0
    %5515 = vmatprep.mubr.bf16.mxu0 0
    %5516 = vmatmul.mubr.bf16.gmra.mxu0 %v5435
    %v5517 = vpop.f32.mrf.mxu0
    %v5518 = vadd.f32 0.0, %v5517
    %v5519 = vpop.f32.mrf.mxu0
    %v5520 = vpop.f32.mrf.mxu0
    %v5521 = vadd.f32 0.0, %v5520
    %v5522 = vpop.f32.mrf.mxu0
    %5523 = vmatprep.mubr.bf16.mxu0 0
    %5524 = vmatmul.mubr.bf16.gmra.mxu0 %v5438
    %v5525 = vpop.f32.mrf.mxu0
    %v5526 = vadd.f32 0.0, %v5525
    %v5527 = vpop.f32.mrf.mxu0
    %v5528 = vpop.f32.mrf.mxu0
    %v5529 = vadd.f32 0.0, %v5528
    %v5530 = vpop.f32.mrf.mxu0
    %5531 = vmatprep.mubr.bf16.mxu0 0
    %5532 = vmatmul.mubr.bf16.gmra.mxu0 %v5441
    %v5533 = vpop.f32.mrf.mxu0
    %v5534 = vadd.f32 0.0, %v5533
    %v5535 = vpop.f32.mrf.mxu0
    %v5536 = vpop.f32.mrf.mxu0
    %v5537 = vadd.f32 0.0, %v5536
    %v5538 = vpop.f32.mrf.mxu0
    %5539 = vdwg.mxu0
    %v5540 = vadd.f32 %v5250, %v5478
    %v5541 = vadd.f32 %v5251, %v5481
    %v5542 = vadd.f32 %v5252, %v5486
    %v5543 = vadd.f32 %v5253, %v5489
    %v5544 = vadd.f32 %v5254, %v5494
    %v5545 = vadd.f32 %v5255, %v5497
    %v5546 = vadd.f32 %v5256, %v5502
    %v5547 = vadd.f32 %v5257, %v5505
    %v5548 = vadd.f32 %v5258, %v5510
    %v5549 = vadd.f32 %v5259, %v5513
    %v5550 = vadd.f32 %v5260, %v5518
    %v5551 = vadd.f32 %v5261, %v5521
    %v5552 = vadd.f32 %v5262, %v5526
    %v5553 = vadd.f32 %v5263, %v5529
    %v5554 = vadd.f32 %v5264, %v5534
    %v5555 = vadd.f32 %v5265, %v5537
    %v5556 = vld [vmem:[%s2363] sm:$0xf]
    %v5557 = vld [vmem:[%s2363 + $0x8] sm:$0xf]
    %v5558 = vld [vmem:[%s2363 + $0x10] sm:$0xf]
    %v5559 = vld [vmem:[%s2363 + $0x18] sm:$0xf]
    %v5560 = vld [vmem:[%s2363 + $0x20] sm:$0xf]
    %v5561 = vld [vmem:[%s2363 + $0x28] sm:$0xf]
    %v5562 = vld [vmem:[%s2363 + $0x30] sm:$0xf]
    %v5563 = vld [vmem:[%s2363 + $0x38] sm:$0xf]
    %v5564 = vld [vmem:[%s2363 + $0x50] sm:$0xf]
    %v5565 = vld [vmem:[%s2363 + $0x58] sm:$0xf]
    %v5566 = vld [vmem:[%s2363 + $0x60] sm:$0xf]
    %v5567 = vld [vmem:[%s2363 + $0x68] sm:$0xf]
    %v5568 = vld [vmem:[%s2363 + $0x70] sm:$0xf]
    %v5569 = vld [vmem:[%s2363 + $0x78] sm:$0xf]
    %v5570 = vld [vmem:[%s2363 + $0x80] sm:$0xf]
    %v5571 = vld [vmem:[%s2363 + $0x88] sm:$0xf]
    %s5572 = scalar_lea.vmem [#allocation5], 240
    %v5573 = vld [vmem:[%s5572] sm:$0xf]
    %v5574 = vld [vmem:[%s5572 + $0x4] sm:$0xf]
    %v5575 = vld [vmem:[%s5572 + $0x8] sm:$0xf]
    %v5576 = vld [vmem:[%s5572 + $0xc] sm:$0xf]
    %v5593 = vunpack.c.l.b16 %v5556
    %v5594 = vunpack.c.l.b16 %v5557
    %v5595 = vunpack.c.l.b16 %v5558
    %v5596 = vunpack.c.l.b16 %v5559
    %v5597 = vunpack.c.l.b16 %v5560
    %v5598 = vunpack.c.l.b16 %v5561
    %v5599 = vunpack.c.l.b16 %v5562
    %v5600 = vunpack.c.l.b16 %v5563
    %v5601 = vunpack.c.l.b16 %v5564
    %v5602 = vunpack.c.l.b16 %v5565
    %v5603 = vunpack.c.l.b16 %v5566
    %v5604 = vunpack.c.l.b16 %v5567
    %v5605 = vunpack.c.l.b16 %v5568
    %v5606 = vunpack.c.l.b16 %v5569
    %v5607 = vunpack.c.l.b16 %v5570
    %v5608 = vunpack.c.l.b16 %v5571
    %v5609 = vpack.c.b16 %v5594, %v5593
    %v5610 = vpack.c.b16 %v5596, %v5595
    %v5611 = vpack.c.b16 %v5598, %v5597
    %v5612 = vpack.c.b16 %v5600, %v5599
    %v5613 = vpack.c.b16 %v5602, %v5601
    %v5614 = vpack.c.b16 %v5604, %v5603
    %v5615 = vpack.c.b16 %v5606, %v5605
    %v5616 = vpack.c.b16 %v5608, %v5607
    %v5621 = vunpack.c.l.b16 %v5573
    %v5622 = vunpack.c.l.b16 %v5574
    %v5623 = vunpack.c.l.b16 %v5575
    %v5624 = vunpack.c.l.b16 %v5576
    %v5625 = vpack.c.b16 %v5622, %v5621
    %v5626 = vpack.c.b16 %v5624, %v5623
    %v5630 = vsel %vm841, %v5609, 0
    %v5633 = vsel %vm841, %v5610, 0
    %v5636 = vsel %vm841, %v5611, 0
    %v5639 = vsel %vm841, %v5612, 0
    %v5642 = vsel %vm841, %v5613, 0
    %v5645 = vsel %vm841, %v5614, 0
    %v5648 = vsel %vm841, %v5615, 0
    %v5651 = vsel %vm841, %v5616, 0
    %5653 = vmatprep.subr.bf16.mxu0 0
    %5654 = vmatpush1.bf16.msra.mxu0 0
    %5655 = vmatprep.subr.bf16.mxu0 0
    %5656 = vmatpush1.bf16.msra.mxu0 0
    %5657 = vmatprep.subr.bf16.mxu0 0
    %5658 = vmatpush1.bf16.msra.mxu0 0
    %5659 = vmatprep.subr.bf16.mxu0 0
    %5660 = vmatpush1.bf16.msra.mxu0 0
    %5661 = vmatprep.subr.bf16.mxu0 0
    %5662 = vmatpush1.bf16.msra.mxu0 0
    %5663 = vmatprep.subr.bf16.mxu0 0
    %5664 = vmatpush1.bf16.msra.mxu0 0
    %5665 = vmatprep.subr.bf16.mxu0 0
    %5666 = vmatpush1.bf16.msra.mxu0 %v5626
    %5667 = vmatprep.subr.bf16.mxu0 0
    %5668 = vmatpush1.bf16.msra.mxu0 %v5625
    %5669 = vmatprep.subr.bf16.mxu0 0
    %5670 = vmatpush2.bf16.msra.mxu0 0
    %5671 = vmatprep.subr.bf16.mxu0 0
    %5672 = vmatpush2.bf16.msra.mxu0 0
    %5673 = vmatprep.subr.bf16.mxu0 0
    %5674 = vmatpush2.bf16.msra.mxu0 0
    %5675 = vmatprep.subr.bf16.mxu0 0
    %5676 = vmatpush2.bf16.msra.mxu0 0
    %5677 = vmatprep.subr.bf16.mxu0 0
    %5678 = vmatpush2.bf16.msra.mxu0 0
    %5679 = vmatprep.subr.bf16.mxu0 0
    %5680 = vmatpush2.bf16.msra.mxu0 0
    %5681 = vmatprep.subr.bf16.mxu0 0
    %5682 = vmatpush2.bf16.msra.mxu0 0
    %5683 = vmatprep.subr.bf16.mxu0 0
    %5684 = vmatpush2.bf16.msra.mxu0 0
    %5685 = vmatprep.mubr.bf16.mxu0 0
    %5686 = vmatmul.mubr.bf16.gmra.mxu0 %v5630
    %v5687 = vpop.f32.mrf.mxu0
    %v5688 = vadd.f32 0.0, %v5687
    %v5689 = vpop.f32.mrf.mxu0
    %v5690 = vpop.f32.mrf.mxu0
    %v5691 = vadd.f32 0.0, %v5690
    %v5692 = vpop.f32.mrf.mxu0
    %5693 = vmatprep.mubr.bf16.mxu0 0
    %5694 = vmatmul.mubr.bf16.gmra.mxu0 %v5633
    %v5695 = vpop.f32.mrf.mxu0
    %v5696 = vadd.f32 0.0, %v5695
    %v5697 = vpop.f32.mrf.mxu0
    %v5698 = vpop.f32.mrf.mxu0
    %v5699 = vadd.f32 0.0, %v5698
    %v5700 = vpop.f32.mrf.mxu0
    %5701 = vmatprep.mubr.bf16.mxu0 0
    %5702 = vmatmul.mubr.bf16.gmra.mxu0 %v5636
    %v5703 = vpop.f32.mrf.mxu0
    %v5704 = vadd.f32 0.0, %v5703
    %v5705 = vpop.f32.mrf.mxu0
    %v5706 = vpop.f32.mrf.mxu0
    %v5707 = vadd.f32 0.0, %v5706
    %v5708 = vpop.f32.mrf.mxu0
    %5709 = vmatprep.mubr.bf16.mxu0 0
    %5710 = vmatmul.mubr.bf16.gmra.mxu0 %v5639
    %v5711 = vpop.f32.mrf.mxu0
    %v5712 = vadd.f32 0.0, %v5711
    %v5713 = vpop.f32.mrf.mxu0
    %v5714 = vpop.f32.mrf.mxu0
    %v5715 = vadd.f32 0.0, %v5714
    %v5716 = vpop.f32.mrf.mxu0
    %5717 = vmatprep.mubr.bf16.mxu0 0
    %5718 = vmatmul.mubr.bf16.gmra.mxu0 %v5642
    %v5719 = vpop.f32.mrf.mxu0
    %v5720 = vadd.f32 0.0, %v5719
    %v5721 = vpop.f32.mrf.mxu0
    %v5722 = vpop.f32.mrf.mxu0
    %v5723 = vadd.f32 0.0, %v5722
    %v5724 = vpop.f32.mrf.mxu0
    %5725 = vmatprep.mubr.bf16.mxu0 0
    %5726 = vmatmul.mubr.bf16.gmra.mxu0 %v5645
    %v5727 = vpop.f32.mrf.mxu0
    %v5728 = vadd.f32 0.0, %v5727
    %v5729 = vpop.f32.mrf.mxu0
    %v5730 = vpop.f32.mrf.mxu0
    %v5731 = vadd.f32 0.0, %v5730
    %v5732 = vpop.f32.mrf.mxu0
    %5733 = vmatprep.mubr.bf16.mxu0 0
    %5734 = vmatmul.mubr.bf16.gmra.mxu0 %v5648
    %v5735 = vpop.f32.mrf.mxu0
    %v5736 = vadd.f32 0.0, %v5735
    %v5737 = vpop.f32.mrf.mxu0
    %v5738 = vpop.f32.mrf.mxu0
    %v5739 = vadd.f32 0.0, %v5738
    %v5740 = vpop.f32.mrf.mxu0
    %5741 = vmatprep.mubr.bf16.mxu0 0
    %5742 = vmatmul.mubr.bf16.gmra.mxu0 %v5651
    %v5743 = vpop.f32.mrf.mxu0
    %v5744 = vadd.f32 0.0, %v5743
    %v5745 = vpop.f32.mrf.mxu0
    %v5746 = vpop.f32.mrf.mxu0
    %v5747 = vadd.f32 0.0, %v5746
    %v5748 = vpop.f32.mrf.mxu0
    %5749 = vdwg.mxu0
    %v5750 = vadd.f32 %v5540, %v5688
    %v5751 = vadd.f32 %v5541, %v5691
    %v5752 = vadd.f32 %v5542, %v5696
    %v5753 = vadd.f32 %v5543, %v5699
    %v5754 = vadd.f32 %v5544, %v5704
    %v5755 = vadd.f32 %v5545, %v5707
    %v5756 = vadd.f32 %v5546, %v5712
    %v5757 = vadd.f32 %v5547, %v5715
    %v5758 = vadd.f32 %v5548, %v5720
    %v5759 = vadd.f32 %v5549, %v5723
    %v5760 = vadd.f32 %v5550, %v5728
    %v5761 = vadd.f32 %v5551, %v5731
    %v5762 = vadd.f32 %v5552, %v5736
    %v5763 = vadd.f32 %v5553, %v5739
    %v5764 = vadd.f32 %v5554, %v5744
    %v5765 = vadd.f32 %v5555, %v5747
    %v5766 = vld [vmem:[%s2363] sm:$0xf]
    %v5767 = vld [vmem:[%s2363 + $0x4] sm:$0x1]
    %v5768 = vld [vmem:[%s2363 + $0x8] sm:$0xf]
    %v5769 = vld [vmem:[%s2363 + $0xc] sm:$0x1]
    %v5770 = vld [vmem:[%s2363 + $0x10] sm:$0xf]
    %v5771 = vld [vmem:[%s2363 + $0x14] sm:$0x1]
    %v5772 = vld [vmem:[%s2363 + $0x18] sm:$0xf]
    %v5773 = vld [vmem:[%s2363 + $0x1c] sm:$0x1]
    %v5774 = vld [vmem:[%s2363 + $0x20] sm:$0xf]
    %v5775 = vld [vmem:[%s2363 + $0x24] sm:$0x1]
    %v5776 = vld [vmem:[%s2363 + $0x28] sm:$0xf]
    %v5777 = vld [vmem:[%s2363 + $0x2c] sm:$0x1]
    %v5778 = vld [vmem:[%s2363 + $0x30] sm:$0xf]
    %v5779 = vld [vmem:[%s2363 + $0x34] sm:$0x1]
    %v5780 = vld [vmem:[%s2363 + $0x38] sm:$0xf]
    %v5781 = vld [vmem:[%s2363 + $0x3c] sm:$0x1]
    %v5782 = vld [vmem:[%s2363 + $0x50] sm:$0xf]
    %v5783 = vld [vmem:[%s2363 + $0x54] sm:$0x1]
    %v5784 = vld [vmem:[%s2363 + $0x58] sm:$0xf]
    %v5785 = vld [vmem:[%s2363 + $0x5c] sm:$0x1]
    %v5786 = vld [vmem:[%s2363 + $0x60] sm:$0xf]
    %v5787 = vld [vmem:[%s2363 + $0x64] sm:$0x1]
    %v5788 = vld [vmem:[%s2363 + $0x68] sm:$0xf]
    %v5789 = vld [vmem:[%s2363 + $0x6c] sm:$0x1]
    %v5790 = vld [vmem:[%s2363 + $0x70] sm:$0xf]
    %v5791 = vld [vmem:[%s2363 + $0x74] sm:$0x1]
    %v5792 = vld [vmem:[%s2363 + $0x78] sm:$0xf]
    %v5793 = vld [vmem:[%s2363 + $0x7c] sm:$0x1]
    %v5794 = vld [vmem:[%s2363 + $0x80] sm:$0xf]
    %v5795 = vld [vmem:[%s2363 + $0x84] sm:$0x1]
    %v5796 = vld [vmem:[%s2363 + $0x88] sm:$0xf]
    %v5797 = vld [vmem:[%s2363 + $0x8c] sm:$0x1]
    %v5799 = vshrl.u32 %v5766, 16
    %v5801 = vrot.slane %v5799, 4
    %v5802 = vshll.u32 %v5766, 16
    %v5804 = vrot.slane %v5802, 5
    %v5805 = vor.u32 %v5801, %v5804
    %v5806 = vrot.slane %v5805, 4
    %v5808 = vshll.u32 %v5767, 16
    %v5810 = vrot.slane %v5808, 5
    %v5811 = vsel %vm575, %v5806, %v5810
    %v5813 = vshrl.u32 %v5768, 16
    %v5815 = vrot.slane %v5813, 4
    %v5816 = vshll.u32 %v5768, 16
    %v5818 = vrot.slane %v5816, 5
    %v5819 = vor.u32 %v5815, %v5818
    %v5820 = vrot.slane %v5819, 4
    %v5822 = vshll.u32 %v5769, 16
    %v5824 = vrot.slane %v5822, 5
    %v5825 = vsel %vm575, %v5820, %v5824
    %v5827 = vshrl.u32 %v5770, 16
    %v5829 = vrot.slane %v5827, 4
    %v5830 = vshll.u32 %v5770, 16
    %v5832 = vrot.slane %v5830, 5
    %v5833 = vor.u32 %v5829, %v5832
    %v5834 = vrot.slane %v5833, 4
    %v5836 = vshll.u32 %v5771, 16
    %v5838 = vrot.slane %v5836, 5
    %v5839 = vsel %vm575, %v5834, %v5838
    %v5841 = vshrl.u32 %v5772, 16
    %v5843 = vrot.slane %v5841, 4
    %v5844 = vshll.u32 %v5772, 16
    %v5846 = vrot.slane %v5844, 5
    %v5847 = vor.u32 %v5843, %v5846
    %v5848 = vrot.slane %v5847, 4
    %v5850 = vshll.u32 %v5773, 16
    %v5852 = vrot.slane %v5850, 5
    %v5853 = vsel %vm575, %v5848, %v5852
    %v5855 = vshrl.u32 %v5774, 16
    %v5857 = vrot.slane %v5855, 4
    %v5858 = vshll.u32 %v5774, 16
    %v5860 = vrot.slane %v5858, 5
    %v5861 = vor.u32 %v5857, %v5860
    %v5862 = vrot.slane %v5861, 4
    %v5864 = vshll.u32 %v5775, 16
    %v5866 = vrot.slane %v5864, 5
    %v5867 = vsel %vm575, %v5862, %v5866
    %v5869 = vshrl.u32 %v5776, 16
    %v5871 = vrot.slane %v5869, 4
    %v5872 = vshll.u32 %v5776, 16
    %v5874 = vrot.slane %v5872, 5
    %v5875 = vor.u32 %v5871, %v5874
    %v5876 = vrot.slane %v5875, 4
    %v5878 = vshll.u32 %v5777, 16
    %v5880 = vrot.slane %v5878, 5
    %v5881 = vsel %vm575, %v5876, %v5880
    %v5883 = vshrl.u32 %v5778, 16
    %v5885 = vrot.slane %v5883, 4
    %v5886 = vshll.u32 %v5778, 16
    %v5888 = vrot.slane %v5886, 5
    %v5889 = vor.u32 %v5885, %v5888
    %v5890 = vrot.slane %v5889, 4
    %v5892 = vshll.u32 %v5779, 16
    %v5894 = vrot.slane %v5892, 5
    %v5895 = vsel %vm575, %v5890, %v5894
    %v5897 = vshrl.u32 %v5780, 16
    %v5899 = vrot.slane %v5897, 4
    %v5900 = vshll.u32 %v5780, 16
    %v5902 = vrot.slane %v5900, 5
    %v5903 = vor.u32 %v5899, %v5902
    %v5904 = vrot.slane %v5903, 4
    %v5906 = vshll.u32 %v5781, 16
    %v5908 = vrot.slane %v5906, 5
    %v5909 = vsel %vm575, %v5904, %v5908
    %v5911 = vshrl.u32 %v5782, 16
    %v5913 = vrot.slane %v5911, 4
    %v5914 = vshll.u32 %v5782, 16
    %v5916 = vrot.slane %v5914, 5
    %v5917 = vor.u32 %v5913, %v5916
    %v5918 = vrot.slane %v5917, 4
    %v5920 = vshll.u32 %v5783, 16
    %v5922 = vrot.slane %v5920, 5
    %v5923 = vsel %vm575, %v5918, %v5922
    %v5925 = vshrl.u32 %v5784, 16
    %v5927 = vrot.slane %v5925, 4
    %v5928 = vshll.u32 %v5784, 16
    %v5930 = vrot.slane %v5928, 5
    %v5931 = vor.u32 %v5927, %v5930
    %v5932 = vrot.slane %v5931, 4
    %v5934 = vshll.u32 %v5785, 16
    %v5936 = vrot.slane %v5934, 5
    %v5937 = vsel %vm575, %v5932, %v5936
    %v5939 = vshrl.u32 %v5786, 16
    %v5941 = vrot.slane %v5939, 4
    %v5942 = vshll.u32 %v5786, 16
    %v5944 = vrot.slane %v5942, 5
    %v5945 = vor.u32 %v5941, %v5944
    %v5946 = vrot.slane %v5945, 4
    %v5948 = vshll.u32 %v5787, 16
    %v5950 = vrot.slane %v5948, 5
    %v5951 = vsel %vm575, %v5946, %v5950
    %v5953 = vshrl.u32 %v5788, 16
    %v5955 = vrot.slane %v5953, 4
    %v5956 = vshll.u32 %v5788, 16
    %v5958 = vrot.slane %v5956, 5
    %v5959 = vor.u32 %v5955, %v5958
    %v5960 = vrot.slane %v5959, 4
    %v5962 = vshll.u32 %v5789, 16
    %v5964 = vrot.slane %v5962, 5
    %v5965 = vsel %vm575, %v5960, %v5964
    %v5967 = vshrl.u32 %v5790, 16
    %v5969 = vrot.slane %v5967, 4
    %v5970 = vshll.u32 %v5790, 16
    %v5972 = vrot.slane %v5970, 5
    %v5973 = vor.u32 %v5969, %v5972
    %v5974 = vrot.slane %v5973, 4
    %v5976 = vshll.u32 %v5791, 16
    %v5978 = vrot.slane %v5976, 5
    %v5979 = vsel %vm575, %v5974, %v5978
    %v5981 = vshrl.u32 %v5792, 16
    %v5983 = vrot.slane %v5981, 4
    %v5984 = vshll.u32 %v5792, 16
    %v5986 = vrot.slane %v5984, 5
    %v5987 = vor.u32 %v5983, %v5986
    %v5988 = vrot.slane %v5987, 4
    %v5990 = vshll.u32 %v5793, 16
    %v5992 = vrot.slane %v5990, 5
    %v5993 = vsel %vm575, %v5988, %v5992
    %v5995 = vshrl.u32 %v5794, 16
    %v5997 = vrot.slane %v5995, 4
    %v5998 = vshll.u32 %v5794, 16
    %v6000 = vrot.slane %v5998, 5
    %v6001 = vor.u32 %v5997, %v6000
    %v6002 = vrot.slane %v6001, 4
    %v6004 = vshll.u32 %v5795, 16
    %v6006 = vrot.slane %v6004, 5
    %v6007 = vsel %vm575, %v6002, %v6006
    %v6009 = vshrl.u32 %v5796, 16
    %v6011 = vrot.slane %v6009, 4
    %v6012 = vshll.u32 %v5796, 16
    %v6014 = vrot.slane %v6012, 5
    %v6015 = vor.u32 %v6011, %v6014
    %v6016 = vrot.slane %v6015, 4
    %v6018 = vshll.u32 %v5797, 16
    %v6020 = vrot.slane %v6018, 5
    %v6021 = vsel %vm575, %v6016, %v6020
    %s6022 = scalar_lea.vmem [#allocation5], 256
    %v6023 = vld [vmem:[%s6022] sm:$0xf]
    %v6024 = vld [vmem:[%s6022 + $0x4] sm:$0xf]
    %v6025 = vld [vmem:[%s6022 + $0x8] sm:$0xf]
    %v6026 = vld [vmem:[%s6022 + $0xc] sm:$0xf]
    %v6027 = vunpack.c.l.b16 %v5811
    %v6028 = vunpack.c.l.b16 %v5825
    %v6029 = vunpack.c.l.b16 %v5839
    %v6030 = vunpack.c.l.b16 %v5853
    %v6031 = vunpack.c.l.b16 %v5867
    %v6032 = vunpack.c.l.b16 %v5881
    %v6033 = vunpack.c.l.b16 %v5895
    %v6034 = vunpack.c.l.b16 %v5909
    %v6035 = vunpack.c.l.b16 %v5923
    %v6036 = vunpack.c.l.b16 %v5937
    %v6037 = vunpack.c.l.b16 %v5951
    %v6038 = vunpack.c.l.b16 %v5965
    %v6039 = vunpack.c.l.b16 %v5979
    %v6040 = vunpack.c.l.b16 %v5993
    %v6041 = vunpack.c.l.b16 %v6007
    %v6042 = vunpack.c.l.b16 %v6021
    %v6043 = vpack.c.b16 %v6028, %v6027
    %v6044 = vpack.c.b16 %v6030, %v6029
    %v6045 = vpack.c.b16 %v6032, %v6031
    %v6046 = vpack.c.b16 %v6034, %v6033
    %v6047 = vpack.c.b16 %v6036, %v6035
    %v6048 = vpack.c.b16 %v6038, %v6037
    %v6049 = vpack.c.b16 %v6040, %v6039
    %v6050 = vpack.c.b16 %v6042, %v6041
    %v6055 = vunpack.c.l.b16 %v6023
    %v6056 = vunpack.c.l.b16 %v6024
    %v6057 = vunpack.c.l.b16 %v6025
    %v6058 = vunpack.c.l.b16 %v6026
    %v6059 = vpack.c.b16 %v6056, %v6055
    %v6060 = vpack.c.b16 %v6058, %v6057
    %v6064 = vsel %vm841, %v6043, 0
    %v6067 = vsel %vm841, %v6044, 0
    %v6070 = vsel %vm841, %v6045, 0
    %v6073 = vsel %vm841, %v6046, 0
    %v6076 = vsel %vm841, %v6047, 0
    %v6079 = vsel %vm841, %v6048, 0
    %v6082 = vsel %vm841, %v6049, 0
    %v6085 = vsel %vm841, %v6050, 0
    %6087 = vmatprep.subr.bf16.mxu0 0
    %6088 = vmatpush1.bf16.msra.mxu0 0
    %6089 = vmatprep.subr.bf16.mxu0 0
    %6090 = vmatpush1.bf16.msra.mxu0 0
    %6091 = vmatprep.subr.bf16.mxu0 0
    %6092 = vmatpush1.bf16.msra.mxu0 0
    %6093 = vmatprep.subr.bf16.mxu0 0
    %6094 = vmatpush1.bf16.msra.mxu0 0
    %6095 = vmatprep.subr.bf16.mxu0 0
    %6096 = vmatpush1.bf16.msra.mxu0 0
    %6097 = vmatprep.subr.bf16.mxu0 0
    %6098 = vmatpush1.bf16.msra.mxu0 0
    %6099 = vmatprep.subr.bf16.mxu0 0
    %6100 = vmatpush1.bf16.msra.mxu0 %v6060
    %6101 = vmatprep.subr.bf16.mxu0 0
    %6102 = vmatpush1.bf16.msra.mxu0 %v6059
    %6103 = vmatprep.subr.bf16.mxu0 0
    %6104 = vmatpush2.bf16.msra.mxu0 0
    %6105 = vmatprep.subr.bf16.mxu0 0
    %6106 = vmatpush2.bf16.msra.mxu0 0
    %6107 = vmatprep.subr.bf16.mxu0 0
    %6108 = vmatpush2.bf16.msra.mxu0 0
    %6109 = vmatprep.subr.bf16.mxu0 0
    %6110 = vmatpush2.bf16.msra.mxu0 0
    %6111 = vmatprep.subr.bf16.mxu0 0
    %6112 = vmatpush2.bf16.msra.mxu0 0
    %6113 = vmatprep.subr.bf16.mxu0 0
    %6114 = vmatpush2.bf16.msra.mxu0 0
    %6115 = vmatprep.subr.bf16.mxu0 0
    %6116 = vmatpush2.bf16.msra.mxu0 0
    %6117 = vmatprep.subr.bf16.mxu0 0
    %6118 = vmatpush2.bf16.msra.mxu0 0
    %6119 = vmatprep.mubr.bf16.mxu0 0
    %6120 = vmatmul.mubr.bf16.gmra.mxu0 %v6064
    %v6121 = vpop.f32.mrf.mxu0
    %v6122 = vadd.f32 0.0, %v6121
    %v6123 = vpop.f32.mrf.mxu0
    %v6124 = vpop.f32.mrf.mxu0
    %v6125 = vadd.f32 0.0, %v6124
    %v6126 = vpop.f32.mrf.mxu0
    %6127 = vmatprep.mubr.bf16.mxu0 0
    %6128 = vmatmul.mubr.bf16.gmra.mxu0 %v6067
    %v6129 = vpop.f32.mrf.mxu0
    %v6130 = vadd.f32 0.0, %v6129
    %v6131 = vpop.f32.mrf.mxu0
    %v6132 = vpop.f32.mrf.mxu0
    %v6133 = vadd.f32 0.0, %v6132
    %v6134 = vpop.f32.mrf.mxu0
    %6135 = vmatprep.mubr.bf16.mxu0 0
    %6136 = vmatmul.mubr.bf16.gmra.mxu0 %v6070
    %v6137 = vpop.f32.mrf.mxu0
    %v6138 = vadd.f32 0.0, %v6137
    %v6139 = vpop.f32.mrf.mxu0
    %v6140 = vpop.f32.mrf.mxu0
    %v6141 = vadd.f32 0.0, %v6140
    %v6142 = vpop.f32.mrf.mxu0
    %6143 = vmatprep.mubr.bf16.mxu0 0
    %6144 = vmatmul.mubr.bf16.gmra.mxu0 %v6073
    %v6145 = vpop.f32.mrf.mxu0
    %v6146 = vadd.f32 0.0, %v6145
    %v6147 = vpop.f32.mrf.mxu0
    %v6148 = vpop.f32.mrf.mxu0
    %v6149 = vadd.f32 0.0, %v6148
    %v6150 = vpop.f32.mrf.mxu0
    %6151 = vmatprep.mubr.bf16.mxu0 0
    %6152 = vmatmul.mubr.bf16.gmra.mxu0 %v6076
    %v6153 = vpop.f32.mrf.mxu0
    %v6154 = vadd.f32 0.0, %v6153
    %v6155 = vpop.f32.mrf.mxu0
    %v6156 = vpop.f32.mrf.mxu0
    %v6157 = vadd.f32 0.0, %v6156
    %v6158 = vpop.f32.mrf.mxu0
    %6159 = vmatprep.mubr.bf16.mxu0 0
    %6160 = vmatmul.mubr.bf16.gmra.mxu0 %v6079
    %v6161 = vpop.f32.mrf.mxu0
    %v6162 = vadd.f32 0.0, %v6161
    %v6163 = vpop.f32.mrf.mxu0
    %v6164 = vpop.f32.mrf.mxu0
    %v6165 = vadd.f32 0.0, %v6164
    %v6166 = vpop.f32.mrf.mxu0
    %6167 = vmatprep.mubr.bf16.mxu0 0
    %6168 = vmatmul.mubr.bf16.gmra.mxu0 %v6082
    %v6169 = vpop.f32.mrf.mxu0
    %v6170 = vadd.f32 0.0, %v6169
    %v6171 = vpop.f32.mrf.mxu0
    %v6172 = vpop.f32.mrf.mxu0
    %v6173 = vadd.f32 0.0, %v6172
    %v6174 = vpop.f32.mrf.mxu0
    %6175 = vmatprep.mubr.bf16.mxu0 0
    %6176 = vmatmul.mubr.bf16.gmra.mxu0 %v6085
    %v6177 = vpop.f32.mrf.mxu0
    %v6178 = vadd.f32 0.0, %v6177
    %v6179 = vpop.f32.mrf.mxu0
    %v6180 = vpop.f32.mrf.mxu0
    %v6181 = vadd.f32 0.0, %v6180
    %v6182 = vpop.f32.mrf.mxu0
    %6183 = vdwg.mxu0
    %v6184 = vadd.f32 %v5750, %v6122
    %v6185 = vadd.f32 %v5751, %v6125
    %v6186 = vadd.f32 %v5752, %v6130
    %v6187 = vadd.f32 %v5753, %v6133
    %v6188 = vadd.f32 %v5754, %v6138
    %v6189 = vadd.f32 %v5755, %v6141
    %v6190 = vadd.f32 %v5756, %v6146
    %v6191 = vadd.f32 %v5757, %v6149
    %v6192 = vadd.f32 %v5758, %v6154
    %v6193 = vadd.f32 %v5759, %v6157
    %v6194 = vadd.f32 %v5760, %v6162
    %v6195 = vadd.f32 %v5761, %v6165
    %v6196 = vadd.f32 %v5762, %v6170
    %v6197 = vadd.f32 %v5763, %v6173
    %v6198 = vadd.f32 %v5764, %v6178
    %v6199 = vadd.f32 %v5765, %v6181
    %v6200 = vld [vmem:[%s2363] sm:$0xe]
    %v6201 = vld [vmem:[%s2363 + $0x8] sm:$0xe]
    %v6202 = vld [vmem:[%s2363 + $0x10] sm:$0xe]
    %v6203 = vld [vmem:[%s2363 + $0x18] sm:$0xe]
    %v6204 = vld [vmem:[%s2363 + $0x20] sm:$0xe]
    %v6205 = vld [vmem:[%s2363 + $0x28] sm:$0xe]
    %v6206 = vld [vmem:[%s2363 + $0x30] sm:$0xe]
    %v6207 = vld [vmem:[%s2363 + $0x38] sm:$0xe]
    %v6208 = vld [vmem:[%s2363 + $0x50] sm:$0xe]
    %v6209 = vld [vmem:[%s2363 + $0x58] sm:$0xe]
    %v6210 = vld [vmem:[%s2363 + $0x60] sm:$0xe]
    %v6211 = vld [vmem:[%s2363 + $0x68] sm:$0xe]
    %v6212 = vld [vmem:[%s2363 + $0x70] sm:$0xe]
    %v6213 = vld [vmem:[%s2363 + $0x78] sm:$0xe]
    %v6214 = vld [vmem:[%s2363 + $0x80] sm:$0xe]
    %v6215 = vld [vmem:[%s2363 + $0x88] sm:$0xe]
    %v6248 = vrot.slane %v6200, 5
    %v6249 = vrot.slane %v6248, 4
    %v6250 = vrot.slane %v5767, 5
    %v6251 = vsel %vm1186, %v6249, %v6250
    %v6252 = vrot.slane %v6201, 5
    %v6253 = vrot.slane %v6252, 4
    %v6254 = vrot.slane %v5769, 5
    %v6255 = vsel %vm1186, %v6253, %v6254
    %v6256 = vrot.slane %v6202, 5
    %v6257 = vrot.slane %v6256, 4
    %v6258 = vrot.slane %v5771, 5
    %v6259 = vsel %vm1186, %v6257, %v6258
    %v6260 = vrot.slane %v6203, 5
    %v6261 = vrot.slane %v6260, 4
    %v6262 = vrot.slane %v5773, 5
    %v6263 = vsel %vm1186, %v6261, %v6262
    %v6264 = vrot.slane %v6204, 5
    %v6265 = vrot.slane %v6264, 4
    %v6266 = vrot.slane %v5775, 5
    %v6267 = vsel %vm1186, %v6265, %v6266
    %v6268 = vrot.slane %v6205, 5
    %v6269 = vrot.slane %v6268, 4
    %v6270 = vrot.slane %v5777, 5
    %v6271 = vsel %vm1186, %v6269, %v6270
    %v6272 = vrot.slane %v6206, 5
    %v6273 = vrot.slane %v6272, 4
    %v6274 = vrot.slane %v5779, 5
    %v6275 = vsel %vm1186, %v6273, %v6274
    %v6276 = vrot.slane %v6207, 5
    %v6277 = vrot.slane %v6276, 4
    %v6278 = vrot.slane %v5781, 5
    %v6279 = vsel %vm1186, %v6277, %v6278
    %v6280 = vrot.slane %v6208, 5
    %v6281 = vrot.slane %v6280, 4
    %v6282 = vrot.slane %v5783, 5
    %v6283 = vsel %vm1186, %v6281, %v6282
    %v6284 = vrot.slane %v6209, 5
    %v6285 = vrot.slane %v6284, 4
    %v6286 = vrot.slane %v5785, 5
    %v6287 = vsel %vm1186, %v6285, %v6286
    %v6288 = vrot.slane %v6210, 5
    %v6289 = vrot.slane %v6288, 4
    %v6290 = vrot.slane %v5787, 5
    %v6291 = vsel %vm1186, %v6289, %v6290
    %v6292 = vrot.slane %v6211, 5
    %v6293 = vrot.slane %v6292, 4
    %v6294 = vrot.slane %v5789, 5
    %v6295 = vsel %vm1186, %v6293, %v6294
    %v6296 = vrot.slane %v6212, 5
    %v6297 = vrot.slane %v6296, 4
    %v6298 = vrot.slane %v5791, 5
    %v6299 = vsel %vm1186, %v6297, %v6298
    %v6300 = vrot.slane %v6213, 5
    %v6301 = vrot.slane %v6300, 4
    %v6302 = vrot.slane %v5793, 5
    %v6303 = vsel %vm1186, %v6301, %v6302
    %v6304 = vrot.slane %v6214, 5
    %v6305 = vrot.slane %v6304, 4
    %v6306 = vrot.slane %v5795, 5
    %v6307 = vsel %vm1186, %v6305, %v6306
    %v6308 = vrot.slane %v6215, 5
    %v6309 = vrot.slane %v6308, 4
    %v6310 = vrot.slane %v5797, 5
    %v6311 = vsel %vm1186, %v6309, %v6310
    %s6312 = scalar_lea.vmem [#allocation5], 272
    %v6313 = vld [vmem:[%s6312] sm:$0xf]
    %v6314 = vld [vmem:[%s6312 + $0x4] sm:$0xf]
    %v6315 = vld [vmem:[%s6312 + $0x8] sm:$0xf]
    %v6316 = vld [vmem:[%s6312 + $0xc] sm:$0xf]
    %v6317 = vunpack.c.l.b16 %v6251
    %v6318 = vunpack.c.l.b16 %v6255
    %v6319 = vunpack.c.l.b16 %v6259
    %v6320 = vunpack.c.l.b16 %v6263
    %v6321 = vunpack.c.l.b16 %v6267
    %v6322 = vunpack.c.l.b16 %v6271
    %v6323 = vunpack.c.l.b16 %v6275
    %v6324 = vunpack.c.l.b16 %v6279
    %v6325 = vunpack.c.l.b16 %v6283
    %v6326 = vunpack.c.l.b16 %v6287
    %v6327 = vunpack.c.l.b16 %v6291
    %v6328 = vunpack.c.l.b16 %v6295
    %v6329 = vunpack.c.l.b16 %v6299
    %v6330 = vunpack.c.l.b16 %v6303
    %v6331 = vunpack.c.l.b16 %v6307
    %v6332 = vunpack.c.l.b16 %v6311
    %v6333 = vpack.c.b16 %v6318, %v6317
    %v6334 = vpack.c.b16 %v6320, %v6319
    %v6335 = vpack.c.b16 %v6322, %v6321
    %v6336 = vpack.c.b16 %v6324, %v6323
    %v6337 = vpack.c.b16 %v6326, %v6325
    %v6338 = vpack.c.b16 %v6328, %v6327
    %v6339 = vpack.c.b16 %v6330, %v6329
    %v6340 = vpack.c.b16 %v6332, %v6331
    %v6345 = vunpack.c.l.b16 %v6313
    %v6346 = vunpack.c.l.b16 %v6314
    %v6347 = vunpack.c.l.b16 %v6315
    %v6348 = vunpack.c.l.b16 %v6316
    %v6349 = vpack.c.b16 %v6346, %v6345
    %v6350 = vpack.c.b16 %v6348, %v6347
    %v6354 = vsel %vm841, %v6333, 0
    %v6357 = vsel %vm841, %v6334, 0
    %v6360 = vsel %vm841, %v6335, 0
    %v6363 = vsel %vm841, %v6336, 0
    %v6366 = vsel %vm841, %v6337, 0
    %v6369 = vsel %vm841, %v6338, 0
    %v6372 = vsel %vm841, %v6339, 0
    %v6375 = vsel %vm841, %v6340, 0
    %6377 = vmatprep.subr.bf16.mxu0 0
    %6378 = vmatpush1.bf16.msra.mxu0 0
    %6379 = vmatprep.subr.bf16.mxu0 0
    %6380 = vmatpush1.bf16.msra.mxu0 0
    %6381 = vmatprep.subr.bf16.mxu0 0
    %6382 = vmatpush1.bf16.msra.mxu0 0
    %6383 = vmatprep.subr.bf16.mxu0 0
    %6384 = vmatpush1.bf16.msra.mxu0 0
    %6385 = vmatprep.subr.bf16.mxu0 0
    %6386 = vmatpush1.bf16.msra.mxu0 0
    %6387 = vmatprep.subr.bf16.mxu0 0
    %6388 = vmatpush1.bf16.msra.mxu0 0
    %6389 = vmatprep.subr.bf16.mxu0 0
    %6390 = vmatpush1.bf16.msra.mxu0 %v6350
    %6391 = vmatprep.subr.bf16.mxu0 0
    %6392 = vmatpush1.bf16.msra.mxu0 %v6349
    %6393 = vmatprep.subr.bf16.mxu0 0
    %6394 = vmatpush2.bf16.msra.mxu0 0
    %6395 = vmatprep.subr.bf16.mxu0 0
    %6396 = vmatpush2.bf16.msra.mxu0 0
    %6397 = vmatprep.subr.bf16.mxu0 0
    %6398 = vmatpush2.bf16.msra.mxu0 0
    %6399 = vmatprep.subr.bf16.mxu0 0
    %6400 = vmatpush2.bf16.msra.mxu0 0
    %6401 = vmatprep.subr.bf16.mxu0 0
    %6402 = vmatpush2.bf16.msra.mxu0 0
    %6403 = vmatprep.subr.bf16.mxu0 0
    %6404 = vmatpush2.bf16.msra.mxu0 0
    %6405 = vmatprep.subr.bf16.mxu0 0
    %6406 = vmatpush2.bf16.msra.mxu0 0
    %6407 = vmatprep.subr.bf16.mxu0 0
    %6408 = vmatpush2.bf16.msra.mxu0 0
    %6409 = vmatprep.mubr.bf16.mxu0 0
    %6410 = vmatmul.mubr.bf16.gmra.mxu0 %v6354
    %v6411 = vpop.f32.mrf.mxu0
    %v6412 = vadd.f32 0.0, %v6411
    %v6413 = vpop.f32.mrf.mxu0
    %v6414 = vpop.f32.mrf.mxu0
    %v6415 = vadd.f32 0.0, %v6414
    %v6416 = vpop.f32.mrf.mxu0
    %6417 = vmatprep.mubr.bf16.mxu0 0
    %6418 = vmatmul.mubr.bf16.gmra.mxu0 %v6357
    %v6419 = vpop.f32.mrf.mxu0
    %v6420 = vadd.f32 0.0, %v6419
    %v6421 = vpop.f32.mrf.mxu0
    %v6422 = vpop.f32.mrf.mxu0
    %v6423 = vadd.f32 0.0, %v6422
    %v6424 = vpop.f32.mrf.mxu0
    %6425 = vmatprep.mubr.bf16.mxu0 0
    %6426 = vmatmul.mubr.bf16.gmra.mxu0 %v6360
    %v6427 = vpop.f32.mrf.mxu0
    %v6428 = vadd.f32 0.0, %v6427
    %v6429 = vpop.f32.mrf.mxu0
    %v6430 = vpop.f32.mrf.mxu0
    %v6431 = vadd.f32 0.0, %v6430
    %v6432 = vpop.f32.mrf.mxu0
    %6433 = vmatprep.mubr.bf16.mxu0 0
    %6434 = vmatmul.mubr.bf16.gmra.mxu0 %v6363
    %v6435 = vpop.f32.mrf.mxu0
    %v6436 = vadd.f32 0.0, %v6435
    %v6437 = vpop.f32.mrf.mxu0
    %v6438 = vpop.f32.mrf.mxu0
    %v6439 = vadd.f32 0.0, %v6438
    %v6440 = vpop.f32.mrf.mxu0
    %6441 = vmatprep.mubr.bf16.mxu0 0
    %6442 = vmatmul.mubr.bf16.gmra.mxu0 %v6366
    %v6443 = vpop.f32.mrf.mxu0
    %v6444 = vadd.f32 0.0, %v6443
    %v6445 = vpop.f32.mrf.mxu0
    %v6446 = vpop.f32.mrf.mxu0
    %v6447 = vadd.f32 0.0, %v6446
    %v6448 = vpop.f32.mrf.mxu0
    %6449 = vmatprep.mubr.bf16.mxu0 0
    %6450 = vmatmul.mubr.bf16.gmra.mxu0 %v6369
    %v6451 = vpop.f32.mrf.mxu0
    %v6452 = vadd.f32 0.0, %v6451
    %v6453 = vpop.f32.mrf.mxu0
    %v6454 = vpop.f32.mrf.mxu0
    %v6455 = vadd.f32 0.0, %v6454
    %v6456 = vpop.f32.mrf.mxu0
    %6457 = vmatprep.mubr.bf16.mxu0 0
    %6458 = vmatmul.mubr.bf16.gmra.mxu0 %v6372
    %v6459 = vpop.f32.mrf.mxu0
    %v6460 = vadd.f32 0.0, %v6459
    %v6461 = vpop.f32.mrf.mxu0
    %v6462 = vpop.f32.mrf.mxu0
    %v6463 = vadd.f32 0.0, %v6462
    %v6464 = vpop.f32.mrf.mxu0
    %6465 = vmatprep.mubr.bf16.mxu0 0
    %6466 = vmatmul.mubr.bf16.gmra.mxu0 %v6375
    %v6467 = vpop.f32.mrf.mxu0
    %v6468 = vadd.f32 0.0, %v6467
    %v6469 = vpop.f32.mrf.mxu0
    %v6470 = vpop.f32.mrf.mxu0
    %v6471 = vadd.f32 0.0, %v6470
    %v6472 = vpop.f32.mrf.mxu0
    %6473 = vdwg.mxu0
    %v6474 = vadd.f32 %v6184, %v6412
    %v6475 = vadd.f32 %v6185, %v6415
    %v6476 = vadd.f32 %v6186, %v6420
    %v6477 = vadd.f32 %v6187, %v6423
    %v6478 = vadd.f32 %v6188, %v6428
    %v6479 = vadd.f32 %v6189, %v6431
    %v6480 = vadd.f32 %v6190, %v6436
    %v6481 = vadd.f32 %v6191, %v6439
    %v6482 = vadd.f32 %v6192, %v6444
    %v6483 = vadd.f32 %v6193, %v6447
    %v6484 = vadd.f32 %v6194, %v6452
    %v6485 = vadd.f32 %v6195, %v6455
    %v6486 = vadd.f32 %v6196, %v6460
    %v6487 = vadd.f32 %v6197, %v6463
    %v6488 = vadd.f32 %v6198, %v6468
    %v6489 = vadd.f32 %v6199, %v6471
    %s6490 = scalar_lea.vmem %s2, 1
    %v6491 = vld [vmem:[%s6490] sm:$0x1]
    %v6493 = vlaneseq
    %v6494 = vshrl.u32 %v6493, 7
    %v6495 = vsub.s32 0, %v6494
    %v6496 = vrot.slane %v6491, %v6495
    %v6498 = vadd.f32 %v6474, %v6496
    %v6499 = vadd.f32 %v6475, %v6496
    %v6500 = vadd.f32 %v6476, %v6496
    %v6501 = vadd.f32 %v6477, %v6496
    %v6502 = vadd.f32 %v6478, %v6496
    %v6503 = vadd.f32 %v6479, %v6496
    %v6504 = vadd.f32 %v6480, %v6496
    %v6505 = vadd.f32 %v6481, %v6496
    %v6506 = vadd.f32 %v6482, %v6496
    %v6507 = vadd.f32 %v6483, %v6496
    %v6508 = vadd.f32 %v6484, %v6496
    %v6509 = vadd.f32 %v6485, %v6496
    %v6510 = vadd.f32 %v6486, %v6496
    %v6511 = vadd.f32 %v6487, %v6496
    %v6512 = vadd.f32 %v6488, %v6496
    %v6513 = vadd.f32 %v6489, %v6496
    %v6514 = vsub.f32 0.0, %v6498
    %v6515 = vsub.f32 0.0, %v6499
    %v6516 = vsub.f32 0.0, %v6500
    %v6517 = vsub.f32 0.0, %v6501
    %v6518 = vsub.f32 0.0, %v6502
    %v6519 = vsub.f32 0.0, %v6503
    %v6520 = vsub.f32 0.0, %v6504
    %v6521 = vsub.f32 0.0, %v6505
    %v6522 = vsub.f32 0.0, %v6506
    %v6523 = vsub.f32 0.0, %v6507
    %v6524 = vsub.f32 0.0, %v6508
    %v6525 = vsub.f32 0.0, %v6509
    %v6526 = vsub.f32 0.0, %v6510
    %v6527 = vsub.f32 0.0, %v6511
    %v6528 = vsub.f32 0.0, %v6512
    %v6529 = vsub.f32 0.0, %v6513
    %v6530 = vmul.f32 %v6514, 1.442695
    %v6531 = vpow.pop %v6530
    %v6532 = vmul.f32 %v6515, 1.442695
    %v6533 = vpow.pop %v6532
    %v6534 = vmul.f32 %v6516, 1.442695
    %v6535 = vpow.pop %v6534
    %v6536 = vmul.f32 %v6517, 1.442695
    %v6537 = vpow.pop %v6536
    %v6538 = vmul.f32 %v6518, 1.442695
    %v6539 = vpow.pop %v6538
    %v6540 = vmul.f32 %v6519, 1.442695
    %v6541 = vpow.pop %v6540
    %v6542 = vmul.f32 %v6520, 1.442695
    %v6543 = vpow.pop %v6542
    %v6544 = vmul.f32 %v6521, 1.442695
    %v6545 = vpow.pop %v6544
    %v6546 = vmul.f32 %v6522, 1.442695
    %v6547 = vpow.pop %v6546
    %v6548 = vmul.f32 %v6523, 1.442695
    %v6549 = vpow.pop %v6548
    %v6550 = vmul.f32 %v6524, 1.442695
    %v6551 = vpow.pop %v6550
    %v6552 = vmul.f32 %v6525, 1.442695
    %v6553 = vpow.pop %v6552
    %v6554 = vmul.f32 %v6526, 1.442695
    %v6555 = vpow.pop %v6554
    %v6556 = vmul.f32 %v6527, 1.442695
    %v6557 = vpow.pop %v6556
    %v6558 = vmul.f32 %v6528, 1.442695
    %v6559 = vpow.pop %v6558
    %v6560 = vmul.f32 %v6529, 1.442695
    %v6561 = vpow.pop %v6560
    %v6562 = vadd.f32 %v6531, 1.0
    %v6563 = vadd.f32 %v6533, 1.0
    %v6564 = vadd.f32 %v6535, 1.0
    %v6565 = vadd.f32 %v6537, 1.0
    %v6566 = vadd.f32 %v6539, 1.0
    %v6567 = vadd.f32 %v6541, 1.0
    %v6568 = vadd.f32 %v6543, 1.0
    %v6569 = vadd.f32 %v6545, 1.0
    %v6570 = vadd.f32 %v6547, 1.0
    %v6571 = vadd.f32 %v6549, 1.0
    %v6572 = vadd.f32 %v6551, 1.0
    %v6573 = vadd.f32 %v6553, 1.0
    %v6574 = vadd.f32 %v6555, 1.0
    %v6575 = vadd.f32 %v6557, 1.0
    %v6576 = vadd.f32 %v6559, 1.0
    %v6577 = vadd.f32 %v6561, 1.0
    %v6578 = vrcp.pop %v6562
    %v6579 = vrcp.pop %v6563
    %v6580 = vrcp.pop %v6564
    %v6581 = vrcp.pop %v6565
    %v6582 = vrcp.pop %v6566
    %v6583 = vrcp.pop %v6567
    %v6584 = vrcp.pop %v6568
    %v6585 = vrcp.pop %v6569
    %v6586 = vrcp.pop %v6570
    %v6587 = vrcp.pop %v6571
    %v6588 = vrcp.pop %v6572
    %v6589 = vrcp.pop %v6573
    %v6590 = vrcp.pop %v6574
    %v6591 = vrcp.pop %v6575
    %v6592 = vrcp.pop %v6576
    %v6593 = vrcp.pop %v6577
    %v6594 = vmul.f32 %v6498, %v6578
    %v6595 = vmul.f32 %v6499, %v6579
    %v6596 = vmul.f32 %v6500, %v6580
    %v6597 = vmul.f32 %v6501, %v6581
    %v6598 = vmul.f32 %v6502, %v6582
    %v6599 = vmul.f32 %v6503, %v6583
    %v6600 = vmul.f32 %v6504, %v6584
    %v6601 = vmul.f32 %v6505, %v6585
    %v6602 = vmul.f32 %v6506, %v6586
    %v6603 = vmul.f32 %v6507, %v6587
    %v6604 = vmul.f32 %v6508, %v6588
    %v6605 = vmul.f32 %v6509, %v6589
    %v6606 = vmul.f32 %v6510, %v6590
    %v6607 = vmul.f32 %v6511, %v6591
    %v6608 = vmul.f32 %v6512, %v6592
    %v6609 = vmul.f32 %v6513, %v6593
    %v6610 = vpack.c.bf16 %v6594, %v6594
    %v6611 = vpack.c.bf16 %v6595, %v6595
    %v6612 = vpack.c.bf16 %v6596, %v6596
    %v6613 = vpack.c.bf16 %v6597, %v6597
    %v6614 = vpack.c.bf16 %v6598, %v6598
    %v6615 = vpack.c.bf16 %v6599, %v6599
    %v6616 = vpack.c.bf16 %v6600, %v6600
    %v6617 = vpack.c.bf16 %v6601, %v6601
    %v6618 = vpack.c.bf16 %v6602, %v6602
    %v6619 = vpack.c.bf16 %v6603, %v6603
    %v6620 = vpack.c.bf16 %v6604, %v6604
    %v6621 = vpack.c.bf16 %v6605, %v6605
    %v6622 = vpack.c.bf16 %v6606, %v6606
    %v6623 = vpack.c.bf16 %v6607, %v6607
    %v6624 = vpack.c.bf16 %v6608, %v6608
    %v6625 = vpack.c.bf16 %v6609, %v6609
    %v6642 = vunpack.c.l.b16 %v6610
    %v6643 = vunpack.c.l.b16 %v6611
    %v6644 = vunpack.c.l.b16 %v6612
    %v6645 = vunpack.c.l.b16 %v6613
    %v6646 = vunpack.c.l.b16 %v6614
    %v6647 = vunpack.c.l.b16 %v6615
    %v6648 = vunpack.c.l.b16 %v6616
    %v6649 = vunpack.c.l.b16 %v6617
    %v6650 = vunpack.c.l.b16 %v6618
    %v6651 = vunpack.c.l.b16 %v6619
    %v6652 = vunpack.c.l.b16 %v6620
    %v6653 = vunpack.c.l.b16 %v6621
    %v6654 = vunpack.c.l.b16 %v6622
    %v6655 = vunpack.c.l.b16 %v6623
    %v6656 = vunpack.c.l.b16 %v6624
    %v6657 = vunpack.c.l.b16 %v6625
    %v6658 = vpack.c.b16 %v6642, %v6642
    %v6659 = vpack.c.b16 %v6643, %v6643
    %v6660 = vpack.c.b16 %v6644, %v6644
    %v6661 = vpack.c.b16 %v6645, %v6645
    %v6662 = vpack.c.b16 %v6646, %v6646
    %v6663 = vpack.c.b16 %v6647, %v6647
    %v6664 = vpack.c.b16 %v6648, %v6648
    %v6665 = vpack.c.b16 %v6649, %v6649
    %v6666 = vpack.c.b16 %v6650, %v6650
    %v6667 = vpack.c.b16 %v6651, %v6651
    %v6668 = vpack.c.b16 %v6652, %v6652
    %v6669 = vpack.c.b16 %v6653, %v6653
    %v6670 = vpack.c.b16 %v6654, %v6654
    %v6671 = vpack.c.b16 %v6655, %v6655
    %v6672 = vpack.c.b16 %v6656, %v6656
    %v6673 = vpack.c.b16 %v6657, %v6657
    %v6675 = vshrl.u32 %v6658, 16
    %v6677 = vrot.slane %v6675, 7
    %v6678 = vshll.u32 %v6658, 16
    %v6680 = vor.u32 %v6677, %v6678
    %v6681 = vrot.slane %v6677, 4
    %v6683 = vshrl.u32 %v6659, 16
    %v6685 = vrot.slane %v6683, 7
    %v6686 = vshll.u32 %v6659, 16
    %v6688 = vor.u32 %v6685, %v6686
    %v6689 = vrot.slane %v6685, 4
    %v6691 = vshrl.u32 %v6660, 16
    %v6693 = vrot.slane %v6691, 7
    %v6694 = vshll.u32 %v6660, 16
    %v6696 = vor.u32 %v6693, %v6694
    %v6697 = vrot.slane %v6693, 4
    %v6699 = vshrl.u32 %v6661, 16
    %v6701 = vrot.slane %v6699, 7
    %v6702 = vshll.u32 %v6661, 16
    %v6704 = vor.u32 %v6701, %v6702
    %v6705 = vrot.slane %v6701, 4
    %v6707 = vshrl.u32 %v6662, 16
    %v6709 = vrot.slane %v6707, 7
    %v6710 = vshll.u32 %v6662, 16
    %v6712 = vor.u32 %v6709, %v6710
    %v6713 = vrot.slane %v6709, 4
    %v6715 = vshrl.u32 %v6663, 16
    %v6717 = vrot.slane %v6715, 7
    %v6718 = vshll.u32 %v6663, 16
    %v6720 = vor.u32 %v6717, %v6718
    %v6721 = vrot.slane %v6717, 4
    %v6723 = vshrl.u32 %v6664, 16
    %v6725 = vrot.slane %v6723, 7
    %v6726 = vshll.u32 %v6664, 16
    %v6728 = vor.u32 %v6725, %v6726
    %v6729 = vrot.slane %v6725, 4
    %v6731 = vshrl.u32 %v6665, 16
    %v6733 = vrot.slane %v6731, 7
    %v6734 = vshll.u32 %v6665, 16
    %v6736 = vor.u32 %v6733, %v6734
    %v6737 = vrot.slane %v6733, 4
    %v6739 = vshrl.u32 %v6666, 16
    %v6741 = vrot.slane %v6739, 7
    %v6742 = vshll.u32 %v6666, 16
    %v6744 = vor.u32 %v6741, %v6742
    %v6745 = vrot.slane %v6741, 4
    %v6747 = vshrl.u32 %v6667, 16
    %v6749 = vrot.slane %v6747, 7
    %v6750 = vshll.u32 %v6667, 16
    %v6752 = vor.u32 %v6749, %v6750
    %v6753 = vrot.slane %v6749, 4
    %v6755 = vshrl.u32 %v6668, 16
    %v6757 = vrot.slane %v6755, 7
    %v6758 = vshll.u32 %v6668, 16
    %v6760 = vor.u32 %v6757, %v6758
    %v6761 = vrot.slane %v6757, 4
    %v6763 = vshrl.u32 %v6669, 16
    %v6765 = vrot.slane %v6763, 7
    %v6766 = vshll.u32 %v6669, 16
    %v6768 = vor.u32 %v6765, %v6766
    %v6769 = vrot.slane %v6765, 4
    %v6771 = vshrl.u32 %v6670, 16
    %v6773 = vrot.slane %v6771, 7
    %v6774 = vshll.u32 %v6670, 16
    %v6776 = vor.u32 %v6773, %v6774
    %v6777 = vrot.slane %v6773, 4
    %v6779 = vshrl.u32 %v6671, 16
    %v6781 = vrot.slane %v6779, 7
    %v6782 = vshll.u32 %v6671, 16
    %v6784 = vor.u32 %v6781, %v6782
    %v6785 = vrot.slane %v6781, 4
    %v6787 = vshrl.u32 %v6672, 16
    %v6789 = vrot.slane %v6787, 7
    %v6790 = vshll.u32 %v6672, 16
    %v6792 = vor.u32 %v6789, %v6790
    %v6793 = vrot.slane %v6789, 4
    %v6795 = vshrl.u32 %v6673, 16
    %v6797 = vrot.slane %v6795, 7
    %v6798 = vshll.u32 %v6673, 16
    %v6800 = vor.u32 %v6797, %v6798
    %v6801 = vrot.slane %v6797, 4
    %v6834 = vsel %vm440, %v6680, %v4832
    %6835 = vst [vmem:[%s438] sm:$0xf] %v6834
    %v6836 = vld [vmem:[%s438 + $0x4] sm:$0x1]
    %v6837 = vsel %vm75, %v6681, %v6836
    %6838 = vst [vmem:[%s438 + $0x4] sm:$0x1] %v6837
    %v6839 = vld [vmem:[%s438 + $0x8] sm:$0xf]
    %v6840 = vsel %vm440, %v6688, %v6839
    %6841 = vst [vmem:[%s438 + $0x8] sm:$0xf] %v6840
    %v6842 = vld [vmem:[%s438 + $0xc] sm:$0x1]
    %v6843 = vsel %vm75, %v6689, %v6842
    %6844 = vst [vmem:[%s438 + $0xc] sm:$0x1] %v6843
    %v6845 = vld [vmem:[%s438 + $0x10] sm:$0xf]
    %v6846 = vsel %vm440, %v6696, %v6845
    %6847 = vst [vmem:[%s438 + $0x10] sm:$0xf] %v6846
    %v6848 = vld [vmem:[%s438 + $0x14] sm:$0x1]
    %v6849 = vsel %vm75, %v6697, %v6848
    %6850 = vst [vmem:[%s438 + $0x14] sm:$0x1] %v6849
    %v6851 = vld [vmem:[%s438 + $0x18] sm:$0xf]
    %v6852 = vsel %vm440, %v6704, %v6851
    %6853 = vst [vmem:[%s438 + $0x18] sm:$0xf] %v6852
    %v6854 = vld [vmem:[%s438 + $0x1c] sm:$0x1]
    %v6855 = vsel %vm75, %v6705, %v6854
    %6856 = vst [vmem:[%s438 + $0x1c] sm:$0x1] %v6855
    %v6857 = vld [vmem:[%s438 + $0x20] sm:$0xf]
    %v6858 = vsel %vm440, %v6712, %v6857
    %6859 = vst [vmem:[%s438 + $0x20] sm:$0xf] %v6858
    %v6860 = vld [vmem:[%s438 + $0x24] sm:$0x1]
    %v6861 = vsel %vm75, %v6713, %v6860
    %6862 = vst [vmem:[%s438 + $0x24] sm:$0x1] %v6861
    %v6863 = vld [vmem:[%s438 + $0x28] sm:$0xf]
    %v6864 = vsel %vm440, %v6720, %v6863
    %6865 = vst [vmem:[%s438 + $0x28] sm:$0xf] %v6864
    %v6866 = vld [vmem:[%s438 + $0x2c] sm:$0x1]
    %v6867 = vsel %vm75, %v6721, %v6866
    %6868 = vst [vmem:[%s438 + $0x2c] sm:$0x1] %v6867
    %v6869 = vld [vmem:[%s438 + $0x30] sm:$0xf]
    %v6870 = vsel %vm440, %v6728, %v6869
    %6871 = vst [vmem:[%s438 + $0x30] sm:$0xf] %v6870
    %v6872 = vld [vmem:[%s438 + $0x34] sm:$0x1]
    %v6873 = vsel %vm75, %v6729, %v6872
    %6874 = vst [vmem:[%s438 + $0x34] sm:$0x1] %v6873
    %v6875 = vld [vmem:[%s438 + $0x38] sm:$0xf]
    %v6876 = vsel %vm440, %v6736, %v6875
    %6877 = vst [vmem:[%s438 + $0x38] sm:$0xf] %v6876
    %v6878 = vld [vmem:[%s438 + $0x3c] sm:$0x1]
    %v6879 = vsel %vm75, %v6737, %v6878
    %6880 = vst [vmem:[%s438 + $0x3c] sm:$0x1] %v6879
    %v6881 = vld [vmem:[%s438 + $0x50] sm:$0xf]
    %v6882 = vsel %vm440, %v6744, %v6881
    %6883 = vst [vmem:[%s438 + $0x50] sm:$0xf] %v6882
    %v6884 = vld [vmem:[%s438 + $0x54] sm:$0x1]
    %v6885 = vsel %vm75, %v6745, %v6884
    %6886 = vst [vmem:[%s438 + $0x54] sm:$0x1] %v6885
    %v6887 = vld [vmem:[%s438 + $0x58] sm:$0xf]
    %v6888 = vsel %vm440, %v6752, %v6887
    %6889 = vst [vmem:[%s438 + $0x58] sm:$0xf] %v6888
    %v6890 = vld [vmem:[%s438 + $0x5c] sm:$0x1]
    %v6891 = vsel %vm75, %v6753, %v6890
    %6892 = vst [vmem:[%s438 + $0x5c] sm:$0x1] %v6891
    %v6893 = vld [vmem:[%s438 + $0x60] sm:$0xf]
    %v6894 = vsel %vm440, %v6760, %v6893
    %6895 = vst [vmem:[%s438 + $0x60] sm:$0xf] %v6894
    %v6896 = vld [vmem:[%s438 + $0x64] sm:$0x1]
    %v6897 = vsel %vm75, %v6761, %v6896
    %6898 = vst [vmem:[%s438 + $0x64] sm:$0x1] %v6897
    %v6899 = vld [vmem:[%s438 + $0x68] sm:$0xf]
    %v6900 = vsel %vm440, %v6768, %v6899
    %6901 = vst [vmem:[%s438 + $0x68] sm:$0xf] %v6900
    %v6902 = vld [vmem:[%s438 + $0x6c] sm:$0x1]
    %v6903 = vsel %vm75, %v6769, %v6902
    %6904 = vst [vmem:[%s438 + $0x6c] sm:$0x1] %v6903
    %v6905 = vld [vmem:[%s438 + $0x70] sm:$0xf]
    %v6906 = vsel %vm440, %v6776, %v6905
    %6907 = vst [vmem:[%s438 + $0x70] sm:$0xf] %v6906
    %v6908 = vld [vmem:[%s438 + $0x74] sm:$0x1]
    %v6909 = vsel %vm75, %v6777, %v6908
    %6910 = vst [vmem:[%s438 + $0x74] sm:$0x1] %v6909
    %v6911 = vld [vmem:[%s438 + $0x78] sm:$0xf]
    %v6912 = vsel %vm440, %v6784, %v6911
    %6913 = vst [vmem:[%s438 + $0x78] sm:$0xf] %v6912
    %v6914 = vld [vmem:[%s438 + $0x7c] sm:$0x1]
    %v6915 = vsel %vm75, %v6785, %v6914
    %6916 = vst [vmem:[%s438 + $0x7c] sm:$0x1] %v6915
    %v6917 = vld [vmem:[%s438 + $0x80] sm:$0xf]
    %v6918 = vsel %vm440, %v6792, %v6917
    %6919 = vst [vmem:[%s438 + $0x80] sm:$0xf] %v6918
    %v6920 = vld [vmem:[%s438 + $0x84] sm:$0x1]
    %v6921 = vsel %vm75, %v6793, %v6920
    %6922 = vst [vmem:[%s438 + $0x84] sm:$0x1] %v6921
    %v6923 = vld [vmem:[%s438 + $0x88] sm:$0xf]
    %v6924 = vsel %vm440, %v6800, %v6923
    %6925 = vst [vmem:[%s438 + $0x88] sm:$0xf] %v6924
    %v6926 = vld [vmem:[%s438 + $0x8c] sm:$0x1]
    %v6927 = vsel %vm75, %v6801, %v6926
    %6928 = vst [vmem:[%s438 + $0x8c] sm:$0x1] %v6927
    %v6929 = vld [vmem:[#allocation2] sm:$0xf]
    %v6930 = vld [vmem:[#allocation2 + $0x8] sm:$0xf]
    %v6931 = vld [vmem:[#allocation2 + $0x10] sm:$0xf]
    %v6932 = vld [vmem:[#allocation2 + $0x18] sm:$0xf]
    %v6933 = vld [vmem:[#allocation2 + $0x20] sm:$0xf]
    %v6934 = vld [vmem:[#allocation2 + $0x28] sm:$0xf]
    %v6935 = vld [vmem:[#allocation2 + $0x30] sm:$0xf]
    %v6936 = vld [vmem:[#allocation2 + $0x38] sm:$0xf]
    %v6937 = vld [vmem:[#allocation2 + $0x50] sm:$0xf]
    %v6938 = vld [vmem:[#allocation2 + $0x58] sm:$0xf]
    %v6939 = vld [vmem:[#allocation2 + $0x60] sm:$0xf]
    %v6940 = vld [vmem:[#allocation2 + $0x68] sm:$0xf]
    %v6941 = vld [vmem:[#allocation2 + $0x70] sm:$0xf]
    %v6942 = vld [vmem:[#allocation2 + $0x78] sm:$0xf]
    %v6943 = vld [vmem:[#allocation2 + $0x80] sm:$0xf]
    %v6944 = vld [vmem:[#allocation2 + $0x88] sm:$0xf]
    %v6945 = vld [vmem:[#allocation7] sm:$0xf]
    %v6946 = vld [vmem:[#allocation7 + $0x4] sm:$0xf]
    %v6947 = vld [vmem:[#allocation7 + $0x8] sm:$0xf]
    %v6948 = vld [vmem:[#allocation7 + $0xc] sm:$0xf]
    %v6949 = vld [vmem:[#allocation2 + $0x4] sm:$0x1]
    %v6950 = vld [vmem:[#allocation2 + $0xc] sm:$0x1]
    %v6951 = vld [vmem:[#allocation2 + $0x14] sm:$0x1]
    %v6952 = vld [vmem:[#allocation2 + $0x1c] sm:$0x1]
    %v6953 = vld [vmem:[#allocation2 + $0x24] sm:$0x1]
    %v6954 = vld [vmem:[#allocation2 + $0x2c] sm:$0x1]
    %v6955 = vld [vmem:[#allocation2 + $0x34] sm:$0x1]
    %v6956 = vld [vmem:[#allocation2 + $0x3c] sm:$0x1]
    %v6957 = vld [vmem:[#allocation2 + $0x54] sm:$0x1]
    %v6958 = vld [vmem:[#allocation2 + $0x5c] sm:$0x1]
    %v6959 = vld [vmem:[#allocation2 + $0x64] sm:$0x1]
    %v6960 = vld [vmem:[#allocation2 + $0x6c] sm:$0x1]
    %v6961 = vld [vmem:[#allocation2 + $0x74] sm:$0x1]
    %v6962 = vld [vmem:[#allocation2 + $0x7c] sm:$0x1]
    %v6963 = vld [vmem:[#allocation2 + $0x84] sm:$0x1]
    %v6964 = vld [vmem:[#allocation2 + $0x8c] sm:$0x1]
    %v6966 = vshrl.u32 %v6929, 16
    %v6968 = vrot.slane %v6966, 4
    %v6969 = vshll.u32 %v6929, 16
    %v6971 = vrot.slane %v6969, 5
    %v6972 = vor.u32 %v6968, %v6971
    %v6973 = vrot.slane %v6972, 4
    %v6975 = vshll.u32 %v6949, 16
    %v6977 = vrot.slane %v6975, 5
    %v6978 = vsel %vm575, %v6973, %v6977
    %v6980 = vshrl.u32 %v6930, 16
    %v6982 = vrot.slane %v6980, 4
    %v6983 = vshll.u32 %v6930, 16
    %v6985 = vrot.slane %v6983, 5
    %v6986 = vor.u32 %v6982, %v6985
    %v6987 = vrot.slane %v6986, 4
    %v6989 = vshll.u32 %v6950, 16
    %v6991 = vrot.slane %v6989, 5
    %v6992 = vsel %vm575, %v6987, %v6991
    %v6994 = vshrl.u32 %v6931, 16
    %v6996 = vrot.slane %v6994, 4
    %v6997 = vshll.u32 %v6931, 16
    %v6999 = vrot.slane %v6997, 5
    %v7000 = vor.u32 %v6996, %v6999
    %v7001 = vrot.slane %v7000, 4
    %v7003 = vshll.u32 %v6951, 16
    %v7005 = vrot.slane %v7003, 5
    %v7006 = vsel %vm575, %v7001, %v7005
    %v7008 = vshrl.u32 %v6932, 16
    %v7010 = vrot.slane %v7008, 4
    %v7011 = vshll.u32 %v6932, 16
    %v7013 = vrot.slane %v7011, 5
    %v7014 = vor.u32 %v7010, %v7013
    %v7015 = vrot.slane %v7014, 4
    %v7017 = vshll.u32 %v6952, 16
    %v7019 = vrot.slane %v7017, 5
    %v7020 = vsel %vm575, %v7015, %v7019
    %v7022 = vshrl.u32 %v6933, 16
    %v7024 = vrot.slane %v7022, 4
    %v7025 = vshll.u32 %v6933, 16
    %v7027 = vrot.slane %v7025, 5
    %v7028 = vor.u32 %v7024, %v7027
    %v7029 = vrot.slane %v7028, 4
    %v7031 = vshll.u32 %v6953, 16
    %v7033 = vrot.slane %v7031, 5
    %v7034 = vsel %vm575, %v7029, %v7033
    %v7036 = vshrl.u32 %v6934, 16
    %v7038 = vrot.slane %v7036, 4
    %v7039 = vshll.u32 %v6934, 16
    %v7041 = vrot.slane %v7039, 5
    %v7042 = vor.u32 %v7038, %v7041
    %v7043 = vrot.slane %v7042, 4
    %v7045 = vshll.u32 %v6954, 16
    %v7047 = vrot.slane %v7045, 5
    %v7048 = vsel %vm575, %v7043, %v7047
    %v7050 = vshrl.u32 %v6935, 16
    %v7052 = vrot.slane %v7050, 4
    %v7053 = vshll.u32 %v6935, 16
    %v7055 = vrot.slane %v7053, 5
    %v7056 = vor.u32 %v7052, %v7055
    %v7057 = vrot.slane %v7056, 4
    %v7059 = vshll.u32 %v6955, 16
    %v7061 = vrot.slane %v7059, 5
    %v7062 = vsel %vm575, %v7057, %v7061
    %v7064 = vshrl.u32 %v6936, 16
    %v7066 = vrot.slane %v7064, 4
    %v7067 = vshll.u32 %v6936, 16
    %v7069 = vrot.slane %v7067, 5
    %v7070 = vor.u32 %v7066, %v7069
    %v7071 = vrot.slane %v7070, 4
    %v7073 = vshll.u32 %v6956, 16
    %v7075 = vrot.slane %v7073, 5
    %v7076 = vsel %vm575, %v7071, %v7075
    %v7078 = vshrl.u32 %v6937, 16
    %v7080 = vrot.slane %v7078, 4
    %v7081 = vshll.u32 %v6937, 16
    %v7083 = vrot.slane %v7081, 5
    %v7084 = vor.u32 %v7080, %v7083
    %v7085 = vrot.slane %v7084, 4
    %v7087 = vshll.u32 %v6957, 16
    %v7089 = vrot.slane %v7087, 5
    %v7090 = vsel %vm575, %v7085, %v7089
    %v7092 = vshrl.u32 %v6938, 16
    %v7094 = vrot.slane %v7092, 4
    %v7095 = vshll.u32 %v6938, 16
    %v7097 = vrot.slane %v7095, 5
    %v7098 = vor.u32 %v7094, %v7097
    %v7099 = vrot.slane %v7098, 4
    %v7101 = vshll.u32 %v6958, 16
    %v7103 = vrot.slane %v7101, 5
    %v7104 = vsel %vm575, %v7099, %v7103
    %v7106 = vshrl.u32 %v6939, 16
    %v7108 = vrot.slane %v7106, 4
    %v7109 = vshll.u32 %v6939, 16
    %v7111 = vrot.slane %v7109, 5
    %v7112 = vor.u32 %v7108, %v7111
    %v7113 = vrot.slane %v7112, 4
    %v7115 = vshll.u32 %v6959, 16
    %v7117 = vrot.slane %v7115, 5
    %v7118 = vsel %vm575, %v7113, %v7117
    %v7120 = vshrl.u32 %v6940, 16
    %v7122 = vrot.slane %v7120, 4
    %v7123 = vshll.u32 %v6940, 16
    %v7125 = vrot.slane %v7123, 5
    %v7126 = vor.u32 %v7122, %v7125
    %v7127 = vrot.slane %v7126, 4
    %v7129 = vshll.u32 %v6960, 16
    %v7131 = vrot.slane %v7129, 5
    %v7132 = vsel %vm575, %v7127, %v7131
    %v7134 = vshrl.u32 %v6941, 16
    %v7136 = vrot.slane %v7134, 4
    %v7137 = vshll.u32 %v6941, 16
    %v7139 = vrot.slane %v7137, 5
    %v7140 = vor.u32 %v7136, %v7139
    %v7141 = vrot.slane %v7140, 4
    %v7143 = vshll.u32 %v6961, 16
    %v7145 = vrot.slane %v7143, 5
    %v7146 = vsel %vm575, %v7141, %v7145
    %v7148 = vshrl.u32 %v6942, 16
    %v7150 = vrot.slane %v7148, 4
    %v7151 = vshll.u32 %v6942, 16
    %v7153 = vrot.slane %v7151, 5
    %v7154 = vor.u32 %v7150, %v7153
    %v7155 = vrot.slane %v7154, 4
    %v7157 = vshll.u32 %v6962, 16
    %v7159 = vrot.slane %v7157, 5
    %v7160 = vsel %vm575, %v7155, %v7159
    %v7162 = vshrl.u32 %v6943, 16
    %v7164 = vrot.slane %v7162, 4
    %v7165 = vshll.u32 %v6943, 16
    %v7167 = vrot.slane %v7165, 5
    %v7168 = vor.u32 %v7164, %v7167
    %v7169 = vrot.slane %v7168, 4
    %v7171 = vshll.u32 %v6963, 16
    %v7173 = vrot.slane %v7171, 5
    %v7174 = vsel %vm575, %v7169, %v7173
    %v7176 = vshrl.u32 %v6944, 16
    %v7178 = vrot.slane %v7176, 4
    %v7179 = vshll.u32 %v6944, 16
    %v7181 = vrot.slane %v7179, 5
    %v7182 = vor.u32 %v7178, %v7181
    %v7183 = vrot.slane %v7182, 4
    %v7185 = vshll.u32 %v6964, 16
    %v7187 = vrot.slane %v7185, 5
    %v7188 = vsel %vm575, %v7183, %v7187
    %s7189 = scalar_lea.vmem [#allocation7], 16
    %v7190 = vld [vmem:[%s7189] sm:$0xf]
    %v7191 = vld [vmem:[%s7189 + $0x4] sm:$0xf]
    %v7192 = vld [vmem:[%s7189 + $0x8] sm:$0xf]
    %v7193 = vld [vmem:[%s7189 + $0xc] sm:$0xf]
    %v7194 = vunpack.c.l.b16 %v6978
    %v7195 = vunpack.c.l.b16 %v6992
    %v7196 = vunpack.c.l.b16 %v7006
    %v7197 = vunpack.c.l.b16 %v7020
    %v7198 = vunpack.c.l.b16 %v7034
    %v7199 = vunpack.c.l.b16 %v7048
    %v7200 = vunpack.c.l.b16 %v7062
    %v7201 = vunpack.c.l.b16 %v7076
    %v7202 = vunpack.c.l.b16 %v7090
    %v7203 = vunpack.c.l.b16 %v7104
    %v7204 = vunpack.c.l.b16 %v7118
    %v7205 = vunpack.c.l.b16 %v7132
    %v7206 = vunpack.c.l.b16 %v7146
    %v7207 = vunpack.c.l.b16 %v7160
    %v7208 = vunpack.c.l.b16 %v7174
    %v7209 = vunpack.c.l.b16 %v7188
    %v7210 = vpack.c.b16 %v7195, %v7194
    %v7211 = vpack.c.b16 %v7197, %v7196
    %v7212 = vpack.c.b16 %v7199, %v7198
    %v7213 = vpack.c.b16 %v7201, %v7200
    %v7214 = vpack.c.b16 %v7203, %v7202
    %v7215 = vpack.c.b16 %v7205, %v7204
    %v7216 = vpack.c.b16 %v7207, %v7206
    %v7217 = vpack.c.b16 %v7209, %v7208
    %v7222 = vunpack.c.l.b16 %v7190
    %v7223 = vunpack.c.l.b16 %v7191
    %v7224 = vunpack.c.l.b16 %v7192
    %v7225 = vunpack.c.l.b16 %v7193
    %v7226 = vpack.c.b16 %v7223, %v7222
    %v7227 = vpack.c.b16 %v7225, %v7224
    %v7231 = vsel %vm841, %v7210, 0
    %v7234 = vsel %vm841, %v7211, 0
    %v7237 = vsel %vm841, %v7212, 0
    %v7240 = vsel %vm841, %v7213, 0
    %v7243 = vsel %vm841, %v7214, 0
    %v7246 = vsel %vm841, %v7215, 0
    %v7249 = vsel %vm841, %v7216, 0
    %v7252 = vsel %vm841, %v7217, 0
    %7254 = vmatprep.subr.bf16.mxu0 0
    %7255 = vmatpush1.bf16.msra.mxu0 0
    %7256 = vmatprep.subr.bf16.mxu0 0
    %7257 = vmatpush1.bf16.msra.mxu0 0
    %7258 = vmatprep.subr.bf16.mxu0 0
    %7259 = vmatpush1.bf16.msra.mxu0 0
    %7260 = vmatprep.subr.bf16.mxu0 0
    %7261 = vmatpush1.bf16.msra.mxu0 0
    %7262 = vmatprep.subr.bf16.mxu0 0
    %7263 = vmatpush1.bf16.msra.mxu0 0
    %7264 = vmatprep.subr.bf16.mxu0 0
    %7265 = vmatpush1.bf16.msra.mxu0 0
    %7266 = vmatprep.subr.bf16.mxu0 0
    %7267 = vmatpush1.bf16.msra.mxu0 %v7227
    %7268 = vmatprep.subr.bf16.mxu0 0
    %7269 = vmatpush1.bf16.msra.mxu0 %v7226
    %7270 = vmatprep.subr.bf16.mxu0 0
    %7271 = vmatpush2.bf16.msra.mxu0 0
    %7272 = vmatprep.subr.bf16.mxu0 0
    %7273 = vmatpush2.bf16.msra.mxu0 0
    %7274 = vmatprep.subr.bf16.mxu0 0
    %7275 = vmatpush2.bf16.msra.mxu0 0
    %7276 = vmatprep.subr.bf16.mxu0 0
    %7277 = vmatpush2.bf16.msra.mxu0 0
    %7278 = vmatprep.subr.bf16.mxu0 0
    %7279 = vmatpush2.bf16.msra.mxu0 0
    %7280 = vmatprep.subr.bf16.mxu0 0
    %7281 = vmatpush2.bf16.msra.mxu0 0
    %7282 = vmatprep.subr.bf16.mxu0 0
    %7283 = vmatpush2.bf16.msra.mxu0 0
    %7284 = vmatprep.subr.bf16.mxu0 0
    %7285 = vmatpush2.bf16.msra.mxu0 0
    %7286 = vmatprep.mubr.bf16.mxu0 0
    %7287 = vmatmul.mubr.bf16.gmra.mxu0 %v7231
    %v7288 = vpop.f32.mrf.mxu0
    %v7289 = vadd.f32 0.0, %v7288
    %v7290 = vpop.f32.mrf.mxu0
    %v7291 = vpop.f32.mrf.mxu0
    %v7292 = vadd.f32 0.0, %v7291
    %v7293 = vpop.f32.mrf.mxu0
    %7294 = vmatprep.mubr.bf16.mxu0 0
    %7295 = vmatmul.mubr.bf16.gmra.mxu0 %v7234
    %v7296 = vpop.f32.mrf.mxu0
    %v7297 = vadd.f32 0.0, %v7296
    %v7298 = vpop.f32.mrf.mxu0
    %v7299 = vpop.f32.mrf.mxu0
    %v7300 = vadd.f32 0.0, %v7299
    %v7301 = vpop.f32.mrf.mxu0
    %7302 = vmatprep.mubr.bf16.mxu0 0
    %7303 = vmatmul.mubr.bf16.gmra.mxu0 %v7237
    %v7304 = vpop.f32.mrf.mxu0
    %v7305 = vadd.f32 0.0, %v7304
    %v7306 = vpop.f32.mrf.mxu0
    %v7307 = vpop.f32.mrf.mxu0
    %v7308 = vadd.f32 0.0, %v7307
    %v7309 = vpop.f32.mrf.mxu0
    %7310 = vmatprep.mubr.bf16.mxu0 0
    %7311 = vmatmul.mubr.bf16.gmra.mxu0 %v7240
    %v7312 = vpop.f32.mrf.mxu0
    %v7313 = vadd.f32 0.0, %v7312
    %v7314 = vpop.f32.mrf.mxu0
    %v7315 = vpop.f32.mrf.mxu0
    %v7316 = vadd.f32 0.0, %v7315
    %v7317 = vpop.f32.mrf.mxu0
    %7318 = vmatprep.mubr.bf16.mxu0 0
    %7319 = vmatmul.mubr.bf16.gmra.mxu0 %v7243
    %v7320 = vpop.f32.mrf.mxu0
    %v7321 = vadd.f32 0.0, %v7320
    %v7322 = vpop.f32.mrf.mxu0
    %v7323 = vpop.f32.mrf.mxu0
    %v7324 = vadd.f32 0.0, %v7323
    %v7325 = vpop.f32.mrf.mxu0
    %7326 = vmatprep.mubr.bf16.mxu0 0
    %7327 = vmatmul.mubr.bf16.gmra.mxu0 %v7246
    %v7328 = vpop.f32.mrf.mxu0
    %v7329 = vadd.f32 0.0, %v7328
    %v7330 = vpop.f32.mrf.mxu0
    %v7331 = vpop.f32.mrf.mxu0
    %v7332 = vadd.f32 0.0, %v7331
    %v7333 = vpop.f32.mrf.mxu0
    %7334 = vmatprep.mubr.bf16.mxu0 0
    %7335 = vmatmul.mubr.bf16.gmra.mxu0 %v7249
    %v7336 = vpop.f32.mrf.mxu0
    %v7337 = vadd.f32 0.0, %v7336
    %v7338 = vpop.f32.mrf.mxu0
    %v7339 = vpop.f32.mrf.mxu0
    %v7340 = vadd.f32 0.0, %v7339
    %v7341 = vpop.f32.mrf.mxu0
    %7342 = vmatprep.mubr.bf16.mxu0 0
    %7343 = vmatmul.mubr.bf16.gmra.mxu0 %v7252
    %v7344 = vpop.f32.mrf.mxu0
    %v7345 = vadd.f32 0.0, %v7344
    %v7346 = vpop.f32.mrf.mxu0
    %v7347 = vpop.f32.mrf.mxu0
    %v7348 = vadd.f32 0.0, %v7347
    %v7349 = vpop.f32.mrf.mxu0
    %7350 = vdwg.mxu0
    %v7367 = vunpack.c.l.b16 %v6929
    %v7368 = vunpack.c.l.b16 %v6930
    %v7369 = vunpack.c.l.b16 %v6931
    %v7370 = vunpack.c.l.b16 %v6932
    %v7371 = vunpack.c.l.b16 %v6933
    %v7372 = vunpack.c.l.b16 %v6934
    %v7373 = vunpack.c.l.b16 %v6935
    %v7374 = vunpack.c.l.b16 %v6936
    %v7375 = vunpack.c.l.b16 %v6937
    %v7376 = vunpack.c.l.b16 %v6938
    %v7377 = vunpack.c.l.b16 %v6939
    %v7378 = vunpack.c.l.b16 %v6940
    %v7379 = vunpack.c.l.b16 %v6941
    %v7380 = vunpack.c.l.b16 %v6942
    %v7381 = vunpack.c.l.b16 %v6943
    %v7382 = vunpack.c.l.b16 %v6944
    %v7383 = vpack.c.b16 %v7368, %v7367
    %v7384 = vpack.c.b16 %v7370, %v7369
    %v7385 = vpack.c.b16 %v7372, %v7371
    %v7386 = vpack.c.b16 %v7374, %v7373
    %v7387 = vpack.c.b16 %v7376, %v7375
    %v7388 = vpack.c.b16 %v7378, %v7377
    %v7389 = vpack.c.b16 %v7380, %v7379
    %v7390 = vpack.c.b16 %v7382, %v7381
    %v7395 = vunpack.c.l.b16 %v6945
    %v7396 = vunpack.c.l.b16 %v6946
    %v7397 = vunpack.c.l.b16 %v6947
    %v7398 = vunpack.c.l.b16 %v6948
    %v7399 = vpack.c.b16 %v7396, %v7395
    %v7400 = vpack.c.b16 %v7398, %v7397
    %v7404 = vsel %vm841, %v7383, 0
    %v7407 = vsel %vm841, %v7384, 0
    %v7410 = vsel %vm841, %v7385, 0
    %v7413 = vsel %vm841, %v7386, 0
    %v7416 = vsel %vm841, %v7387, 0
    %v7419 = vsel %vm841, %v7388, 0
    %v7422 = vsel %vm841, %v7389, 0
    %v7425 = vsel %vm841, %v7390, 0
    %7427 = vmatprep.subr.bf16.mxu0 0
    %7428 = vmatpush1.bf16.msra.mxu0 0
    %7429 = vmatprep.subr.bf16.mxu0 0
    %7430 = vmatpush1.bf16.msra.mxu0 0
    %7431 = vmatprep.subr.bf16.mxu0 0
    %7432 = vmatpush1.bf16.msra.mxu0 0
    %7433 = vmatprep.subr.bf16.mxu0 0
    %7434 = vmatpush1.bf16.msra.mxu0 0
    %7435 = vmatprep.subr.bf16.mxu0 0
    %7436 = vmatpush1.bf16.msra.mxu0 0
    %7437 = vmatprep.subr.bf16.mxu0 0
    %7438 = vmatpush1.bf16.msra.mxu0 0
    %7439 = vmatprep.subr.bf16.mxu0 0
    %7440 = vmatpush1.bf16.msra.mxu0 %v7400
    %7441 = vmatprep.subr.bf16.mxu0 0
    %7442 = vmatpush1.bf16.msra.mxu0 %v7399
    %7443 = vmatprep.subr.bf16.mxu0 0
    %7444 = vmatpush2.bf16.msra.mxu0 0
    %7445 = vmatprep.subr.bf16.mxu0 0
    %7446 = vmatpush2.bf16.msra.mxu0 0
    %7447 = vmatprep.subr.bf16.mxu0 0
    %7448 = vmatpush2.bf16.msra.mxu0 0
    %7449 = vmatprep.subr.bf16.mxu0 0
    %7450 = vmatpush2.bf16.msra.mxu0 0
    %7451 = vmatprep.subr.bf16.mxu0 0
    %7452 = vmatpush2.bf16.msra.mxu0 0
    %7453 = vmatprep.subr.bf16.mxu0 0
    %7454 = vmatpush2.bf16.msra.mxu0 0
    %7455 = vmatprep.subr.bf16.mxu0 0
    %7456 = vmatpush2.bf16.msra.mxu0 0
    %7457 = vmatprep.subr.bf16.mxu0 0
    %7458 = vmatpush2.bf16.msra.mxu0 0
    %7459 = vmatprep.mubr.bf16.mxu0 0
    %7460 = vmatmul.mubr.bf16.gmra.mxu0 %v7404
    %v7461 = vpop.f32.mrf.mxu0
    %v7462 = vadd.f32 %v7289, %v7461
    %v7463 = vpop.f32.mrf.mxu0
    %v7464 = vpop.f32.mrf.mxu0
    %v7465 = vadd.f32 %v7292, %v7464
    %v7466 = vpop.f32.mrf.mxu0
    %7467 = vmatprep.mubr.bf16.mxu0 0
    %7468 = vmatmul.mubr.bf16.gmra.mxu0 %v7407
    %v7469 = vpop.f32.mrf.mxu0
    %v7470 = vadd.f32 %v7297, %v7469
    %v7471 = vpop.f32.mrf.mxu0
    %v7472 = vpop.f32.mrf.mxu0
    %v7473 = vadd.f32 %v7300, %v7472
    %v7474 = vpop.f32.mrf.mxu0
    %7475 = vmatprep.mubr.bf16.mxu0 0
    %7476 = vmatmul.mubr.bf16.gmra.mxu0 %v7410
    %v7477 = vpop.f32.mrf.mxu0
    %v7478 = vadd.f32 %v7305, %v7477
    %v7479 = vpop.f32.mrf.mxu0
    %v7480 = vpop.f32.mrf.mxu0
    %v7481 = vadd.f32 %v7308, %v7480
    %v7482 = vpop.f32.mrf.mxu0
    %7483 = vmatprep.mubr.bf16.mxu0 0
    %7484 = vmatmul.mubr.bf16.gmra.mxu0 %v7413
    %v7485 = vpop.f32.mrf.mxu0
    %v7486 = vadd.f32 %v7313, %v7485
    %v7487 = vpop.f32.mrf.mxu0
    %v7488 = vpop.f32.mrf.mxu0
    %v7489 = vadd.f32 %v7316, %v7488
    %v7490 = vpop.f32.mrf.mxu0
    %7491 = vmatprep.mubr.bf16.mxu0 0
    %7492 = vmatmul.mubr.bf16.gmra.mxu0 %v7416
    %v7493 = vpop.f32.mrf.mxu0
    %v7494 = vadd.f32 %v7321, %v7493
    %v7495 = vpop.f32.mrf.mxu0
    %v7496 = vpop.f32.mrf.mxu0
    %v7497 = vadd.f32 %v7324, %v7496
    %v7498 = vpop.f32.mrf.mxu0
    %7499 = vmatprep.mubr.bf16.mxu0 0
    %7500 = vmatmul.mubr.bf16.gmra.mxu0 %v7419
    %v7501 = vpop.f32.mrf.mxu0
    %v7502 = vadd.f32 %v7329, %v7501
    %v7503 = vpop.f32.mrf.mxu0
    %v7504 = vpop.f32.mrf.mxu0
    %v7505 = vadd.f32 %v7332, %v7504
    %v7506 = vpop.f32.mrf.mxu0
    %7507 = vmatprep.mubr.bf16.mxu0 0
    %7508 = vmatmul.mubr.bf16.gmra.mxu0 %v7422
    %v7509 = vpop.f32.mrf.mxu0
    %v7510 = vadd.f32 %v7337, %v7509
    %v7511 = vpop.f32.mrf.mxu0
    %v7512 = vpop.f32.mrf.mxu0
    %v7513 = vadd.f32 %v7340, %v7512
    %v7514 = vpop.f32.mrf.mxu0
    %7515 = vmatprep.mubr.bf16.mxu0 0
    %7516 = vmatmul.mubr.bf16.gmra.mxu0 %v7425
    %v7517 = vpop.f32.mrf.mxu0
    %v7518 = vadd.f32 %v7345, %v7517
    %v7519 = vpop.f32.mrf.mxu0
    %v7520 = vpop.f32.mrf.mxu0
    %v7521 = vadd.f32 %v7348, %v7520
    %v7522 = vpop.f32.mrf.mxu0
    %7523 = vdwg.mxu0
    %v7524 = vld [vmem:[#allocation2] sm:$0xe]
    %v7525 = vld [vmem:[#allocation2 + $0x8] sm:$0xe]
    %v7526 = vld [vmem:[#allocation2 + $0x10] sm:$0xe]
    %v7527 = vld [vmem:[#allocation2 + $0x18] sm:$0xe]
    %v7528 = vld [vmem:[#allocation2 + $0x20] sm:$0xe]
    %v7529 = vld [vmem:[#allocation2 + $0x28] sm:$0xe]
    %v7530 = vld [vmem:[#allocation2 + $0x30] sm:$0xe]
    %v7531 = vld [vmem:[#allocation2 + $0x38] sm:$0xe]
    %v7532 = vld [vmem:[#allocation2 + $0x50] sm:$0xe]
    %v7533 = vld [vmem:[#allocation2 + $0x58] sm:$0xe]
    %v7534 = vld [vmem:[#allocation2 + $0x60] sm:$0xe]
    %v7535 = vld [vmem:[#allocation2 + $0x68] sm:$0xe]
    %v7536 = vld [vmem:[#allocation2 + $0x70] sm:$0xe]
    %v7537 = vld [vmem:[#allocation2 + $0x78] sm:$0xe]
    %v7538 = vld [vmem:[#allocation2 + $0x80] sm:$0xe]
    %v7539 = vld [vmem:[#allocation2 + $0x88] sm:$0xe]
    %v7572 = vrot.slane %v7524, 5
    %v7573 = vrot.slane %v7572, 4
    %v7574 = vrot.slane %v6949, 5
    %v7575 = vsel %vm1186, %v7573, %v7574
    %v7576 = vrot.slane %v7525, 5
    %v7577 = vrot.slane %v7576, 4
    %v7578 = vrot.slane %v6950, 5
    %v7579 = vsel %vm1186, %v7577, %v7578
    %v7580 = vrot.slane %v7526, 5
    %v7581 = vrot.slane %v7580, 4
    %v7582 = vrot.slane %v6951, 5
    %v7583 = vsel %vm1186, %v7581, %v7582
    %v7584 = vrot.slane %v7527, 5
    %v7585 = vrot.slane %v7584, 4
    %v7586 = vrot.slane %v6952, 5
    %v7587 = vsel %vm1186, %v7585, %v7586
    %v7588 = vrot.slane %v7528, 5
    %v7589 = vrot.slane %v7588, 4
    %v7590 = vrot.slane %v6953, 5
    %v7591 = vsel %vm1186, %v7589, %v7590
    %v7592 = vrot.slane %v7529, 5
    %v7593 = vrot.slane %v7592, 4
    %v7594 = vrot.slane %v6954, 5
    %v7595 = vsel %vm1186, %v7593, %v7594
    %v7596 = vrot.slane %v7530, 5
    %v7597 = vrot.slane %v7596, 4
    %v7598 = vrot.slane %v6955, 5
    %v7599 = vsel %vm1186, %v7597, %v7598
    %v7600 = vrot.slane %v7531, 5
    %v7601 = vrot.slane %v7600, 4
    %v7602 = vrot.slane %v6956, 5
    %v7603 = vsel %vm1186, %v7601, %v7602
    %v7604 = vrot.slane %v7532, 5
    %v7605 = vrot.slane %v7604, 4
    %v7606 = vrot.slane %v6957, 5
    %v7607 = vsel %vm1186, %v7605, %v7606
    %v7608 = vrot.slane %v7533, 5
    %v7609 = vrot.slane %v7608, 4
    %v7610 = vrot.slane %v6958, 5
    %v7611 = vsel %vm1186, %v7609, %v7610
    %v7612 = vrot.slane %v7534, 5
    %v7613 = vrot.slane %v7612, 4
    %v7614 = vrot.slane %v6959, 5
    %v7615 = vsel %vm1186, %v7613, %v7614
    %v7616 = vrot.slane %v7535, 5
    %v7617 = vrot.slane %v7616, 4
    %v7618 = vrot.slane %v6960, 5
    %v7619 = vsel %vm1186, %v7617, %v7618
    %v7620 = vrot.slane %v7536, 5
    %v7621 = vrot.slane %v7620, 4
    %v7622 = vrot.slane %v6961, 5
    %v7623 = vsel %vm1186, %v7621, %v7622
    %v7624 = vrot.slane %v7537, 5
    %v7625 = vrot.slane %v7624, 4
    %v7626 = vrot.slane %v6962, 5
    %v7627 = vsel %vm1186, %v7625, %v7626
    %v7628 = vrot.slane %v7538, 5
    %v7629 = vrot.slane %v7628, 4
    %v7630 = vrot.slane %v6963, 5
    %v7631 = vsel %vm1186, %v7629, %v7630
    %v7632 = vrot.slane %v7539, 5
    %v7633 = vrot.slane %v7632, 4
    %v7634 = vrot.slane %v6964, 5
    %v7635 = vsel %vm1186, %v7633, %v7634
    %s7636 = scalar_lea.vmem [#allocation7], 32
    %v7637 = vld [vmem:[%s7636] sm:$0xf]
    %v7638 = vld [vmem:[%s7636 + $0x4] sm:$0xf]
    %v7639 = vld [vmem:[%s7636 + $0x8] sm:$0xf]
    %v7640 = vld [vmem:[%s7636 + $0xc] sm:$0xf]
    %v7641 = vunpack.c.l.b16 %v7575
    %v7642 = vunpack.c.l.b16 %v7579
    %v7643 = vunpack.c.l.b16 %v7583
    %v7644 = vunpack.c.l.b16 %v7587
    %v7645 = vunpack.c.l.b16 %v7591
    %v7646 = vunpack.c.l.b16 %v7595
    %v7647 = vunpack.c.l.b16 %v7599
    %v7648 = vunpack.c.l.b16 %v7603
    %v7649 = vunpack.c.l.b16 %v7607
    %v7650 = vunpack.c.l.b16 %v7611
    %v7651 = vunpack.c.l.b16 %v7615
    %v7652 = vunpack.c.l.b16 %v7619
    %v7653 = vunpack.c.l.b16 %v7623
    %v7654 = vunpack.c.l.b16 %v7627
    %v7655 = vunpack.c.l.b16 %v7631
    %v7656 = vunpack.c.l.b16 %v7635
    %v7657 = vpack.c.b16 %v7642, %v7641
    %v7658 = vpack.c.b16 %v7644, %v7643
    %v7659 = vpack.c.b16 %v7646, %v7645
    %v7660 = vpack.c.b16 %v7648, %v7647
    %v7661 = vpack.c.b16 %v7650, %v7649
    %v7662 = vpack.c.b16 %v7652, %v7651
    %v7663 = vpack.c.b16 %v7654, %v7653
    %v7664 = vpack.c.b16 %v7656, %v7655
    %v7669 = vunpack.c.l.b16 %v7637
    %v7670 = vunpack.c.l.b16 %v7638
    %v7671 = vunpack.c.l.b16 %v7639
    %v7672 = vunpack.c.l.b16 %v7640
    %v7673 = vpack.c.b16 %v7670, %v7669
    %v7674 = vpack.c.b16 %v7672, %v7671
    %v7678 = vsel %vm841, %v7657, 0
    %v7681 = vsel %vm841, %v7658, 0
    %v7684 = vsel %vm841, %v7659, 0
    %v7687 = vsel %vm841, %v7660, 0
    %v7690 = vsel %vm841, %v7661, 0
    %v7693 = vsel %vm841, %v7662, 0
    %v7696 = vsel %vm841, %v7663, 0
    %v7699 = vsel %vm841, %v7664, 0
    %7701 = vmatprep.subr.bf16.mxu0 0
    %7702 = vmatpush1.bf16.msra.mxu0 0
    %7703 = vmatprep.subr.bf16.mxu0 0
    %7704 = vmatpush1.bf16.msra.mxu0 0
    %7705 = vmatprep.subr.bf16.mxu0 0
    %7706 = vmatpush1.bf16.msra.mxu0 0
    %7707 = vmatprep.subr.bf16.mxu0 0
    %7708 = vmatpush1.bf16.msra.mxu0 0
    %7709 = vmatprep.subr.bf16.mxu0 0
    %7710 = vmatpush1.bf16.msra.mxu0 0
    %7711 = vmatprep.subr.bf16.mxu0 0
    %7712 = vmatpush1.bf16.msra.mxu0 0
    %7713 = vmatprep.subr.bf16.mxu0 0
    %7714 = vmatpush1.bf16.msra.mxu0 %v7674
    %7715 = vmatprep.subr.bf16.mxu0 0
    %7716 = vmatpush1.bf16.msra.mxu0 %v7673
    %7717 = vmatprep.subr.bf16.mxu0 0
    %7718 = vmatpush2.bf16.msra.mxu0 0
    %7719 = vmatprep.subr.bf16.mxu0 0
    %7720 = vmatpush2.bf16.msra.mxu0 0
    %7721 = vmatprep.subr.bf16.mxu0 0
    %7722 = vmatpush2.bf16.msra.mxu0 0
    %7723 = vmatprep.subr.bf16.mxu0 0
    %7724 = vmatpush2.bf16.msra.mxu0 0
    %7725 = vmatprep.subr.bf16.mxu0 0
    %7726 = vmatpush2.bf16.msra.mxu0 0
    %7727 = vmatprep.subr.bf16.mxu0 0
    %7728 = vmatpush2.bf16.msra.mxu0 0
    %7729 = vmatprep.subr.bf16.mxu0 0
    %7730 = vmatpush2.bf16.msra.mxu0 0
    %7731 = vmatprep.subr.bf16.mxu0 0
    %7732 = vmatpush2.bf16.msra.mxu0 0
    %7733 = vmatprep.mubr.bf16.mxu0 0
    %7734 = vmatmul.mubr.bf16.gmra.mxu0 %v7678
    %v7735 = vpop.f32.mrf.mxu0
    %v7736 = vadd.f32 0.0, %v7735
    %v7737 = vpop.f32.mrf.mxu0
    %v7738 = vpop.f32.mrf.mxu0
    %v7739 = vadd.f32 0.0, %v7738
    %v7740 = vpop.f32.mrf.mxu0
    %7741 = vmatprep.mubr.bf16.mxu0 0
    %7742 = vmatmul.mubr.bf16.gmra.mxu0 %v7681
    %v7743 = vpop.f32.mrf.mxu0
    %v7744 = vadd.f32 0.0, %v7743
    %v7745 = vpop.f32.mrf.mxu0
    %v7746 = vpop.f32.mrf.mxu0
    %v7747 = vadd.f32 0.0, %v7746
    %v7748 = vpop.f32.mrf.mxu0
    %7749 = vmatprep.mubr.bf16.mxu0 0
    %7750 = vmatmul.mubr.bf16.gmra.mxu0 %v7684
    %v7751 = vpop.f32.mrf.mxu0
    %v7752 = vadd.f32 0.0, %v7751
    %v7753 = vpop.f32.mrf.mxu0
    %v7754 = vpop.f32.mrf.mxu0
    %v7755 = vadd.f32 0.0, %v7754
    %v7756 = vpop.f32.mrf.mxu0
    %7757 = vmatprep.mubr.bf16.mxu0 0
    %7758 = vmatmul.mubr.bf16.gmra.mxu0 %v7687
    %v7759 = vpop.f32.mrf.mxu0
    %v7760 = vadd.f32 0.0, %v7759
    %v7761 = vpop.f32.mrf.mxu0
    %v7762 = vpop.f32.mrf.mxu0
    %v7763 = vadd.f32 0.0, %v7762
    %v7764 = vpop.f32.mrf.mxu0
    %7765 = vmatprep.mubr.bf16.mxu0 0
    %7766 = vmatmul.mubr.bf16.gmra.mxu0 %v7690
    %v7767 = vpop.f32.mrf.mxu0
    %v7768 = vadd.f32 0.0, %v7767
    %v7769 = vpop.f32.mrf.mxu0
    %v7770 = vpop.f32.mrf.mxu0
    %v7771 = vadd.f32 0.0, %v7770
    %v7772 = vpop.f32.mrf.mxu0
    %7773 = vmatprep.mubr.bf16.mxu0 0
    %7774 = vmatmul.mubr.bf16.gmra.mxu0 %v7693
    %v7775 = vpop.f32.mrf.mxu0
    %v7776 = vadd.f32 0.0, %v7775
    %v7777 = vpop.f32.mrf.mxu0
    %v7778 = vpop.f32.mrf.mxu0
    %v7779 = vadd.f32 0.0, %v7778
    %v7780 = vpop.f32.mrf.mxu0
    %7781 = vmatprep.mubr.bf16.mxu0 0
    %7782 = vmatmul.mubr.bf16.gmra.mxu0 %v7696
    %v7783 = vpop.f32.mrf.mxu0
    %v7784 = vadd.f32 0.0, %v7783
    %v7785 = vpop.f32.mrf.mxu0
    %v7786 = vpop.f32.mrf.mxu0
    %v7787 = vadd.f32 0.0, %v7786
    %v7788 = vpop.f32.mrf.mxu0
    %7789 = vmatprep.mubr.bf16.mxu0 0
    %7790 = vmatmul.mubr.bf16.gmra.mxu0 %v7699
    %v7791 = vpop.f32.mrf.mxu0
    %v7792 = vadd.f32 0.0, %v7791
    %v7793 = vpop.f32.mrf.mxu0
    %v7794 = vpop.f32.mrf.mxu0
    %v7795 = vadd.f32 0.0, %v7794
    %v7796 = vpop.f32.mrf.mxu0
    %7797 = vdwg.mxu0
    %v7798 = vadd.f32 %v7462, %v7736
    %v7799 = vadd.f32 %v7465, %v7739
    %v7800 = vadd.f32 %v7470, %v7744
    %v7801 = vadd.f32 %v7473, %v7747
    %v7802 = vadd.f32 %v7478, %v7752
    %v7803 = vadd.f32 %v7481, %v7755
    %v7804 = vadd.f32 %v7486, %v7760
    %v7805 = vadd.f32 %v7489, %v7763
    %v7806 = vadd.f32 %v7494, %v7768
    %v7807 = vadd.f32 %v7497, %v7771
    %v7808 = vadd.f32 %v7502, %v7776
    %v7809 = vadd.f32 %v7505, %v7779
    %v7810 = vadd.f32 %v7510, %v7784
    %v7811 = vadd.f32 %v7513, %v7787
    %v7812 = vadd.f32 %v7518, %v7792
    %v7813 = vadd.f32 %v7521, %v7795
    %v7814 = vld [vmem:[%s438] sm:$0xf]
    %v7815 = vld [vmem:[%s438 + $0x8] sm:$0xf]
    %v7816 = vld [vmem:[%s438 + $0x10] sm:$0xf]
    %v7817 = vld [vmem:[%s438 + $0x18] sm:$0xf]
    %v7818 = vld [vmem:[%s438 + $0x20] sm:$0xf]
    %v7819 = vld [vmem:[%s438 + $0x28] sm:$0xf]
    %v7820 = vld [vmem:[%s438 + $0x30] sm:$0xf]
    %v7821 = vld [vmem:[%s438 + $0x38] sm:$0xf]
    %v7822 = vld [vmem:[%s438 + $0x50] sm:$0xf]
    %v7823 = vld [vmem:[%s438 + $0x58] sm:$0xf]
    %v7824 = vld [vmem:[%s438 + $0x60] sm:$0xf]
    %v7825 = vld [vmem:[%s438 + $0x68] sm:$0xf]
    %v7826 = vld [vmem:[%s438 + $0x70] sm:$0xf]
    %v7827 = vld [vmem:[%s438 + $0x78] sm:$0xf]
    %v7828 = vld [vmem:[%s438 + $0x80] sm:$0xf]
    %v7829 = vld [vmem:[%s438 + $0x88] sm:$0xf]
    %s7830 = scalar_lea.vmem [#allocation7], 48
    %v7831 = vld [vmem:[%s7830] sm:$0xf]
    %v7832 = vld [vmem:[%s7830 + $0x4] sm:$0xf]
    %v7833 = vld [vmem:[%s7830 + $0x8] sm:$0xf]
    %v7834 = vld [vmem:[%s7830 + $0xc] sm:$0xf]
    %v7851 = vunpack.c.l.b16 %v7814
    %v7852 = vunpack.c.l.b16 %v7815
    %v7853 = vunpack.c.l.b16 %v7816
    %v7854 = vunpack.c.l.b16 %v7817
    %v7855 = vunpack.c.l.b16 %v7818
    %v7856 = vunpack.c.l.b16 %v7819
    %v7857 = vunpack.c.l.b16 %v7820
    %v7858 = vunpack.c.l.b16 %v7821
    %v7859 = vunpack.c.l.b16 %v7822
    %v7860 = vunpack.c.l.b16 %v7823
    %v7861 = vunpack.c.l.b16 %v7824
    %v7862 = vunpack.c.l.b16 %v7825
    %v7863 = vunpack.c.l.b16 %v7826
    %v7864 = vunpack.c.l.b16 %v7827
    %v7865 = vunpack.c.l.b16 %v7828
    %v7866 = vunpack.c.l.b16 %v7829
    %v7867 = vpack.c.b16 %v7852, %v7851
    %v7868 = vpack.c.b16 %v7854, %v7853
    %v7869 = vpack.c.b16 %v7856, %v7855
    %v7870 = vpack.c.b16 %v7858, %v7857
    %v7871 = vpack.c.b16 %v7860, %v7859
    %v7872 = vpack.c.b16 %v7862, %v7861
    %v7873 = vpack.c.b16 %v7864, %v7863
    %v7874 = vpack.c.b16 %v7866, %v7865
    %v7879 = vunpack.c.l.b16 %v7831
    %v7880 = vunpack.c.l.b16 %v7832
    %v7881 = vunpack.c.l.b16 %v7833
    %v7882 = vunpack.c.l.b16 %v7834
    %v7883 = vpack.c.b16 %v7880, %v7879
    %v7884 = vpack.c.b16 %v7882, %v7881
    %v7888 = vsel %vm841, %v7867, 0
    %v7891 = vsel %vm841, %v7868, 0
    %v7894 = vsel %vm841, %v7869, 0
    %v7897 = vsel %vm841, %v7870, 0
    %v7900 = vsel %vm841, %v7871, 0
    %v7903 = vsel %vm841, %v7872, 0
    %v7906 = vsel %vm841, %v7873, 0
    %v7909 = vsel %vm841, %v7874, 0
    %7911 = vmatprep.subr.bf16.mxu0 0
    %7912 = vmatpush1.bf16.msra.mxu0 0
    %7913 = vmatprep.subr.bf16.mxu0 0
    %7914 = vmatpush1.bf16.msra.mxu0 0
    %7915 = vmatprep.subr.bf16.mxu0 0
    %7916 = vmatpush1.bf16.msra.mxu0 0
    %7917 = vmatprep.subr.bf16.mxu0 0
    %7918 = vmatpush1.bf16.msra.mxu0 0
    %7919 = vmatprep.subr.bf16.mxu0 0
    %7920 = vmatpush1.bf16.msra.mxu0 0
    %7921 = vmatprep.subr.bf16.mxu0 0
    %7922 = vmatpush1.bf16.msra.mxu0 0
    %7923 = vmatprep.subr.bf16.mxu0 0
    %7924 = vmatpush1.bf16.msra.mxu0 %v7884
    %7925 = vmatprep.subr.bf16.mxu0 0
    %7926 = vmatpush1.bf16.msra.mxu0 %v7883
    %7927 = vmatprep.subr.bf16.mxu0 0
    %7928 = vmatpush2.bf16.msra.mxu0 0
    %7929 = vmatprep.subr.bf16.mxu0 0
    %7930 = vmatpush2.bf16.msra.mxu0 0
    %7931 = vmatprep.subr.bf16.mxu0 0
    %7932 = vmatpush2.bf16.msra.mxu0 0
    %7933 = vmatprep.subr.bf16.mxu0 0
    %7934 = vmatpush2.bf16.msra.mxu0 0
    %7935 = vmatprep.subr.bf16.mxu0 0
    %7936 = vmatpush2.bf16.msra.mxu0 0
    %7937 = vmatprep.subr.bf16.mxu0 0
    %7938 = vmatpush2.bf16.msra.mxu0 0
    %7939 = vmatprep.subr.bf16.mxu0 0
    %7940 = vmatpush2.bf16.msra.mxu0 0
    %7941 = vmatprep.subr.bf16.mxu0 0
    %7942 = vmatpush2.bf16.msra.mxu0 0
    %7943 = vmatprep.mubr.bf16.mxu0 0
    %7944 = vmatmul.mubr.bf16.gmra.mxu0 %v7888
    %v7945 = vpop.f32.mrf.mxu0
    %v7946 = vadd.f32 0.0, %v7945
    %v7947 = vpop.f32.mrf.mxu0
    %v7948 = vpop.f32.mrf.mxu0
    %v7949 = vadd.f32 0.0, %v7948
    %v7950 = vpop.f32.mrf.mxu0
    %7951 = vmatprep.mubr.bf16.mxu0 0
    %7952 = vmatmul.mubr.bf16.gmra.mxu0 %v7891
    %v7953 = vpop.f32.mrf.mxu0
    %v7954 = vadd.f32 0.0, %v7953
    %v7955 = vpop.f32.mrf.mxu0
    %v7956 = vpop.f32.mrf.mxu0
    %v7957 = vadd.f32 0.0, %v7956
    %v7958 = vpop.f32.mrf.mxu0
    %7959 = vmatprep.mubr.bf16.mxu0 0
    %7960 = vmatmul.mubr.bf16.gmra.mxu0 %v7894
    %v7961 = vpop.f32.mrf.mxu0
    %v7962 = vadd.f32 0.0, %v7961
    %v7963 = vpop.f32.mrf.mxu0
    %v7964 = vpop.f32.mrf.mxu0
    %v7965 = vadd.f32 0.0, %v7964
    %v7966 = vpop.f32.mrf.mxu0
    %7967 = vmatprep.mubr.bf16.mxu0 0
    %7968 = vmatmul.mubr.bf16.gmra.mxu0 %v7897
    %v7969 = vpop.f32.mrf.mxu0
    %v7970 = vadd.f32 0.0, %v7969
    %v7971 = vpop.f32.mrf.mxu0
    %v7972 = vpop.f32.mrf.mxu0
    %v7973 = vadd.f32 0.0, %v7972
    %v7974 = vpop.f32.mrf.mxu0
    %7975 = vmatprep.mubr.bf16.mxu0 0
    %7976 = vmatmul.mubr.bf16.gmra.mxu0 %v7900
    %v7977 = vpop.f32.mrf.mxu0
    %v7978 = vadd.f32 0.0, %v7977
    %v7979 = vpop.f32.mrf.mxu0
    %v7980 = vpop.f32.mrf.mxu0
    %v7981 = vadd.f32 0.0, %v7980
    %v7982 = vpop.f32.mrf.mxu0
    %7983 = vmatprep.mubr.bf16.mxu0 0
    %7984 = vmatmul.mubr.bf16.gmra.mxu0 %v7903
    %v7985 = vpop.f32.mrf.mxu0
    %v7986 = vadd.f32 0.0, %v7985
    %v7987 = vpop.f32.mrf.mxu0
    %v7988 = vpop.f32.mrf.mxu0
    %v7989 = vadd.f32 0.0, %v7988
    %v7990 = vpop.f32.mrf.mxu0
    %7991 = vmatprep.mubr.bf16.mxu0 0
    %7992 = vmatmul.mubr.bf16.gmra.mxu0 %v7906
    %v7993 = vpop.f32.mrf.mxu0
    %v7994 = vadd.f32 0.0, %v7993
    %v7995 = vpop.f32.mrf.mxu0
    %v7996 = vpop.f32.mrf.mxu0
    %v7997 = vadd.f32 0.0, %v7996
    %v7998 = vpop.f32.mrf.mxu0
    %7999 = vmatprep.mubr.bf16.mxu0 0
    %8000 = vmatmul.mubr.bf16.gmra.mxu0 %v7909
    %v8001 = vpop.f32.mrf.mxu0
    %v8002 = vadd.f32 0.0, %v8001
    %v8003 = vpop.f32.mrf.mxu0
    %v8004 = vpop.f32.mrf.mxu0
    %v8005 = vadd.f32 0.0, %v8004
    %v8006 = vpop.f32.mrf.mxu0
    %8007 = vdwg.mxu0
    %v8008 = vadd.f32 %v7798, %v7946
    %v8009 = vadd.f32 %v7799, %v7949
    %v8010 = vadd.f32 %v7800, %v7954
    %v8011 = vadd.f32 %v7801, %v7957
    %v8012 = vadd.f32 %v7802, %v7962
    %v8013 = vadd.f32 %v7803, %v7965
    %v8014 = vadd.f32 %v7804, %v7970
    %v8015 = vadd.f32 %v7805, %v7973
    %v8016 = vadd.f32 %v7806, %v7978
    %v8017 = vadd.f32 %v7807, %v7981
    %v8018 = vadd.f32 %v7808, %v7986
    %v8019 = vadd.f32 %v7809, %v7989
    %v8020 = vadd.f32 %v7810, %v7994
    %v8021 = vadd.f32 %v7811, %v7997
    %v8022 = vadd.f32 %v7812, %v8002
    %v8023 = vadd.f32 %v7813, %v8005
    %v8024 = vld [vmem:[%s438] sm:$0xf]
    %v8025 = vld [vmem:[%s438 + $0x4] sm:$0x1]
    %v8026 = vld [vmem:[%s438 + $0x8] sm:$0xf]
    %v8027 = vld [vmem:[%s438 + $0xc] sm:$0x1]
    %v8028 = vld [vmem:[%s438 + $0x10] sm:$0xf]
    %v8029 = vld [vmem:[%s438 + $0x14] sm:$0x1]
    %v8030 = vld [vmem:[%s438 + $0x18] sm:$0xf]
    %v8031 = vld [vmem:[%s438 + $0x1c] sm:$0x1]
    %v8032 = vld [vmem:[%s438 + $0x20] sm:$0xf]
    %v8033 = vld [vmem:[%s438 + $0x24] sm:$0x1]
    %v8034 = vld [vmem:[%s438 + $0x28] sm:$0xf]
    %v8035 = vld [vmem:[%s438 + $0x2c] sm:$0x1]
    %v8036 = vld [vmem:[%s438 + $0x30] sm:$0xf]
    %v8037 = vld [vmem:[%s438 + $0x34] sm:$0x1]
    %v8038 = vld [vmem:[%s438 + $0x38] sm:$0xf]
    %v8039 = vld [vmem:[%s438 + $0x3c] sm:$0x1]
    %v8040 = vld [vmem:[%s438 + $0x50] sm:$0xf]
    %v8041 = vld [vmem:[%s438 + $0x54] sm:$0x1]
    %v8042 = vld [vmem:[%s438 + $0x58] sm:$0xf]
    %v8043 = vld [vmem:[%s438 + $0x5c] sm:$0x1]
    %v8044 = vld [vmem:[%s438 + $0x60] sm:$0xf]
    %v8045 = vld [vmem:[%s438 + $0x64] sm:$0x1]
    %v8046 = vld [vmem:[%s438 + $0x68] sm:$0xf]
    %v8047 = vld [vmem:[%s438 + $0x6c] sm:$0x1]
    %v8048 = vld [vmem:[%s438 + $0x70] sm:$0xf]
    %v8049 = vld [vmem:[%s438 + $0x74] sm:$0x1]
    %v8050 = vld [vmem:[%s438 + $0x78] sm:$0xf]
    %v8051 = vld [vmem:[%s438 + $0x7c] sm:$0x1]
    %v8052 = vld [vmem:[%s438 + $0x80] sm:$0xf]
    %v8053 = vld [vmem:[%s438 + $0x84] sm:$0x1]
    %v8054 = vld [vmem:[%s438 + $0x88] sm:$0xf]
    %v8055 = vld [vmem:[%s438 + $0x8c] sm:$0x1]
    %v8057 = vshrl.u32 %v8024, 16
    %v8059 = vrot.slane %v8057, 4
    %v8060 = vshll.u32 %v8024, 16
    %v8062 = vrot.slane %v8060, 5
    %v8063 = vor.u32 %v8059, %v8062
    %v8064 = vrot.slane %v8063, 4
    %v8066 = vshll.u32 %v8025, 16
    %v8068 = vrot.slane %v8066, 5
    %v8069 = vsel %vm575, %v8064, %v8068
    %v8071 = vshrl.u32 %v8026, 16
    %v8073 = vrot.slane %v8071, 4
    %v8074 = vshll.u32 %v8026, 16
    %v8076 = vrot.slane %v8074, 5
    %v8077 = vor.u32 %v8073, %v8076
    %v8078 = vrot.slane %v8077, 4
    %v8080 = vshll.u32 %v8027, 16
    %v8082 = vrot.slane %v8080, 5
    %v8083 = vsel %vm575, %v8078, %v8082
    %v8085 = vshrl.u32 %v8028, 16
    %v8087 = vrot.slane %v8085, 4
    %v8088 = vshll.u32 %v8028, 16
    %v8090 = vrot.slane %v8088, 5
    %v8091 = vor.u32 %v8087, %v8090
    %v8092 = vrot.slane %v8091, 4
    %v8094 = vshll.u32 %v8029, 16
    %v8096 = vrot.slane %v8094, 5
    %v8097 = vsel %vm575, %v8092, %v8096
    %v8099 = vshrl.u32 %v8030, 16
    %v8101 = vrot.slane %v8099, 4
    %v8102 = vshll.u32 %v8030, 16
    %v8104 = vrot.slane %v8102, 5
    %v8105 = vor.u32 %v8101, %v8104
    %v8106 = vrot.slane %v8105, 4
    %v8108 = vshll.u32 %v8031, 16
    %v8110 = vrot.slane %v8108, 5
    %v8111 = vsel %vm575, %v8106, %v8110
    %v8113 = vshrl.u32 %v8032, 16
    %v8115 = vrot.slane %v8113, 4
    %v8116 = vshll.u32 %v8032, 16
    %v8118 = vrot.slane %v8116, 5
    %v8119 = vor.u32 %v8115, %v8118
    %v8120 = vrot.slane %v8119, 4
    %v8122 = vshll.u32 %v8033, 16
    %v8124 = vrot.slane %v8122, 5
    %v8125 = vsel %vm575, %v8120, %v8124
    %v8127 = vshrl.u32 %v8034, 16
    %v8129 = vrot.slane %v8127, 4
    %v8130 = vshll.u32 %v8034, 16
    %v8132 = vrot.slane %v8130, 5
    %v8133 = vor.u32 %v8129, %v8132
    %v8134 = vrot.slane %v8133, 4
    %v8136 = vshll.u32 %v8035, 16
    %v8138 = vrot.slane %v8136, 5
    %v8139 = vsel %vm575, %v8134, %v8138
    %v8141 = vshrl.u32 %v8036, 16
    %v8143 = vrot.slane %v8141, 4
    %v8144 = vshll.u32 %v8036, 16
    %v8146 = vrot.slane %v8144, 5
    %v8147 = vor.u32 %v8143, %v8146
    %v8148 = vrot.slane %v8147, 4
    %v8150 = vshll.u32 %v8037, 16
    %v8152 = vrot.slane %v8150, 5
    %v8153 = vsel %vm575, %v8148, %v8152
    %v8155 = vshrl.u32 %v8038, 16
    %v8157 = vrot.slane %v8155, 4
    %v8158 = vshll.u32 %v8038, 16
    %v8160 = vrot.slane %v8158, 5
    %v8161 = vor.u32 %v8157, %v8160
    %v8162 = vrot.slane %v8161, 4
    %v8164 = vshll.u32 %v8039, 16
    %v8166 = vrot.slane %v8164, 5
    %v8167 = vsel %vm575, %v8162, %v8166
    %v8169 = vshrl.u32 %v8040, 16
    %v8171 = vrot.slane %v8169, 4
    %v8172 = vshll.u32 %v8040, 16
    %v8174 = vrot.slane %v8172, 5
    %v8175 = vor.u32 %v8171, %v8174
    %v8176 = vrot.slane %v8175, 4
    %v8178 = vshll.u32 %v8041, 16
    %v8180 = vrot.slane %v8178, 5
    %v8181 = vsel %vm575, %v8176, %v8180
    %v8183 = vshrl.u32 %v8042, 16
    %v8185 = vrot.slane %v8183, 4
    %v8186 = vshll.u32 %v8042, 16
    %v8188 = vrot.slane %v8186, 5
    %v8189 = vor.u32 %v8185, %v8188
    %v8190 = vrot.slane %v8189, 4
    %v8192 = vshll.u32 %v8043, 16
    %v8194 = vrot.slane %v8192, 5
    %v8195 = vsel %vm575, %v8190, %v8194
    %v8197 = vshrl.u32 %v8044, 16
    %v8199 = vrot.slane %v8197, 4
    %v8200 = vshll.u32 %v8044, 16
    %v8202 = vrot.slane %v8200, 5
    %v8203 = vor.u32 %v8199, %v8202
    %v8204 = vrot.slane %v8203, 4
    %v8206 = vshll.u32 %v8045, 16
    %v8208 = vrot.slane %v8206, 5
    %v8209 = vsel %vm575, %v8204, %v8208
    %v8211 = vshrl.u32 %v8046, 16
    %v8213 = vrot.slane %v8211, 4
    %v8214 = vshll.u32 %v8046, 16
    %v8216 = vrot.slane %v8214, 5
    %v8217 = vor.u32 %v8213, %v8216
    %v8218 = vrot.slane %v8217, 4
    %v8220 = vshll.u32 %v8047, 16
    %v8222 = vrot.slane %v8220, 5
    %v8223 = vsel %vm575, %v8218, %v8222
    %v8225 = vshrl.u32 %v8048, 16
    %v8227 = vrot.slane %v8225, 4
    %v8228 = vshll.u32 %v8048, 16
    %v8230 = vrot.slane %v8228, 5
    %v8231 = vor.u32 %v8227, %v8230
    %v8232 = vrot.slane %v8231, 4
    %v8234 = vshll.u32 %v8049, 16
    %v8236 = vrot.slane %v8234, 5
    %v8237 = vsel %vm575, %v8232, %v8236
    %v8239 = vshrl.u32 %v8050, 16
    %v8241 = vrot.slane %v8239, 4
    %v8242 = vshll.u32 %v8050, 16
    %v8244 = vrot.slane %v8242, 5
    %v8245 = vor.u32 %v8241, %v8244
    %v8246 = vrot.slane %v8245, 4
    %v8248 = vshll.u32 %v8051, 16
    %v8250 = vrot.slane %v8248, 5
    %v8251 = vsel %vm575, %v8246, %v8250
    %v8253 = vshrl.u32 %v8052, 16
    %v8255 = vrot.slane %v8253, 4
    %v8256 = vshll.u32 %v8052, 16
    %v8258 = vrot.slane %v8256, 5
    %v8259 = vor.u32 %v8255, %v8258
    %v8260 = vrot.slane %v8259, 4
    %v8262 = vshll.u32 %v8053, 16
    %v8264 = vrot.slane %v8262, 5
    %v8265 = vsel %vm575, %v8260, %v8264
    %v8267 = vshrl.u32 %v8054, 16
    %v8269 = vrot.slane %v8267, 4
    %v8270 = vshll.u32 %v8054, 16
    %v8272 = vrot.slane %v8270, 5
    %v8273 = vor.u32 %v8269, %v8272
    %v8274 = vrot.slane %v8273, 4
    %v8276 = vshll.u32 %v8055, 16
    %v8278 = vrot.slane %v8276, 5
    %v8279 = vsel %vm575, %v8274, %v8278
    %s8280 = scalar_lea.vmem [#allocation7], 64
    %v8281 = vld [vmem:[%s8280] sm:$0xf]
    %v8282 = vld [vmem:[%s8280 + $0x4] sm:$0xf]
    %v8283 = vld [vmem:[%s8280 + $0x8] sm:$0xf]
    %v8284 = vld [vmem:[%s8280 + $0xc] sm:$0xf]
    %v8285 = vunpack.c.l.b16 %v8069
    %v8286 = vunpack.c.l.b16 %v8083
    %v8287 = vunpack.c.l.b16 %v8097
    %v8288 = vunpack.c.l.b16 %v8111
    %v8289 = vunpack.c.l.b16 %v8125
    %v8290 = vunpack.c.l.b16 %v8139
    %v8291 = vunpack.c.l.b16 %v8153
    %v8292 = vunpack.c.l.b16 %v8167
    %v8293 = vunpack.c.l.b16 %v8181
    %v8294 = vunpack.c.l.b16 %v8195
    %v8295 = vunpack.c.l.b16 %v8209
    %v8296 = vunpack.c.l.b16 %v8223
    %v8297 = vunpack.c.l.b16 %v8237
    %v8298 = vunpack.c.l.b16 %v8251
    %v8299 = vunpack.c.l.b16 %v8265
    %v8300 = vunpack.c.l.b16 %v8279
    %v8301 = vpack.c.b16 %v8286, %v8285
    %v8302 = vpack.c.b16 %v8288, %v8287
    %v8303 = vpack.c.b16 %v8290, %v8289
    %v8304 = vpack.c.b16 %v8292, %v8291
    %v8305 = vpack.c.b16 %v8294, %v8293
    %v8306 = vpack.c.b16 %v8296, %v8295
    %v8307 = vpack.c.b16 %v8298, %v8297
    %v8308 = vpack.c.b16 %v8300, %v8299
    %v8313 = vunpack.c.l.b16 %v8281
    %v8314 = vunpack.c.l.b16 %v8282
    %v8315 = vunpack.c.l.b16 %v8283
    %v8316 = vunpack.c.l.b16 %v8284
    %v8317 = vpack.c.b16 %v8314, %v8313
    %v8318 = vpack.c.b16 %v8316, %v8315
    %v8322 = vsel %vm841, %v8301, 0
    %v8325 = vsel %vm841, %v8302, 0
    %v8328 = vsel %vm841, %v8303, 0
    %v8331 = vsel %vm841, %v8304, 0
    %v8334 = vsel %vm841, %v8305, 0
    %v8337 = vsel %vm841, %v8306, 0
    %v8340 = vsel %vm841, %v8307, 0
    %v8343 = vsel %vm841, %v8308, 0
    %8345 = vmatprep.subr.bf16.mxu0 0
    %8346 = vmatpush1.bf16.msra.mxu0 0
    %8347 = vmatprep.subr.bf16.mxu0 0
    %8348 = vmatpush1.bf16.msra.mxu0 0
    %8349 = vmatprep.subr.bf16.mxu0 0
    %8350 = vmatpush1.bf16.msra.mxu0 0
    %8351 = vmatprep.subr.bf16.mxu0 0
    %8352 = vmatpush1.bf16.msra.mxu0 0
    %8353 = vmatprep.subr.bf16.mxu0 0
    %8354 = vmatpush1.bf16.msra.mxu0 0
    %8355 = vmatprep.subr.bf16.mxu0 0
    %8356 = vmatpush1.bf16.msra.mxu0 0
    %8357 = vmatprep.subr.bf16.mxu0 0
    %8358 = vmatpush1.bf16.msra.mxu0 %v8318
    %8359 = vmatprep.subr.bf16.mxu0 0
    %8360 = vmatpush1.bf16.msra.mxu0 %v8317
    %8361 = vmatprep.subr.bf16.mxu0 0
    %8362 = vmatpush2.bf16.msra.mxu0 0
    %8363 = vmatprep.subr.bf16.mxu0 0
    %8364 = vmatpush2.bf16.msra.mxu0 0
    %8365 = vmatprep.subr.bf16.mxu0 0
    %8366 = vmatpush2.bf16.msra.mxu0 0
    %8367 = vmatprep.subr.bf16.mxu0 0
    %8368 = vmatpush2.bf16.msra.mxu0 0
    %8369 = vmatprep.subr.bf16.mxu0 0
    %8370 = vmatpush2.bf16.msra.mxu0 0
    %8371 = vmatprep.subr.bf16.mxu0 0
    %8372 = vmatpush2.bf16.msra.mxu0 0
    %8373 = vmatprep.subr.bf16.mxu0 0
    %8374 = vmatpush2.bf16.msra.mxu0 0
    %8375 = vmatprep.subr.bf16.mxu0 0
    %8376 = vmatpush2.bf16.msra.mxu0 0
    %8377 = vmatprep.mubr.bf16.mxu0 0
    %8378 = vmatmul.mubr.bf16.gmra.mxu0 %v8322
    %v8379 = vpop.f32.mrf.mxu0
    %v8380 = vadd.f32 0.0, %v8379
    %v8381 = vpop.f32.mrf.mxu0
    %v8382 = vpop.f32.mrf.mxu0
    %v8383 = vadd.f32 0.0, %v8382
    %v8384 = vpop.f32.mrf.mxu0
    %8385 = vmatprep.mubr.bf16.mxu0 0
    %8386 = vmatmul.mubr.bf16.gmra.mxu0 %v8325
    %v8387 = vpop.f32.mrf.mxu0
    %v8388 = vadd.f32 0.0, %v8387
    %v8389 = vpop.f32.mrf.mxu0
    %v8390 = vpop.f32.mrf.mxu0
    %v8391 = vadd.f32 0.0, %v8390
    %v8392 = vpop.f32.mrf.mxu0
    %8393 = vmatprep.mubr.bf16.mxu0 0
    %8394 = vmatmul.mubr.bf16.gmra.mxu0 %v8328
    %v8395 = vpop.f32.mrf.mxu0
    %v8396 = vadd.f32 0.0, %v8395
    %v8397 = vpop.f32.mrf.mxu0
    %v8398 = vpop.f32.mrf.mxu0
    %v8399 = vadd.f32 0.0, %v8398
    %v8400 = vpop.f32.mrf.mxu0
    %8401 = vmatprep.mubr.bf16.mxu0 0
    %8402 = vmatmul.mubr.bf16.gmra.mxu0 %v8331
    %v8403 = vpop.f32.mrf.mxu0
    %v8404 = vadd.f32 0.0, %v8403
    %v8405 = vpop.f32.mrf.mxu0
    %v8406 = vpop.f32.mrf.mxu0
    %v8407 = vadd.f32 0.0, %v8406
    %v8408 = vpop.f32.mrf.mxu0
    %8409 = vmatprep.mubr.bf16.mxu0 0
    %8410 = vmatmul.mubr.bf16.gmra.mxu0 %v8334
    %v8411 = vpop.f32.mrf.mxu0
    %v8412 = vadd.f32 0.0, %v8411
    %v8413 = vpop.f32.mrf.mxu0
    %v8414 = vpop.f32.mrf.mxu0
    %v8415 = vadd.f32 0.0, %v8414
    %v8416 = vpop.f32.mrf.mxu0
    %8417 = vmatprep.mubr.bf16.mxu0 0
    %8418 = vmatmul.mubr.bf16.gmra.mxu0 %v8337
    %v8419 = vpop.f32.mrf.mxu0
    %v8420 = vadd.f32 0.0, %v8419
    %v8421 = vpop.f32.mrf.mxu0
    %v8422 = vpop.f32.mrf.mxu0
    %v8423 = vadd.f32 0.0, %v8422
    %v8424 = vpop.f32.mrf.mxu0
    %8425 = vmatprep.mubr.bf16.mxu0 0
    %8426 = vmatmul.mubr.bf16.gmra.mxu0 %v8340
    %v8427 = vpop.f32.mrf.mxu0
    %v8428 = vadd.f32 0.0, %v8427
    %v8429 = vpop.f32.mrf.mxu0
    %v8430 = vpop.f32.mrf.mxu0
    %v8431 = vadd.f32 0.0, %v8430
    %v8432 = vpop.f32.mrf.mxu0
    %8433 = vmatprep.mubr.bf16.mxu0 0
    %8434 = vmatmul.mubr.bf16.gmra.mxu0 %v8343
    %v8435 = vpop.f32.mrf.mxu0
    %v8436 = vadd.f32 0.0, %v8435
    %v8437 = vpop.f32.mrf.mxu0
    %v8438 = vpop.f32.mrf.mxu0
    %v8439 = vadd.f32 0.0, %v8438
    %v8440 = vpop.f32.mrf.mxu0
    %8441 = vdwg.mxu0
    %v8442 = vadd.f32 %v8008, %v8380
    %v8443 = vadd.f32 %v8009, %v8383
    %v8444 = vadd.f32 %v8010, %v8388
    %v8445 = vadd.f32 %v8011, %v8391
    %v8446 = vadd.f32 %v8012, %v8396
    %v8447 = vadd.f32 %v8013, %v8399
    %v8448 = vadd.f32 %v8014, %v8404
    %v8449 = vadd.f32 %v8015, %v8407
    %v8450 = vadd.f32 %v8016, %v8412
    %v8451 = vadd.f32 %v8017, %v8415
    %v8452 = vadd.f32 %v8018, %v8420
    %v8453 = vadd.f32 %v8019, %v8423
    %v8454 = vadd.f32 %v8020, %v8428
    %v8455 = vadd.f32 %v8021, %v8431
    %v8456 = vadd.f32 %v8022, %v8436
    %v8457 = vadd.f32 %v8023, %v8439
    %v8458 = vld [vmem:[%s438] sm:$0xe]
    %v8459 = vld [vmem:[%s438 + $0x8] sm:$0xe]
    %v8460 = vld [vmem:[%s438 + $0x10] sm:$0xe]
    %v8461 = vld [vmem:[%s438 + $0x18] sm:$0xe]
    %v8462 = vld [vmem:[%s438 + $0x20] sm:$0xe]
    %v8463 = vld [vmem:[%s438 + $0x28] sm:$0xe]
    %v8464 = vld [vmem:[%s438 + $0x30] sm:$0xe]
    %v8465 = vld [vmem:[%s438 + $0x38] sm:$0xe]
    %v8466 = vld [vmem:[%s438 + $0x50] sm:$0xe]
    %v8467 = vld [vmem:[%s438 + $0x58] sm:$0xe]
    %v8468 = vld [vmem:[%s438 + $0x60] sm:$0xe]
    %v8469 = vld [vmem:[%s438 + $0x68] sm:$0xe]
    %v8470 = vld [vmem:[%s438 + $0x70] sm:$0xe]
    %v8471 = vld [vmem:[%s438 + $0x78] sm:$0xe]
    %v8472 = vld [vmem:[%s438 + $0x80] sm:$0xe]
    %v8473 = vld [vmem:[%s438 + $0x88] sm:$0xe]
    %v8506 = vrot.slane %v8458, 5
    %v8507 = vrot.slane %v8506, 4
    %v8508 = vrot.slane %v8025, 5
    %v8509 = vsel %vm1186, %v8507, %v8508
    %v8510 = vrot.slane %v8459, 5
    %v8511 = vrot.slane %v8510, 4
    %v8512 = vrot.slane %v8027, 5
    %v8513 = vsel %vm1186, %v8511, %v8512
    %v8514 = vrot.slane %v8460, 5
    %v8515 = vrot.slane %v8514, 4
    %v8516 = vrot.slane %v8029, 5
    %v8517 = vsel %vm1186, %v8515, %v8516
    %v8518 = vrot.slane %v8461, 5
    %v8519 = vrot.slane %v8518, 4
    %v8520 = vrot.slane %v8031, 5
    %v8521 = vsel %vm1186, %v8519, %v8520
    %v8522 = vrot.slane %v8462, 5
    %v8523 = vrot.slane %v8522, 4
    %v8524 = vrot.slane %v8033, 5
    %v8525 = vsel %vm1186, %v8523, %v8524
    %v8526 = vrot.slane %v8463, 5
    %v8527 = vrot.slane %v8526, 4
    %v8528 = vrot.slane %v8035, 5
    %v8529 = vsel %vm1186, %v8527, %v8528
    %v8530 = vrot.slane %v8464, 5
    %v8531 = vrot.slane %v8530, 4
    %v8532 = vrot.slane %v8037, 5
    %v8533 = vsel %vm1186, %v8531, %v8532
    %v8534 = vrot.slane %v8465, 5
    %v8535 = vrot.slane %v8534, 4
    %v8536 = vrot.slane %v8039, 5
    %v8537 = vsel %vm1186, %v8535, %v8536
    %v8538 = vrot.slane %v8466, 5
    %v8539 = vrot.slane %v8538, 4
    %v8540 = vrot.slane %v8041, 5
    %v8541 = vsel %vm1186, %v8539, %v8540
    %v8542 = vrot.slane %v8467, 5
    %v8543 = vrot.slane %v8542, 4
    %v8544 = vrot.slane %v8043, 5
    %v8545 = vsel %vm1186, %v8543, %v8544
    %v8546 = vrot.slane %v8468, 5
    %v8547 = vrot.slane %v8546, 4
    %v8548 = vrot.slane %v8045, 5
    %v8549 = vsel %vm1186, %v8547, %v8548
    %v8550 = vrot.slane %v8469, 5
    %v8551 = vrot.slane %v8550, 4
    %v8552 = vrot.slane %v8047, 5
    %v8553 = vsel %vm1186, %v8551, %v8552
    %v8554 = vrot.slane %v8470, 5
    %v8555 = vrot.slane %v8554, 4
    %v8556 = vrot.slane %v8049, 5
    %v8557 = vsel %vm1186, %v8555, %v8556
    %v8558 = vrot.slane %v8471, 5
    %v8559 = vrot.slane %v8558, 4
    %v8560 = vrot.slane %v8051, 5
    %v8561 = vsel %vm1186, %v8559, %v8560
    %v8562 = vrot.slane %v8472, 5
    %v8563 = vrot.slane %v8562, 4
    %v8564 = vrot.slane %v8053, 5
    %v8565 = vsel %vm1186, %v8563, %v8564
    %v8566 = vrot.slane %v8473, 5
    %v8567 = vrot.slane %v8566, 4
    %v8568 = vrot.slane %v8055, 5
    %v8569 = vsel %vm1186, %v8567, %v8568
    %s8570 = scalar_lea.vmem [#allocation7], 80
    %v8571 = vld [vmem:[%s8570] sm:$0xf]
    %v8572 = vld [vmem:[%s8570 + $0x4] sm:$0xf]
    %v8573 = vld [vmem:[%s8570 + $0x8] sm:$0xf]
    %v8574 = vld [vmem:[%s8570 + $0xc] sm:$0xf]
    %v8575 = vunpack.c.l.b16 %v8509
    %v8576 = vunpack.c.l.b16 %v8513
    %v8577 = vunpack.c.l.b16 %v8517
    %v8578 = vunpack.c.l.b16 %v8521
    %v8579 = vunpack.c.l.b16 %v8525
    %v8580 = vunpack.c.l.b16 %v8529
    %v8581 = vunpack.c.l.b16 %v8533
    %v8582 = vunpack.c.l.b16 %v8537
    %v8583 = vunpack.c.l.b16 %v8541
    %v8584 = vunpack.c.l.b16 %v8545
    %v8585 = vunpack.c.l.b16 %v8549
    %v8586 = vunpack.c.l.b16 %v8553
    %v8587 = vunpack.c.l.b16 %v8557
    %v8588 = vunpack.c.l.b16 %v8561
    %v8589 = vunpack.c.l.b16 %v8565
    %v8590 = vunpack.c.l.b16 %v8569
    %v8591 = vpack.c.b16 %v8576, %v8575
    %v8592 = vpack.c.b16 %v8578, %v8577
    %v8593 = vpack.c.b16 %v8580, %v8579
    %v8594 = vpack.c.b16 %v8582, %v8581
    %v8595 = vpack.c.b16 %v8584, %v8583
    %v8596 = vpack.c.b16 %v8586, %v8585
    %v8597 = vpack.c.b16 %v8588, %v8587
    %v8598 = vpack.c.b16 %v8590, %v8589
    %v8603 = vunpack.c.l.b16 %v8571
    %v8604 = vunpack.c.l.b16 %v8572
    %v8605 = vunpack.c.l.b16 %v8573
    %v8606 = vunpack.c.l.b16 %v8574
    %v8607 = vpack.c.b16 %v8604, %v8603
    %v8608 = vpack.c.b16 %v8606, %v8605
    %v8612 = vsel %vm841, %v8591, 0
    %v8615 = vsel %vm841, %v8592, 0
    %v8618 = vsel %vm841, %v8593, 0
    %v8621 = vsel %vm841, %v8594, 0
    %v8624 = vsel %vm841, %v8595, 0
    %v8627 = vsel %vm841, %v8596, 0
    %v8630 = vsel %vm841, %v8597, 0
    %v8633 = vsel %vm841, %v8598, 0
    %8635 = vmatprep.subr.bf16.mxu0 0
    %8636 = vmatpush1.bf16.msra.mxu0 0
    %8637 = vmatprep.subr.bf16.mxu0 0
    %8638 = vmatpush1.bf16.msra.mxu0 0
    %8639 = vmatprep.subr.bf16.mxu0 0
    %8640 = vmatpush1.bf16.msra.mxu0 0
    %8641 = vmatprep.subr.bf16.mxu0 0
    %8642 = vmatpush1.bf16.msra.mxu0 0
    %8643 = vmatprep.subr.bf16.mxu0 0
    %8644 = vmatpush1.bf16.msra.mxu0 0
    %8645 = vmatprep.subr.bf16.mxu0 0
    %8646 = vmatpush1.bf16.msra.mxu0 0
    %8647 = vmatprep.subr.bf16.mxu0 0
    %8648 = vmatpush1.bf16.msra.mxu0 %v8608
    %8649 = vmatprep.subr.bf16.mxu0 0
    %8650 = vmatpush1.bf16.msra.mxu0 %v8607
    %8651 = vmatprep.subr.bf16.mxu0 0
    %8652 = vmatpush2.bf16.msra.mxu0 0
    %8653 = vmatprep.subr.bf16.mxu0 0
    %8654 = vmatpush2.bf16.msra.mxu0 0
    %8655 = vmatprep.subr.bf16.mxu0 0
    %8656 = vmatpush2.bf16.msra.mxu0 0
    %8657 = vmatprep.subr.bf16.mxu0 0
    %8658 = vmatpush2.bf16.msra.mxu0 0
    %8659 = vmatprep.subr.bf16.mxu0 0
    %8660 = vmatpush2.bf16.msra.mxu0 0
    %8661 = vmatprep.subr.bf16.mxu0 0
    %8662 = vmatpush2.bf16.msra.mxu0 0
    %8663 = vmatprep.subr.bf16.mxu0 0
    %8664 = vmatpush2.bf16.msra.mxu0 0
    %8665 = vmatprep.subr.bf16.mxu0 0
    %8666 = vmatpush2.bf16.msra.mxu0 0
    %8667 = vmatprep.mubr.bf16.mxu0 0
    %8668 = vmatmul.mubr.bf16.gmra.mxu0 %v8612
    %v8669 = vpop.f32.mrf.mxu0
    %v8670 = vadd.f32 0.0, %v8669
    %v8671 = vpop.f32.mrf.mxu0
    %v8672 = vpop.f32.mrf.mxu0
    %v8673 = vadd.f32 0.0, %v8672
    %v8674 = vpop.f32.mrf.mxu0
    %8675 = vmatprep.mubr.bf16.mxu0 0
    %8676 = vmatmul.mubr.bf16.gmra.mxu0 %v8615
    %v8677 = vpop.f32.mrf.mxu0
    %v8678 = vadd.f32 0.0, %v8677
    %v8679 = vpop.f32.mrf.mxu0
    %v8680 = vpop.f32.mrf.mxu0
    %v8681 = vadd.f32 0.0, %v8680
    %v8682 = vpop.f32.mrf.mxu0
    %8683 = vmatprep.mubr.bf16.mxu0 0
    %8684 = vmatmul.mubr.bf16.gmra.mxu0 %v8618
    %v8685 = vpop.f32.mrf.mxu0
    %v8686 = vadd.f32 0.0, %v8685
    %v8687 = vpop.f32.mrf.mxu0
    %v8688 = vpop.f32.mrf.mxu0
    %v8689 = vadd.f32 0.0, %v8688
    %v8690 = vpop.f32.mrf.mxu0
    %8691 = vmatprep.mubr.bf16.mxu0 0
    %8692 = vmatmul.mubr.bf16.gmra.mxu0 %v8621
    %v8693 = vpop.f32.mrf.mxu0
    %v8694 = vadd.f32 0.0, %v8693
    %v8695 = vpop.f32.mrf.mxu0
    %v8696 = vpop.f32.mrf.mxu0
    %v8697 = vadd.f32 0.0, %v8696
    %v8698 = vpop.f32.mrf.mxu0
    %8699 = vmatprep.mubr.bf16.mxu0 0
    %8700 = vmatmul.mubr.bf16.gmra.mxu0 %v8624
    %v8701 = vpop.f32.mrf.mxu0
    %v8702 = vadd.f32 0.0, %v8701
    %v8703 = vpop.f32.mrf.mxu0
    %v8704 = vpop.f32.mrf.mxu0
    %v8705 = vadd.f32 0.0, %v8704
    %v8706 = vpop.f32.mrf.mxu0
    %8707 = vmatprep.mubr.bf16.mxu0 0
    %8708 = vmatmul.mubr.bf16.gmra.mxu0 %v8627
    %v8709 = vpop.f32.mrf.mxu0
    %v8710 = vadd.f32 0.0, %v8709
    %v8711 = vpop.f32.mrf.mxu0
    %v8712 = vpop.f32.mrf.mxu0
    %v8713 = vadd.f32 0.0, %v8712
    %v8714 = vpop.f32.mrf.mxu0
    %8715 = vmatprep.mubr.bf16.mxu0 0
    %8716 = vmatmul.mubr.bf16.gmra.mxu0 %v8630
    %v8717 = vpop.f32.mrf.mxu0
    %v8718 = vadd.f32 0.0, %v8717
    %v8719 = vpop.f32.mrf.mxu0
    %v8720 = vpop.f32.mrf.mxu0
    %v8721 = vadd.f32 0.0, %v8720
    %v8722 = vpop.f32.mrf.mxu0
    %8723 = vmatprep.mubr.bf16.mxu0 0
    %8724 = vmatmul.mubr.bf16.gmra.mxu0 %v8633
    %v8725 = vpop.f32.mrf.mxu0
    %v8726 = vadd.f32 0.0, %v8725
    %v8727 = vpop.f32.mrf.mxu0
    %v8728 = vpop.f32.mrf.mxu0
    %v8729 = vadd.f32 0.0, %v8728
    %v8730 = vpop.f32.mrf.mxu0
    %8731 = vdwg.mxu0
    %v8732 = vadd.f32 %v8442, %v8670
    %v8733 = vadd.f32 %v8443, %v8673
    %v8734 = vadd.f32 %v8444, %v8678
    %v8735 = vadd.f32 %v8445, %v8681
    %v8736 = vadd.f32 %v8446, %v8686
    %v8737 = vadd.f32 %v8447, %v8689
    %v8738 = vadd.f32 %v8448, %v8694
    %v8739 = vadd.f32 %v8449, %v8697
    %v8740 = vadd.f32 %v8450, %v8702
    %v8741 = vadd.f32 %v8451, %v8705
    %v8742 = vadd.f32 %v8452, %v8710
    %v8743 = vadd.f32 %v8453, %v8713
    %v8744 = vadd.f32 %v8454, %v8718
    %v8745 = vadd.f32 %v8455, %v8721
    %v8746 = vadd.f32 %v8456, %v8726
    %v8747 = vadd.f32 %v8457, %v8729
    %v8748 = vld [vmem:[%s2363] sm:$0xf]
    %v8749 = vld [vmem:[%s2363 + $0x8] sm:$0xf]
    %v8750 = vld [vmem:[%s2363 + $0x10] sm:$0xf]
    %v8751 = vld [vmem:[%s2363 + $0x18] sm:$0xf]
    %v8752 = vld [vmem:[%s2363 + $0x20] sm:$0xf]
    %v8753 = vld [vmem:[%s2363 + $0x28] sm:$0xf]
    %v8754 = vld [vmem:[%s2363 + $0x30] sm:$0xf]
    %v8755 = vld [vmem:[%s2363 + $0x38] sm:$0xf]
    %v8756 = vld [vmem:[%s2363 + $0x50] sm:$0xf]
    %v8757 = vld [vmem:[%s2363 + $0x58] sm:$0xf]
    %v8758 = vld [vmem:[%s2363 + $0x60] sm:$0xf]
    %v8759 = vld [vmem:[%s2363 + $0x68] sm:$0xf]
    %v8760 = vld [vmem:[%s2363 + $0x70] sm:$0xf]
    %v8761 = vld [vmem:[%s2363 + $0x78] sm:$0xf]
    %v8762 = vld [vmem:[%s2363 + $0x80] sm:$0xf]
    %v8763 = vld [vmem:[%s2363 + $0x88] sm:$0xf]
    %s8764 = scalar_lea.vmem [#allocation7], 96
    %v8765 = vld [vmem:[%s8764] sm:$0xf]
    %v8766 = vld [vmem:[%s8764 + $0x4] sm:$0xf]
    %v8767 = vld [vmem:[%s8764 + $0x8] sm:$0xf]
    %v8768 = vld [vmem:[%s8764 + $0xc] sm:$0xf]
    %v8785 = vunpack.c.l.b16 %v8748
    %v8786 = vunpack.c.l.b16 %v8749
    %v8787 = vunpack.c.l.b16 %v8750
    %v8788 = vunpack.c.l.b16 %v8751
    %v8789 = vunpack.c.l.b16 %v8752
    %v8790 = vunpack.c.l.b16 %v8753
    %v8791 = vunpack.c.l.b16 %v8754
    %v8792 = vunpack.c.l.b16 %v8755
    %v8793 = vunpack.c.l.b16 %v8756
    %v8794 = vunpack.c.l.b16 %v8757
    %v8795 = vunpack.c.l.b16 %v8758
    %v8796 = vunpack.c.l.b16 %v8759
    %v8797 = vunpack.c.l.b16 %v8760
    %v8798 = vunpack.c.l.b16 %v8761
    %v8799 = vunpack.c.l.b16 %v8762
    %v8800 = vunpack.c.l.b16 %v8763
    %v8801 = vpack.c.b16 %v8786, %v8785
    %v8802 = vpack.c.b16 %v8788, %v8787
    %v8803 = vpack.c.b16 %v8790, %v8789
    %v8804 = vpack.c.b16 %v8792, %v8791
    %v8805 = vpack.c.b16 %v8794, %v8793
    %v8806 = vpack.c.b16 %v8796, %v8795
    %v8807 = vpack.c.b16 %v8798, %v8797
    %v8808 = vpack.c.b16 %v8800, %v8799
    %v8813 = vunpack.c.l.b16 %v8765
    %v8814 = vunpack.c.l.b16 %v8766
    %v8815 = vunpack.c.l.b16 %v8767
    %v8816 = vunpack.c.l.b16 %v8768
    %v8817 = vpack.c.b16 %v8814, %v8813
    %v8818 = vpack.c.b16 %v8816, %v8815
    %v8822 = vsel %vm841, %v8801, 0
    %v8825 = vsel %vm841, %v8802, 0
    %v8828 = vsel %vm841, %v8803, 0
    %v8831 = vsel %vm841, %v8804, 0
    %v8834 = vsel %vm841, %v8805, 0
    %v8837 = vsel %vm841, %v8806, 0
    %v8840 = vsel %vm841, %v8807, 0
    %v8843 = vsel %vm841, %v8808, 0
    %8845 = vmatprep.subr.bf16.mxu0 0
    %8846 = vmatpush1.bf16.msra.mxu0 0
    %8847 = vmatprep.subr.bf16.mxu0 0
    %8848 = vmatpush1.bf16.msra.mxu0 0
    %8849 = vmatprep.subr.bf16.mxu0 0
    %8850 = vmatpush1.bf16.msra.mxu0 0
    %8851 = vmatprep.subr.bf16.mxu0 0
    %8852 = vmatpush1.bf16.msra.mxu0 0
    %8853 = vmatprep.subr.bf16.mxu0 0
    %8854 = vmatpush1.bf16.msra.mxu0 0
    %8855 = vmatprep.subr.bf16.mxu0 0
    %8856 = vmatpush1.bf16.msra.mxu0 0
    %8857 = vmatprep.subr.bf16.mxu0 0
    %8858 = vmatpush1.bf16.msra.mxu0 %v8818
    %8859 = vmatprep.subr.bf16.mxu0 0
    %8860 = vmatpush1.bf16.msra.mxu0 %v8817
    %8861 = vmatprep.subr.bf16.mxu0 0
    %8862 = vmatpush2.bf16.msra.mxu0 0
    %8863 = vmatprep.subr.bf16.mxu0 0
    %8864 = vmatpush2.bf16.msra.mxu0 0
    %8865 = vmatprep.subr.bf16.mxu0 0
    %8866 = vmatpush2.bf16.msra.mxu0 0
    %8867 = vmatprep.subr.bf16.mxu0 0
    %8868 = vmatpush2.bf16.msra.mxu0 0
    %8869 = vmatprep.subr.bf16.mxu0 0
    %8870 = vmatpush2.bf16.msra.mxu0 0
    %8871 = vmatprep.subr.bf16.mxu0 0
    %8872 = vmatpush2.bf16.msra.mxu0 0
    %8873 = vmatprep.subr.bf16.mxu0 0
    %8874 = vmatpush2.bf16.msra.mxu0 0
    %8875 = vmatprep.subr.bf16.mxu0 0
    %8876 = vmatpush2.bf16.msra.mxu0 0
    %8877 = vmatprep.mubr.bf16.mxu0 0
    %8878 = vmatmul.mubr.bf16.gmra.mxu0 %v8822
    %v8879 = vpop.f32.mrf.mxu0
    %v8880 = vadd.f32 0.0, %v8879
    %v8881 = vpop.f32.mrf.mxu0
    %v8882 = vpop.f32.mrf.mxu0
    %v8883 = vadd.f32 0.0, %v8882
    %v8884 = vpop.f32.mrf.mxu0
    %8885 = vmatprep.mubr.bf16.mxu0 0
    %8886 = vmatmul.mubr.bf16.gmra.mxu0 %v8825
    %v8887 = vpop.f32.mrf.mxu0
    %v8888 = vadd.f32 0.0, %v8887
    %v8889 = vpop.f32.mrf.mxu0
    %v8890 = vpop.f32.mrf.mxu0
    %v8891 = vadd.f32 0.0, %v8890
    %v8892 = vpop.f32.mrf.mxu0
    %8893 = vmatprep.mubr.bf16.mxu0 0
    %8894 = vmatmul.mubr.bf16.gmra.mxu0 %v8828
    %v8895 = vpop.f32.mrf.mxu0
    %v8896 = vadd.f32 0.0, %v8895
    %v8897 = vpop.f32.mrf.mxu0
    %v8898 = vpop.f32.mrf.mxu0
    %v8899 = vadd.f32 0.0, %v8898
    %v8900 = vpop.f32.mrf.mxu0
    %8901 = vmatprep.mubr.bf16.mxu0 0
    %8902 = vmatmul.mubr.bf16.gmra.mxu0 %v8831
    %v8903 = vpop.f32.mrf.mxu0
    %v8904 = vadd.f32 0.0, %v8903
    %v8905 = vpop.f32.mrf.mxu0
    %v8906 = vpop.f32.mrf.mxu0
    %v8907 = vadd.f32 0.0, %v8906
    %v8908 = vpop.f32.mrf.mxu0
    %8909 = vmatprep.mubr.bf16.mxu0 0
    %8910 = vmatmul.mubr.bf16.gmra.mxu0 %v8834
    %v8911 = vpop.f32.mrf.mxu0
    %v8912 = vadd.f32 0.0, %v8911
    %v8913 = vpop.f32.mrf.mxu0
    %v8914 = vpop.f32.mrf.mxu0
    %v8915 = vadd.f32 0.0, %v8914
    %v8916 = vpop.f32.mrf.mxu0
    %8917 = vmatprep.mubr.bf16.mxu0 0
    %8918 = vmatmul.mubr.bf16.gmra.mxu0 %v8837
    %v8919 = vpop.f32.mrf.mxu0
    %v8920 = vadd.f32 0.0, %v8919
    %v8921 = vpop.f32.mrf.mxu0
    %v8922 = vpop.f32.mrf.mxu0
    %v8923 = vadd.f32 0.0, %v8922
    %v8924 = vpop.f32.mrf.mxu0
    %8925 = vmatprep.mubr.bf16.mxu0 0
    %8926 = vmatmul.mubr.bf16.gmra.mxu0 %v8840
    %v8927 = vpop.f32.mrf.mxu0
    %v8928 = vadd.f32 0.0, %v8927
    %v8929 = vpop.f32.mrf.mxu0
    %v8930 = vpop.f32.mrf.mxu0
    %v8931 = vadd.f32 0.0, %v8930
    %v8932 = vpop.f32.mrf.mxu0
    %8933 = vmatprep.mubr.bf16.mxu0 0
    %8934 = vmatmul.mubr.bf16.gmra.mxu0 %v8843
    %v8935 = vpop.f32.mrf.mxu0
    %v8936 = vadd.f32 0.0, %v8935
    %v8937 = vpop.f32.mrf.mxu0
    %v8938 = vpop.f32.mrf.mxu0
    %v8939 = vadd.f32 0.0, %v8938
    %v8940 = vpop.f32.mrf.mxu0
    %8941 = vdwg.mxu0
    %v8942 = vadd.f32 %v8732, %v8880
    %v8943 = vadd.f32 %v8733, %v8883
    %v8944 = vadd.f32 %v8734, %v8888
    %v8945 = vadd.f32 %v8735, %v8891
    %v8946 = vadd.f32 %v8736, %v8896
    %v8947 = vadd.f32 %v8737, %v8899
    %v8948 = vadd.f32 %v8738, %v8904
    %v8949 = vadd.f32 %v8739, %v8907
    %v8950 = vadd.f32 %v8740, %v8912
    %v8951 = vadd.f32 %v8741, %v8915
    %v8952 = vadd.f32 %v8742, %v8920
    %v8953 = vadd.f32 %v8743, %v8923
    %v8954 = vadd.f32 %v8744, %v8928
    %v8955 = vadd.f32 %v8745, %v8931
    %v8956 = vadd.f32 %v8746, %v8936
    %v8957 = vadd.f32 %v8747, %v8939
    %v8958 = vld [vmem:[%s2363] sm:$0xf]
    %v8959 = vld [vmem:[%s2363 + $0x4] sm:$0x1]
    %v8960 = vld [vmem:[%s2363 + $0x8] sm:$0xf]
    %v8961 = vld [vmem:[%s2363 + $0xc] sm:$0x1]
    %v8962 = vld [vmem:[%s2363 + $0x10] sm:$0xf]
    %v8963 = vld [vmem:[%s2363 + $0x14] sm:$0x1]
    %v8964 = vld [vmem:[%s2363 + $0x18] sm:$0xf]
    %v8965 = vld [vmem:[%s2363 + $0x1c] sm:$0x1]
    %v8966 = vld [vmem:[%s2363 + $0x20] sm:$0xf]
    %v8967 = vld [vmem:[%s2363 + $0x24] sm:$0x1]
    %v8968 = vld [vmem:[%s2363 + $0x28] sm:$0xf]
    %v8969 = vld [vmem:[%s2363 + $0x2c] sm:$0x1]
    %v8970 = vld [vmem:[%s2363 + $0x30] sm:$0xf]
    %v8971 = vld [vmem:[%s2363 + $0x34] sm:$0x1]
    %v8972 = vld [vmem:[%s2363 + $0x38] sm:$0xf]
    %v8973 = vld [vmem:[%s2363 + $0x3c] sm:$0x1]
    %v8974 = vld [vmem:[%s2363 + $0x50] sm:$0xf]
    %v8975 = vld [vmem:[%s2363 + $0x54] sm:$0x1]
    %v8976 = vld [vmem:[%s2363 + $0x58] sm:$0xf]
    %v8977 = vld [vmem:[%s2363 + $0x5c] sm:$0x1]
    %v8978 = vld [vmem:[%s2363 + $0x60] sm:$0xf]
    %v8979 = vld [vmem:[%s2363 + $0x64] sm:$0x1]
    %v8980 = vld [vmem:[%s2363 + $0x68] sm:$0xf]
    %v8981 = vld [vmem:[%s2363 + $0x6c] sm:$0x1]
    %v8982 = vld [vmem:[%s2363 + $0x70] sm:$0xf]
    %v8983 = vld [vmem:[%s2363 + $0x74] sm:$0x1]
    %v8984 = vld [vmem:[%s2363 + $0x78] sm:$0xf]
    %v8985 = vld [vmem:[%s2363 + $0x7c] sm:$0x1]
    %v8986 = vld [vmem:[%s2363 + $0x80] sm:$0xf]
    %v8987 = vld [vmem:[%s2363 + $0x84] sm:$0x1]
    %v8988 = vld [vmem:[%s2363 + $0x88] sm:$0xf]
    %v8989 = vld [vmem:[%s2363 + $0x8c] sm:$0x1]
    %v8991 = vshrl.u32 %v8958, 16
    %v8993 = vrot.slane %v8991, 4
    %v8994 = vshll.u32 %v8958, 16
    %v8996 = vrot.slane %v8994, 5
    %v8997 = vor.u32 %v8993, %v8996
    %v8998 = vrot.slane %v8997, 4
    %v9000 = vshll.u32 %v8959, 16
    %v9002 = vrot.slane %v9000, 5
    %v9003 = vsel %vm575, %v8998, %v9002
    %v9005 = vshrl.u32 %v8960, 16
    %v9007 = vrot.slane %v9005, 4
    %v9008 = vshll.u32 %v8960, 16
    %v9010 = vrot.slane %v9008, 5
    %v9011 = vor.u32 %v9007, %v9010
    %v9012 = vrot.slane %v9011, 4
    %v9014 = vshll.u32 %v8961, 16
    %v9016 = vrot.slane %v9014, 5
    %v9017 = vsel %vm575, %v9012, %v9016
    %v9019 = vshrl.u32 %v8962, 16
    %v9021 = vrot.slane %v9019, 4
    %v9022 = vshll.u32 %v8962, 16
    %v9024 = vrot.slane %v9022, 5
    %v9025 = vor.u32 %v9021, %v9024
    %v9026 = vrot.slane %v9025, 4
    %v9028 = vshll.u32 %v8963, 16
    %v9030 = vrot.slane %v9028, 5
    %v9031 = vsel %vm575, %v9026, %v9030
    %v9033 = vshrl.u32 %v8964, 16
    %v9035 = vrot.slane %v9033, 4
    %v9036 = vshll.u32 %v8964, 16
    %v9038 = vrot.slane %v9036, 5
    %v9039 = vor.u32 %v9035, %v9038
    %v9040 = vrot.slane %v9039, 4
    %v9042 = vshll.u32 %v8965, 16
    %v9044 = vrot.slane %v9042, 5
    %v9045 = vsel %vm575, %v9040, %v9044
    %v9047 = vshrl.u32 %v8966, 16
    %v9049 = vrot.slane %v9047, 4
    %v9050 = vshll.u32 %v8966, 16
    %v9052 = vrot.slane %v9050, 5
    %v9053 = vor.u32 %v9049, %v9052
    %v9054 = vrot.slane %v9053, 4
    %v9056 = vshll.u32 %v8967, 16
    %v9058 = vrot.slane %v9056, 5
    %v9059 = vsel %vm575, %v9054, %v9058
    %v9061 = vshrl.u32 %v8968, 16
    %v9063 = vrot.slane %v9061, 4
    %v9064 = vshll.u32 %v8968, 16
    %v9066 = vrot.slane %v9064, 5
    %v9067 = vor.u32 %v9063, %v9066
    %v9068 = vrot.slane %v9067, 4
    %v9070 = vshll.u32 %v8969, 16
    %v9072 = vrot.slane %v9070, 5
    %v9073 = vsel %vm575, %v9068, %v9072
    %v9075 = vshrl.u32 %v8970, 16
    %v9077 = vrot.slane %v9075, 4
    %v9078 = vshll.u32 %v8970, 16
    %v9080 = vrot.slane %v9078, 5
    %v9081 = vor.u32 %v9077, %v9080
    %v9082 = vrot.slane %v9081, 4
    %v9084 = vshll.u32 %v8971, 16
    %v9086 = vrot.slane %v9084, 5
    %v9087 = vsel %vm575, %v9082, %v9086
    %v9089 = vshrl.u32 %v8972, 16
    %v9091 = vrot.slane %v9089, 4
    %v9092 = vshll.u32 %v8972, 16
    %v9094 = vrot.slane %v9092, 5
    %v9095 = vor.u32 %v9091, %v9094
    %v9096 = vrot.slane %v9095, 4
    %v9098 = vshll.u32 %v8973, 16
    %v9100 = vrot.slane %v9098, 5
    %v9101 = vsel %vm575, %v9096, %v9100
    %v9103 = vshrl.u32 %v8974, 16
    %v9105 = vrot.slane %v9103, 4
    %v9106 = vshll.u32 %v8974, 16
    %v9108 = vrot.slane %v9106, 5
    %v9109 = vor.u32 %v9105, %v9108
    %v9110 = vrot.slane %v9109, 4
    %v9112 = vshll.u32 %v8975, 16
    %v9114 = vrot.slane %v9112, 5
    %v9115 = vsel %vm575, %v9110, %v9114
    %v9117 = vshrl.u32 %v8976, 16
    %v9119 = vrot.slane %v9117, 4
    %v9120 = vshll.u32 %v8976, 16
    %v9122 = vrot.slane %v9120, 5
    %v9123 = vor.u32 %v9119, %v9122
    %v9124 = vrot.slane %v9123, 4
    %v9126 = vshll.u32 %v8977, 16
    %v9128 = vrot.slane %v9126, 5
    %v9129 = vsel %vm575, %v9124, %v9128
    %v9131 = vshrl.u32 %v8978, 16
    %v9133 = vrot.slane %v9131, 4
    %v9134 = vshll.u32 %v8978, 16
    %v9136 = vrot.slane %v9134, 5
    %v9137 = vor.u32 %v9133, %v9136
    %v9138 = vrot.slane %v9137, 4
    %v9140 = vshll.u32 %v8979, 16
    %v9142 = vrot.slane %v9140, 5
    %v9143 = vsel %vm575, %v9138, %v9142
    %v9145 = vshrl.u32 %v8980, 16
    %v9147 = vrot.slane %v9145, 4
    %v9148 = vshll.u32 %v8980, 16
    %v9150 = vrot.slane %v9148, 5
    %v9151 = vor.u32 %v9147, %v9150
    %v9152 = vrot.slane %v9151, 4
    %v9154 = vshll.u32 %v8981, 16
    %v9156 = vrot.slane %v9154, 5
    %v9157 = vsel %vm575, %v9152, %v9156
    %v9159 = vshrl.u32 %v8982, 16
    %v9161 = vrot.slane %v9159, 4
    %v9162 = vshll.u32 %v8982, 16
    %v9164 = vrot.slane %v9162, 5
    %v9165 = vor.u32 %v9161, %v9164
    %v9166 = vrot.slane %v9165, 4
    %v9168 = vshll.u32 %v8983, 16
    %v9170 = vrot.slane %v9168, 5
    %v9171 = vsel %vm575, %v9166, %v9170
    %v9173 = vshrl.u32 %v8984, 16
    %v9175 = vrot.slane %v9173, 4
    %v9176 = vshll.u32 %v8984, 16
    %v9178 = vrot.slane %v9176, 5
    %v9179 = vor.u32 %v9175, %v9178
    %v9180 = vrot.slane %v9179, 4
    %v9182 = vshll.u32 %v8985, 16
    %v9184 = vrot.slane %v9182, 5
    %v9185 = vsel %vm575, %v9180, %v9184
    %v9187 = vshrl.u32 %v8986, 16
    %v9189 = vrot.slane %v9187, 4
    %v9190 = vshll.u32 %v8986, 16
    %v9192 = vrot.slane %v9190, 5
    %v9193 = vor.u32 %v9189, %v9192
    %v9194 = vrot.slane %v9193, 4
    %v9196 = vshll.u32 %v8987, 16
    %v9198 = vrot.slane %v9196, 5
    %v9199 = vsel %vm575, %v9194, %v9198
    %v9201 = vshrl.u32 %v8988, 16
    %v9203 = vrot.slane %v9201, 4
    %v9204 = vshll.u32 %v8988, 16
    %v9206 = vrot.slane %v9204, 5
    %v9207 = vor.u32 %v9203, %v9206
    %v9208 = vrot.slane %v9207, 4
    %v9210 = vshll.u32 %v8989, 16
    %v9212 = vrot.slane %v9210, 5
    %v9213 = vsel %vm575, %v9208, %v9212
    %s9214 = scalar_lea.vmem [#allocation7], 112
    %v9215 = vld [vmem:[%s9214] sm:$0xf]
    %v9216 = vld [vmem:[%s9214 + $0x4] sm:$0xf]
    %v9217 = vld [vmem:[%s9214 + $0x8] sm:$0xf]
    %v9218 = vld [vmem:[%s9214 + $0xc] sm:$0xf]
    %v9219 = vunpack.c.l.b16 %v9003
    %v9220 = vunpack.c.l.b16 %v9017
    %v9221 = vunpack.c.l.b16 %v9031
    %v9222 = vunpack.c.l.b16 %v9045
    %v9223 = vunpack.c.l.b16 %v9059
    %v9224 = vunpack.c.l.b16 %v9073
    %v9225 = vunpack.c.l.b16 %v9087
    %v9226 = vunpack.c.l.b16 %v9101
    %v9227 = vunpack.c.l.b16 %v9115
    %v9228 = vunpack.c.l.b16 %v9129
    %v9229 = vunpack.c.l.b16 %v9143
    %v9230 = vunpack.c.l.b16 %v9157
    %v9231 = vunpack.c.l.b16 %v9171
    %v9232 = vunpack.c.l.b16 %v9185
    %v9233 = vunpack.c.l.b16 %v9199
    %v9234 = vunpack.c.l.b16 %v9213
    %v9235 = vpack.c.b16 %v9220, %v9219
    %v9236 = vpack.c.b16 %v9222, %v9221
    %v9237 = vpack.c.b16 %v9224, %v9223
    %v9238 = vpack.c.b16 %v9226, %v9225
    %v9239 = vpack.c.b16 %v9228, %v9227
    %v9240 = vpack.c.b16 %v9230, %v9229
    %v9241 = vpack.c.b16 %v9232, %v9231
    %v9242 = vpack.c.b16 %v9234, %v9233
    %v9247 = vunpack.c.l.b16 %v9215
    %v9248 = vunpack.c.l.b16 %v9216
    %v9249 = vunpack.c.l.b16 %v9217
    %v9250 = vunpack.c.l.b16 %v9218
    %v9251 = vpack.c.b16 %v9248, %v9247
    %v9252 = vpack.c.b16 %v9250, %v9249
    %v9256 = vsel %vm841, %v9235, 0
    %v9259 = vsel %vm841, %v9236, 0
    %v9262 = vsel %vm841, %v9237, 0
    %v9265 = vsel %vm841, %v9238, 0
    %v9268 = vsel %vm841, %v9239, 0
    %v9271 = vsel %vm841, %v9240, 0
    %v9274 = vsel %vm841, %v9241, 0
    %v9277 = vsel %vm841, %v9242, 0
    %9279 = vmatprep.subr.bf16.mxu0 0
    %9280 = vmatpush1.bf16.msra.mxu0 0
    %9281 = vmatprep.subr.bf16.mxu0 0
    %9282 = vmatpush1.bf16.msra.mxu0 0
    %9283 = vmatprep.subr.bf16.mxu0 0
    %9284 = vmatpush1.bf16.msra.mxu0 0
    %9285 = vmatprep.subr.bf16.mxu0 0
    %9286 = vmatpush1.bf16.msra.mxu0 0
    %9287 = vmatprep.subr.bf16.mxu0 0
    %9288 = vmatpush1.bf16.msra.mxu0 0
    %9289 = vmatprep.subr.bf16.mxu0 0
    %9290 = vmatpush1.bf16.msra.mxu0 0
    %9291 = vmatprep.subr.bf16.mxu0 0
    %9292 = vmatpush1.bf16.msra.mxu0 %v9252
    %9293 = vmatprep.subr.bf16.mxu0 0
    %9294 = vmatpush1.bf16.msra.mxu0 %v9251
    %9295 = vmatprep.subr.bf16.mxu0 0
    %9296 = vmatpush2.bf16.msra.mxu0 0
    %9297 = vmatprep.subr.bf16.mxu0 0
    %9298 = vmatpush2.bf16.msra.mxu0 0
    %9299 = vmatprep.subr.bf16.mxu0 0
    %9300 = vmatpush2.bf16.msra.mxu0 0
    %9301 = vmatprep.subr.bf16.mxu0 0
    %9302 = vmatpush2.bf16.msra.mxu0 0
    %9303 = vmatprep.subr.bf16.mxu0 0
    %9304 = vmatpush2.bf16.msra.mxu0 0
    %9305 = vmatprep.subr.bf16.mxu0 0
    %9306 = vmatpush2.bf16.msra.mxu0 0
    %9307 = vmatprep.subr.bf16.mxu0 0
    %9308 = vmatpush2.bf16.msra.mxu0 0
    %9309 = vmatprep.subr.bf16.mxu0 0
    %9310 = vmatpush2.bf16.msra.mxu0 0
    %9311 = vmatprep.mubr.bf16.mxu0 0
    %9312 = vmatmul.mubr.bf16.gmra.mxu0 %v9256
    %v9313 = vpop.f32.mrf.mxu0
    %v9314 = vadd.f32 0.0, %v9313
    %v9315 = vpop.f32.mrf.mxu0
    %v9316 = vpop.f32.mrf.mxu0
    %v9317 = vadd.f32 0.0, %v9316
    %v9318 = vpop.f32.mrf.mxu0
    %9319 = vmatprep.mubr.bf16.mxu0 0
    %9320 = vmatmul.mubr.bf16.gmra.mxu0 %v9259
    %v9321 = vpop.f32.mrf.mxu0
    %v9322 = vadd.f32 0.0, %v9321
    %v9323 = vpop.f32.mrf.mxu0
    %v9324 = vpop.f32.mrf.mxu0
    %v9325 = vadd.f32 0.0, %v9324
    %v9326 = vpop.f32.mrf.mxu0
    %9327 = vmatprep.mubr.bf16.mxu0 0
    %9328 = vmatmul.mubr.bf16.gmra.mxu0 %v9262
    %v9329 = vpop.f32.mrf.mxu0
    %v9330 = vadd.f32 0.0, %v9329
    %v9331 = vpop.f32.mrf.mxu0
    %v9332 = vpop.f32.mrf.mxu0
    %v9333 = vadd.f32 0.0, %v9332
    %v9334 = vpop.f32.mrf.mxu0
    %9335 = vmatprep.mubr.bf16.mxu0 0
    %9336 = vmatmul.mubr.bf16.gmra.mxu0 %v9265
    %v9337 = vpop.f32.mrf.mxu0
    %v9338 = vadd.f32 0.0, %v9337
    %v9339 = vpop.f32.mrf.mxu0
    %v9340 = vpop.f32.mrf.mxu0
    %v9341 = vadd.f32 0.0, %v9340
    %v9342 = vpop.f32.mrf.mxu0
    %9343 = vmatprep.mubr.bf16.mxu0 0
    %9344 = vmatmul.mubr.bf16.gmra.mxu0 %v9268
    %v9345 = vpop.f32.mrf.mxu0
    %v9346 = vadd.f32 0.0, %v9345
    %v9347 = vpop.f32.mrf.mxu0
    %v9348 = vpop.f32.mrf.mxu0
    %v9349 = vadd.f32 0.0, %v9348
    %v9350 = vpop.f32.mrf.mxu0
    %9351 = vmatprep.mubr.bf16.mxu0 0
    %9352 = vmatmul.mubr.bf16.gmra.mxu0 %v9271
    %v9353 = vpop.f32.mrf.mxu0
    %v9354 = vadd.f32 0.0, %v9353
    %v9355 = vpop.f32.mrf.mxu0
    %v9356 = vpop.f32.mrf.mxu0
    %v9357 = vadd.f32 0.0, %v9356
    %v9358 = vpop.f32.mrf.mxu0
    %9359 = vmatprep.mubr.bf16.mxu0 0
    %9360 = vmatmul.mubr.bf16.gmra.mxu0 %v9274
    %v9361 = vpop.f32.mrf.mxu0
    %v9362 = vadd.f32 0.0, %v9361
    %v9363 = vpop.f32.mrf.mxu0
    %v9364 = vpop.f32.mrf.mxu0
    %v9365 = vadd.f32 0.0, %v9364
    %v9366 = vpop.f32.mrf.mxu0
    %9367 = vmatprep.mubr.bf16.mxu0 0
    %9368 = vmatmul.mubr.bf16.gmra.mxu0 %v9277
    %v9369 = vpop.f32.mrf.mxu0
    %v9370 = vadd.f32 0.0, %v9369
    %v9371 = vpop.f32.mrf.mxu0
    %v9372 = vpop.f32.mrf.mxu0
    %v9373 = vadd.f32 0.0, %v9372
    %v9374 = vpop.f32.mrf.mxu0
    %9375 = vdwg.mxu0
    %v9376 = vadd.f32 %v8942, %v9314
    %v9377 = vadd.f32 %v8943, %v9317
    %v9378 = vadd.f32 %v8944, %v9322
    %v9379 = vadd.f32 %v8945, %v9325
    %v9380 = vadd.f32 %v8946, %v9330
    %v9381 = vadd.f32 %v8947, %v9333
    %v9382 = vadd.f32 %v8948, %v9338
    %v9383 = vadd.f32 %v8949, %v9341
    %v9384 = vadd.f32 %v8950, %v9346
    %v9385 = vadd.f32 %v8951, %v9349
    %v9386 = vadd.f32 %v8952, %v9354
    %v9387 = vadd.f32 %v8953, %v9357
    %v9388 = vadd.f32 %v8954, %v9362
    %v9389 = vadd.f32 %v8955, %v9365
    %v9390 = vadd.f32 %v8956, %v9370
    %v9391 = vadd.f32 %v8957, %v9373
    %v9392 = vld [vmem:[%s2363] sm:$0xe]
    %v9393 = vld [vmem:[%s2363 + $0x8] sm:$0xe]
    %v9394 = vld [vmem:[%s2363 + $0x10] sm:$0xe]
    %v9395 = vld [vmem:[%s2363 + $0x18] sm:$0xe]
    %v9396 = vld [vmem:[%s2363 + $0x20] sm:$0xe]
    %v9397 = vld [vmem:[%s2363 + $0x28] sm:$0xe]
    %v9398 = vld [vmem:[%s2363 + $0x30] sm:$0xe]
    %v9399 = vld [vmem:[%s2363 + $0x38] sm:$0xe]
    %v9400 = vld [vmem:[%s2363 + $0x50] sm:$0xe]
    %v9401 = vld [vmem:[%s2363 + $0x58] sm:$0xe]
    %v9402 = vld [vmem:[%s2363 + $0x60] sm:$0xe]
    %v9403 = vld [vmem:[%s2363 + $0x68] sm:$0xe]
    %v9404 = vld [vmem:[%s2363 + $0x70] sm:$0xe]
    %v9405 = vld [vmem:[%s2363 + $0x78] sm:$0xe]
    %v9406 = vld [vmem:[%s2363 + $0x80] sm:$0xe]
    %v9407 = vld [vmem:[%s2363 + $0x88] sm:$0xe]
    %v9440 = vrot.slane %v9392, 5
    %v9441 = vrot.slane %v9440, 4
    %v9442 = vrot.slane %v8959, 5
    %v9443 = vsel %vm1186, %v9441, %v9442
    %v9444 = vrot.slane %v9393, 5
    %v9445 = vrot.slane %v9444, 4
    %v9446 = vrot.slane %v8961, 5
    %v9447 = vsel %vm1186, %v9445, %v9446
    %v9448 = vrot.slane %v9394, 5
    %v9449 = vrot.slane %v9448, 4
    %v9450 = vrot.slane %v8963, 5
    %v9451 = vsel %vm1186, %v9449, %v9450
    %v9452 = vrot.slane %v9395, 5
    %v9453 = vrot.slane %v9452, 4
    %v9454 = vrot.slane %v8965, 5
    %v9455 = vsel %vm1186, %v9453, %v9454
    %v9456 = vrot.slane %v9396, 5
    %v9457 = vrot.slane %v9456, 4
    %v9458 = vrot.slane %v8967, 5
    %v9459 = vsel %vm1186, %v9457, %v9458
    %v9460 = vrot.slane %v9397, 5
    %v9461 = vrot.slane %v9460, 4
    %v9462 = vrot.slane %v8969, 5
    %v9463 = vsel %vm1186, %v9461, %v9462
    %v9464 = vrot.slane %v9398, 5
    %v9465 = vrot.slane %v9464, 4
    %v9466 = vrot.slane %v8971, 5
    %v9467 = vsel %vm1186, %v9465, %v9466
    %v9468 = vrot.slane %v9399, 5
    %v9469 = vrot.slane %v9468, 4
    %v9470 = vrot.slane %v8973, 5
    %v9471 = vsel %vm1186, %v9469, %v9470
    %v9472 = vrot.slane %v9400, 5
    %v9473 = vrot.slane %v9472, 4
    %v9474 = vrot.slane %v8975, 5
    %v9475 = vsel %vm1186, %v9473, %v9474
    %v9476 = vrot.slane %v9401, 5
    %v9477 = vrot.slane %v9476, 4
    %v9478 = vrot.slane %v8977, 5
    %v9479 = vsel %vm1186, %v9477, %v9478
    %v9480 = vrot.slane %v9402, 5
    %v9481 = vrot.slane %v9480, 4
    %v9482 = vrot.slane %v8979, 5
    %v9483 = vsel %vm1186, %v9481, %v9482
    %v9484 = vrot.slane %v9403, 5
    %v9485 = vrot.slane %v9484, 4
    %v9486 = vrot.slane %v8981, 5
    %v9487 = vsel %vm1186, %v9485, %v9486
    %v9488 = vrot.slane %v9404, 5
    %v9489 = vrot.slane %v9488, 4
    %v9490 = vrot.slane %v8983, 5
    %v9491 = vsel %vm1186, %v9489, %v9490
    %v9492 = vrot.slane %v9405, 5
    %v9493 = vrot.slane %v9492, 4
    %v9494 = vrot.slane %v8985, 5
    %v9495 = vsel %vm1186, %v9493, %v9494
    %v9496 = vrot.slane %v9406, 5
    %v9497 = vrot.slane %v9496, 4
    %v9498 = vrot.slane %v8987, 5
    %v9499 = vsel %vm1186, %v9497, %v9498
    %v9500 = vrot.slane %v9407, 5
    %v9501 = vrot.slane %v9500, 4
    %v9502 = vrot.slane %v8989, 5
    %v9503 = vsel %vm1186, %v9501, %v9502
    %s9504 = scalar_lea.vmem [#allocation7], 128
    %v9505 = vld [vmem:[%s9504] sm:$0xf]
    %v9506 = vld [vmem:[%s9504 + $0x4] sm:$0xf]
    %v9507 = vld [vmem:[%s9504 + $0x8] sm:$0xf]
    %v9508 = vld [vmem:[%s9504 + $0xc] sm:$0xf]
    %v9509 = vunpack.c.l.b16 %v9443
    %v9510 = vunpack.c.l.b16 %v9447
    %v9511 = vunpack.c.l.b16 %v9451
    %v9512 = vunpack.c.l.b16 %v9455
    %v9513 = vunpack.c.l.b16 %v9459
    %v9514 = vunpack.c.l.b16 %v9463
    %v9515 = vunpack.c.l.b16 %v9467
    %v9516 = vunpack.c.l.b16 %v9471
    %v9517 = vunpack.c.l.b16 %v9475
    %v9518 = vunpack.c.l.b16 %v9479
    %v9519 = vunpack.c.l.b16 %v9483
    %v9520 = vunpack.c.l.b16 %v9487
    %v9521 = vunpack.c.l.b16 %v9491
    %v9522 = vunpack.c.l.b16 %v9495
    %v9523 = vunpack.c.l.b16 %v9499
    %v9524 = vunpack.c.l.b16 %v9503
    %v9525 = vpack.c.b16 %v9510, %v9509
    %v9526 = vpack.c.b16 %v9512, %v9511
    %v9527 = vpack.c.b16 %v9514, %v9513
    %v9528 = vpack.c.b16 %v9516, %v9515
    %v9529 = vpack.c.b16 %v9518, %v9517
    %v9530 = vpack.c.b16 %v9520, %v9519
    %v9531 = vpack.c.b16 %v9522, %v9521
    %v9532 = vpack.c.b16 %v9524, %v9523
    %v9537 = vunpack.c.l.b16 %v9505
    %v9538 = vunpack.c.l.b16 %v9506
    %v9539 = vunpack.c.l.b16 %v9507
    %v9540 = vunpack.c.l.b16 %v9508
    %v9541 = vpack.c.b16 %v9538, %v9537
    %v9542 = vpack.c.b16 %v9540, %v9539
    %v9546 = vsel %vm841, %v9525, 0
    %v9549 = vsel %vm841, %v9526, 0
    %v9552 = vsel %vm841, %v9527, 0
    %v9555 = vsel %vm841, %v9528, 0
    %v9558 = vsel %vm841, %v9529, 0
    %v9561 = vsel %vm841, %v9530, 0
    %v9564 = vsel %vm841, %v9531, 0
    %v9567 = vsel %vm841, %v9532, 0
    %9569 = vmatprep.subr.bf16.mxu0 0
    %9570 = vmatpush1.bf16.msra.mxu0 0
    %9571 = vmatprep.subr.bf16.mxu0 0
    %9572 = vmatpush1.bf16.msra.mxu0 0
    %9573 = vmatprep.subr.bf16.mxu0 0
    %9574 = vmatpush1.bf16.msra.mxu0 0
    %9575 = vmatprep.subr.bf16.mxu0 0
    %9576 = vmatpush1.bf16.msra.mxu0 0
    %9577 = vmatprep.subr.bf16.mxu0 0
    %9578 = vmatpush1.bf16.msra.mxu0 0
    %9579 = vmatprep.subr.bf16.mxu0 0
    %9580 = vmatpush1.bf16.msra.mxu0 0
    %9581 = vmatprep.subr.bf16.mxu0 0
    %9582 = vmatpush1.bf16.msra.mxu0 %v9542
    %9583 = vmatprep.subr.bf16.mxu0 0
    %9584 = vmatpush1.bf16.msra.mxu0 %v9541
    %9585 = vmatprep.subr.bf16.mxu0 0
    %9586 = vmatpush2.bf16.msra.mxu0 0
    %9587 = vmatprep.subr.bf16.mxu0 0
    %9588 = vmatpush2.bf16.msra.mxu0 0
    %9589 = vmatprep.subr.bf16.mxu0 0
    %9590 = vmatpush2.bf16.msra.mxu0 0
    %9591 = vmatprep.subr.bf16.mxu0 0
    %9592 = vmatpush2.bf16.msra.mxu0 0
    %9593 = vmatprep.subr.bf16.mxu0 0
    %9594 = vmatpush2.bf16.msra.mxu0 0
    %9595 = vmatprep.subr.bf16.mxu0 0
    %9596 = vmatpush2.bf16.msra.mxu0 0
    %9597 = vmatprep.subr.bf16.mxu0 0
    %9598 = vmatpush2.bf16.msra.mxu0 0
    %9599 = vmatprep.subr.bf16.mxu0 0
    %9600 = vmatpush2.bf16.msra.mxu0 0
    %9601 = vmatprep.mubr.bf16.mxu0 0
    %9602 = vmatmul.mubr.bf16.gmra.mxu0 %v9546
    %v9603 = vpop.f32.mrf.mxu0
    %v9604 = vadd.f32 0.0, %v9603
    %v9605 = vpop.f32.mrf.mxu0
    %v9606 = vpop.f32.mrf.mxu0
    %v9607 = vadd.f32 0.0, %v9606
    %v9608 = vpop.f32.mrf.mxu0
    %9609 = vmatprep.mubr.bf16.mxu0 0
    %9610 = vmatmul.mubr.bf16.gmra.mxu0 %v9549
    %v9611 = vpop.f32.mrf.mxu0
    %v9612 = vadd.f32 0.0, %v9611
    %v9613 = vpop.f32.mrf.mxu0
    %v9614 = vpop.f32.mrf.mxu0
    %v9615 = vadd.f32 0.0, %v9614
    %v9616 = vpop.f32.mrf.mxu0
    %9617 = vmatprep.mubr.bf16.mxu0 0
    %9618 = vmatmul.mubr.bf16.gmra.mxu0 %v9552
    %v9619 = vpop.f32.mrf.mxu0
    %v9620 = vadd.f32 0.0, %v9619
    %v9621 = vpop.f32.mrf.mxu0
    %v9622 = vpop.f32.mrf.mxu0
    %v9623 = vadd.f32 0.0, %v9622
    %v9624 = vpop.f32.mrf.mxu0
    %9625 = vmatprep.mubr.bf16.mxu0 0
    %9626 = vmatmul.mubr.bf16.gmra.mxu0 %v9555
    %v9627 = vpop.f32.mrf.mxu0
    %v9628 = vadd.f32 0.0, %v9627
    %v9629 = vpop.f32.mrf.mxu0
    %v9630 = vpop.f32.mrf.mxu0
    %v9631 = vadd.f32 0.0, %v9630
    %v9632 = vpop.f32.mrf.mxu0
    %9633 = vmatprep.mubr.bf16.mxu0 0
    %9634 = vmatmul.mubr.bf16.gmra.mxu0 %v9558
    %v9635 = vpop.f32.mrf.mxu0
    %v9636 = vadd.f32 0.0, %v9635
    %v9637 = vpop.f32.mrf.mxu0
    %v9638 = vpop.f32.mrf.mxu0
    %v9639 = vadd.f32 0.0, %v9638
    %v9640 = vpop.f32.mrf.mxu0
    %9641 = vmatprep.mubr.bf16.mxu0 0
    %9642 = vmatmul.mubr.bf16.gmra.mxu0 %v9561
    %v9643 = vpop.f32.mrf.mxu0
    %v9644 = vadd.f32 0.0, %v9643
    %v9645 = vpop.f32.mrf.mxu0
    %v9646 = vpop.f32.mrf.mxu0
    %v9647 = vadd.f32 0.0, %v9646
    %v9648 = vpop.f32.mrf.mxu0
    %9649 = vmatprep.mubr.bf16.mxu0 0
    %9650 = vmatmul.mubr.bf16.gmra.mxu0 %v9564
    %v9651 = vpop.f32.mrf.mxu0
    %v9652 = vadd.f32 0.0, %v9651
    %v9653 = vpop.f32.mrf.mxu0
    %v9654 = vpop.f32.mrf.mxu0
    %v9655 = vadd.f32 0.0, %v9654
    %v9656 = vpop.f32.mrf.mxu0
    %9657 = vmatprep.mubr.bf16.mxu0 0
    %9658 = vmatmul.mubr.bf16.gmra.mxu0 %v9567
    %v9659 = vpop.f32.mrf.mxu0
    %v9660 = vadd.f32 0.0, %v9659
    %v9661 = vpop.f32.mrf.mxu0
    %v9662 = vpop.f32.mrf.mxu0
    %v9663 = vadd.f32 0.0, %v9662
    %v9664 = vpop.f32.mrf.mxu0
    %9665 = vdwg.mxu0
    %v9666 = vadd.f32 %v9376, %v9604
    %v9667 = vadd.f32 %v9377, %v9607
    %v9668 = vadd.f32 %v9378, %v9612
    %v9669 = vadd.f32 %v9379, %v9615
    %v9670 = vadd.f32 %v9380, %v9620
    %v9671 = vadd.f32 %v9381, %v9623
    %v9672 = vadd.f32 %v9382, %v9628
    %v9673 = vadd.f32 %v9383, %v9631
    %v9674 = vadd.f32 %v9384, %v9636
    %v9675 = vadd.f32 %v9385, %v9639
    %v9676 = vadd.f32 %v9386, %v9644
    %v9677 = vadd.f32 %v9387, %v9647
    %v9678 = vadd.f32 %v9388, %v9652
    %v9679 = vadd.f32 %v9389, %v9655
    %v9680 = vadd.f32 %v9390, %v9660
    %v9681 = vadd.f32 %v9391, %v9663
    %v9682 = vld [vmem:[%s4] sm:$0x1]
    %v9684 = vlaneseq
    %v9685 = vshrl.u32 %v9684, 7
    %v9686 = vsub.s32 0, %v9685
    %v9687 = vrot.slane %v9682, %v9686
    %v9689 = vadd.f32 %v9666, %v9687
    %v9690 = vadd.f32 %v9667, %v9687
    %v9691 = vadd.f32 %v9668, %v9687
    %v9692 = vadd.f32 %v9669, %v9687
    %v9693 = vadd.f32 %v9670, %v9687
    %v9694 = vadd.f32 %v9671, %v9687
    %v9695 = vadd.f32 %v9672, %v9687
    %v9696 = vadd.f32 %v9673, %v9687
    %v9697 = vadd.f32 %v9674, %v9687
    %v9698 = vadd.f32 %v9675, %v9687
    %v9699 = vadd.f32 %v9676, %v9687
    %v9700 = vadd.f32 %v9677, %v9687
    %v9701 = vadd.f32 %v9678, %v9687
    %v9702 = vadd.f32 %v9679, %v9687
    %v9703 = vadd.f32 %v9680, %v9687
    %v9704 = vadd.f32 %v9681, %v9687
    %v9705 = vsub.f32 0.0, %v9689
    %v9706 = vsub.f32 0.0, %v9690
    %v9707 = vsub.f32 0.0, %v9691
    %v9708 = vsub.f32 0.0, %v9692
    %v9709 = vsub.f32 0.0, %v9693
    %v9710 = vsub.f32 0.0, %v9694
    %v9711 = vsub.f32 0.0, %v9695
    %v9712 = vsub.f32 0.0, %v9696
    %v9713 = vsub.f32 0.0, %v9697
    %v9714 = vsub.f32 0.0, %v9698
    %v9715 = vsub.f32 0.0, %v9699
    %v9716 = vsub.f32 0.0, %v9700
    %v9717 = vsub.f32 0.0, %v9701
    %v9718 = vsub.f32 0.0, %v9702
    %v9719 = vsub.f32 0.0, %v9703
    %v9720 = vsub.f32 0.0, %v9704
    %v9721 = vmul.f32 %v9705, 1.442695
    %v9722 = vpow.pop %v9721
    %v9723 = vmul.f32 %v9706, 1.442695
    %v9724 = vpow.pop %v9723
    %v9725 = vmul.f32 %v9707, 1.442695
    %v9726 = vpow.pop %v9725
    %v9727 = vmul.f32 %v9708, 1.442695
    %v9728 = vpow.pop %v9727
    %v9729 = vmul.f32 %v9709, 1.442695
    %v9730 = vpow.pop %v9729
    %v9731 = vmul.f32 %v9710, 1.442695
    %v9732 = vpow.pop %v9731
    %v9733 = vmul.f32 %v9711, 1.442695
    %v9734 = vpow.pop %v9733
    %v9735 = vmul.f32 %v9712, 1.442695
    %v9736 = vpow.pop %v9735
    %v9737 = vmul.f32 %v9713, 1.442695
    %v9738 = vpow.pop %v9737
    %v9739 = vmul.f32 %v9714, 1.442695
    %v9740 = vpow.pop %v9739
    %v9741 = vmul.f32 %v9715, 1.442695
    %v9742 = vpow.pop %v9741
    %v9743 = vmul.f32 %v9716, 1.442695
    %v9744 = vpow.pop %v9743
    %v9745 = vmul.f32 %v9717, 1.442695
    %v9746 = vpow.pop %v9745
    %v9747 = vmul.f32 %v9718, 1.442695
    %v9748 = vpow.pop %v9747
    %v9749 = vmul.f32 %v9719, 1.442695
    %v9750 = vpow.pop %v9749
    %v9751 = vmul.f32 %v9720, 1.442695
    %v9752 = vpow.pop %v9751
    %v9753 = vadd.f32 %v9722, 1.0
    %v9754 = vadd.f32 %v9724, 1.0
    %v9755 = vadd.f32 %v9726, 1.0
    %v9756 = vadd.f32 %v9728, 1.0
    %v9757 = vadd.f32 %v9730, 1.0
    %v9758 = vadd.f32 %v9732, 1.0
    %v9759 = vadd.f32 %v9734, 1.0
    %v9760 = vadd.f32 %v9736, 1.0
    %v9761 = vadd.f32 %v9738, 1.0
    %v9762 = vadd.f32 %v9740, 1.0
    %v9763 = vadd.f32 %v9742, 1.0
    %v9764 = vadd.f32 %v9744, 1.0
    %v9765 = vadd.f32 %v9746, 1.0
    %v9766 = vadd.f32 %v9748, 1.0
    %v9767 = vadd.f32 %v9750, 1.0
    %v9768 = vadd.f32 %v9752, 1.0
    %v9769 = vrcp.pop %v9753
    %v9770 = vmul.f32 1.0, %v9769
    %v9771 = vrcp.pop %v9754
    %v9772 = vmul.f32 1.0, %v9771
    %v9773 = vrcp.pop %v9755
    %v9774 = vmul.f32 1.0, %v9773
    %v9775 = vrcp.pop %v9756
    %v9776 = vmul.f32 1.0, %v9775
    %v9777 = vrcp.pop %v9757
    %v9778 = vmul.f32 1.0, %v9777
    %v9779 = vrcp.pop %v9758
    %v9780 = vmul.f32 1.0, %v9779
    %v9781 = vrcp.pop %v9759
    %v9782 = vmul.f32 1.0, %v9781
    %v9783 = vrcp.pop %v9760
    %v9784 = vmul.f32 1.0, %v9783
    %v9785 = vrcp.pop %v9761
    %v9786 = vmul.f32 1.0, %v9785
    %v9787 = vrcp.pop %v9762
    %v9788 = vmul.f32 1.0, %v9787
    %v9789 = vrcp.pop %v9763
    %v9790 = vmul.f32 1.0, %v9789
    %v9791 = vrcp.pop %v9764
    %v9792 = vmul.f32 1.0, %v9791
    %v9793 = vrcp.pop %v9765
    %v9794 = vmul.f32 1.0, %v9793
    %v9795 = vrcp.pop %v9766
    %v9796 = vmul.f32 1.0, %v9795
    %v9797 = vrcp.pop %v9767
    %v9798 = vmul.f32 1.0, %v9797
    %v9799 = vrcp.pop %v9768
    %v9800 = vmul.f32 1.0, %v9799
    %9801 = vst [vmem:[%s5] sm:$0xff] %v9770
    %9802 = vst [vmem:[%s5 + $0x8] sm:$0xff] %v9772
    %9803 = vst [vmem:[%s5 + $0x10] sm:$0xff] %v9774
    %9804 = vst [vmem:[%s5 + $0x18] sm:$0xff] %v9776
    %9805 = vst [vmem:[%s5 + $0x20] sm:$0xff] %v9778
    %9806 = vst [vmem:[%s5 + $0x28] sm:$0xff] %v9780
    %9807 = vst [vmem:[%s5 + $0x30] sm:$0xff] %v9782
    %9808 = vst [vmem:[%s5 + $0x38] sm:$0xff] %v9784
    %9809 = vst [vmem:[%s5 + $0x40] sm:$0xff] %v9786
    %9810 = vst [vmem:[%s5 + $0x48] sm:$0xff] %v9788
    %9811 = vst [vmem:[%s5 + $0x50] sm:$0xff] %v9790
    %9812 = vst [vmem:[%s5 + $0x58] sm:$0xff] %v9792
    %9813 = vst [vmem:[%s5 + $0x60] sm:$0xff] %v9794
    %9814 = vst [vmem:[%s5 + $0x68] sm:$0xff] %v9796
    %9815 = vst [vmem:[%s5 + $0x70] sm:$0xff] %v9798
    %9816 = vst [vmem:[%s5 + $0x78] sm:$0xff] %v9800
    // Predicated region
    $region34: #{classification_model_forward.1} parent=1 // pred_check
      _
    $region35: #{classification_model_forward.1} parent=1 // pred_check_branch
      %9818 = sbr.rel (0) target = $region37
    $region36: #{classification_model_forward.1} parent=1 // pred_region
      _
    $region37: #{classification_model_forward.1} parent=1 // pred_fallthru
      _
    // Predicated region
    $region38: #{classification_model_forward.1} parent=1 // pred_check
      _
    $region39: #{classification_model_forward.1} parent=1 // pred_check_branch
      %9820 = sbr.rel (0) target = $region41
    $region40: #{classification_model_forward.1} parent=1 // pred_region
      _
    $region41: #{classification_model_forward.1} parent=1 // pred_fallthru
      _
    %9821 = vsyncpa [#allocation4], 1
    %9822 = vsyncpa [#allocation6], 1

</llo_original>
